<compile_context>
chip_gen: v6e
topology: v6e:2x2x1
jax: 0.10.0
libtpu: 0.0.40
codegen_flags: <defaults>
</compile_context>

<pallas_src>
import functools

import jax
import jax.numpy as jnp
from jax import lax
from jax.experimental import pallas as pl
from jax.experimental.pallas import tpu as pltpu


# ----------------------------- fused forward kernel -------------------------
def _fused_forward_kernel(head,
                          doc_ref,
                          w_doc_ref, b_doc_ref,
                          w_ih_ref, b_ih_ref,
                          whh_f_ref, bhh_f_ref,
                          whh_b_ref, bhh_b_ref,
                          w_gout_ref, b_gout_ref,
                          cw1_ref, cb1_ref, cw2_ref, cb2_ref,
                          mh1_wo_ref, mh1_bo_ref, mh1_lg_ref, mh1_lb_ref,
                          mh2_wqkv_ref, mh2_bqkv_ref,
                          mh2_wo_ref, mh2_bo_ref, mh2_lg_ref, mh2_lb_ref,
                          w_aout_ref, b_aout_ref,
                          out_ref,
                          of_ref, ob_ref):
    S = doc_ref.shape[1]
    E = doc_ref.shape[2]
    T = out_ref.shape[2]
    H = E
    D = E // head
    # Scale is hard-coded to 1/sqrt(768) to match the PyTorch reference
    # (AttentionModule divides by 768 ** 0.5 regardless of head dim).
    scale = 1.0 / (768.0 ** 0.5)

    x = doc_ref[0]                                                   # (S, E)

    # ---- fused per-token matmul on doc: [g_lin1 | mh1 Q | K | V | gate(3T)]
    fused = (jnp.dot(x, w_doc_ref[...], preferred_element_type=jnp.float32)
             + b_doc_ref[...])                                       # (S, 4E+3T)
    g_in = fused[:, 0:E]                # g_model linear_1 output (GRU input)
    qkv1 = fused[:, E:4 * E]            # mh1 q|k|v
    gates = fused[:, 4 * E:4 * E + 3 * T]   # top-level gating weights

    # -------------------------- g branch: BiGRU ----------------------------
    gx = (jnp.dot(g_in, w_ih_ref[...], preferred_element_type=jnp.float32)
          + b_ih_ref[...])                                           # (S, 6H)
    gx_f = gx[:, 0:3 * H]
    gx_b = gx[:, 3 * H:6 * H]
    whf = whh_f_ref[...]
    bhf = bhh_f_ref[...]
    whb = whh_b_ref[...]
    bhb = bhh_b_ref[...]

    def gru_cell(grow, h, wh, bh):
        gh = jnp.dot(h, wh, preferred_element_type=jnp.float32) + bh
        r = jax.nn.sigmoid(grow[:, 0:H] + gh[:, 0:H])
        z = jax.nn.sigmoid(grow[:, H:2 * H] + gh[:, H:2 * H])
        n = jnp.tanh(grow[:, 2 * H:3 * H] + r * gh[:, 2 * H:3 * H])
        return (1.0 - z) * n + z * h

    hf = jnp.zeros((1, H), jnp.float32)     # zero init (reference never passes
    hb = jnp.zeros((1, H), jnp.float32)     # init_hidden to nn.GRU)
    for i in range(S):                      # static unroll, fwd/bwd interleaved
        tb = S - 1 - i
        hf = gru_cell(gx_f[i:i + 1, :], hf, whf, bhf)
        hb = gru_cell(gx_b[tb:tb + 1, :], hb, whb, bhb)
        of_ref[pl.ds(i, 1), :] = hf
        ob_ref[pl.ds(tb, 1), :] = hb

    wg = w_gout_ref[...]                    # (2H, T): rows [0:H]=fwd, [H:2H]=bwd
    g_doc = (jnp.dot(jnp.tanh(of_ref[...]), wg[0:H, :],
                     preferred_element_type=jnp.float32)
             + jnp.dot(jnp.tanh(ob_ref[...]), wg[H:2 * H, :],
                       preferred_element_type=jnp.float32)
             + b_gout_ref[...])                                      # (S, T)

    # ------------------ c branch: conv1d(k3,p1) + ReLU + conv1d -------------
    # padding=1 realized via shift matrices (exact, pure MXU work)
    r_idx = lax.broadcasted_iota(jnp.int32, (S, S), 0)
    c_idx = lax.broadcasted_iota(jnp.int32, (S, S), 1)
    sdown = (r_idx == c_idx + 1).astype(jnp.float32)   # y[t] = x[t-1], y[0]=0
    sup = (r_idx + 1 == c_idx).astype(jnp.float32)     # y[t] = x[t+1], y[S-1]=0

    def conv3(xin, w_ref, b_ref):
        xprev = jnp.dot(sdown, xin, preferred_element_type=jnp.float32)
        xnext = jnp.dot(sup, xin, preferred_element_type=jnp.float32)
        return (jnp.dot(xprev, w_ref[0], preferred_element_type=jnp.float32)
                + jnp.dot(xin, w_ref[1], preferred_element_type=jnp.float32)
                + jnp.dot(xnext, w_ref[2], preferred_element_type=jnp.float32)
                + b_ref[...])

    h1 = jnp.maximum(conv3(x, cw1_ref, cb1_ref), 0.0)   # (S, 256), stays in VMEM
    c_doc = conv3(h1, cw2_ref, cb2_ref)                  # (S, T)

    # ------------------ attention branch: 2x MultiHead + Linear -------------
    def multihead(res, qkv, wo_ref, bo_ref, lg_ref, lb_ref):
        q = qkv[:, 0:E]
        k = qkv[:, E:2 * E]
        v = qkv[:, 2 * E:3 * E]
        wo = wo_ref[...]
        o = jnp.zeros((S, E), jnp.float32)
        for h in range(head):               # static unroll over heads
            lo = h * D
            qh = q[:, lo:lo + D]
            kh = k[:, lo:lo + D]
            vh = v[:, lo:lo + D]
            s = jnp.dot(qh, kh.T, preferred_element_type=jnp.float32) * scale
            s = s - jnp.max(s, axis=-1, keepdims=True)
            p = jnp.exp(s)
            p = p / jnp.sum(p, axis=-1, keepdims=True)
            ah = jnp.dot(p, vh, preferred_element_type=jnp.float32)
            # head-merge + linear_o fused: sum_h ah @ Wo[h*D:(h+1)*D, :]
            o = o + jnp.dot(ah, wo[lo:lo + D, :],
                            preferred_element_type=jnp.float32)
        y = res + o + bo_ref[...]
        mu = jnp.mean(y, axis=-1, keepdims=True)
        yc = y - mu
        var = jnp.mean(yc * yc, axis=-1, keepdims=True)
        return yc * lax.rsqrt(var + 1e-5) * lg_ref[...] + lb_ref[...]

    a1 = multihead(x, qkv1, mh1_wo_ref, mh1_bo_ref, mh1_lg_ref, mh1_lb_ref)
    qkv2 = (jnp.dot(a1, mh2_wqkv_ref[...], preferred_element_type=jnp.float32)
            + mh2_bqkv_ref[...])
    a2 = multihead(a1, qkv2, mh2_wo_ref, mh2_bo_ref, mh2_lg_ref, mh2_lb_ref)
    a_doc = (jnp.dot(a2, w_aout_ref[...], preferred_element_type=jnp.float32)
             + b_aout_ref[...])                                      # (S, T)

    # ------------------------------ gate & sum ------------------------------
    out = (g_doc * gates[:, 0:T]
           + c_doc * gates[:, T:2 * T]
           + a_doc * gates[:, 2 * T:3 * T])
    out_ref[0] = out


# ------------------------------ model forward -------------------------------
def forward(params, doc, init_hidden):
    # init_hidden kept for signature parity: the reference forward never passes
    # it to nn.GRU, so a zero initial state is used (PyTorch's default).
    del init_hidden
    B, S, E = doc.shape
    T = params["num_tags"]
    head = params["head"]
    H = E

    # ---- fuse same-input linear weights (wider MXU matmuls, fewer pushes)
    w_doc = jnp.concatenate([params["g_lin1_w"], params["mh1_q_w"],
                             params["mh1_k_w"], params["mh1_v_w"],
                             params["top_w"]], axis=1)               # (E, 4E+3T)
    b_doc = jnp.concatenate([params["g_lin1_b"], params["mh1_q_b"],
                             params["mh1_k_b"], params["mh1_v_b"],
                             params["top_b"]], axis=0).reshape(1, -1)
    w_ih = jnp.concatenate([params["gru_wih_f"], params["gru_wih_b"]],
                           axis=1)                                    # (E, 6H)
    b_ih = jnp.concatenate([params["gru_bih_f"], params["gru_bih_b"]],
                           axis=0).reshape(1, -1)
    mh2_wqkv = jnp.concatenate([params["mh2_q_w"], params["mh2_k_w"],
                                params["mh2_v_w"]], axis=1)           # (E, 3E)
    mh2_bqkv = jnp.concatenate([params["mh2_q_b"], params["mh2_k_b"],
                                params["mh2_v_b"]], axis=0).reshape(1, -1)

    weight_args = (
        w_doc, b_doc, w_ih, b_ih,
        params["gru_whh_f"], params["gru_bhh_f"].reshape(1, -1),
        params["gru_whh_b"], params["gru_bhh_b"].reshape(1, -1),
        params["g_out_w"], params["g_out_b"].reshape(1, -1),
        params["conv1_w"], params["conv1_b"].reshape(1, -1),
        params["conv2_w"], params["conv2_b"].reshape(1, -1),
        params["mh1_o_w"], params["mh1_o_b"].reshape(1, -1),
        params["mh1_ln_g"].reshape(1, -1), params["mh1_ln_b"].reshape(1, -1),
        mh2_wqkv, mh2_bqkv,
        params["mh2_o_w"], params["mh2_o_b"].reshape(1, -1),
        params["mh2_ln_g"].reshape(1, -1), params["mh2_ln_b"].reshape(1, -1),
        params["att_out_w"], params["att_out_b"].reshape(1, -1),
    )

    def full_spec(arr):
        nd = arr.ndim
        return pl.BlockSpec(arr.shape, lambda b: (0,) * nd)

    in_specs = ([pl.BlockSpec((1, S, E), lambda b: (b, 0, 0))]
                + [full_spec(a) for a in weight_args])

    out = pl.pallas_call(
        functools.partial(_fused_forward_kernel, head),
        out_shape=jax.ShapeDtypeStruct((B, S, T), jnp.float32),
        grid=(B,),
        in_specs=in_specs,
        out_specs=pl.BlockSpec((1, S, T), lambda b: (b, 0, 0)),
        scratch_shapes=[pltpu.VMEM((S, H), jnp.float32),    # fwd GRU outputs
                        pltpu.VMEM((S, H), jnp.float32)],   # bwd GRU outputs
        compiler_params=pltpu.CompilerParams(
            dimension_semantics=("parallel",)),              # 2 TCs on v7x
    )(doc, *weight_args)
    return out


# ------------------------------ parameters ----------------------------------
def init_params(key, emb_size, num_tags, head):
    E, T, H = emb_size, num_tags, emb_size
    keys = iter(jax.random.split(key, 64))

    def nrm(shape, scale=0.05):
        return scale * jax.random.normal(next(keys), shape, jnp.float32)

    p = {"head": head, "num_tags": num_tags}
    # g_model (SentenceTaggingModel, attention=False)
    p["g_lin1_w"] = nrm((E, E)); p["g_lin1_b"] = nrm((E,))
    p["gru_wih_f"] = nrm((E, 3 * H)); p["gru_whh_f"] = nrm((H, 3 * H))
    p["gru_bih_f"] = nrm((3 * H,)); p["gru_bhh_f"] = nrm((3 * H,))
    p["gru_wih_b"] = nrm((E, 3 * H)); p["gru_whh_b"] = nrm((H, 3 * H))
    p["gru_bih_b"] = nrm((3 * H,)); p["gru_bhh_b"] = nrm((3 * H,))
    p["g_out_w"] = nrm((2 * H, T)); p["g_out_b"] = nrm((T,))
    # c_model (SentenceFCNTaggingModel) — 256 hidden channels hard-coded
    p["conv1_w"] = nrm((3, E, 256)); p["conv1_b"] = nrm((256,))
    p["conv2_w"] = nrm((3, 256, T)); p["conv2_b"] = nrm((T,))
    # SelfAttention: two MultiHead blocks + output linear
    for mh in ("mh1", "mh2"):
        for nm in ("q", "k", "v", "o"):
            p[f"{mh}_{nm}_w"] = nrm((E, E))
            p[f"{mh}_{nm}_b"] = nrm((E,))
        p[f"{mh}_ln_g"] = jnp.ones((E,), jnp.float32)
        p[f"{mh}_ln_b"] = jnp.zeros((E,), jnp.float32)
    p["att_out_w"] = nrm((E, T)); p["att_out_b"] = nrm((T,))
    # top-level gating linear: Linear(E, 3T)
    p["top_w"] = nrm((E, 3 * T)); p["top_b"] = nrm((3 * T,))
    return p


if __name__ == "__main__":
    B, S, E, T, HEAD = 2, 8, 32, 8, 8
    key = jax.random.PRNGKey(0)
    k_param, k_doc = jax.random.split(key)
    params = init_params(k_param, E, T, HEAD)

    doc = jax.random.normal(k_doc, (B, S, E), jnp.float32)
    # init_hidden matches nn.GRU(bidirectional) hidden shape; unused (see forward).
    init_hidden = jnp.zeros((2, B, E), jnp.float32)

    fwd = jax.jit(lambda d, h: forward(params, d, h))
    out = fwd(doc, init_hidden)
    jax.block_until_ready(out)
    assert out.shape == (B, S, T) and out.dtype == jnp.float32
    print("KERNEL_OK")
</pallas_src>

<mosaic_0001>
module attributes {stable_mosaic.version = 11 : i64} {
  func.func @_fused_forward_kernel(%arg0: i32, %arg1: memref<1x8x32xf32, #tpu.memory_space<vmem>>, %arg2: memref<32x152xf32, #tpu.memory_space<vmem>>, %arg3: memref<1x152xf32, #tpu.memory_space<vmem>>, %arg4: memref<32x192xf32, #tpu.memory_space<vmem>>, %arg5: memref<1x192xf32, #tpu.memory_space<vmem>>, %arg6: memref<32x96xf32, #tpu.memory_space<vmem>>, %arg7: memref<1x96xf32, #tpu.memory_space<vmem>>, %arg8: memref<32x96xf32, #tpu.memory_space<vmem>>, %arg9: memref<1x96xf32, #tpu.memory_space<vmem>>, %arg10: memref<64x8xf32, #tpu.memory_space<vmem>>, %arg11: memref<1x8xf32, #tpu.memory_space<vmem>>, %arg12: memref<3x32x256xf32, #tpu.memory_space<vmem>>, %arg13: memref<1x256xf32, #tpu.memory_space<vmem>>, %arg14: memref<3x256x8xf32, #tpu.memory_space<vmem>>, %arg15: memref<1x8xf32, #tpu.memory_space<vmem>>, %arg16: memref<32x32xf32, #tpu.memory_space<vmem>>, %arg17: memref<1x32xf32, #tpu.memory_space<vmem>>, %arg18: memref<1x32xf32, #tpu.memory_space<vmem>>, %arg19: memref<1x32xf32, #tpu.memory_space<vmem>>, %arg20: memref<32x96xf32, #tpu.memory_space<vmem>>, %arg21: memref<1x96xf32, #tpu.memory_space<vmem>>, %arg22: memref<32x32xf32, #tpu.memory_space<vmem>>, %arg23: memref<1x32xf32, #tpu.memory_space<vmem>>, %arg24: memref<1x32xf32, #tpu.memory_space<vmem>>, %arg25: memref<1x32xf32, #tpu.memory_space<vmem>>, %arg26: memref<32x8xf32, #tpu.memory_space<vmem>>, %arg27: memref<1x8xf32, #tpu.memory_space<vmem>>, %arg28: memref<1x8x8xf32, #tpu.memory_space<vmem>>, %arg29: memref<8x32xf32, #tpu.memory_space<vmem>>, %arg30: memref<8x32xf32, #tpu.memory_space<vmem>>) attributes {dimension_semantics = [#tpu.dimension_semantics<parallel>], iteration_bounds = array<i64: 2>, scalar_prefetch = 0 : i64, scratch_operands = 2 : i64, tpu.core_type = #tpu.core_type<tc>, window_params = [{transform_indices = @transform_0, window_bounds = array<i64: 1, 8, 32>}, {pipeline_mode = #tpu.pipeline_mode<synchronous>, transform_indices = @transform_1, window_bounds = array<i64: 32, 152>}, {pipeline_mode = #tpu.pipeline_mode<synchronous>, transform_indices = @transform_2, window_bounds = array<i64: 1, 152>}, {pipeline_mode = #tpu.pipeline_mode<synchronous>, transform_indices = @transform_3, window_bounds = array<i64: 32, 192>}, {pipeline_mode = #tpu.pipeline_mode<synchronous>, transform_indices = @transform_4, window_bounds = array<i64: 1, 192>}, {pipeline_mode = #tpu.pipeline_mode<synchronous>, transform_indices = @transform_5, window_bounds = array<i64: 32, 96>}, {pipeline_mode = #tpu.pipeline_mode<synchronous>, transform_indices = @transform_6, window_bounds = array<i64: 1, 96>}, {pipeline_mode = #tpu.pipeline_mode<synchronous>, transform_indices = @transform_7, window_bounds = array<i64: 32, 96>}, {pipeline_mode = #tpu.pipeline_mode<synchronous>, transform_indices = @transform_8, window_bounds = array<i64: 1, 96>}, {pipeline_mode = #tpu.pipeline_mode<synchronous>, transform_indices = @transform_9, window_bounds = array<i64: 64, 8>}, {pipeline_mode = #tpu.pipeline_mode<synchronous>, transform_indices = @transform_10, window_bounds = array<i64: 1, 8>}, {pipeline_mode = #tpu.pipeline_mode<synchronous>, transform_indices = @transform_11, window_bounds = array<i64: 3, 32, 256>}, {pipeline_mode = #tpu.pipeline_mode<synchronous>, transform_indices = @transform_12, window_bounds = array<i64: 1, 256>}, {pipeline_mode = #tpu.pipeline_mode<synchronous>, transform_indices = @transform_13, window_bounds = array<i64: 3, 256, 8>}, {pipeline_mode = #tpu.pipeline_mode<synchronous>, transform_indices = @transform_14, window_bounds = array<i64: 1, 8>}, {pipeline_mode = #tpu.pipeline_mode<synchronous>, transform_indices = @transform_15, window_bounds = array<i64: 32, 32>}, {pipeline_mode = #tpu.pipeline_mode<synchronous>, transform_indices = @transform_16, window_bounds = array<i64: 1, 32>}, {pipeline_mode = #tpu.pipeline_mode<synchronous>, transform_indices = @transform_17, window_bounds = array<i64: 1, 32>}, {pipeline_mode = #tpu.pipeline_mode<synchronous>, transform_indices = @transform_18, window_bounds = array<i64: 1, 32>}, {pipeline_mode = #tpu.pipeline_mode<synchronous>, transform_indices = @transform_19, window_bounds = array<i64: 32, 96>}, {pipeline_mode = #tpu.pipeline_mode<synchronous>, transform_indices = @transform_20, window_bounds = array<i64: 1, 96>}, {pipeline_mode = #tpu.pipeline_mode<synchronous>, transform_indices = @transform_21, window_bounds = array<i64: 32, 32>}, {pipeline_mode = #tpu.pipeline_mode<synchronous>, transform_indices = @transform_22, window_bounds = array<i64: 1, 32>}, {pipeline_mode = #tpu.pipeline_mode<synchronous>, transform_indices = @transform_23, window_bounds = array<i64: 1, 32>}, {pipeline_mode = #tpu.pipeline_mode<synchronous>, transform_indices = @transform_24, window_bounds = array<i64: 1, 32>}, {pipeline_mode = #tpu.pipeline_mode<synchronous>, transform_indices = @transform_25, window_bounds = array<i64: 32, 8>}, {pipeline_mode = #tpu.pipeline_mode<synchronous>, transform_indices = @transform_26, window_bounds = array<i64: 1, 8>}, {transform_indices = @transform_27, window_bounds = array<i64: 1, 8, 8>}]} {
    %c0 = arith.constant 0 : index
    %c0_0 = arith.constant 0 : index
    %c0_1 = arith.constant 0 : index
    %0 = vector.load %arg1[%c0, %c0_0, %c0_1] : memref<1x8x32xf32, #tpu.memory_space<vmem>>, vector<1x8x32xf32>
    %1 = vector.shape_cast %0 : vector<1x8x32xf32> to vector<8x32xf32>
    %c0_2 = arith.constant 0 : index
    %c0_3 = arith.constant 0 : index
    %2 = vector.load %arg2[%c0_2, %c0_3] : memref<32x152xf32, #tpu.memory_space<vmem>>, vector<32x152xf32>
    %cst = arith.constant dense<0.000000e+00> : vector<8x152xf32>
    %3 = tpu.matmul %1, %2, %cst {dimension_numbers = #tpu.dot_dimension_numbers<[1], [0], [0], [1], [0, 0, 1, 1], [], []>} : vector<8x32xf32>, vector<32x152xf32>, vector<8x152xf32> -> vector<8x152xf32>
    %c0_4 = arith.constant 0 : index
    %c0_5 = arith.constant 0 : index
    %4 = vector.load %arg3[%c0_4, %c0_5] : memref<1x152xf32, #tpu.memory_space<vmem>>, vector<1x152xf32>
    %5 = vector.broadcast %4 : vector<1x152xf32> to vector<8x152xf32>
    %6 = arith.addf %3, %5 : vector<8x152xf32>
    %7 = vector.extract_strided_slice %6 {offsets = [0, 0], sizes = [8, 32], strides = [1, 1]} : vector<8x152xf32> to vector<8x32xf32>
    %8 = vector.extract_strided_slice %6 {offsets = [0, 32], sizes = [8, 96], strides = [1, 1]} : vector<8x152xf32> to vector<8x96xf32>
    %9 = vector.extract_strided_slice %6 {offsets = [0, 128], sizes = [8, 24], strides = [1, 1]} : vector<8x152xf32> to vector<8x24xf32>
    %c0_6 = arith.constant 0 : index
    %c0_7 = arith.constant 0 : index
    %10 = vector.load %arg4[%c0_6, %c0_7] : memref<32x192xf32, #tpu.memory_space<vmem>>, vector<32x192xf32>
    %cst_8 = arith.constant dense<0.000000e+00> : vector<8x192xf32>
    %11 = tpu.matmul %7, %10, %cst_8 {dimension_numbers = #tpu.dot_dimension_numbers<[1], [0], [0], [1], [0, 0, 1, 1], [], []>} : vector<8x32xf32>, vector<32x192xf32>, vector<8x192xf32> -> vector<8x192xf32>
    %c0_9 = arith.constant 0 : index
    %c0_10 = arith.constant 0 : index
    %12 = vector.load %arg5[%c0_9, %c0_10] : memref<1x192xf32, #tpu.memory_space<vmem>>, vector<1x192xf32>
    %13 = vector.broadcast %12 : vector<1x192xf32> to vector<8x192xf32>
    %14 = arith.addf %11, %13 : vector<8x192xf32>
    %15 = vector.extract_strided_slice %14 {offsets = [0, 0], sizes = [8, 96], strides = [1, 1]} : vector<8x192xf32> to vector<8x96xf32>
    %16 = vector.extract_strided_slice %14 {offsets = [0, 96], sizes = [8, 96], strides = [1, 1]} : vector<8x192xf32> to vector<8x96xf32>
    %c0_11 = arith.constant 0 : index
    %c0_12 = arith.constant 0 : index
    %17 = vector.load %arg6[%c0_11, %c0_12] : memref<32x96xf32, #tpu.memory_space<vmem>>, vector<32x96xf32>
    %c0_13 = arith.constant 0 : index
    %c0_14 = arith.constant 0 : index
    %18 = vector.load %arg7[%c0_13, %c0_14] : memref<1x96xf32, #tpu.memory_space<vmem>>, vector<1x96xf32>
    %c0_15 = arith.constant 0 : index
    %c0_16 = arith.constant 0 : index
    %19 = vector.load %arg8[%c0_15, %c0_16] : memref<32x96xf32, #tpu.memory_space<vmem>>, vector<32x96xf32>
    %c0_17 = arith.constant 0 : index
    %c0_18 = arith.constant 0 : index
    %20 = vector.load %arg9[%c0_17, %c0_18] : memref<1x96xf32, #tpu.memory_space<vmem>>, vector<1x96xf32>
    %cst_19 = arith.constant 0.000000e+00 : f32
    %21 = vector.broadcast %cst_19 : f32 to vector<1x32xf32>
    %cst_20 = arith.constant 0.000000e+00 : f32
    %22 = vector.broadcast %cst_20 : f32 to vector<1x32xf32>
    %23 = vector.extract_strided_slice %15 {offsets = [0, 0], sizes = [1, 96], strides = [1, 1]} : vector<8x96xf32> to vector<1x96xf32>
    %cst_21 = arith.constant dense<0.000000e+00> : vector<1x96xf32>
    %24 = tpu.matmul %21, %17, %cst_21 {dimension_numbers = #tpu.dot_dimension_numbers<[1], [0], [0], [1], [0, 0, 1, 1], [], []>} : vector<1x32xf32>, vector<32x96xf32>, vector<1x96xf32> -> vector<1x96xf32>
    %25 = arith.addf %24, %18 : vector<1x96xf32>
    %26 = vector.extract_strided_slice %23 {offsets = [0, 0], sizes = [1, 32], strides = [1, 1]} : vector<1x96xf32> to vector<1x32xf32>
    %27 = vector.extract_strided_slice %25 {offsets = [0, 0], sizes = [1, 32], strides = [1, 1]} : vector<1x96xf32> to vector<1x32xf32>
    %28 = arith.addf %26, %27 : vector<1x32xf32>
    %29 = arith.negf %28 : vector<1x32xf32>
    %30 = math.exp %29 : vector<1x32xf32>
    %cst_22 = arith.constant 1.000000e+00 : f32
    %31 = vector.broadcast %cst_22 : f32 to vector<1x32xf32>
    %32 = arith.addf %31, %30 : vector<1x32xf32>
    %33 = arith.divf %31, %32 : vector<1x32xf32>
    %34 = vector.extract_strided_slice %23 {offsets = [0, 32], sizes = [1, 32], strides = [1, 1]} : vector<1x96xf32> to vector<1x32xf32>
    %35 = vector.extract_strided_slice %25 {offsets = [0, 32], sizes = [1, 32], strides = [1, 1]} : vector<1x96xf32> to vector<1x32xf32>
    %36 = arith.addf %34, %35 : vector<1x32xf32>
    %37 = arith.negf %36 : vector<1x32xf32>
    %38 = math.exp %37 : vector<1x32xf32>
    %cst_23 = arith.constant 1.000000e+00 : f32
    %39 = vector.broadcast %cst_23 : f32 to vector<1x32xf32>
    %40 = arith.addf %39, %38 : vector<1x32xf32>
    %41 = arith.divf %39, %40 : vector<1x32xf32>
    %42 = vector.extract_strided_slice %23 {offsets = [0, 64], sizes = [1, 32], strides = [1, 1]} : vector<1x96xf32> to vector<1x32xf32>
    %43 = vector.extract_strided_slice %25 {offsets = [0, 64], sizes = [1, 32], strides = [1, 1]} : vector<1x96xf32> to vector<1x32xf32>
    %44 = arith.mulf %33, %43 : vector<1x32xf32>
    %45 = arith.addf %42, %44 : vector<1x32xf32>
    %46 = math.tanh %45 : vector<1x32xf32>
    %cst_24 = arith.constant 1.000000e+00 : f32
    %47 = vector.broadcast %cst_24 : f32 to vector<1x32xf32>
    %48 = arith.subf %47, %41 : vector<1x32xf32>
    %49 = arith.mulf %48, %46 : vector<1x32xf32>
    %50 = arith.mulf %41, %21 : vector<1x32xf32>
    %51 = arith.addf %49, %50 : vector<1x32xf32>
    %52 = vector.extract_strided_slice %16 {offsets = [7, 0], sizes = [1, 96], strides = [1, 1]} : vector<8x96xf32> to vector<1x96xf32>
    %cst_25 = arith.constant dense<0.000000e+00> : vector<1x96xf32>
    %53 = tpu.matmul %22, %19, %cst_25 {dimension_numbers = #tpu.dot_dimension_numbers<[1], [0], [0], [1], [0, 0, 1, 1], [], []>} : vector<1x32xf32>, vector<32x96xf32>, vector<1x96xf32> -> vector<1x96xf32>
    %54 = arith.addf %53, %20 : vector<1x96xf32>
    %55 = vector.extract_strided_slice %52 {offsets = [0, 0], sizes = [1, 32], strides = [1, 1]} : vector<1x96xf32> to vector<1x32xf32>
    %56 = vector.extract_strided_slice %54 {offsets = [0, 0], sizes = [1, 32], strides = [1, 1]} : vector<1x96xf32> to vector<1x32xf32>
    %57 = arith.addf %55, %56 : vector<1x32xf32>
    %58 = arith.negf %57 : vector<1x32xf32>
    %59 = math.exp %58 : vector<1x32xf32>
    %cst_26 = arith.constant 1.000000e+00 : f32
    %60 = vector.broadcast %cst_26 : f32 to vector<1x32xf32>
    %61 = arith.addf %60, %59 : vector<1x32xf32>
    %62 = arith.divf %60, %61 : vector<1x32xf32>
    %63 = vector.extract_strided_slice %52 {offsets = [0, 32], sizes = [1, 32], strides = [1, 1]} : vector<1x96xf32> to vector<1x32xf32>
    %64 = vector.extract_strided_slice %54 {offsets = [0, 32], sizes = [1, 32], strides = [1, 1]} : vector<1x96xf32> to vector<1x32xf32>
    %65 = arith.addf %63, %64 : vector<1x32xf32>
    %66 = arith.negf %65 : vector<1x32xf32>
    %67 = math.exp %66 : vector<1x32xf32>
    %cst_27 = arith.constant 1.000000e+00 : f32
    %68 = vector.broadcast %cst_27 : f32 to vector<1x32xf32>
    %69 = arith.addf %68, %67 : vector<1x32xf32>
    %70 = arith.divf %68, %69 : vector<1x32xf32>
    %71 = vector.extract_strided_slice %52 {offsets = [0, 64], sizes = [1, 32], strides = [1, 1]} : vector<1x96xf32> to vector<1x32xf32>
    %72 = vector.extract_strided_slice %54 {offsets = [0, 64], sizes = [1, 32], strides = [1, 1]} : vector<1x96xf32> to vector<1x32xf32>
    %73 = arith.mulf %62, %72 : vector<1x32xf32>
    %74 = arith.addf %71, %73 : vector<1x32xf32>
    %75 = math.tanh %74 : vector<1x32xf32>
    %cst_28 = arith.constant 1.000000e+00 : f32
    %76 = vector.broadcast %cst_28 : f32 to vector<1x32xf32>
    %77 = arith.subf %76, %70 : vector<1x32xf32>
    %78 = arith.mulf %77, %75 : vector<1x32xf32>
    %79 = arith.mulf %70, %22 : vector<1x32xf32>
    %80 = arith.addf %78, %79 : vector<1x32xf32>
    %c0_29 = arith.constant 0 : index
    %c0_30 = arith.constant 0 : index
    %81 = vector.load %arg29[%c0_29, %c0_30] : memref<8x32xf32, #tpu.memory_space<vmem>>, vector<1x32xf32>
    tpu.vector_store %arg29[%c0_29, %c0_30], %51 {strides = array<i32>} : memref<8x32xf32, #tpu.memory_space<vmem>>, vector<1x32xf32>,
    %c7 = arith.constant 7 : index
    %c0_31 = arith.constant 0 : index
    %82 = vector.load %arg30[%c7, %c0_31] : memref<8x32xf32, #tpu.memory_space<vmem>>, vector<1x32xf32>
    tpu.vector_store %arg30[%c7, %c0_31], %80 {strides = array<i32>} : memref<8x32xf32, #tpu.memory_space<vmem>>, vector<1x32xf32>,
    %83 = vector.extract_strided_slice %15 {offsets = [1, 0], sizes = [1, 96], strides = [1, 1]} : vector<8x96xf32> to vector<1x96xf32>
    %cst_32 = arith.constant dense<0.000000e+00> : vector<1x96xf32>
    %84 = tpu.matmul %51, %17, %cst_32 {dimension_numbers = #tpu.dot_dimension_numbers<[1], [0], [0], [1], [0, 0, 1, 1], [], []>} : vector<1x32xf32>, vector<32x96xf32>, vector<1x96xf32> -> vector<1x96xf32>
    %85 = arith.addf %84, %18 : vector<1x96xf32>
    %86 = vector.extract_strided_slice %83 {offsets = [0, 0], sizes = [1, 32], strides = [1, 1]} : vector<1x96xf32> to vector<1x32xf32>
    %87 = vector.extract_strided_slice %85 {offsets = [0, 0], sizes = [1, 32], strides = [1, 1]} : vector<1x96xf32> to vector<1x32xf32>
    %88 = arith.addf %86, %87 : vector<1x32xf32>
    %89 = arith.negf %88 : vector<1x32xf32>
    %90 = math.exp %89 : vector<1x32xf32>
    %cst_33 = arith.constant 1.000000e+00 : f32
    %91 = vector.broadcast %cst_33 : f32 to vector<1x32xf32>
    %92 = arith.addf %91, %90 : vector<1x32xf32>
    %93 = arith.divf %91, %92 : vector<1x32xf32>
    %94 = vector.extract_strided_slice %83 {offsets = [0, 32], sizes = [1, 32], strides = [1, 1]} : vector<1x96xf32> to vector<1x32xf32>
    %95 = vector.extract_strided_slice %85 {offsets = [0, 32], sizes = [1, 32], strides = [1, 1]} : vector<1x96xf32> to vector<1x32xf32>
    %96 = arith.addf %94, %95 : vector<1x32xf32>
    %97 = arith.negf %96 : vector<1x32xf32>
    %98 = math.exp %97 : vector<1x32xf32>
    %cst_34 = arith.constant 1.000000e+00 : f32
    %99 = vector.broadcast %cst_34 : f32 to vector<1x32xf32>
    %100 = arith.addf %99, %98 : vector<1x32xf32>
    %101 = arith.divf %99, %100 : vector<1x32xf32>
    %102 = vector.extract_strided_slice %83 {offsets = [0, 64], sizes = [1, 32], strides = [1, 1]} : vector<1x96xf32> to vector<1x32xf32>
    %103 = vector.extract_strided_slice %85 {offsets = [0, 64], sizes = [1, 32], strides = [1, 1]} : vector<1x96xf32> to vector<1x32xf32>
    %104 = arith.mulf %93, %103 : vector<1x32xf32>
    %105 = arith.addf %102, %104 : vector<1x32xf32>
    %106 = math.tanh %105 : vector<1x32xf32>
    %cst_35 = arith.constant 1.000000e+00 : f32
    %107 = vector.broadcast %cst_35 : f32 to vector<1x32xf32>
    %108 = arith.subf %107, %101 : vector<1x32xf32>
    %109 = arith.mulf %108, %106 : vector<1x32xf32>
    %110 = arith.mulf %101, %51 : vector<1x32xf32>
    %111 = arith.addf %109, %110 : vector<1x32xf32>
    %112 = vector.extract_strided_slice %16 {offsets = [6, 0], sizes = [1, 96], strides = [1, 1]} : vector<8x96xf32> to vector<1x96xf32>
    %cst_36 = arith.constant dense<0.000000e+00> : vector<1x96xf32>
    %113 = tpu.matmul %80, %19, %cst_36 {dimension_numbers = #tpu.dot_dimension_numbers<[1], [0], [0], [1], [0, 0, 1, 1], [], []>} : vector<1x32xf32>, vector<32x96xf32>, vector<1x96xf32> -> vector<1x96xf32>
    %114 = arith.addf %113, %20 : vector<1x96xf32>
    %115 = vector.extract_strided_slice %112 {offsets = [0, 0], sizes = [1, 32], strides = [1, 1]} : vector<1x96xf32> to vector<1x32xf32>
    %116 = vector.extract_strided_slice %114 {offsets = [0, 0], sizes = [1, 32], strides = [1, 1]} : vector<1x96xf32> to vector<1x32xf32>
    %117 = arith.addf %115, %116 : vector<1x32xf32>
    %118 = arith.negf %117 : vector<1x32xf32>
    %119 = math.exp %118 : vector<1x32xf32>
    %cst_37 = arith.constant 1.000000e+00 : f32
    %120 = vector.broadcast %cst_37 : f32 to vector<1x32xf32>
    %121 = arith.addf %120, %119 : vector<1x32xf32>
    %122 = arith.divf %120, %121 : vector<1x32xf32>
    %123 = vector.extract_strided_slice %112 {offsets = [0, 32], sizes = [1, 32], strides = [1, 1]} : vector<1x96xf32> to vector<1x32xf32>
    %124 = vector.extract_strided_slice %114 {offsets = [0, 32], sizes = [1, 32], strides = [1, 1]} : vector<1x96xf32> to vector<1x32xf32>
    %125 = arith.addf %123, %124 : vector<1x32xf32>
    %126 = arith.negf %125 : vector<1x32xf32>
    %127 = math.exp %126 : vector<1x32xf32>
    %cst_38 = arith.constant 1.000000e+00 : f32
    %128 = vector.broadcast %cst_38 : f32 to vector<1x32xf32>
    %129 = arith.addf %128, %127 : vector<1x32xf32>
    %130 = arith.divf %128, %129 : vector<1x32xf32>
    %131 = vector.extract_strided_slice %112 {offsets = [0, 64], sizes = [1, 32], strides = [1, 1]} : vector<1x96xf32> to vector<1x32xf32>
    %132 = vector.extract_strided_slice %114 {offsets = [0, 64], sizes = [1, 32], strides = [1, 1]} : vector<1x96xf32> to vector<1x32xf32>
    %133 = arith.mulf %122, %132 : vector<1x32xf32>
    %134 = arith.addf %131, %133 : vector<1x32xf32>
    %135 = math.tanh %134 : vector<1x32xf32>
    %cst_39 = arith.constant 1.000000e+00 : f32
    %136 = vector.broadcast %cst_39 : f32 to vector<1x32xf32>
    %137 = arith.subf %136, %130 : vector<1x32xf32>
    %138 = arith.mulf %137, %135 : vector<1x32xf32>
    %139 = arith.mulf %130, %80 : vector<1x32xf32>
    %140 = arith.addf %138, %139 : vector<1x32xf32>
    %c1 = arith.constant 1 : index
    %c0_40 = arith.constant 0 : index
    %141 = vector.load %arg29[%c1, %c0_40] : memref<8x32xf32, #tpu.memory_space<vmem>>, vector<1x32xf32>
    tpu.vector_store %arg29[%c1, %c0_40], %111 {strides = array<i32>} : memref<8x32xf32, #tpu.memory_space<vmem>>, vector<1x32xf32>,
    %c6 = arith.constant 6 : index
    %c0_41 = arith.constant 0 : index
    %142 = vector.load %arg30[%c6, %c0_41] : memref<8x32xf32, #tpu.memory_space<vmem>>, vector<1x32xf32>
    tpu.vector_store %arg30[%c6, %c0_41], %140 {strides = array<i32>} : memref<8x32xf32, #tpu.memory_space<vmem>>, vector<1x32xf32>,
    %143 = vector.extract_strided_slice %15 {offsets = [2, 0], sizes = [1, 96], strides = [1, 1]} : vector<8x96xf32> to vector<1x96xf32>
    %cst_42 = arith.constant dense<0.000000e+00> : vector<1x96xf32>
    %144 = tpu.matmul %111, %17, %cst_42 {dimension_numbers = #tpu.dot_dimension_numbers<[1], [0], [0], [1], [0, 0, 1, 1], [], []>} : vector<1x32xf32>, vector<32x96xf32>, vector<1x96xf32> -> vector<1x96xf32>
    %145 = arith.addf %144, %18 : vector<1x96xf32>
    %146 = vector.extract_strided_slice %143 {offsets = [0, 0], sizes = [1, 32], strides = [1, 1]} : vector<1x96xf32> to vector<1x32xf32>
    %147 = vector.extract_strided_slice %145 {offsets = [0, 0], sizes = [1, 32], strides = [1, 1]} : vector<1x96xf32> to vector<1x32xf32>
    %148 = arith.addf %146, %147 : vector<1x32xf32>
    %149 = arith.negf %148 : vector<1x32xf32>
    %150 = math.exp %149 : vector<1x32xf32>
    %cst_43 = arith.constant 1.000000e+00 : f32
    %151 = vector.broadcast %cst_43 : f32 to vector<1x32xf32>
    %152 = arith.addf %151, %150 : vector<1x32xf32>
    %153 = arith.divf %151, %152 : vector<1x32xf32>
    %154 = vector.extract_strided_slice %143 {offsets = [0, 32], sizes = [1, 32], strides = [1, 1]} : vector<1x96xf32> to vector<1x32xf32>
    %155 = vector.extract_strided_slice %145 {offsets = [0, 32], sizes = [1, 32], strides = [1, 1]} : vector<1x96xf32> to vector<1x32xf32>
    %156 = arith.addf %154, %155 : vector<1x32xf32>
    %157 = arith.negf %156 : vector<1x32xf32>
    %158 = math.exp %157 : vector<1x32xf32>
    %cst_44 = arith.constant 1.000000e+00 : f32
    %159 = vector.broadcast %cst_44 : f32 to vector<1x32xf32>
    %160 = arith.addf %159, %158 : vector<1x32xf32>
    %161 = arith.divf %159, %160 : vector<1x32xf32>
    %162 = vector.extract_strided_slice %143 {offsets = [0, 64], sizes = [1, 32], strides = [1, 1]} : vector<1x96xf32> to vector<1x32xf32>
    %163 = vector.extract_strided_slice %145 {offsets = [0, 64], sizes = [1, 32], strides = [1, 1]} : vector<1x96xf32> to vector<1x32xf32>
    %164 = arith.mulf %153, %163 : vector<1x32xf32>
    %165 = arith.addf %162, %164 : vector<1x32xf32>
    %166 = math.tanh %165 : vector<1x32xf32>
    %cst_45 = arith.constant 1.000000e+00 : f32
    %167 = vector.broadcast %cst_45 : f32 to vector<1x32xf32>
    %168 = arith.subf %167, %161 : vector<1x32xf32>
    %169 = arith.mulf %168, %166 : vector<1x32xf32>
    %170 = arith.mulf %161, %111 : vector<1x32xf32>
    %171 = arith.addf %169, %170 : vector<1x32xf32>
    %172 = vector.extract_strided_slice %16 {offsets = [5, 0], sizes = [1, 96], strides = [1, 1]} : vector<8x96xf32> to vector<1x96xf32>
    %cst_46 = arith.constant dense<0.000000e+00> : vector<1x96xf32>
    %173 = tpu.matmul %140, %19, %cst_46 {dimension_numbers = #tpu.dot_dimension_numbers<[1], [0], [0], [1], [0, 0, 1, 1], [], []>} : vector<1x32xf32>, vector<32x96xf32>, vector<1x96xf32> -> vector<1x96xf32>
    %174 = arith.addf %173, %20 : vector<1x96xf32>
    %175 = vector.extract_strided_slice %172 {offsets = [0, 0], sizes = [1, 32], strides = [1, 1]} : vector<1x96xf32> to vector<1x32xf32>
    %176 = vector.extract_strided_slice %174 {offsets = [0, 0], sizes = [1, 32], strides = [1, 1]} : vector<1x96xf32> to vector<1x32xf32>
    %177 = arith.addf %175, %176 : vector<1x32xf32>
    %178 = arith.negf %177 : vector<1x32xf32>
    %179 = math.exp %178 : vector<1x32xf32>
    %cst_47 = arith.constant 1.000000e+00 : f32
    %180 = vector.broadcast %cst_47 : f32 to vector<1x32xf32>
    %181 = arith.addf %180, %179 : vector<1x32xf32>
    %182 = arith.divf %180, %181 : vector<1x32xf32>
    %183 = vector.extract_strided_slice %172 {offsets = [0, 32], sizes = [1, 32], strides = [1, 1]} : vector<1x96xf32> to vector<1x32xf32>
    %184 = vector.extract_strided_slice %174 {offsets = [0, 32], sizes = [1, 32], strides = [1, 1]} : vector<1x96xf32> to vector<1x32xf32>
    %185 = arith.addf %183, %184 : vector<1x32xf32>
    %186 = arith.negf %185 : vector<1x32xf32>
    %187 = math.exp %186 : vector<1x32xf32>
    %cst_48 = arith.constant 1.000000e+00 : f32
    %188 = vector.broadcast %cst_48 : f32 to vector<1x32xf32>
    %189 = arith.addf %188, %187 : vector<1x32xf32>
    %190 = arith.divf %188, %189 : vector<1x32xf32>
    %191 = vector.extract_strided_slice %172 {offsets = [0, 64], sizes = [1, 32], strides = [1, 1]} : vector<1x96xf32> to vector<1x32xf32>
    %192 = vector.extract_strided_slice %174 {offsets = [0, 64], sizes = [1, 32], strides = [1, 1]} : vector<1x96xf32> to vector<1x32xf32>
    %193 = arith.mulf %182, %192 : vector<1x32xf32>
    %194 = arith.addf %191, %193 : vector<1x32xf32>
    %195 = math.tanh %194 : vector<1x32xf32>
    %cst_49 = arith.constant 1.000000e+00 : f32
    %196 = vector.broadcast %cst_49 : f32 to vector<1x32xf32>
    %197 = arith.subf %196, %190 : vector<1x32xf32>
    %198 = arith.mulf %197, %195 : vector<1x32xf32>
    %199 = arith.mulf %190, %140 : vector<1x32xf32>
    %200 = arith.addf %198, %199 : vector<1x32xf32>
    %c2 = arith.constant 2 : index
    %c0_50 = arith.constant 0 : index
    %201 = vector.load %arg29[%c2, %c0_50] : memref<8x32xf32, #tpu.memory_space<vmem>>, vector<1x32xf32>
    tpu.vector_store %arg29[%c2, %c0_50], %171 {strides = array<i32>} : memref<8x32xf32, #tpu.memory_space<vmem>>, vector<1x32xf32>,
    %c5 = arith.constant 5 : index
    %c0_51 = arith.constant 0 : index
    %202 = vector.load %arg30[%c5, %c0_51] : memref<8x32xf32, #tpu.memory_space<vmem>>, vector<1x32xf32>
    tpu.vector_store %arg30[%c5, %c0_51], %200 {strides = array<i32>} : memref<8x32xf32, #tpu.memory_space<vmem>>, vector<1x32xf32>,
    %203 = vector.extract_strided_slice %15 {offsets = [3, 0], sizes = [1, 96], strides = [1, 1]} : vector<8x96xf32> to vector<1x96xf32>
    %cst_52 = arith.constant dense<0.000000e+00> : vector<1x96xf32>
    %204 = tpu.matmul %171, %17, %cst_52 {dimension_numbers = #tpu.dot_dimension_numbers<[1], [0], [0], [1], [0, 0, 1, 1], [], []>} : vector<1x32xf32>, vector<32x96xf32>, vector<1x96xf32> -> vector<1x96xf32>
    %205 = arith.addf %204, %18 : vector<1x96xf32>
    %206 = vector.extract_strided_slice %203 {offsets = [0, 0], sizes = [1, 32], strides = [1, 1]} : vector<1x96xf32> to vector<1x32xf32>
    %207 = vector.extract_strided_slice %205 {offsets = [0, 0], sizes = [1, 32], strides = [1, 1]} : vector<1x96xf32> to vector<1x32xf32>
    %208 = arith.addf %206, %207 : vector<1x32xf32>
    %209 = arith.negf %208 : vector<1x32xf32>
    %210 = math.exp %209 : vector<1x32xf32>
    %cst_53 = arith.constant 1.000000e+00 : f32
    %211 = vector.broadcast %cst_53 : f32 to vector<1x32xf32>
    %212 = arith.addf %211, %210 : vector<1x32xf32>
    %213 = arith.divf %211, %212 : vector<1x32xf32>
    %214 = vector.extract_strided_slice %203 {offsets = [0, 32], sizes = [1, 32], strides = [1, 1]} : vector<1x96xf32> to vector<1x32xf32>
    %215 = vector.extract_strided_slice %205 {offsets = [0, 32], sizes = [1, 32], strides = [1, 1]} : vector<1x96xf32> to vector<1x32xf32>
    %216 = arith.addf %214, %215 : vector<1x32xf32>
    %217 = arith.negf %216 : vector<1x32xf32>
    %218 = math.exp %217 : vector<1x32xf32>
    %cst_54 = arith.constant 1.000000e+00 : f32
    %219 = vector.broadcast %cst_54 : f32 to vector<1x32xf32>
    %220 = arith.addf %219, %218 : vector<1x32xf32>
    %221 = arith.divf %219, %220 : vector<1x32xf32>
    %222 = vector.extract_strided_slice %203 {offsets = [0, 64], sizes = [1, 32], strides = [1, 1]} : vector<1x96xf32> to vector<1x32xf32>
    %223 = vector.extract_strided_slice %205 {offsets = [0, 64], sizes = [1, 32], strides = [1, 1]} : vector<1x96xf32> to vector<1x32xf32>
    %224 = arith.mulf %213, %223 : vector<1x32xf32>
    %225 = arith.addf %222, %224 : vector<1x32xf32>
    %226 = math.tanh %225 : vector<1x32xf32>
    %cst_55 = arith.constant 1.000000e+00 : f32
    %227 = vector.broadcast %cst_55 : f32 to vector<1x32xf32>
    %228 = arith.subf %227, %221 : vector<1x32xf32>
    %229 = arith.mulf %228, %226 : vector<1x32xf32>
    %230 = arith.mulf %221, %171 : vector<1x32xf32>
    %231 = arith.addf %229, %230 : vector<1x32xf32>
    %232 = vector.extract_strided_slice %16 {offsets = [4, 0], sizes = [1, 96], strides = [1, 1]} : vector<8x96xf32> to vector<1x96xf32>
    %cst_56 = arith.constant dense<0.000000e+00> : vector<1x96xf32>
    %233 = tpu.matmul %200, %19, %cst_56 {dimension_numbers = #tpu.dot_dimension_numbers<[1], [0], [0], [1], [0, 0, 1, 1], [], []>} : vector<1x32xf32>, vector<32x96xf32>, vector<1x96xf32> -> vector<1x96xf32>
    %234 = arith.addf %233, %20 : vector<1x96xf32>
    %235 = vector.extract_strided_slice %232 {offsets = [0, 0], sizes = [1, 32], strides = [1, 1]} : vector<1x96xf32> to vector<1x32xf32>
    %236 = vector.extract_strided_slice %234 {offsets = [0, 0], sizes = [1, 32], strides = [1, 1]} : vector<1x96xf32> to vector<1x32xf32>
    %237 = arith.addf %235, %236 : vector<1x32xf32>
    %238 = arith.negf %237 : vector<1x32xf32>
    %239 = math.exp %238 : vector<1x32xf32>
    %cst_57 = arith.constant 1.000000e+00 : f32
    %240 = vector.broadcast %cst_57 : f32 to vector<1x32xf32>
    %241 = arith.addf %240, %239 : vector<1x32xf32>
    %242 = arith.divf %240, %241 : vector<1x32xf32>
    %243 = vector.extract_strided_slice %232 {offsets = [0, 32], sizes = [1, 32], strides = [1, 1]} : vector<1x96xf32> to vector<1x32xf32>
    %244 = vector.extract_strided_slice %234 {offsets = [0, 32], sizes = [1, 32], strides = [1, 1]} : vector<1x96xf32> to vector<1x32xf32>
    %245 = arith.addf %243, %244 : vector<1x32xf32>
    %246 = arith.negf %245 : vector<1x32xf32>
    %247 = math.exp %246 : vector<1x32xf32>
    %cst_58 = arith.constant 1.000000e+00 : f32
    %248 = vector.broadcast %cst_58 : f32 to vector<1x32xf32>
    %249 = arith.addf %248, %247 : vector<1x32xf32>
    %250 = arith.divf %248, %249 : vector<1x32xf32>
    %251 = vector.extract_strided_slice %232 {offsets = [0, 64], sizes = [1, 32], strides = [1, 1]} : vector<1x96xf32> to vector<1x32xf32>
    %252 = vector.extract_strided_slice %234 {offsets = [0, 64], sizes = [1, 32], strides = [1, 1]} : vector<1x96xf32> to vector<1x32xf32>
    %253 = arith.mulf %242, %252 : vector<1x32xf32>
    %254 = arith.addf %251, %253 : vector<1x32xf32>
    %255 = math.tanh %254 : vector<1x32xf32>
    %cst_59 = arith.constant 1.000000e+00 : f32
    %256 = vector.broadcast %cst_59 : f32 to vector<1x32xf32>
    %257 = arith.subf %256, %250 : vector<1x32xf32>
    %258 = arith.mulf %257, %255 : vector<1x32xf32>
    %259 = arith.mulf %250, %200 : vector<1x32xf32>
    %260 = arith.addf %258, %259 : vector<1x32xf32>
    %c3 = arith.constant 3 : index
    %c0_60 = arith.constant 0 : index
    %261 = vector.load %arg29[%c3, %c0_60] : memref<8x32xf32, #tpu.memory_space<vmem>>, vector<1x32xf32>
    tpu.vector_store %arg29[%c3, %c0_60], %231 {strides = array<i32>} : memref<8x32xf32, #tpu.memory_space<vmem>>, vector<1x32xf32>,
    %c4 = arith.constant 4 : index
    %c0_61 = arith.constant 0 : index
    %262 = vector.load %arg30[%c4, %c0_61] : memref<8x32xf32, #tpu.memory_space<vmem>>, vector<1x32xf32>
    tpu.vector_store %arg30[%c4, %c0_61], %260 {strides = array<i32>} : memref<8x32xf32, #tpu.memory_space<vmem>>, vector<1x32xf32>,
    %263 = vector.extract_strided_slice %15 {offsets = [4, 0], sizes = [1, 96], strides = [1, 1]} : vector<8x96xf32> to vector<1x96xf32>
    %cst_62 = arith.constant dense<0.000000e+00> : vector<1x96xf32>
    %264 = tpu.matmul %231, %17, %cst_62 {dimension_numbers = #tpu.dot_dimension_numbers<[1], [0], [0], [1], [0, 0, 1, 1], [], []>} : vector<1x32xf32>, vector<32x96xf32>, vector<1x96xf32> -> vector<1x96xf32>
    %265 = arith.addf %264, %18 : vector<1x96xf32>
    %266 = vector.extract_strided_slice %263 {offsets = [0, 0], sizes = [1, 32], strides = [1, 1]} : vector<1x96xf32> to vector<1x32xf32>
    %267 = vector.extract_strided_slice %265 {offsets = [0, 0], sizes = [1, 32], strides = [1, 1]} : vector<1x96xf32> to vector<1x32xf32>
    %268 = arith.addf %266, %267 : vector<1x32xf32>
    %269 = arith.negf %268 : vector<1x32xf32>
    %270 = math.exp %269 : vector<1x32xf32>
    %cst_63 = arith.constant 1.000000e+00 : f32
    %271 = vector.broadcast %cst_63 : f32 to vector<1x32xf32>
    %272 = arith.addf %271, %270 : vector<1x32xf32>
    %273 = arith.divf %271, %272 : vector<1x32xf32>
    %274 = vector.extract_strided_slice %263 {offsets = [0, 32], sizes = [1, 32], strides = [1, 1]} : vector<1x96xf32> to vector<1x32xf32>
    %275 = vector.extract_strided_slice %265 {offsets = [0, 32], sizes = [1, 32], strides = [1, 1]} : vector<1x96xf32> to vector<1x32xf32>
    %276 = arith.addf %274, %275 : vector<1x32xf32>
    %277 = arith.negf %276 : vector<1x32xf32>
    %278 = math.exp %277 : vector<1x32xf32>
    %cst_64 = arith.constant 1.000000e+00 : f32
    %279 = vector.broadcast %cst_64 : f32 to vector<1x32xf32>
    %280 = arith.addf %279, %278 : vector<1x32xf32>
    %281 = arith.divf %279, %280 : vector<1x32xf32>
    %282 = vector.extract_strided_slice %263 {offsets = [0, 64], sizes = [1, 32], strides = [1, 1]} : vector<1x96xf32> to vector<1x32xf32>
    %283 = vector.extract_strided_slice %265 {offsets = [0, 64], sizes = [1, 32], strides = [1, 1]} : vector<1x96xf32> to vector<1x32xf32>
    %284 = arith.mulf %273, %283 : vector<1x32xf32>
    %285 = arith.addf %282, %284 : vector<1x32xf32>
    %286 = math.tanh %285 : vector<1x32xf32>
    %cst_65 = arith.constant 1.000000e+00 : f32
    %287 = vector.broadcast %cst_65 : f32 to vector<1x32xf32>
    %288 = arith.subf %287, %281 : vector<1x32xf32>
    %289 = arith.mulf %288, %286 : vector<1x32xf32>
    %290 = arith.mulf %281, %231 : vector<1x32xf32>
    %291 = arith.addf %289, %290 : vector<1x32xf32>
    %292 = vector.extract_strided_slice %16 {offsets = [3, 0], sizes = [1, 96], strides = [1, 1]} : vector<8x96xf32> to vector<1x96xf32>
    %cst_66 = arith.constant dense<0.000000e+00> : vector<1x96xf32>
    %293 = tpu.matmul %260, %19, %cst_66 {dimension_numbers = #tpu.dot_dimension_numbers<[1], [0], [0], [1], [0, 0, 1, 1], [], []>} : vector<1x32xf32>, vector<32x96xf32>, vector<1x96xf32> -> vector<1x96xf32>
    %294 = arith.addf %293, %20 : vector<1x96xf32>
    %295 = vector.extract_strided_slice %292 {offsets = [0, 0], sizes = [1, 32], strides = [1, 1]} : vector<1x96xf32> to vector<1x32xf32>
    %296 = vector.extract_strided_slice %294 {offsets = [0, 0], sizes = [1, 32], strides = [1, 1]} : vector<1x96xf32> to vector<1x32xf32>
    %297 = arith.addf %295, %296 : vector<1x32xf32>
    %298 = arith.negf %297 : vector<1x32xf32>
    %299 = math.exp %298 : vector<1x32xf32>
    %cst_67 = arith.constant 1.000000e+00 : f32
    %300 = vector.broadcast %cst_67 : f32 to vector<1x32xf32>
    %301 = arith.addf %300, %299 : vector<1x32xf32>
    %302 = arith.divf %300, %301 : vector<1x32xf32>
    %303 = vector.extract_strided_slice %292 {offsets = [0, 32], sizes = [1, 32], strides = [1, 1]} : vector<1x96xf32> to vector<1x32xf32>
    %304 = vector.extract_strided_slice %294 {offsets = [0, 32], sizes = [1, 32], strides = [1, 1]} : vector<1x96xf32> to vector<1x32xf32>
    %305 = arith.addf %303, %304 : vector<1x32xf32>
    %306 = arith.negf %305 : vector<1x32xf32>
    %307 = math.exp %306 : vector<1x32xf32>
    %cst_68 = arith.constant 1.000000e+00 : f32
    %308 = vector.broadcast %cst_68 : f32 to vector<1x32xf32>
    %309 = arith.addf %308, %307 : vector<1x32xf32>
    %310 = arith.divf %308, %309 : vector<1x32xf32>
    %311 = vector.extract_strided_slice %292 {offsets = [0, 64], sizes = [1, 32], strides = [1, 1]} : vector<1x96xf32> to vector<1x32xf32>
    %312 = vector.extract_strided_slice %294 {offsets = [0, 64], sizes = [1, 32], strides = [1, 1]} : vector<1x96xf32> to vector<1x32xf32>
    %313 = arith.mulf %302, %312 : vector<1x32xf32>
    %314 = arith.addf %311, %313 : vector<1x32xf32>
    %315 = math.tanh %314 : vector<1x32xf32>
    %cst_69 = arith.constant 1.000000e+00 : f32
    %316 = vector.broadcast %cst_69 : f32 to vector<1x32xf32>
    %317 = arith.subf %316, %310 : vector<1x32xf32>
    %318 = arith.mulf %317, %315 : vector<1x32xf32>
    %319 = arith.mulf %310, %260 : vector<1x32xf32>
    %320 = arith.addf %318, %319 : vector<1x32xf32>
    %c4_70 = arith.constant 4 : index
    %c0_71 = arith.constant 0 : index
    %321 = vector.load %arg29[%c4_70, %c0_71] : memref<8x32xf32, #tpu.memory_space<vmem>>, vector<1x32xf32>
    tpu.vector_store %arg29[%c4_70, %c0_71], %291 {strides = array<i32>} : memref<8x32xf32, #tpu.memory_space<vmem>>, vector<1x32xf32>,
    %c3_72 = arith.constant 3 : index
    %c0_73 = arith.constant 0 : index
    %322 = vector.load %arg30[%c3_72, %c0_73] : memref<8x32xf32, #tpu.memory_space<vmem>>, vector<1x32xf32>
    tpu.vector_store %arg30[%c3_72, %c0_73], %320 {strides = array<i32>} : memref<8x32xf32, #tpu.memory_space<vmem>>, vector<1x32xf32>,
    %323 = vector.extract_strided_slice %15 {offsets = [5, 0], sizes = [1, 96], strides = [1, 1]} : vector<8x96xf32> to vector<1x96xf32>
    %cst_74 = arith.constant dense<0.000000e+00> : vector<1x96xf32>
    %324 = tpu.matmul %291, %17, %cst_74 {dimension_numbers = #tpu.dot_dimension_numbers<[1], [0], [0], [1], [0, 0, 1, 1], [], []>} : vector<1x32xf32>, vector<32x96xf32>, vector<1x96xf32> -> vector<1x96xf32>
    %325 = arith.addf %324, %18 : vector<1x96xf32>
    %326 = vector.extract_strided_slice %323 {offsets = [0, 0], sizes = [1, 32], strides = [1, 1]} : vector<1x96xf32> to vector<1x32xf32>
    %327 = vector.extract_strided_slice %325 {offsets = [0, 0], sizes = [1, 32], strides = [1, 1]} : vector<1x96xf32> to vector<1x32xf32>
    %328 = arith.addf %326, %327 : vector<1x32xf32>
    %329 = arith.negf %328 : vector<1x32xf32>
    %330 = math.exp %329 : vector<1x32xf32>
    %cst_75 = arith.constant 1.000000e+00 : f32
    %331 = vector.broadcast %cst_75 : f32 to vector<1x32xf32>
    %332 = arith.addf %331, %330 : vector<1x32xf32>
    %333 = arith.divf %331, %332 : vector<1x32xf32>
    %334 = vector.extract_strided_slice %323 {offsets = [0, 32], sizes = [1, 32], strides = [1, 1]} : vector<1x96xf32> to vector<1x32xf32>
    %335 = vector.extract_strided_slice %325 {offsets = [0, 32], sizes = [1, 32], strides = [1, 1]} : vector<1x96xf32> to vector<1x32xf32>
    %336 = arith.addf %334, %335 : vector<1x32xf32>
    %337 = arith.negf %336 : vector<1x32xf32>
    %338 = math.exp %337 : vector<1x32xf32>
    %cst_76 = arith.constant 1.000000e+00 : f32
    %339 = vector.broadcast %cst_76 : f32 to vector<1x32xf32>
    %340 = arith.addf %339, %338 : vector<1x32xf32>
    %341 = arith.divf %339, %340 : vector<1x32xf32>
    %342 = vector.extract_strided_slice %323 {offsets = [0, 64], sizes = [1, 32], strides = [1, 1]} : vector<1x96xf32> to vector<1x32xf32>
    %343 = vector.extract_strided_slice %325 {offsets = [0, 64], sizes = [1, 32], strides = [1, 1]} : vector<1x96xf32> to vector<1x32xf32>
    %344 = arith.mulf %333, %343 : vector<1x32xf32>
    %345 = arith.addf %342, %344 : vector<1x32xf32>
    %346 = math.tanh %345 : vector<1x32xf32>
    %cst_77 = arith.constant 1.000000e+00 : f32
    %347 = vector.broadcast %cst_77 : f32 to vector<1x32xf32>
    %348 = arith.subf %347, %341 : vector<1x32xf32>
    %349 = arith.mulf %348, %346 : vector<1x32xf32>
    %350 = arith.mulf %341, %291 : vector<1x32xf32>
    %351 = arith.addf %349, %350 : vector<1x32xf32>
    %352 = vector.extract_strided_slice %16 {offsets = [2, 0], sizes = [1, 96], strides = [1, 1]} : vector<8x96xf32> to vector<1x96xf32>
    %cst_78 = arith.constant dense<0.000000e+00> : vector<1x96xf32>
    %353 = tpu.matmul %320, %19, %cst_78 {dimension_numbers = #tpu.dot_dimension_numbers<[1], [0], [0], [1], [0, 0, 1, 1], [], []>} : vector<1x32xf32>, vector<32x96xf32>, vector<1x96xf32> -> vector<1x96xf32>
    %354 = arith.addf %353, %20 : vector<1x96xf32>
    %355 = vector.extract_strided_slice %352 {offsets = [0, 0], sizes = [1, 32], strides = [1, 1]} : vector<1x96xf32> to vector<1x32xf32>
    %356 = vector.extract_strided_slice %354 {offsets = [0, 0], sizes = [1, 32], strides = [1, 1]} : vector<1x96xf32> to vector<1x32xf32>
    %357 = arith.addf %355, %356 : vector<1x32xf32>
    %358 = arith.negf %357 : vector<1x32xf32>
    %359 = math.exp %358 : vector<1x32xf32>
    %cst_79 = arith.constant 1.000000e+00 : f32
    %360 = vector.broadcast %cst_79 : f32 to vector<1x32xf32>
    %361 = arith.addf %360, %359 : vector<1x32xf32>
    %362 = arith.divf %360, %361 : vector<1x32xf32>
    %363 = vector.extract_strided_slice %352 {offsets = [0, 32], sizes = [1, 32], strides = [1, 1]} : vector<1x96xf32> to vector<1x32xf32>
    %364 = vector.extract_strided_slice %354 {offsets = [0, 32], sizes = [1, 32], strides = [1, 1]} : vector<1x96xf32> to vector<1x32xf32>
    %365 = arith.addf %363, %364 : vector<1x32xf32>
    %366 = arith.negf %365 : vector<1x32xf32>
    %367 = math.exp %366 : vector<1x32xf32>
    %cst_80 = arith.constant 1.000000e+00 : f32
    %368 = vector.broadcast %cst_80 : f32 to vector<1x32xf32>
    %369 = arith.addf %368, %367 : vector<1x32xf32>
    %370 = arith.divf %368, %369 : vector<1x32xf32>
    %371 = vector.extract_strided_slice %352 {offsets = [0, 64], sizes = [1, 32], strides = [1, 1]} : vector<1x96xf32> to vector<1x32xf32>
    %372 = vector.extract_strided_slice %354 {offsets = [0, 64], sizes = [1, 32], strides = [1, 1]} : vector<1x96xf32> to vector<1x32xf32>
    %373 = arith.mulf %362, %372 : vector<1x32xf32>
    %374 = arith.addf %371, %373 : vector<1x32xf32>
    %375 = math.tanh %374 : vector<1x32xf32>
    %cst_81 = arith.constant 1.000000e+00 : f32
    %376 = vector.broadcast %cst_81 : f32 to vector<1x32xf32>
    %377 = arith.subf %376, %370 : vector<1x32xf32>
    %378 = arith.mulf %377, %375 : vector<1x32xf32>
    %379 = arith.mulf %370, %320 : vector<1x32xf32>
    %380 = arith.addf %378, %379 : vector<1x32xf32>
    %c5_82 = arith.constant 5 : index
    %c0_83 = arith.constant 0 : index
    %381 = vector.load %arg29[%c5_82, %c0_83] : memref<8x32xf32, #tpu.memory_space<vmem>>, vector<1x32xf32>
    tpu.vector_store %arg29[%c5_82, %c0_83], %351 {strides = array<i32>} : memref<8x32xf32, #tpu.memory_space<vmem>>, vector<1x32xf32>,
    %c2_84 = arith.constant 2 : index
    %c0_85 = arith.constant 0 : index
    %382 = vector.load %arg30[%c2_84, %c0_85] : memref<8x32xf32, #tpu.memory_space<vmem>>, vector<1x32xf32>
    tpu.vector_store %arg30[%c2_84, %c0_85], %380 {strides = array<i32>} : memref<8x32xf32, #tpu.memory_space<vmem>>, vector<1x32xf32>,
    %383 = vector.extract_strided_slice %15 {offsets = [6, 0], sizes = [1, 96], strides = [1, 1]} : vector<8x96xf32> to vector<1x96xf32>
    %cst_86 = arith.constant dense<0.000000e+00> : vector<1x96xf32>
    %384 = tpu.matmul %351, %17, %cst_86 {dimension_numbers = #tpu.dot_dimension_numbers<[1], [0], [0], [1], [0, 0, 1, 1], [], []>} : vector<1x32xf32>, vector<32x96xf32>, vector<1x96xf32> -> vector<1x96xf32>
    %385 = arith.addf %384, %18 : vector<1x96xf32>
    %386 = vector.extract_strided_slice %383 {offsets = [0, 0], sizes = [1, 32], strides = [1, 1]} : vector<1x96xf32> to vector<1x32xf32>
    %387 = vector.extract_strided_slice %385 {offsets = [0, 0], sizes = [1, 32], strides = [1, 1]} : vector<1x96xf32> to vector<1x32xf32>
    %388 = arith.addf %386, %387 : vector<1x32xf32>
    %389 = arith.negf %388 : vector<1x32xf32>
    %390 = math.exp %389 : vector<1x32xf32>
    %cst_87 = arith.constant 1.000000e+00 : f32
    %391 = vector.broadcast %cst_87 : f32 to vector<1x32xf32>
    %392 = arith.addf %391, %390 : vector<1x32xf32>
    %393 = arith.divf %391, %392 : vector<1x32xf32>
    %394 = vector.extract_strided_slice %383 {offsets = [0, 32], sizes = [1, 32], strides = [1, 1]} : vector<1x96xf32> to vector<1x32xf32>
    %395 = vector.extract_strided_slice %385 {offsets = [0, 32], sizes = [1, 32], strides = [1, 1]} : vector<1x96xf32> to vector<1x32xf32>
    %396 = arith.addf %394, %395 : vector<1x32xf32>
    %397 = arith.negf %396 : vector<1x32xf32>
    %398 = math.exp %397 : vector<1x32xf32>
    %cst_88 = arith.constant 1.000000e+00 : f32
    %399 = vector.broadcast %cst_88 : f32 to vector<1x32xf32>
    %400 = arith.addf %399, %398 : vector<1x32xf32>
    %401 = arith.divf %399, %400 : vector<1x32xf32>
    %402 = vector.extract_strided_slice %383 {offsets = [0, 64], sizes = [1, 32], strides = [1, 1]} : vector<1x96xf32> to vector<1x32xf32>
    %403 = vector.extract_strided_slice %385 {offsets = [0, 64], sizes = [1, 32], strides = [1, 1]} : vector<1x96xf32> to vector<1x32xf32>
    %404 = arith.mulf %393, %403 : vector<1x32xf32>
    %405 = arith.addf %402, %404 : vector<1x32xf32>
    %406 = math.tanh %405 : vector<1x32xf32>
    %cst_89 = arith.constant 1.000000e+00 : f32
    %407 = vector.broadcast %cst_89 : f32 to vector<1x32xf32>
    %408 = arith.subf %407, %401 : vector<1x32xf32>
    %409 = arith.mulf %408, %406 : vector<1x32xf32>
    %410 = arith.mulf %401, %351 : vector<1x32xf32>
    %411 = arith.addf %409, %410 : vector<1x32xf32>
    %412 = vector.extract_strided_slice %16 {offsets = [1, 0], sizes = [1, 96], strides = [1, 1]} : vector<8x96xf32> to vector<1x96xf32>
    %cst_90 = arith.constant dense<0.000000e+00> : vector<1x96xf32>
    %413 = tpu.matmul %380, %19, %cst_90 {dimension_numbers = #tpu.dot_dimension_numbers<[1], [0], [0], [1], [0, 0, 1, 1], [], []>} : vector<1x32xf32>, vector<32x96xf32>, vector<1x96xf32> -> vector<1x96xf32>
    %414 = arith.addf %413, %20 : vector<1x96xf32>
    %415 = vector.extract_strided_slice %412 {offsets = [0, 0], sizes = [1, 32], strides = [1, 1]} : vector<1x96xf32> to vector<1x32xf32>
    %416 = vector.extract_strided_slice %414 {offsets = [0, 0], sizes = [1, 32], strides = [1, 1]} : vector<1x96xf32> to vector<1x32xf32>
    %417 = arith.addf %415, %416 : vector<1x32xf32>
    %418 = arith.negf %417 : vector<1x32xf32>
    %419 = math.exp %418 : vector<1x32xf32>
    %cst_91 = arith.constant 1.000000e+00 : f32
    %420 = vector.broadcast %cst_91 : f32 to vector<1x32xf32>
    %421 = arith.addf %420, %419 : vector<1x32xf32>
    %422 = arith.divf %420, %421 : vector<1x32xf32>
    %423 = vector.extract_strided_slice %412 {offsets = [0, 32], sizes = [1, 32], strides = [1, 1]} : vector<1x96xf32> to vector<1x32xf32>
    %424 = vector.extract_strided_slice %414 {offsets = [0, 32], sizes = [1, 32], strides = [1, 1]} : vector<1x96xf32> to vector<1x32xf32>
    %425 = arith.addf %423, %424 : vector<1x32xf32>
    %426 = arith.negf %425 : vector<1x32xf32>
    %427 = math.exp %426 : vector<1x32xf32>
    %cst_92 = arith.constant 1.000000e+00 : f32
    %428 = vector.broadcast %cst_92 : f32 to vector<1x32xf32>
    %429 = arith.addf %428, %427 : vector<1x32xf32>
    %430 = arith.divf %428, %429 : vector<1x32xf32>
    %431 = vector.extract_strided_slice %412 {offsets = [0, 64], sizes = [1, 32], strides = [1, 1]} : vector<1x96xf32> to vector<1x32xf32>
    %432 = vector.extract_strided_slice %414 {offsets = [0, 64], sizes = [1, 32], strides = [1, 1]} : vector<1x96xf32> to vector<1x32xf32>
    %433 = arith.mulf %422, %432 : vector<1x32xf32>
    %434 = arith.addf %431, %433 : vector<1x32xf32>
    %435 = math.tanh %434 : vector<1x32xf32>
    %cst_93 = arith.constant 1.000000e+00 : f32
    %436 = vector.broadcast %cst_93 : f32 to vector<1x32xf32>
    %437 = arith.subf %436, %430 : vector<1x32xf32>
    %438 = arith.mulf %437, %435 : vector<1x32xf32>
    %439 = arith.mulf %430, %380 : vector<1x32xf32>
    %440 = arith.addf %438, %439 : vector<1x32xf32>
    %c6_94 = arith.constant 6 : index
    %c0_95 = arith.constant 0 : index
    %441 = vector.load %arg29[%c6_94, %c0_95] : memref<8x32xf32, #tpu.memory_space<vmem>>, vector<1x32xf32>
    tpu.vector_store %arg29[%c6_94, %c0_95], %411 {strides = array<i32>} : memref<8x32xf32, #tpu.memory_space<vmem>>, vector<1x32xf32>,
    %c1_96 = arith.constant 1 : index
    %c0_97 = arith.constant 0 : index
    %442 = vector.load %arg30[%c1_96, %c0_97] : memref<8x32xf32, #tpu.memory_space<vmem>>, vector<1x32xf32>
    tpu.vector_store %arg30[%c1_96, %c0_97], %440 {strides = array<i32>} : memref<8x32xf32, #tpu.memory_space<vmem>>, vector<1x32xf32>,
    %443 = vector.extract_strided_slice %15 {offsets = [7, 0], sizes = [1, 96], strides = [1, 1]} : vector<8x96xf32> to vector<1x96xf32>
    %cst_98 = arith.constant dense<0.000000e+00> : vector<1x96xf32>
    %444 = tpu.matmul %411, %17, %cst_98 {dimension_numbers = #tpu.dot_dimension_numbers<[1], [0], [0], [1], [0, 0, 1, 1], [], []>} : vector<1x32xf32>, vector<32x96xf32>, vector<1x96xf32> -> vector<1x96xf32>
    %445 = arith.addf %444, %18 : vector<1x96xf32>
    %446 = vector.extract_strided_slice %443 {offsets = [0, 0], sizes = [1, 32], strides = [1, 1]} : vector<1x96xf32> to vector<1x32xf32>
    %447 = vector.extract_strided_slice %445 {offsets = [0, 0], sizes = [1, 32], strides = [1, 1]} : vector<1x96xf32> to vector<1x32xf32>
    %448 = arith.addf %446, %447 : vector<1x32xf32>
    %449 = arith.negf %448 : vector<1x32xf32>
    %450 = math.exp %449 : vector<1x32xf32>
    %cst_99 = arith.constant 1.000000e+00 : f32
    %451 = vector.broadcast %cst_99 : f32 to vector<1x32xf32>
    %452 = arith.addf %451, %450 : vector<1x32xf32>
    %453 = arith.divf %451, %452 : vector<1x32xf32>
    %454 = vector.extract_strided_slice %443 {offsets = [0, 32], sizes = [1, 32], strides = [1, 1]} : vector<1x96xf32> to vector<1x32xf32>
    %455 = vector.extract_strided_slice %445 {offsets = [0, 32], sizes = [1, 32], strides = [1, 1]} : vector<1x96xf32> to vector<1x32xf32>
    %456 = arith.addf %454, %455 : vector<1x32xf32>
    %457 = arith.negf %456 : vector<1x32xf32>
    %458 = math.exp %457 : vector<1x32xf32>
    %cst_100 = arith.constant 1.000000e+00 : f32
    %459 = vector.broadcast %cst_100 : f32 to vector<1x32xf32>
    %460 = arith.addf %459, %458 : vector<1x32xf32>
    %461 = arith.divf %459, %460 : vector<1x32xf32>
    %462 = vector.extract_strided_slice %443 {offsets = [0, 64], sizes = [1, 32], strides = [1, 1]} : vector<1x96xf32> to vector<1x32xf32>
    %463 = vector.extract_strided_slice %445 {offsets = [0, 64], sizes = [1, 32], strides = [1, 1]} : vector<1x96xf32> to vector<1x32xf32>
    %464 = arith.mulf %453, %463 : vector<1x32xf32>
    %465 = arith.addf %462, %464 : vector<1x32xf32>
    %466 = math.tanh %465 : vector<1x32xf32>
    %cst_101 = arith.constant 1.000000e+00 : f32
    %467 = vector.broadcast %cst_101 : f32 to vector<1x32xf32>
    %468 = arith.subf %467, %461 : vector<1x32xf32>
    %469 = arith.mulf %468, %466 : vector<1x32xf32>
    %470 = arith.mulf %461, %411 : vector<1x32xf32>
    %471 = arith.addf %469, %470 : vector<1x32xf32>
    %472 = vector.extract_strided_slice %16 {offsets = [0, 0], sizes = [1, 96], strides = [1, 1]} : vector<8x96xf32> to vector<1x96xf32>
    %cst_102 = arith.constant dense<0.000000e+00> : vector<1x96xf32>
    %473 = tpu.matmul %440, %19, %cst_102 {dimension_numbers = #tpu.dot_dimension_numbers<[1], [0], [0], [1], [0, 0, 1, 1], [], []>} : vector<1x32xf32>, vector<32x96xf32>, vector<1x96xf32> -> vector<1x96xf32>
    %474 = arith.addf %473, %20 : vector<1x96xf32>
    %475 = vector.extract_strided_slice %472 {offsets = [0, 0], sizes = [1, 32], strides = [1, 1]} : vector<1x96xf32> to vector<1x32xf32>
    %476 = vector.extract_strided_slice %474 {offsets = [0, 0], sizes = [1, 32], strides = [1, 1]} : vector<1x96xf32> to vector<1x32xf32>
    %477 = arith.addf %475, %476 : vector<1x32xf32>
    %478 = arith.negf %477 : vector<1x32xf32>
    %479 = math.exp %478 : vector<1x32xf32>
    %cst_103 = arith.constant 1.000000e+00 : f32
    %480 = vector.broadcast %cst_103 : f32 to vector<1x32xf32>
    %481 = arith.addf %480, %479 : vector<1x32xf32>
    %482 = arith.divf %480, %481 : vector<1x32xf32>
    %483 = vector.extract_strided_slice %472 {offsets = [0, 32], sizes = [1, 32], strides = [1, 1]} : vector<1x96xf32> to vector<1x32xf32>
    %484 = vector.extract_strided_slice %474 {offsets = [0, 32], sizes = [1, 32], strides = [1, 1]} : vector<1x96xf32> to vector<1x32xf32>
    %485 = arith.addf %483, %484 : vector<1x32xf32>
    %486 = arith.negf %485 : vector<1x32xf32>
    %487 = math.exp %486 : vector<1x32xf32>
    %cst_104 = arith.constant 1.000000e+00 : f32
    %488 = vector.broadcast %cst_104 : f32 to vector<1x32xf32>
    %489 = arith.addf %488, %487 : vector<1x32xf32>
    %490 = arith.divf %488, %489 : vector<1x32xf32>
    %491 = vector.extract_strided_slice %472 {offsets = [0, 64], sizes = [1, 32], strides = [1, 1]} : vector<1x96xf32> to vector<1x32xf32>
    %492 = vector.extract_strided_slice %474 {offsets = [0, 64], sizes = [1, 32], strides = [1, 1]} : vector<1x96xf32> to vector<1x32xf32>
    %493 = arith.mulf %482, %492 : vector<1x32xf32>
    %494 = arith.addf %491, %493 : vector<1x32xf32>
    %495 = math.tanh %494 : vector<1x32xf32>
    %cst_105 = arith.constant 1.000000e+00 : f32
    %496 = vector.broadcast %cst_105 : f32 to vector<1x32xf32>
    %497 = arith.subf %496, %490 : vector<1x32xf32>
    %498 = arith.mulf %497, %495 : vector<1x32xf32>
    %499 = arith.mulf %490, %440 : vector<1x32xf32>
    %500 = arith.addf %498, %499 : vector<1x32xf32>
    %c7_106 = arith.constant 7 : index
    %c0_107 = arith.constant 0 : index
    %501 = vector.load %arg29[%c7_106, %c0_107] : memref<8x32xf32, #tpu.memory_space<vmem>>, vector<1x32xf32>
    tpu.vector_store %arg29[%c7_106, %c0_107], %471 {strides = array<i32>} : memref<8x32xf32, #tpu.memory_space<vmem>>, vector<1x32xf32>,
    %c0_108 = arith.constant 0 : index
    %c0_109 = arith.constant 0 : index
    %502 = vector.load %arg30[%c0_108, %c0_109] : memref<8x32xf32, #tpu.memory_space<vmem>>, vector<1x32xf32>
    tpu.vector_store %arg30[%c0_108, %c0_109], %500 {strides = array<i32>} : memref<8x32xf32, #tpu.memory_space<vmem>>, vector<1x32xf32>,
    %c0_110 = arith.constant 0 : index
    %c0_111 = arith.constant 0 : index
    %503 = vector.load %arg10[%c0_110, %c0_111] : memref<64x8xf32, #tpu.memory_space<vmem>>, vector<64x8xf32>
    %c0_112 = arith.constant 0 : index
    %c0_113 = arith.constant 0 : index
    %504 = vector.load %arg29[%c0_112, %c0_113] : memref<8x32xf32, #tpu.memory_space<vmem>>, vector<8x32xf32>
    %505 = math.tanh %504 : vector<8x32xf32>
    %506 = vector.extract_strided_slice %503 {offsets = [0, 0], sizes = [32, 8], strides = [1, 1]} : vector<64x8xf32> to vector<32x8xf32>
    %cst_114 = arith.constant dense<0.000000e+00> : vector<8x8xf32>
    %507 = tpu.matmul %505, %506, %cst_114 {dimension_numbers = #tpu.dot_dimension_numbers<[1], [0], [0], [1], [0, 0, 1, 1], [], []>} : vector<8x32xf32>, vector<32x8xf32>, vector<8x8xf32> -> vector<8x8xf32>
    %c0_115 = arith.constant 0 : index
    %c0_116 = arith.constant 0 : index
    %508 = vector.load %arg30[%c0_115, %c0_116] : memref<8x32xf32, #tpu.memory_space<vmem>>, vector<8x32xf32>
    %509 = math.tanh %508 : vector<8x32xf32>
    %510 = vector.extract_strided_slice %503 {offsets = [32, 0], sizes = [32, 8], strides = [1, 1]} : vector<64x8xf32> to vector<32x8xf32>
    %cst_117 = arith.constant dense<0.000000e+00> : vector<8x8xf32>
    %511 = tpu.matmul %509, %510, %cst_117 {dimension_numbers = #tpu.dot_dimension_numbers<[1], [0], [0], [1], [0, 0, 1, 1], [], []>} : vector<8x32xf32>, vector<32x8xf32>, vector<8x8xf32> -> vector<8x8xf32>
    %512 = arith.addf %507, %511 : vector<8x8xf32>
    %c0_118 = arith.constant 0 : index
    %c0_119 = arith.constant 0 : index
    %513 = vector.load %arg11[%c0_118, %c0_119] : memref<1x8xf32, #tpu.memory_space<vmem>>, vector<1x8xf32>
    %514 = vector.broadcast %513 : vector<1x8xf32> to vector<8x8xf32>
    %515 = arith.addf %512, %514 : vector<8x8xf32>
    %516 = tpu.iota {dimensions = array<i32: 0>} : vector<8x8xi32>
    %517 = tpu.iota {dimensions = array<i32: 1>} : vector<8x8xi32>
    %c1_i32 = arith.constant 1 : i32
    %518 = vector.broadcast %c1_i32 : i32 to vector<8x8xi32>
    %519 = arith.addi %517, %518 : vector<8x8xi32>
    %520 = arith.cmpi eq, %516, %519 : vector<8x8xi32>
    %521 = arith.extui %520 : vector<8x8xi1> to vector<8x8xi32>
    %522 = arith.sitofp %521 : vector<8x8xi32> to vector<8x8xf32>
    %c1_i32_120 = arith.constant 1 : i32
    %523 = vector.broadcast %c1_i32_120 : i32 to vector<8x8xi32>
    %524 = arith.addi %516, %523 : vector<8x8xi32>
    %525 = arith.cmpi eq, %524, %517 : vector<8x8xi32>
    %526 = arith.extui %525 : vector<8x8xi1> to vector<8x8xi32>
    %527 = arith.sitofp %526 : vector<8x8xi32> to vector<8x8xf32>
    %cst_121 = arith.constant dense<0.000000e+00> : vector<8x32xf32>
    %528 = tpu.matmul %522, %1, %cst_121 {dimension_numbers = #tpu.dot_dimension_numbers<[1], [0], [0], [1], [0, 0, 1, 1], [], []>} : vector<8x8xf32>, vector<8x32xf32>, vector<8x32xf32> -> vector<8x32xf32>
    %cst_122 = arith.constant dense<0.000000e+00> : vector<8x32xf32>
    %529 = tpu.matmul %527, %1, %cst_122 {dimension_numbers = #tpu.dot_dimension_numbers<[1], [0], [0], [1], [0, 0, 1, 1], [], []>} : vector<8x8xf32>, vector<8x32xf32>, vector<8x32xf32> -> vector<8x32xf32>
    %c0_123 = arith.constant 0 : index
    %c0_124 = arith.constant 0 : index
    %c0_125 = arith.constant 0 : index
    %530 = vector.load %arg12[%c0_123, %c0_124, %c0_125] : memref<3x32x256xf32, #tpu.memory_space<vmem>>, vector<1x32x256xf32>
    %531 = vector.shape_cast %530 : vector<1x32x256xf32> to vector<32x256xf32>
    %cst_126 = arith.constant dense<0.000000e+00> : vector<8x256xf32>
    %532 = tpu.matmul %528, %531, %cst_126 {dimension_numbers = #tpu.dot_dimension_numbers<[1], [0], [0], [1], [0, 0, 1, 1], [], []>} : vector<8x32xf32>, vector<32x256xf32>, vector<8x256xf32> -> vector<8x256xf32>
    %c1_127 = arith.constant 1 : index
    %c0_128 = arith.constant 0 : index
    %c0_129 = arith.constant 0 : index
    %533 = vector.load %arg12[%c1_127, %c0_128, %c0_129] : memref<3x32x256xf32, #tpu.memory_space<vmem>>, vector<1x32x256xf32>
    %534 = vector.shape_cast %533 : vector<1x32x256xf32> to vector<32x256xf32>
    %cst_130 = arith.constant dense<0.000000e+00> : vector<8x256xf32>
    %535 = tpu.matmul %1, %534, %cst_130 {dimension_numbers = #tpu.dot_dimension_numbers<[1], [0], [0], [1], [0, 0, 1, 1], [], []>} : vector<8x32xf32>, vector<32x256xf32>, vector<8x256xf32> -> vector<8x256xf32>
    %536 = arith.addf %532, %535 : vector<8x256xf32>
    %c2_131 = arith.constant 2 : index
    %c0_132 = arith.constant 0 : index
    %c0_133 = arith.constant 0 : index
    %537 = vector.load %arg12[%c2_131, %c0_132, %c0_133] : memref<3x32x256xf32, #tpu.memory_space<vmem>>, vector<1x32x256xf32>
    %538 = vector.shape_cast %537 : vector<1x32x256xf32> to vector<32x256xf32>
    %cst_134 = arith.constant dense<0.000000e+00> : vector<8x256xf32>
    %539 = tpu.matmul %529, %538, %cst_134 {dimension_numbers = #tpu.dot_dimension_numbers<[1], [0], [0], [1], [0, 0, 1, 1], [], []>} : vector<8x32xf32>, vector<32x256xf32>, vector<8x256xf32> -> vector<8x256xf32>
    %540 = arith.addf %536, %539 : vector<8x256xf32>
    %c0_135 = arith.constant 0 : index
    %c0_136 = arith.constant 0 : index
    %541 = vector.load %arg13[%c0_135, %c0_136] : memref<1x256xf32, #tpu.memory_space<vmem>>, vector<1x256xf32>
    %542 = vector.broadcast %541 : vector<1x256xf32> to vector<8x256xf32>
    %543 = arith.addf %540, %542 : vector<8x256xf32>
    %cst_137 = arith.constant 0.000000e+00 : f32
    %544 = vector.broadcast %cst_137 : f32 to vector<8x256xf32>
    %545 = arith.maximumf %543, %544 : vector<8x256xf32>
    %cst_138 = arith.constant dense<0.000000e+00> : vector<8x256xf32>
    %546 = tpu.matmul %522, %545, %cst_138 {dimension_numbers = #tpu.dot_dimension_numbers<[1], [0], [0], [1], [0, 0, 1, 1], [], []>} : vector<8x8xf32>, vector<8x256xf32>, vector<8x256xf32> -> vector<8x256xf32>
    %cst_139 = arith.constant dense<0.000000e+00> : vector<8x256xf32>
    %547 = tpu.matmul %527, %545, %cst_139 {dimension_numbers = #tpu.dot_dimension_numbers<[1], [0], [0], [1], [0, 0, 1, 1], [], []>} : vector<8x8xf32>, vector<8x256xf32>, vector<8x256xf32> -> vector<8x256xf32>
    %c0_140 = arith.constant 0 : index
    %c0_141 = arith.constant 0 : index
    %c0_142 = arith.constant 0 : index
    %548 = vector.load %arg14[%c0_140, %c0_141, %c0_142] : memref<3x256x8xf32, #tpu.memory_space<vmem>>, vector<1x256x8xf32>
    %549 = vector.shape_cast %548 : vector<1x256x8xf32> to vector<256x8xf32>
    %cst_143 = arith.constant dense<0.000000e+00> : vector<8x8xf32>
    %550 = tpu.matmul %546, %549, %cst_143 {dimension_numbers = #tpu.dot_dimension_numbers<[1], [0], [0], [1], [0, 0, 1, 1], [], []>} : vector<8x256xf32>, vector<256x8xf32>, vector<8x8xf32> -> vector<8x8xf32>
    %c1_144 = arith.constant 1 : index
    %c0_145 = arith.constant 0 : index
    %c0_146 = arith.constant 0 : index
    %551 = vector.load %arg14[%c1_144, %c0_145, %c0_146] : memref<3x256x8xf32, #tpu.memory_space<vmem>>, vector<1x256x8xf32>
    %552 = vector.shape_cast %551 : vector<1x256x8xf32> to vector<256x8xf32>
    %cst_147 = arith.constant dense<0.000000e+00> : vector<8x8xf32>
    %553 = tpu.matmul %545, %552, %cst_147 {dimension_numbers = #tpu.dot_dimension_numbers<[1], [0], [0], [1], [0, 0, 1, 1], [], []>} : vector<8x256xf32>, vector<256x8xf32>, vector<8x8xf32> -> vector<8x8xf32>
    %554 = arith.addf %550, %553 : vector<8x8xf32>
    %c2_148 = arith.constant 2 : index
    %c0_149 = arith.constant 0 : index
    %c0_150 = arith.constant 0 : index
    %555 = vector.load %arg14[%c2_148, %c0_149, %c0_150] : memref<3x256x8xf32, #tpu.memory_space<vmem>>, vector<1x256x8xf32>
    %556 = vector.shape_cast %555 : vector<1x256x8xf32> to vector<256x8xf32>
    %cst_151 = arith.constant dense<0.000000e+00> : vector<8x8xf32>
    %557 = tpu.matmul %547, %556, %cst_151 {dimension_numbers = #tpu.dot_dimension_numbers<[1], [0], [0], [1], [0, 0, 1, 1], [], []>} : vector<8x256xf32>, vector<256x8xf32>, vector<8x8xf32> -> vector<8x8xf32>
    %558 = arith.addf %554, %557 : vector<8x8xf32>
    %c0_152 = arith.constant 0 : index
    %c0_153 = arith.constant 0 : index
    %559 = vector.load %arg15[%c0_152, %c0_153] : memref<1x8xf32, #tpu.memory_space<vmem>>, vector<1x8xf32>
    %560 = vector.broadcast %559 : vector<1x8xf32> to vector<8x8xf32>
    %561 = arith.addf %558, %560 : vector<8x8xf32>
    %562 = vector.extract_strided_slice %8 {offsets = [0, 0], sizes = [8, 32], strides = [1, 1]} : vector<8x96xf32> to vector<8x32xf32>
    %563 = vector.extract_strided_slice %8 {offsets = [0, 32], sizes = [8, 32], strides = [1, 1]} : vector<8x96xf32> to vector<8x32xf32>
    %564 = vector.extract_strided_slice %8 {offsets = [0, 64], sizes = [8, 32], strides = [1, 1]} : vector<8x96xf32> to vector<8x32xf32>
    %c0_154 = arith.constant 0 : index
    %c0_155 = arith.constant 0 : index
    %565 = vector.load %arg16[%c0_154, %c0_155] : memref<32x32xf32, #tpu.memory_space<vmem>>, vector<32x32xf32>
    %cst_156 = arith.constant 0.000000e+00 : f32
    %566 = vector.broadcast %cst_156 : f32 to vector<8x32xf32>
    %567 = vector.extract_strided_slice %562 {offsets = [0, 0], sizes = [8, 4], strides = [1, 1]} : vector<8x32xf32> to vector<8x4xf32>
    %568 = vector.extract_strided_slice %563 {offsets = [0, 0], sizes = [8, 4], strides = [1, 1]} : vector<8x32xf32> to vector<8x4xf32>
    %569 = vector.extract_strided_slice %564 {offsets = [0, 0], sizes = [8, 4], strides = [1, 1]} : vector<8x32xf32> to vector<8x4xf32>
    %570 = tpu.transpose %568, [1, 0] : vector<8x4xf32> -> vector<4x8xf32>
    %cst_157 = arith.constant dense<0.000000e+00> : vector<8x8xf32>
    %571 = tpu.matmul %567, %570, %cst_157 {dimension_numbers = #tpu.dot_dimension_numbers<[1], [0], [0], [1], [0, 0, 1, 1], [], []>} : vector<8x4xf32>, vector<4x8xf32>, vector<8x8xf32> -> vector<8x8xf32>
    %cst_158 = arith.constant 0.0360843912 : f32
    %572 = vector.broadcast %cst_158 : f32 to vector<8x8xf32>
    %573 = arith.mulf %571, %572 : vector<8x8xf32>
    %cst_159 = arith.constant dense<0xFF800000> : vector<8xf32>
    %574 = vector.multi_reduction <maximumf>, %573, %cst_159 [1] : vector<8x8xf32> to vector<8xf32>
    %575 = vector.shape_cast %574 : vector<8xf32> to vector<8x1xf32>
    %576 = vector.broadcast %575 : vector<8x1xf32> to vector<8x8xf32>
    %577 = arith.subf %573, %576 : vector<8x8xf32>
    %578 = math.exp %577 : vector<8x8xf32>
    %cst_160 = arith.constant dense<0.000000e+00> : vector<8xf32>
    %579 = vector.multi_reduction <add>, %578, %cst_160 [1] : vector<8x8xf32> to vector<8xf32>
    %580 = vector.shape_cast %579 : vector<8xf32> to vector<8x1xf32>
    %581 = vector.broadcast %580 : vector<8x1xf32> to vector<8x8xf32>
    %582 = arith.divf %578, %581 : vector<8x8xf32>
    %cst_161 = arith.constant dense<0.000000e+00> : vector<8x4xf32>
    %583 = tpu.matmul %582, %569, %cst_161 {dimension_numbers = #tpu.dot_dimension_numbers<[1], [0], [0], [1], [0, 0, 1, 1], [], []>} : vector<8x8xf32>, vector<8x4xf32>, vector<8x4xf32> -> vector<8x4xf32>
    %584 = vector.extract_strided_slice %565 {offsets = [0, 0], sizes = [4, 32], strides = [1, 1]} : vector<32x32xf32> to vector<4x32xf32>
    %cst_162 = arith.constant dense<0.000000e+00> : vector<8x32xf32>
    %585 = tpu.matmul %583, %584, %cst_162 {dimension_numbers = #tpu.dot_dimension_numbers<[1], [0], [0], [1], [0, 0, 1, 1], [], []>} : vector<8x4xf32>, vector<4x32xf32>, vector<8x32xf32> -> vector<8x32xf32>
    %586 = arith.addf %566, %585 : vector<8x32xf32>
    %587 = vector.extract_strided_slice %562 {offsets = [0, 4], sizes = [8, 4], strides = [1, 1]} : vector<8x32xf32> to vector<8x4xf32>
    %588 = vector.extract_strided_slice %563 {offsets = [0, 4], sizes = [8, 4], strides = [1, 1]} : vector<8x32xf32> to vector<8x4xf32>
    %589 = vector.extract_strided_slice %564 {offsets = [0, 4], sizes = [8, 4], strides = [1, 1]} : vector<8x32xf32> to vector<8x4xf32>
    %590 = tpu.transpose %588, [1, 0] : vector<8x4xf32> -> vector<4x8xf32>
    %cst_163 = arith.constant dense<0.000000e+00> : vector<8x8xf32>
    %591 = tpu.matmul %587, %590, %cst_163 {dimension_numbers = #tpu.dot_dimension_numbers<[1], [0], [0], [1], [0, 0, 1, 1], [], []>} : vector<8x4xf32>, vector<4x8xf32>, vector<8x8xf32> -> vector<8x8xf32>
    %cst_164 = arith.constant 0.0360843912 : f32
    %592 = vector.broadcast %cst_164 : f32 to vector<8x8xf32>
    %593 = arith.mulf %591, %592 : vector<8x8xf32>
    %cst_165 = arith.constant dense<0xFF800000> : vector<8xf32>
    %594 = vector.multi_reduction <maximumf>, %593, %cst_165 [1] : vector<8x8xf32> to vector<8xf32>
    %595 = vector.shape_cast %594 : vector<8xf32> to vector<8x1xf32>
    %596 = vector.broadcast %595 : vector<8x1xf32> to vector<8x8xf32>
    %597 = arith.subf %593, %596 : vector<8x8xf32>
    %598 = math.exp %597 : vector<8x8xf32>
    %cst_166 = arith.constant dense<0.000000e+00> : vector<8xf32>
    %599 = vector.multi_reduction <add>, %598, %cst_166 [1] : vector<8x8xf32> to vector<8xf32>
    %600 = vector.shape_cast %599 : vector<8xf32> to vector<8x1xf32>
    %601 = vector.broadcast %600 : vector<8x1xf32> to vector<8x8xf32>
    %602 = arith.divf %598, %601 : vector<8x8xf32>
    %cst_167 = arith.constant dense<0.000000e+00> : vector<8x4xf32>
    %603 = tpu.matmul %602, %589, %cst_167 {dimension_numbers = #tpu.dot_dimension_numbers<[1], [0], [0], [1], [0, 0, 1, 1], [], []>} : vector<8x8xf32>, vector<8x4xf32>, vector<8x4xf32> -> vector<8x4xf32>
    %604 = vector.extract_strided_slice %565 {offsets = [4, 0], sizes = [4, 32], strides = [1, 1]} : vector<32x32xf32> to vector<4x32xf32>
    %cst_168 = arith.constant dense<0.000000e+00> : vector<8x32xf32>
    %605 = tpu.matmul %603, %604, %cst_168 {dimension_numbers = #tpu.dot_dimension_numbers<[1], [0], [0], [1], [0, 0, 1, 1], [], []>} : vector<8x4xf32>, vector<4x32xf32>, vector<8x32xf32> -> vector<8x32xf32>
    %606 = arith.addf %586, %605 : vector<8x32xf32>
    %607 = vector.extract_strided_slice %562 {offsets = [0, 8], sizes = [8, 4], strides = [1, 1]} : vector<8x32xf32> to vector<8x4xf32>
    %608 = vector.extract_strided_slice %563 {offsets = [0, 8], sizes = [8, 4], strides = [1, 1]} : vector<8x32xf32> to vector<8x4xf32>
    %609 = vector.extract_strided_slice %564 {offsets = [0, 8], sizes = [8, 4], strides = [1, 1]} : vector<8x32xf32> to vector<8x4xf32>
    %610 = tpu.transpose %608, [1, 0] : vector<8x4xf32> -> vector<4x8xf32>
    %cst_169 = arith.constant dense<0.000000e+00> : vector<8x8xf32>
    %611 = tpu.matmul %607, %610, %cst_169 {dimension_numbers = #tpu.dot_dimension_numbers<[1], [0], [0], [1], [0, 0, 1, 1], [], []>} : vector<8x4xf32>, vector<4x8xf32>, vector<8x8xf32> -> vector<8x8xf32>
    %cst_170 = arith.constant 0.0360843912 : f32
    %612 = vector.broadcast %cst_170 : f32 to vector<8x8xf32>
    %613 = arith.mulf %611, %612 : vector<8x8xf32>
    %cst_171 = arith.constant dense<0xFF800000> : vector<8xf32>
    %614 = vector.multi_reduction <maximumf>, %613, %cst_171 [1] : vector<8x8xf32> to vector<8xf32>
    %615 = vector.shape_cast %614 : vector<8xf32> to vector<8x1xf32>
    %616 = vector.broadcast %615 : vector<8x1xf32> to vector<8x8xf32>
    %617 = arith.subf %613, %616 : vector<8x8xf32>
    %618 = math.exp %617 : vector<8x8xf32>
    %cst_172 = arith.constant dense<0.000000e+00> : vector<8xf32>
    %619 = vector.multi_reduction <add>, %618, %cst_172 [1] : vector<8x8xf32> to vector<8xf32>
    %620 = vector.shape_cast %619 : vector<8xf32> to vector<8x1xf32>
    %621 = vector.broadcast %620 : vector<8x1xf32> to vector<8x8xf32>
    %622 = arith.divf %618, %621 : vector<8x8xf32>
    %cst_173 = arith.constant dense<0.000000e+00> : vector<8x4xf32>
    %623 = tpu.matmul %622, %609, %cst_173 {dimension_numbers = #tpu.dot_dimension_numbers<[1], [0], [0], [1], [0, 0, 1, 1], [], []>} : vector<8x8xf32>, vector<8x4xf32>, vector<8x4xf32> -> vector<8x4xf32>
    %624 = vector.extract_strided_slice %565 {offsets = [8, 0], sizes = [4, 32], strides = [1, 1]} : vector<32x32xf32> to vector<4x32xf32>
    %cst_174 = arith.constant dense<0.000000e+00> : vector<8x32xf32>
    %625 = tpu.matmul %623, %624, %cst_174 {dimension_numbers = #tpu.dot_dimension_numbers<[1], [0], [0], [1], [0, 0, 1, 1], [], []>} : vector<8x4xf32>, vector<4x32xf32>, vector<8x32xf32> -> vector<8x32xf32>
    %626 = arith.addf %606, %625 : vector<8x32xf32>
    %627 = vector.extract_strided_slice %562 {offsets = [0, 12], sizes = [8, 4], strides = [1, 1]} : vector<8x32xf32> to vector<8x4xf32>
    %628 = vector.extract_strided_slice %563 {offsets = [0, 12], sizes = [8, 4], strides = [1, 1]} : vector<8x32xf32> to vector<8x4xf32>
    %629 = vector.extract_strided_slice %564 {offsets = [0, 12], sizes = [8, 4], strides = [1, 1]} : vector<8x32xf32> to vector<8x4xf32>
    %630 = tpu.transpose %628, [1, 0] : vector<8x4xf32> -> vector<4x8xf32>
    %cst_175 = arith.constant dense<0.000000e+00> : vector<8x8xf32>
    %631 = tpu.matmul %627, %630, %cst_175 {dimension_numbers = #tpu.dot_dimension_numbers<[1], [0], [0], [1], [0, 0, 1, 1], [], []>} : vector<8x4xf32>, vector<4x8xf32>, vector<8x8xf32> -> vector<8x8xf32>
    %cst_176 = arith.constant 0.0360843912 : f32
    %632 = vector.broadcast %cst_176 : f32 to vector<8x8xf32>
    %633 = arith.mulf %631, %632 : vector<8x8xf32>
    %cst_177 = arith.constant dense<0xFF800000> : vector<8xf32>
    %634 = vector.multi_reduction <maximumf>, %633, %cst_177 [1] : vector<8x8xf32> to vector<8xf32>
    %635 = vector.shape_cast %634 : vector<8xf32> to vector<8x1xf32>
    %636 = vector.broadcast %635 : vector<8x1xf32> to vector<8x8xf32>
    %637 = arith.subf %633, %636 : vector<8x8xf32>
    %638 = math.exp %637 : vector<8x8xf32>
    %cst_178 = arith.constant dense<0.000000e+00> : vector<8xf32>
    %639 = vector.multi_reduction <add>, %638, %cst_178 [1] : vector<8x8xf32> to vector<8xf32>
    %640 = vector.shape_cast %639 : vector<8xf32> to vector<8x1xf32>
    %641 = vector.broadcast %640 : vector<8x1xf32> to vector<8x8xf32>
    %642 = arith.divf %638, %641 : vector<8x8xf32>
    %cst_179 = arith.constant dense<0.000000e+00> : vector<8x4xf32>
    %643 = tpu.matmul %642, %629, %cst_179 {dimension_numbers = #tpu.dot_dimension_numbers<[1], [0], [0], [1], [0, 0, 1, 1], [], []>} : vector<8x8xf32>, vector<8x4xf32>, vector<8x4xf32> -> vector<8x4xf32>
    %644 = vector.extract_strided_slice %565 {offsets = [12, 0], sizes = [4, 32], strides = [1, 1]} : vector<32x32xf32> to vector<4x32xf32>
    %cst_180 = arith.constant dense<0.000000e+00> : vector<8x32xf32>
    %645 = tpu.matmul %643, %644, %cst_180 {dimension_numbers = #tpu.dot_dimension_numbers<[1], [0], [0], [1], [0, 0, 1, 1], [], []>} : vector<8x4xf32>, vector<4x32xf32>, vector<8x32xf32> -> vector<8x32xf32>
    %646 = arith.addf %626, %645 : vector<8x32xf32>
    %647 = vector.extract_strided_slice %562 {offsets = [0, 16], sizes = [8, 4], strides = [1, 1]} : vector<8x32xf32> to vector<8x4xf32>
    %648 = vector.extract_strided_slice %563 {offsets = [0, 16], sizes = [8, 4], strides = [1, 1]} : vector<8x32xf32> to vector<8x4xf32>
    %649 = vector.extract_strided_slice %564 {offsets = [0, 16], sizes = [8, 4], strides = [1, 1]} : vector<8x32xf32> to vector<8x4xf32>
    %650 = tpu.transpose %648, [1, 0] : vector<8x4xf32> -> vector<4x8xf32>
    %cst_181 = arith.constant dense<0.000000e+00> : vector<8x8xf32>
    %651 = tpu.matmul %647, %650, %cst_181 {dimension_numbers = #tpu.dot_dimension_numbers<[1], [0], [0], [1], [0, 0, 1, 1], [], []>} : vector<8x4xf32>, vector<4x8xf32>, vector<8x8xf32> -> vector<8x8xf32>
    %cst_182 = arith.constant 0.0360843912 : f32
    %652 = vector.broadcast %cst_182 : f32 to vector<8x8xf32>
    %653 = arith.mulf %651, %652 : vector<8x8xf32>
    %cst_183 = arith.constant dense<0xFF800000> : vector<8xf32>
    %654 = vector.multi_reduction <maximumf>, %653, %cst_183 [1] : vector<8x8xf32> to vector<8xf32>
    %655 = vector.shape_cast %654 : vector<8xf32> to vector<8x1xf32>
    %656 = vector.broadcast %655 : vector<8x1xf32> to vector<8x8xf32>
    %657 = arith.subf %653, %656 : vector<8x8xf32>
    %658 = math.exp %657 : vector<8x8xf32>
    %cst_184 = arith.constant dense<0.000000e+00> : vector<8xf32>
    %659 = vector.multi_reduction <add>, %658, %cst_184 [1] : vector<8x8xf32> to vector<8xf32>
    %660 = vector.shape_cast %659 : vector<8xf32> to vector<8x1xf32>
    %661 = vector.broadcast %660 : vector<8x1xf32> to vector<8x8xf32>
    %662 = arith.divf %658, %661 : vector<8x8xf32>
    %cst_185 = arith.constant dense<0.000000e+00> : vector<8x4xf32>
    %663 = tpu.matmul %662, %649, %cst_185 {dimension_numbers = #tpu.dot_dimension_numbers<[1], [0], [0], [1], [0, 0, 1, 1], [], []>} : vector<8x8xf32>, vector<8x4xf32>, vector<8x4xf32> -> vector<8x4xf32>
    %664 = vector.extract_strided_slice %565 {offsets = [16, 0], sizes = [4, 32], strides = [1, 1]} : vector<32x32xf32> to vector<4x32xf32>
    %cst_186 = arith.constant dense<0.000000e+00> : vector<8x32xf32>
    %665 = tpu.matmul %663, %664, %cst_186 {dimension_numbers = #tpu.dot_dimension_numbers<[1], [0], [0], [1], [0, 0, 1, 1], [], []>} : vector<8x4xf32>, vector<4x32xf32>, vector<8x32xf32> -> vector<8x32xf32>
    %666 = arith.addf %646, %665 : vector<8x32xf32>
    %667 = vector.extract_strided_slice %562 {offsets = [0, 20], sizes = [8, 4], strides = [1, 1]} : vector<8x32xf32> to vector<8x4xf32>
    %668 = vector.extract_strided_slice %563 {offsets = [0, 20], sizes = [8, 4], strides = [1, 1]} : vector<8x32xf32> to vector<8x4xf32>
    %669 = vector.extract_strided_slice %564 {offsets = [0, 20], sizes = [8, 4], strides = [1, 1]} : vector<8x32xf32> to vector<8x4xf32>
    %670 = tpu.transpose %668, [1, 0] : vector<8x4xf32> -> vector<4x8xf32>
    %cst_187 = arith.constant dense<0.000000e+00> : vector<8x8xf32>
    %671 = tpu.matmul %667, %670, %cst_187 {dimension_numbers = #tpu.dot_dimension_numbers<[1], [0], [0], [1], [0, 0, 1, 1], [], []>} : vector<8x4xf32>, vector<4x8xf32>, vector<8x8xf32> -> vector<8x8xf32>
    %cst_188 = arith.constant 0.0360843912 : f32
    %672 = vector.broadcast %cst_188 : f32 to vector<8x8xf32>
    %673 = arith.mulf %671, %672 : vector<8x8xf32>
    %cst_189 = arith.constant dense<0xFF800000> : vector<8xf32>
    %674 = vector.multi_reduction <maximumf>, %673, %cst_189 [1] : vector<8x8xf32> to vector<8xf32>
    %675 = vector.shape_cast %674 : vector<8xf32> to vector<8x1xf32>
    %676 = vector.broadcast %675 : vector<8x1xf32> to vector<8x8xf32>
    %677 = arith.subf %673, %676 : vector<8x8xf32>
    %678 = math.exp %677 : vector<8x8xf32>
    %cst_190 = arith.constant dense<0.000000e+00> : vector<8xf32>
    %679 = vector.multi_reduction <add>, %678, %cst_190 [1] : vector<8x8xf32> to vector<8xf32>
    %680 = vector.shape_cast %679 : vector<8xf32> to vector<8x1xf32>
    %681 = vector.broadcast %680 : vector<8x1xf32> to vector<8x8xf32>
    %682 = arith.divf %678, %681 : vector<8x8xf32>
    %cst_191 = arith.constant dense<0.000000e+00> : vector<8x4xf32>
    %683 = tpu.matmul %682, %669, %cst_191 {dimension_numbers = #tpu.dot_dimension_numbers<[1], [0], [0], [1], [0, 0, 1, 1], [], []>} : vector<8x8xf32>, vector<8x4xf32>, vector<8x4xf32> -> vector<8x4xf32>
    %684 = vector.extract_strided_slice %565 {offsets = [20, 0], sizes = [4, 32], strides = [1, 1]} : vector<32x32xf32> to vector<4x32xf32>
    %cst_192 = arith.constant dense<0.000000e+00> : vector<8x32xf32>
    %685 = tpu.matmul %683, %684, %cst_192 {dimension_numbers = #tpu.dot_dimension_numbers<[1], [0], [0], [1], [0, 0, 1, 1], [], []>} : vector<8x4xf32>, vector<4x32xf32>, vector<8x32xf32> -> vector<8x32xf32>
    %686 = arith.addf %666, %685 : vector<8x32xf32>
    %687 = vector.extract_strided_slice %562 {offsets = [0, 24], sizes = [8, 4], strides = [1, 1]} : vector<8x32xf32> to vector<8x4xf32>
    %688 = vector.extract_strided_slice %563 {offsets = [0, 24], sizes = [8, 4], strides = [1, 1]} : vector<8x32xf32> to vector<8x4xf32>
    %689 = vector.extract_strided_slice %564 {offsets = [0, 24], sizes = [8, 4], strides = [1, 1]} : vector<8x32xf32> to vector<8x4xf32>
    %690 = tpu.transpose %688, [1, 0] : vector<8x4xf32> -> vector<4x8xf32>
    %cst_193 = arith.constant dense<0.000000e+00> : vector<8x8xf32>
    %691 = tpu.matmul %687, %690, %cst_193 {dimension_numbers = #tpu.dot_dimension_numbers<[1], [0], [0], [1], [0, 0, 1, 1], [], []>} : vector<8x4xf32>, vector<4x8xf32>, vector<8x8xf32> -> vector<8x8xf32>
    %cst_194 = arith.constant 0.0360843912 : f32
    %692 = vector.broadcast %cst_194 : f32 to vector<8x8xf32>
    %693 = arith.mulf %691, %692 : vector<8x8xf32>
    %cst_195 = arith.constant dense<0xFF800000> : vector<8xf32>
    %694 = vector.multi_reduction <maximumf>, %693, %cst_195 [1] : vector<8x8xf32> to vector<8xf32>
    %695 = vector.shape_cast %694 : vector<8xf32> to vector<8x1xf32>
    %696 = vector.broadcast %695 : vector<8x1xf32> to vector<8x8xf32>
    %697 = arith.subf %693, %696 : vector<8x8xf32>
    %698 = math.exp %697 : vector<8x8xf32>
    %cst_196 = arith.constant dense<0.000000e+00> : vector<8xf32>
    %699 = vector.multi_reduction <add>, %698, %cst_196 [1] : vector<8x8xf32> to vector<8xf32>
    %700 = vector.shape_cast %699 : vector<8xf32> to vector<8x1xf32>
    %701 = vector.broadcast %700 : vector<8x1xf32> to vector<8x8xf32>
    %702 = arith.divf %698, %701 : vector<8x8xf32>
    %cst_197 = arith.constant dense<0.000000e+00> : vector<8x4xf32>
    %703 = tpu.matmul %702, %689, %cst_197 {dimension_numbers = #tpu.dot_dimension_numbers<[1], [0], [0], [1], [0, 0, 1, 1], [], []>} : vector<8x8xf32>, vector<8x4xf32>, vector<8x4xf32> -> vector<8x4xf32>
    %704 = vector.extract_strided_slice %565 {offsets = [24, 0], sizes = [4, 32], strides = [1, 1]} : vector<32x32xf32> to vector<4x32xf32>
    %cst_198 = arith.constant dense<0.000000e+00> : vector<8x32xf32>
    %705 = tpu.matmul %703, %704, %cst_198 {dimension_numbers = #tpu.dot_dimension_numbers<[1], [0], [0], [1], [0, 0, 1, 1], [], []>} : vector<8x4xf32>, vector<4x32xf32>, vector<8x32xf32> -> vector<8x32xf32>
    %706 = arith.addf %686, %705 : vector<8x32xf32>
    %707 = vector.extract_strided_slice %562 {offsets = [0, 28], sizes = [8, 4], strides = [1, 1]} : vector<8x32xf32> to vector<8x4xf32>
    %708 = vector.extract_strided_slice %563 {offsets = [0, 28], sizes = [8, 4], strides = [1, 1]} : vector<8x32xf32> to vector<8x4xf32>
    %709 = vector.extract_strided_slice %564 {offsets = [0, 28], sizes = [8, 4], strides = [1, 1]} : vector<8x32xf32> to vector<8x4xf32>
    %710 = tpu.transpose %708, [1, 0] : vector<8x4xf32> -> vector<4x8xf32>
    %cst_199 = arith.constant dense<0.000000e+00> : vector<8x8xf32>
    %711 = tpu.matmul %707, %710, %cst_199 {dimension_numbers = #tpu.dot_dimension_numbers<[1], [0], [0], [1], [0, 0, 1, 1], [], []>} : vector<8x4xf32>, vector<4x8xf32>, vector<8x8xf32> -> vector<8x8xf32>
    %cst_200 = arith.constant 0.0360843912 : f32
    %712 = vector.broadcast %cst_200 : f32 to vector<8x8xf32>
    %713 = arith.mulf %711, %712 : vector<8x8xf32>
    %cst_201 = arith.constant dense<0xFF800000> : vector<8xf32>
    %714 = vector.multi_reduction <maximumf>, %713, %cst_201 [1] : vector<8x8xf32> to vector<8xf32>
    %715 = vector.shape_cast %714 : vector<8xf32> to vector<8x1xf32>
    %716 = vector.broadcast %715 : vector<8x1xf32> to vector<8x8xf32>
    %717 = arith.subf %713, %716 : vector<8x8xf32>
    %718 = math.exp %717 : vector<8x8xf32>
    %cst_202 = arith.constant dense<0.000000e+00> : vector<8xf32>
    %719 = vector.multi_reduction <add>, %718, %cst_202 [1] : vector<8x8xf32> to vector<8xf32>
    %720 = vector.shape_cast %719 : vector<8xf32> to vector<8x1xf32>
    %721 = vector.broadcast %720 : vector<8x1xf32> to vector<8x8xf32>
    %722 = arith.divf %718, %721 : vector<8x8xf32>
    %cst_203 = arith.constant dense<0.000000e+00> : vector<8x4xf32>
    %723 = tpu.matmul %722, %709, %cst_203 {dimension_numbers = #tpu.dot_dimension_numbers<[1], [0], [0], [1], [0, 0, 1, 1], [], []>} : vector<8x8xf32>, vector<8x4xf32>, vector<8x4xf32> -> vector<8x4xf32>
    %724 = vector.extract_strided_slice %565 {offsets = [28, 0], sizes = [4, 32], strides = [1, 1]} : vector<32x32xf32> to vector<4x32xf32>
    %cst_204 = arith.constant dense<0.000000e+00> : vector<8x32xf32>
    %725 = tpu.matmul %723, %724, %cst_204 {dimension_numbers = #tpu.dot_dimension_numbers<[1], [0], [0], [1], [0, 0, 1, 1], [], []>} : vector<8x4xf32>, vector<4x32xf32>, vector<8x32xf32> -> vector<8x32xf32>
    %726 = arith.addf %706, %725 : vector<8x32xf32>
    %727 = arith.addf %1, %726 : vector<8x32xf32>
    %c0_205 = arith.constant 0 : index
    %c0_206 = arith.constant 0 : index
    %728 = vector.load %arg17[%c0_205, %c0_206] : memref<1x32xf32, #tpu.memory_space<vmem>>, vector<1x32xf32>
    %729 = vector.broadcast %728 : vector<1x32xf32> to vector<8x32xf32>
    %730 = arith.addf %727, %729 : vector<8x32xf32>
    %cst_207 = arith.constant dense<0.000000e+00> : vector<8xf32>
    %731 = vector.multi_reduction <add>, %730, %cst_207 [1] : vector<8x32xf32> to vector<8xf32>
    %732 = vector.shape_cast %731 : vector<8xf32> to vector<8x1xf32>
    %cst_208 = arith.constant 3.200000e+01 : f32
    %733 = vector.broadcast %cst_208 : f32 to vector<8x1xf32>
    %734 = arith.divf %732, %733 : vector<8x1xf32>
    %735 = vector.broadcast %734 : vector<8x1xf32> to vector<8x32xf32>
    %736 = arith.subf %730, %735 : vector<8x32xf32>
    %737 = arith.mulf %736, %736 : vector<8x32xf32>
    %cst_209 = arith.constant dense<0.000000e+00> : vector<8xf32>
    %738 = vector.multi_reduction <add>, %737, %cst_209 [1] : vector<8x32xf32> to vector<8xf32>
    %739 = vector.shape_cast %738 : vector<8xf32> to vector<8x1xf32>
    %cst_210 = arith.constant 3.200000e+01 : f32
    %740 = vector.broadcast %cst_210 : f32 to vector<8x1xf32>
    %741 = arith.divf %739, %740 : vector<8x1xf32>
    %cst_211 = arith.constant 9.99999974E-6 : f32
    %742 = vector.broadcast %cst_211 : f32 to vector<8x1xf32>
    %743 = arith.addf %741, %742 : vector<8x1xf32>
    %744 = math.rsqrt %743 : vector<8x1xf32>
    %745 = vector.broadcast %744 : vector<8x1xf32> to vector<8x32xf32>
    %746 = arith.mulf %736, %745 : vector<8x32xf32>
    %c0_212 = arith.constant 0 : index
    %c0_213 = arith.constant 0 : index
    %747 = vector.load %arg18[%c0_212, %c0_213] : memref<1x32xf32, #tpu.memory_space<vmem>>, vector<1x32xf32>
    %748 = vector.broadcast %747 : vector<1x32xf32> to vector<8x32xf32>
    %749 = arith.mulf %746, %748 : vector<8x32xf32>
    %c0_214 = arith.constant 0 : index
    %c0_215 = arith.constant 0 : index
    %750 = vector.load %arg19[%c0_214, %c0_215] : memref<1x32xf32, #tpu.memory_space<vmem>>, vector<1x32xf32>
    %751 = vector.broadcast %750 : vector<1x32xf32> to vector<8x32xf32>
    %752 = arith.addf %749, %751 : vector<8x32xf32>
    %c0_216 = arith.constant 0 : index
    %c0_217 = arith.constant 0 : index
    %753 = vector.load %arg20[%c0_216, %c0_217] : memref<32x96xf32, #tpu.memory_space<vmem>>, vector<32x96xf32>
    %cst_218 = arith.constant dense<0.000000e+00> : vector<8x96xf32>
    %754 = tpu.matmul %752, %753, %cst_218 {dimension_numbers = #tpu.dot_dimension_numbers<[1], [0], [0], [1], [0, 0, 1, 1], [], []>} : vector<8x32xf32>, vector<32x96xf32>, vector<8x96xf32> -> vector<8x96xf32>
    %c0_219 = arith.constant 0 : index
    %c0_220 = arith.constant 0 : index
    %755 = vector.load %arg21[%c0_219, %c0_220] : memref<1x96xf32, #tpu.memory_space<vmem>>, vector<1x96xf32>
    %756 = vector.broadcast %755 : vector<1x96xf32> to vector<8x96xf32>
    %757 = arith.addf %754, %756 : vector<8x96xf32>
    %758 = vector.extract_strided_slice %757 {offsets = [0, 0], sizes = [8, 32], strides = [1, 1]} : vector<8x96xf32> to vector<8x32xf32>
    %759 = vector.extract_strided_slice %757 {offsets = [0, 32], sizes = [8, 32], strides = [1, 1]} : vector<8x96xf32> to vector<8x32xf32>
    %760 = vector.extract_strided_slice %757 {offsets = [0, 64], sizes = [8, 32], strides = [1, 1]} : vector<8x96xf32> to vector<8x32xf32>
    %c0_221 = arith.constant 0 : index
    %c0_222 = arith.constant 0 : index
    %761 = vector.load %arg22[%c0_221, %c0_222] : memref<32x32xf32, #tpu.memory_space<vmem>>, vector<32x32xf32>
    %cst_223 = arith.constant 0.000000e+00 : f32
    %762 = vector.broadcast %cst_223 : f32 to vector<8x32xf32>
    %763 = vector.extract_strided_slice %758 {offsets = [0, 0], sizes = [8, 4], strides = [1, 1]} : vector<8x32xf32> to vector<8x4xf32>
    %764 = vector.extract_strided_slice %759 {offsets = [0, 0], sizes = [8, 4], strides = [1, 1]} : vector<8x32xf32> to vector<8x4xf32>
    %765 = vector.extract_strided_slice %760 {offsets = [0, 0], sizes = [8, 4], strides = [1, 1]} : vector<8x32xf32> to vector<8x4xf32>
    %766 = tpu.transpose %764, [1, 0] : vector<8x4xf32> -> vector<4x8xf32>
    %cst_224 = arith.constant dense<0.000000e+00> : vector<8x8xf32>
    %767 = tpu.matmul %763, %766, %cst_224 {dimension_numbers = #tpu.dot_dimension_numbers<[1], [0], [0], [1], [0, 0, 1, 1], [], []>} : vector<8x4xf32>, vector<4x8xf32>, vector<8x8xf32> -> vector<8x8xf32>
    %cst_225 = arith.constant 0.0360843912 : f32
    %768 = vector.broadcast %cst_225 : f32 to vector<8x8xf32>
    %769 = arith.mulf %767, %768 : vector<8x8xf32>
    %cst_226 = arith.constant dense<0xFF800000> : vector<8xf32>
    %770 = vector.multi_reduction <maximumf>, %769, %cst_226 [1] : vector<8x8xf32> to vector<8xf32>
    %771 = vector.shape_cast %770 : vector<8xf32> to vector<8x1xf32>
    %772 = vector.broadcast %771 : vector<8x1xf32> to vector<8x8xf32>
    %773 = arith.subf %769, %772 : vector<8x8xf32>
    %774 = math.exp %773 : vector<8x8xf32>
    %cst_227 = arith.constant dense<0.000000e+00> : vector<8xf32>
    %775 = vector.multi_reduction <add>, %774, %cst_227 [1] : vector<8x8xf32> to vector<8xf32>
    %776 = vector.shape_cast %775 : vector<8xf32> to vector<8x1xf32>
    %777 = vector.broadcast %776 : vector<8x1xf32> to vector<8x8xf32>
    %778 = arith.divf %774, %777 : vector<8x8xf32>
    %cst_228 = arith.constant dense<0.000000e+00> : vector<8x4xf32>
    %779 = tpu.matmul %778, %765, %cst_228 {dimension_numbers = #tpu.dot_dimension_numbers<[1], [0], [0], [1], [0, 0, 1, 1], [], []>} : vector<8x8xf32>, vector<8x4xf32>, vector<8x4xf32> -> vector<8x4xf32>
    %780 = vector.extract_strided_slice %761 {offsets = [0, 0], sizes = [4, 32], strides = [1, 1]} : vector<32x32xf32> to vector<4x32xf32>
    %cst_229 = arith.constant dense<0.000000e+00> : vector<8x32xf32>
    %781 = tpu.matmul %779, %780, %cst_229 {dimension_numbers = #tpu.dot_dimension_numbers<[1], [0], [0], [1], [0, 0, 1, 1], [], []>} : vector<8x4xf32>, vector<4x32xf32>, vector<8x32xf32> -> vector<8x32xf32>
    %782 = arith.addf %762, %781 : vector<8x32xf32>
    %783 = vector.extract_strided_slice %758 {offsets = [0, 4], sizes = [8, 4], strides = [1, 1]} : vector<8x32xf32> to vector<8x4xf32>
    %784 = vector.extract_strided_slice %759 {offsets = [0, 4], sizes = [8, 4], strides = [1, 1]} : vector<8x32xf32> to vector<8x4xf32>
    %785 = vector.extract_strided_slice %760 {offsets = [0, 4], sizes = [8, 4], strides = [1, 1]} : vector<8x32xf32> to vector<8x4xf32>
    %786 = tpu.transpose %784, [1, 0] : vector<8x4xf32> -> vector<4x8xf32>
    %cst_230 = arith.constant dense<0.000000e+00> : vector<8x8xf32>
    %787 = tpu.matmul %783, %786, %cst_230 {dimension_numbers = #tpu.dot_dimension_numbers<[1], [0], [0], [1], [0, 0, 1, 1], [], []>} : vector<8x4xf32>, vector<4x8xf32>, vector<8x8xf32> -> vector<8x8xf32>
    %cst_231 = arith.constant 0.0360843912 : f32
    %788 = vector.broadcast %cst_231 : f32 to vector<8x8xf32>
    %789 = arith.mulf %787, %788 : vector<8x8xf32>
    %cst_232 = arith.constant dense<0xFF800000> : vector<8xf32>
    %790 = vector.multi_reduction <maximumf>, %789, %cst_232 [1] : vector<8x8xf32> to vector<8xf32>
    %791 = vector.shape_cast %790 : vector<8xf32> to vector<8x1xf32>
    %792 = vector.broadcast %791 : vector<8x1xf32> to vector<8x8xf32>
    %793 = arith.subf %789, %792 : vector<8x8xf32>
    %794 = math.exp %793 : vector<8x8xf32>
    %cst_233 = arith.constant dense<0.000000e+00> : vector<8xf32>
    %795 = vector.multi_reduction <add>, %794, %cst_233 [1] : vector<8x8xf32> to vector<8xf32>
    %796 = vector.shape_cast %795 : vector<8xf32> to vector<8x1xf32>
    %797 = vector.broadcast %796 : vector<8x1xf32> to vector<8x8xf32>
    %798 = arith.divf %794, %797 : vector<8x8xf32>
    %cst_234 = arith.constant dense<0.000000e+00> : vector<8x4xf32>
    %799 = tpu.matmul %798, %785, %cst_234 {dimension_numbers = #tpu.dot_dimension_numbers<[1], [0], [0], [1], [0, 0, 1, 1], [], []>} : vector<8x8xf32>, vector<8x4xf32>, vector<8x4xf32> -> vector<8x4xf32>
    %800 = vector.extract_strided_slice %761 {offsets = [4, 0], sizes = [4, 32], strides = [1, 1]} : vector<32x32xf32> to vector<4x32xf32>
    %cst_235 = arith.constant dense<0.000000e+00> : vector<8x32xf32>
    %801 = tpu.matmul %799, %800, %cst_235 {dimension_numbers = #tpu.dot_dimension_numbers<[1], [0], [0], [1], [0, 0, 1, 1], [], []>} : vector<8x4xf32>, vector<4x32xf32>, vector<8x32xf32> -> vector<8x32xf32>
    %802 = arith.addf %782, %801 : vector<8x32xf32>
    %803 = vector.extract_strided_slice %758 {offsets = [0, 8], sizes = [8, 4], strides = [1, 1]} : vector<8x32xf32> to vector<8x4xf32>
    %804 = vector.extract_strided_slice %759 {offsets = [0, 8], sizes = [8, 4], strides = [1, 1]} : vector<8x32xf32> to vector<8x4xf32>
    %805 = vector.extract_strided_slice %760 {offsets = [0, 8], sizes = [8, 4], strides = [1, 1]} : vector<8x32xf32> to vector<8x4xf32>
    %806 = tpu.transpose %804, [1, 0] : vector<8x4xf32> -> vector<4x8xf32>
    %cst_236 = arith.constant dense<0.000000e+00> : vector<8x8xf32>
    %807 = tpu.matmul %803, %806, %cst_236 {dimension_numbers = #tpu.dot_dimension_numbers<[1], [0], [0], [1], [0, 0, 1, 1], [], []>} : vector<8x4xf32>, vector<4x8xf32>, vector<8x8xf32> -> vector<8x8xf32>
    %cst_237 = arith.constant 0.0360843912 : f32
    %808 = vector.broadcast %cst_237 : f32 to vector<8x8xf32>
    %809 = arith.mulf %807, %808 : vector<8x8xf32>
    %cst_238 = arith.constant dense<0xFF800000> : vector<8xf32>
    %810 = vector.multi_reduction <maximumf>, %809, %cst_238 [1] : vector<8x8xf32> to vector<8xf32>
    %811 = vector.shape_cast %810 : vector<8xf32> to vector<8x1xf32>
    %812 = vector.broadcast %811 : vector<8x1xf32> to vector<8x8xf32>
    %813 = arith.subf %809, %812 : vector<8x8xf32>
    %814 = math.exp %813 : vector<8x8xf32>
    %cst_239 = arith.constant dense<0.000000e+00> : vector<8xf32>
    %815 = vector.multi_reduction <add>, %814, %cst_239 [1] : vector<8x8xf32> to vector<8xf32>
    %816 = vector.shape_cast %815 : vector<8xf32> to vector<8x1xf32>
    %817 = vector.broadcast %816 : vector<8x1xf32> to vector<8x8xf32>
    %818 = arith.divf %814, %817 : vector<8x8xf32>
    %cst_240 = arith.constant dense<0.000000e+00> : vector<8x4xf32>
    %819 = tpu.matmul %818, %805, %cst_240 {dimension_numbers = #tpu.dot_dimension_numbers<[1], [0], [0], [1], [0, 0, 1, 1], [], []>} : vector<8x8xf32>, vector<8x4xf32>, vector<8x4xf32> -> vector<8x4xf32>
    %820 = vector.extract_strided_slice %761 {offsets = [8, 0], sizes = [4, 32], strides = [1, 1]} : vector<32x32xf32> to vector<4x32xf32>
    %cst_241 = arith.constant dense<0.000000e+00> : vector<8x32xf32>
    %821 = tpu.matmul %819, %820, %cst_241 {dimension_numbers = #tpu.dot_dimension_numbers<[1], [0], [0], [1], [0, 0, 1, 1], [], []>} : vector<8x4xf32>, vector<4x32xf32>, vector<8x32xf32> -> vector<8x32xf32>
    %822 = arith.addf %802, %821 : vector<8x32xf32>
    %823 = vector.extract_strided_slice %758 {offsets = [0, 12], sizes = [8, 4], strides = [1, 1]} : vector<8x32xf32> to vector<8x4xf32>
    %824 = vector.extract_strided_slice %759 {offsets = [0, 12], sizes = [8, 4], strides = [1, 1]} : vector<8x32xf32> to vector<8x4xf32>
    %825 = vector.extract_strided_slice %760 {offsets = [0, 12], sizes = [8, 4], strides = [1, 1]} : vector<8x32xf32> to vector<8x4xf32>
    %826 = tpu.transpose %824, [1, 0] : vector<8x4xf32> -> vector<4x8xf32>
    %cst_242 = arith.constant dense<0.000000e+00> : vector<8x8xf32>
    %827 = tpu.matmul %823, %826, %cst_242 {dimension_numbers = #tpu.dot_dimension_numbers<[1], [0], [0], [1], [0, 0, 1, 1], [], []>} : vector<8x4xf32>, vector<4x8xf32>, vector<8x8xf32> -> vector<8x8xf32>
    %cst_243 = arith.constant 0.0360843912 : f32
    %828 = vector.broadcast %cst_243 : f32 to vector<8x8xf32>
    %829 = arith.mulf %827, %828 : vector<8x8xf32>
    %cst_244 = arith.constant dense<0xFF800000> : vector<8xf32>
    %830 = vector.multi_reduction <maximumf>, %829, %cst_244 [1] : vector<8x8xf32> to vector<8xf32>
    %831 = vector.shape_cast %830 : vector<8xf32> to vector<8x1xf32>
    %832 = vector.broadcast %831 : vector<8x1xf32> to vector<8x8xf32>
    %833 = arith.subf %829, %832 : vector<8x8xf32>
    %834 = math.exp %833 : vector<8x8xf32>
    %cst_245 = arith.constant dense<0.000000e+00> : vector<8xf32>
    %835 = vector.multi_reduction <add>, %834, %cst_245 [1] : vector<8x8xf32> to vector<8xf32>
    %836 = vector.shape_cast %835 : vector<8xf32> to vector<8x1xf32>
    %837 = vector.broadcast %836 : vector<8x1xf32> to vector<8x8xf32>
    %838 = arith.divf %834, %837 : vector<8x8xf32>
    %cst_246 = arith.constant dense<0.000000e+00> : vector<8x4xf32>
    %839 = tpu.matmul %838, %825, %cst_246 {dimension_numbers = #tpu.dot_dimension_numbers<[1], [0], [0], [1], [0, 0, 1, 1], [], []>} : vector<8x8xf32>, vector<8x4xf32>, vector<8x4xf32> -> vector<8x4xf32>
    %840 = vector.extract_strided_slice %761 {offsets = [12, 0], sizes = [4, 32], strides = [1, 1]} : vector<32x32xf32> to vector<4x32xf32>
    %cst_247 = arith.constant dense<0.000000e+00> : vector<8x32xf32>
    %841 = tpu.matmul %839, %840, %cst_247 {dimension_numbers = #tpu.dot_dimension_numbers<[1], [0], [0], [1], [0, 0, 1, 1], [], []>} : vector<8x4xf32>, vector<4x32xf32>, vector<8x32xf32> -> vector<8x32xf32>
    %842 = arith.addf %822, %841 : vector<8x32xf32>
    %843 = vector.extract_strided_slice %758 {offsets = [0, 16], sizes = [8, 4], strides = [1, 1]} : vector<8x32xf32> to vector<8x4xf32>
    %844 = vector.extract_strided_slice %759 {offsets = [0, 16], sizes = [8, 4], strides = [1, 1]} : vector<8x32xf32> to vector<8x4xf32>
    %845 = vector.extract_strided_slice %760 {offsets = [0, 16], sizes = [8, 4], strides = [1, 1]} : vector<8x32xf32> to vector<8x4xf32>
    %846 = tpu.transpose %844, [1, 0] : vector<8x4xf32> -> vector<4x8xf32>
    %cst_248 = arith.constant dense<0.000000e+00> : vector<8x8xf32>
    %847 = tpu.matmul %843, %846, %cst_248 {dimension_numbers = #tpu.dot_dimension_numbers<[1], [0], [0], [1], [0, 0, 1, 1], [], []>} : vector<8x4xf32>, vector<4x8xf32>, vector<8x8xf32> -> vector<8x8xf32>
    %cst_249 = arith.constant 0.0360843912 : f32
    %848 = vector.broadcast %cst_249 : f32 to vector<8x8xf32>
    %849 = arith.mulf %847, %848 : vector<8x8xf32>
    %cst_250 = arith.constant dense<0xFF800000> : vector<8xf32>
    %850 = vector.multi_reduction <maximumf>, %849, %cst_250 [1] : vector<8x8xf32> to vector<8xf32>
    %851 = vector.shape_cast %850 : vector<8xf32> to vector<8x1xf32>
    %852 = vector.broadcast %851 : vector<8x1xf32> to vector<8x8xf32>
    %853 = arith.subf %849, %852 : vector<8x8xf32>
    %854 = math.exp %853 : vector<8x8xf32>
    %cst_251 = arith.constant dense<0.000000e+00> : vector<8xf32>
    %855 = vector.multi_reduction <add>, %854, %cst_251 [1] : vector<8x8xf32> to vector<8xf32>
    %856 = vector.shape_cast %855 : vector<8xf32> to vector<8x1xf32>
    %857 = vector.broadcast %856 : vector<8x1xf32> to vector<8x8xf32>
    %858 = arith.divf %854, %857 : vector<8x8xf32>
    %cst_252 = arith.constant dense<0.000000e+00> : vector<8x4xf32>
    %859 = tpu.matmul %858, %845, %cst_252 {dimension_numbers = #tpu.dot_dimension_numbers<[1], [0], [0], [1], [0, 0, 1, 1], [], []>} : vector<8x8xf32>, vector<8x4xf32>, vector<8x4xf32> -> vector<8x4xf32>
    %860 = vector.extract_strided_slice %761 {offsets = [16, 0], sizes = [4, 32], strides = [1, 1]} : vector<32x32xf32> to vector<4x32xf32>
    %cst_253 = arith.constant dense<0.000000e+00> : vector<8x32xf32>
    %861 = tpu.matmul %859, %860, %cst_253 {dimension_numbers = #tpu.dot_dimension_numbers<[1], [0], [0], [1], [0, 0, 1, 1], [], []>} : vector<8x4xf32>, vector<4x32xf32>, vector<8x32xf32> -> vector<8x32xf32>
    %862 = arith.addf %842, %861 : vector<8x32xf32>
    %863 = vector.extract_strided_slice %758 {offsets = [0, 20], sizes = [8, 4], strides = [1, 1]} : vector<8x32xf32> to vector<8x4xf32>
    %864 = vector.extract_strided_slice %759 {offsets = [0, 20], sizes = [8, 4], strides = [1, 1]} : vector<8x32xf32> to vector<8x4xf32>
    %865 = vector.extract_strided_slice %760 {offsets = [0, 20], sizes = [8, 4], strides = [1, 1]} : vector<8x32xf32> to vector<8x4xf32>
    %866 = tpu.transpose %864, [1, 0] : vector<8x4xf32> -> vector<4x8xf32>
    %cst_254 = arith.constant dense<0.000000e+00> : vector<8x8xf32>
    %867 = tpu.matmul %863, %866, %cst_254 {dimension_numbers = #tpu.dot_dimension_numbers<[1], [0], [0], [1], [0, 0, 1, 1], [], []>} : vector<8x4xf32>, vector<4x8xf32>, vector<8x8xf32> -> vector<8x8xf32>
    %cst_255 = arith.constant 0.0360843912 : f32
    %868 = vector.broadcast %cst_255 : f32 to vector<8x8xf32>
    %869 = arith.mulf %867, %868 : vector<8x8xf32>
    %cst_256 = arith.constant dense<0xFF800000> : vector<8xf32>
    %870 = vector.multi_reduction <maximumf>, %869, %cst_256 [1] : vector<8x8xf32> to vector<8xf32>
    %871 = vector.shape_cast %870 : vector<8xf32> to vector<8x1xf32>
    %872 = vector.broadcast %871 : vector<8x1xf32> to vector<8x8xf32>
    %873 = arith.subf %869, %872 : vector<8x8xf32>
    %874 = math.exp %873 : vector<8x8xf32>
    %cst_257 = arith.constant dense<0.000000e+00> : vector<8xf32>
    %875 = vector.multi_reduction <add>, %874, %cst_257 [1] : vector<8x8xf32> to vector<8xf32>
    %876 = vector.shape_cast %875 : vector<8xf32> to vector<8x1xf32>
    %877 = vector.broadcast %876 : vector<8x1xf32> to vector<8x8xf32>
    %878 = arith.divf %874, %877 : vector<8x8xf32>
    %cst_258 = arith.constant dense<0.000000e+00> : vector<8x4xf32>
    %879 = tpu.matmul %878, %865, %cst_258 {dimension_numbers = #tpu.dot_dimension_numbers<[1], [0], [0], [1], [0, 0, 1, 1], [], []>} : vector<8x8xf32>, vector<8x4xf32>, vector<8x4xf32> -> vector<8x4xf32>
    %880 = vector.extract_strided_slice %761 {offsets = [20, 0], sizes = [4, 32], strides = [1, 1]} : vector<32x32xf32> to vector<4x32xf32>
    %cst_259 = arith.constant dense<0.000000e+00> : vector<8x32xf32>
    %881 = tpu.matmul %879, %880, %cst_259 {dimension_numbers = #tpu.dot_dimension_numbers<[1], [0], [0], [1], [0, 0, 1, 1], [], []>} : vector<8x4xf32>, vector<4x32xf32>, vector<8x32xf32> -> vector<8x32xf32>
    %882 = arith.addf %862, %881 : vector<8x32xf32>
    %883 = vector.extract_strided_slice %758 {offsets = [0, 24], sizes = [8, 4], strides = [1, 1]} : vector<8x32xf32> to vector<8x4xf32>
    %884 = vector.extract_strided_slice %759 {offsets = [0, 24], sizes = [8, 4], strides = [1, 1]} : vector<8x32xf32> to vector<8x4xf32>
    %885 = vector.extract_strided_slice %760 {offsets = [0, 24], sizes = [8, 4], strides = [1, 1]} : vector<8x32xf32> to vector<8x4xf32>
    %886 = tpu.transpose %884, [1, 0] : vector<8x4xf32> -> vector<4x8xf32>
    %cst_260 = arith.constant dense<0.000000e+00> : vector<8x8xf32>
    %887 = tpu.matmul %883, %886, %cst_260 {dimension_numbers = #tpu.dot_dimension_numbers<[1], [0], [0], [1], [0, 0, 1, 1], [], []>} : vector<8x4xf32>, vector<4x8xf32>, vector<8x8xf32> -> vector<8x8xf32>
    %cst_261 = arith.constant 0.0360843912 : f32
    %888 = vector.broadcast %cst_261 : f32 to vector<8x8xf32>
    %889 = arith.mulf %887, %888 : vector<8x8xf32>
    %cst_262 = arith.constant dense<0xFF800000> : vector<8xf32>
    %890 = vector.multi_reduction <maximumf>, %889, %cst_262 [1] : vector<8x8xf32> to vector<8xf32>
    %891 = vector.shape_cast %890 : vector<8xf32> to vector<8x1xf32>
    %892 = vector.broadcast %891 : vector<8x1xf32> to vector<8x8xf32>
    %893 = arith.subf %889, %892 : vector<8x8xf32>
    %894 = math.exp %893 : vector<8x8xf32>
    %cst_263 = arith.constant dense<0.000000e+00> : vector<8xf32>
    %895 = vector.multi_reduction <add>, %894, %cst_263 [1] : vector<8x8xf32> to vector<8xf32>
    %896 = vector.shape_cast %895 : vector<8xf32> to vector<8x1xf32>
    %897 = vector.broadcast %896 : vector<8x1xf32> to vector<8x8xf32>
    %898 = arith.divf %894, %897 : vector<8x8xf32>
    %cst_264 = arith.constant dense<0.000000e+00> : vector<8x4xf32>
    %899 = tpu.matmul %898, %885, %cst_264 {dimension_numbers = #tpu.dot_dimension_numbers<[1], [0], [0], [1], [0, 0, 1, 1], [], []>} : vector<8x8xf32>, vector<8x4xf32>, vector<8x4xf32> -> vector<8x4xf32>
    %900 = vector.extract_strided_slice %761 {offsets = [24, 0], sizes = [4, 32], strides = [1, 1]} : vector<32x32xf32> to vector<4x32xf32>
    %cst_265 = arith.constant dense<0.000000e+00> : vector<8x32xf32>
    %901 = tpu.matmul %899, %900, %cst_265 {dimension_numbers = #tpu.dot_dimension_numbers<[1], [0], [0], [1], [0, 0, 1, 1], [], []>} : vector<8x4xf32>, vector<4x32xf32>, vector<8x32xf32> -> vector<8x32xf32>
    %902 = arith.addf %882, %901 : vector<8x32xf32>
    %903 = vector.extract_strided_slice %758 {offsets = [0, 28], sizes = [8, 4], strides = [1, 1]} : vector<8x32xf32> to vector<8x4xf32>
    %904 = vector.extract_strided_slice %759 {offsets = [0, 28], sizes = [8, 4], strides = [1, 1]} : vector<8x32xf32> to vector<8x4xf32>
    %905 = vector.extract_strided_slice %760 {offsets = [0, 28], sizes = [8, 4], strides = [1, 1]} : vector<8x32xf32> to vector<8x4xf32>
    %906 = tpu.transpose %904, [1, 0] : vector<8x4xf32> -> vector<4x8xf32>
    %cst_266 = arith.constant dense<0.000000e+00> : vector<8x8xf32>
    %907 = tpu.matmul %903, %906, %cst_266 {dimension_numbers = #tpu.dot_dimension_numbers<[1], [0], [0], [1], [0, 0, 1, 1], [], []>} : vector<8x4xf32>, vector<4x8xf32>, vector<8x8xf32> -> vector<8x8xf32>
    %cst_267 = arith.constant 0.0360843912 : f32
    %908 = vector.broadcast %cst_267 : f32 to vector<8x8xf32>
    %909 = arith.mulf %907, %908 : vector<8x8xf32>
    %cst_268 = arith.constant dense<0xFF800000> : vector<8xf32>
    %910 = vector.multi_reduction <maximumf>, %909, %cst_268 [1] : vector<8x8xf32> to vector<8xf32>
    %911 = vector.shape_cast %910 : vector<8xf32> to vector<8x1xf32>
    %912 = vector.broadcast %911 : vector<8x1xf32> to vector<8x8xf32>
    %913 = arith.subf %909, %912 : vector<8x8xf32>
    %914 = math.exp %913 : vector<8x8xf32>
    %cst_269 = arith.constant dense<0.000000e+00> : vector<8xf32>
    %915 = vector.multi_reduction <add>, %914, %cst_269 [1] : vector<8x8xf32> to vector<8xf32>
    %916 = vector.shape_cast %915 : vector<8xf32> to vector<8x1xf32>
    %917 = vector.broadcast %916 : vector<8x1xf32> to vector<8x8xf32>
    %918 = arith.divf %914, %917 : vector<8x8xf32>
    %cst_270 = arith.constant dense<0.000000e+00> : vector<8x4xf32>
    %919 = tpu.matmul %918, %905, %cst_270 {dimension_numbers = #tpu.dot_dimension_numbers<[1], [0], [0], [1], [0, 0, 1, 1], [], []>} : vector<8x8xf32>, vector<8x4xf32>, vector<8x4xf32> -> vector<8x4xf32>
    %920 = vector.extract_strided_slice %761 {offsets = [28, 0], sizes = [4, 32], strides = [1, 1]} : vector<32x32xf32> to vector<4x32xf32>
    %cst_271 = arith.constant dense<0.000000e+00> : vector<8x32xf32>
    %921 = tpu.matmul %919, %920, %cst_271 {dimension_numbers = #tpu.dot_dimension_numbers<[1], [0], [0], [1], [0, 0, 1, 1], [], []>} : vector<8x4xf32>, vector<4x32xf32>, vector<8x32xf32> -> vector<8x32xf32>
    %922 = arith.addf %902, %921 : vector<8x32xf32>
    %923 = arith.addf %752, %922 : vector<8x32xf32>
    %c0_272 = arith.constant 0 : index
    %c0_273 = arith.constant 0 : index
    %924 = vector.load %arg23[%c0_272, %c0_273] : memref<1x32xf32, #tpu.memory_space<vmem>>, vector<1x32xf32>
    %925 = vector.broadcast %924 : vector<1x32xf32> to vector<8x32xf32>
    %926 = arith.addf %923, %925 : vector<8x32xf32>
    %cst_274 = arith.constant dense<0.000000e+00> : vector<8xf32>
    %927 = vector.multi_reduction <add>, %926, %cst_274 [1] : vector<8x32xf32> to vector<8xf32>
    %928 = vector.shape_cast %927 : vector<8xf32> to vector<8x1xf32>
    %cst_275 = arith.constant 3.200000e+01 : f32
    %929 = vector.broadcast %cst_275 : f32 to vector<8x1xf32>
    %930 = arith.divf %928, %929 : vector<8x1xf32>
    %931 = vector.broadcast %930 : vector<8x1xf32> to vector<8x32xf32>
    %932 = arith.subf %926, %931 : vector<8x32xf32>
    %933 = arith.mulf %932, %932 : vector<8x32xf32>
    %cst_276 = arith.constant dense<0.000000e+00> : vector<8xf32>
    %934 = vector.multi_reduction <add>, %933, %cst_276 [1] : vector<8x32xf32> to vector<8xf32>
    %935 = vector.shape_cast %934 : vector<8xf32> to vector<8x1xf32>
    %cst_277 = arith.constant 3.200000e+01 : f32
    %936 = vector.broadcast %cst_277 : f32 to vector<8x1xf32>
    %937 = arith.divf %935, %936 : vector<8x1xf32>
    %cst_278 = arith.constant 9.99999974E-6 : f32
    %938 = vector.broadcast %cst_278 : f32 to vector<8x1xf32>
    %939 = arith.addf %937, %938 : vector<8x1xf32>
    %940 = math.rsqrt %939 : vector<8x1xf32>
    %941 = vector.broadcast %940 : vector<8x1xf32> to vector<8x32xf32>
    %942 = arith.mulf %932, %941 : vector<8x32xf32>
    %c0_279 = arith.constant 0 : index
    %c0_280 = arith.constant 0 : index
    %943 = vector.load %arg24[%c0_279, %c0_280] : memref<1x32xf32, #tpu.memory_space<vmem>>, vector<1x32xf32>
    %944 = vector.broadcast %943 : vector<1x32xf32> to vector<8x32xf32>
    %945 = arith.mulf %942, %944 : vector<8x32xf32>
    %c0_281 = arith.constant 0 : index
    %c0_282 = arith.constant 0 : index
    %946 = vector.load %arg25[%c0_281, %c0_282] : memref<1x32xf32, #tpu.memory_space<vmem>>, vector<1x32xf32>
    %947 = vector.broadcast %946 : vector<1x32xf32> to vector<8x32xf32>
    %948 = arith.addf %945, %947 : vector<8x32xf32>
    %c0_283 = arith.constant 0 : index
    %c0_284 = arith.constant 0 : index
    %949 = vector.load %arg26[%c0_283, %c0_284] : memref<32x8xf32, #tpu.memory_space<vmem>>, vector<32x8xf32>
    %cst_285 = arith.constant dense<0.000000e+00> : vector<8x8xf32>
    %950 = tpu.matmul %948, %949, %cst_285 {dimension_numbers = #tpu.dot_dimension_numbers<[1], [0], [0], [1], [0, 0, 1, 1], [], []>} : vector<8x32xf32>, vector<32x8xf32>, vector<8x8xf32> -> vector<8x8xf32>
    %c0_286 = arith.constant 0 : index
    %c0_287 = arith.constant 0 : index
    %951 = vector.load %arg27[%c0_286, %c0_287] : memref<1x8xf32, #tpu.memory_space<vmem>>, vector<1x8xf32>
    %952 = vector.broadcast %951 : vector<1x8xf32> to vector<8x8xf32>
    %953 = arith.addf %950, %952 : vector<8x8xf32>
    %954 = vector.extract_strided_slice %9 {offsets = [0, 0], sizes = [8, 8], strides = [1, 1]} : vector<8x24xf32> to vector<8x8xf32>
    %955 = arith.mulf %515, %954 : vector<8x8xf32>
    %956 = vector.extract_strided_slice %9 {offsets = [0, 8], sizes = [8, 8], strides = [1, 1]} : vector<8x24xf32> to vector<8x8xf32>
    %957 = arith.mulf %561, %956 : vector<8x8xf32>
    %958 = arith.addf %955, %957 : vector<8x8xf32>
    %959 = vector.extract_strided_slice %9 {offsets = [0, 16], sizes = [8, 8], strides = [1, 1]} : vector<8x24xf32> to vector<8x8xf32>
    %960 = arith.mulf %953, %959 : vector<8x8xf32>
    %961 = arith.addf %958, %960 : vector<8x8xf32>
    %c0_288 = arith.constant 0 : index
    %c0_289 = arith.constant 0 : index
    %c0_290 = arith.constant 0 : index
    %962 = vector.load %arg28[%c0_288, %c0_289, %c0_290] : memref<1x8x8xf32, #tpu.memory_space<vmem>>, vector<1x8x8xf32>
    %963 = vector.shape_cast %962 : vector<1x8x8xf32> to vector<8x8xf32>
    %964 = vector.shape_cast %961 : vector<8x8xf32> to vector<1x8x8xf32>
    tpu.vector_store %arg28[%c0_288, %c0_289, %c0_290], %964 {strides = array<i32>} : memref<1x8x8xf32, #tpu.memory_space<vmem>>, vector<1x8x8xf32>,
    return
  }
  func.func @transform_0(%arg0: i32) -> (i32, i32, i32) {
    %c0_i32 = arith.constant 0 : i32
    %c0_i32_0 = arith.constant 0 : i32
    %c0_i32_1 = arith.constant 0 : i32
    return %arg0, %c0_i32, %c0_i32_0 : i32, i32, i32
  }
  func.func @transform_1(%arg0: i32) -> (i32, i32) {
    %c0_i32 = arith.constant 0 : i32
    %c0_i32_0 = arith.constant 0 : i32
    %c0_i32_1 = arith.constant 0 : i32
    return %c0_i32, %c0_i32_0 : i32, i32
  }
  func.func @transform_2(%arg0: i32) -> (i32, i32) {
    %c0_i32 = arith.constant 0 : i32
    %c0_i32_0 = arith.constant 0 : i32
    %c0_i32_1 = arith.constant 0 : i32
    return %c0_i32, %c0_i32_0 : i32, i32
  }
  func.func @transform_3(%arg0: i32) -> (i32, i32) {
    %c0_i32 = arith.constant 0 : i32
    %c0_i32_0 = arith.constant 0 : i32
    %c0_i32_1 = arith.constant 0 : i32
    return %c0_i32, %c0_i32_0 : i32, i32
  }
  func.func @transform_4(%arg0: i32) -> (i32, i32) {
    %c0_i32 = arith.constant 0 : i32
    %c0_i32_0 = arith.constant 0 : i32
    %c0_i32_1 = arith.constant 0 : i32
    return %c0_i32, %c0_i32_0 : i32, i32
  }
  func.func @transform_5(%arg0: i32) -> (i32, i32) {
    %c0_i32 = arith.constant 0 : i32
    %c0_i32_0 = arith.constant 0 : i32
    %c0_i32_1 = arith.constant 0 : i32
    return %c0_i32, %c0_i32_0 : i32, i32
  }
  func.func @transform_6(%arg0: i32) -> (i32, i32) {
    %c0_i32 = arith.constant 0 : i32
    %c0_i32_0 = arith.constant 0 : i32
    %c0_i32_1 = arith.constant 0 : i32
    return %c0_i32, %c0_i32_0 : i32, i32
  }
  func.func @transform_7(%arg0: i32) -> (i32, i32) {
    %c0_i32 = arith.constant 0 : i32
    %c0_i32_0 = arith.constant 0 : i32
    %c0_i32_1 = arith.constant 0 : i32
    return %c0_i32, %c0_i32_0 : i32, i32
  }
  func.func @transform_8(%arg0: i32) -> (i32, i32) {
    %c0_i32 = arith.constant 0 : i32
    %c0_i32_0 = arith.constant 0 : i32
    %c0_i32_1 = arith.constant 0 : i32
    return %c0_i32, %c0_i32_0 : i32, i32
  }
  func.func @transform_9(%arg0: i32) -> (i32, i32) {
    %c0_i32 = arith.constant 0 : i32
    %c0_i32_0 = arith.constant 0 : i32
    %c0_i32_1 = arith.constant 0 : i32
    return %c0_i32, %c0_i32_0 : i32, i32
  }
  func.func @transform_10(%arg0: i32) -> (i32, i32) {
    %c0_i32 = arith.constant 0 : i32
    %c0_i32_0 = arith.constant 0 : i32
    %c0_i32_1 = arith.constant 0 : i32
    return %c0_i32, %c0_i32_0 : i32, i32
  }
  func.func @transform_11(%arg0: i32) -> (i32, i32, i32) {
    %c0_i32 = arith.constant 0 : i32
    %c0_i32_0 = arith.constant 0 : i32
    %c0_i32_1 = arith.constant 0 : i32
    %c0_i32_2 = arith.constant 0 : i32
    return %c0_i32, %c0_i32_0, %c0_i32_1 : i32, i32, i32
  }
  func.func @transform_12(%arg0: i32) -> (i32, i32) {
    %c0_i32 = arith.constant 0 : i32
    %c0_i32_0 = arith.constant 0 : i32
    %c0_i32_1 = arith.constant 0 : i32
    return %c0_i32, %c0_i32_0 : i32, i32
  }
  func.func @transform_13(%arg0: i32) -> (i32, i32, i32) {
    %c0_i32 = arith.constant 0 : i32
    %c0_i32_0 = arith.constant 0 : i32
    %c0_i32_1 = arith.constant 0 : i32
    %c0_i32_2 = arith.constant 0 : i32
    return %c0_i32, %c0_i32_0, %c0_i32_1 : i32, i32, i32
  }
  func.func @transform_14(%arg0: i32) -> (i32, i32) {
    %c0_i32 = arith.constant 0 : i32
    %c0_i32_0 = arith.constant 0 : i32
    %c0_i32_1 = arith.constant 0 : i32
    return %c0_i32, %c0_i32_0 : i32, i32
  }
  func.func @transform_15(%arg0: i32) -> (i32, i32) {
    %c0_i32 = arith.constant 0 : i32
    %c0_i32_0 = arith.constant 0 : i32
    %c0_i32_1 = arith.constant 0 : i32
    return %c0_i32, %c0_i32_0 : i32, i32
  }
  func.func @transform_16(%arg0: i32) -> (i32, i32) {
    %c0_i32 = arith.constant 0 : i32
    %c0_i32_0 = arith.constant 0 : i32
    %c0_i32_1 = arith.constant 0 : i32
    return %c0_i32, %c0_i32_0 : i32, i32
  }
  func.func @transform_17(%arg0: i32) -> (i32, i32) {
    %c0_i32 = arith.constant 0 : i32
    %c0_i32_0 = arith.constant 0 : i32
    %c0_i32_1 = arith.constant 0 : i32
    return %c0_i32, %c0_i32_0 : i32, i32
  }
  func.func @transform_18(%arg0: i32) -> (i32, i32) {
    %c0_i32 = arith.constant 0 : i32
    %c0_i32_0 = arith.constant 0 : i32
    %c0_i32_1 = arith.constant 0 : i32
    return %c0_i32, %c0_i32_0 : i32, i32
  }
  func.func @transform_19(%arg0: i32) -> (i32, i32) {
    %c0_i32 = arith.constant 0 : i32
    %c0_i32_0 = arith.constant 0 : i32
    %c0_i32_1 = arith.constant 0 : i32
    return %c0_i32, %c0_i32_0 : i32, i32
  }
  func.func @transform_20(%arg0: i32) -> (i32, i32) {
    %c0_i32 = arith.constant 0 : i32
    %c0_i32_0 = arith.constant 0 : i32
    %c0_i32_1 = arith.constant 0 : i32
    return %c0_i32, %c0_i32_0 : i32, i32
  }
  func.func @transform_21(%arg0: i32) -> (i32, i32) {
    %c0_i32 = arith.constant 0 : i32
    %c0_i32_0 = arith.constant 0 : i32
    %c0_i32_1 = arith.constant 0 : i32
    return %c0_i32, %c0_i32_0 : i32, i32
  }
  func.func @transform_22(%arg0: i32) -> (i32, i32) {
    %c0_i32 = arith.constant 0 : i32
    %c0_i32_0 = arith.constant 0 : i32
    %c0_i32_1 = arith.constant 0 : i32
    return %c0_i32, %c0_i32_0 : i32, i32
  }
  func.func @transform_23(%arg0: i32) -> (i32, i32) {
    %c0_i32 = arith.constant 0 : i32
    %c0_i32_0 = arith.constant 0 : i32
    %c0_i32_1 = arith.constant 0 : i32
    return %c0_i32, %c0_i32_0 : i32, i32
  }
  func.func @transform_24(%arg0: i32) -> (i32, i32) {
    %c0_i32 = arith.constant 0 : i32
    %c0_i32_0 = arith.constant 0 : i32
    %c0_i32_1 = arith.constant 0 : i32
    return %c0_i32, %c0_i32_0 : i32, i32
  }
  func.func @transform_25(%arg0: i32) -> (i32, i32) {
    %c0_i32 = arith.constant 0 : i32
    %c0_i32_0 = arith.constant 0 : i32
    %c0_i32_1 = arith.constant 0 : i32
    return %c0_i32, %c0_i32_0 : i32, i32
  }
  func.func @transform_26(%arg0: i32) -> (i32, i32) {
    %c0_i32 = arith.constant 0 : i32
    %c0_i32_0 = arith.constant 0 : i32
    %c0_i32_1 = arith.constant 0 : i32
    return %c0_i32, %c0_i32_0 : i32, i32
  }
  func.func @transform_27(%arg0: i32) -> (i32, i32, i32) {
    %c0_i32 = arith.constant 0 : i32
    %c0_i32_0 = arith.constant 0 : i32
    %c0_i32_1 = arith.constant 0 : i32
    return %arg0, %c0_i32, %c0_i32_0 : i32, i32, i32
  }
}

</mosaic_0001>

<llo_original>
// kernel: _lambda_.1
$region0: #{_lambda_.1}
  #allocation0 [shape = 'u32[]', space=smem, size = 0x4, offset = 0x4, fixed_abs, tag = 'smem constant byte address 0x4 - core index']
  #allocation1 [shape = 'u32[144,128]{1,0:T(1,128)}', space=vmem, size = 0x12000, scoped, tag = 'internal scratch']
  #allocation2 [shape = 'f32[8,32]{1,0:T(8,128)}', space=vmem, size = 0x1000, scoped, tag = 'scratch operand']
  #allocation3 [shape = 'f32[8,32]{1,0:T(8,128)}', space=vmem, size = 0x1000, scoped, tag = 'scratch operand']
  %s0 = inlined_call_operand.hbm [shape: f32[2,8,32], index: 0, kind: input, shape index: {}]
  %s1 = inlined_call_operand.hbm [shape: f32[32,152], index: 1, kind: input, shape index: {}]
  %s2 = inlined_call_operand.vmem [shape: f32[1,152], index: 2, kind: input, shape index: {}]
  %s3 = inlined_call_operand.hbm [shape: f32[32,192], index: 3, kind: input, shape index: {}]
  %s4 = inlined_call_operand.vmem [shape: f32[1,192], index: 4, kind: input, shape index: {}]
  %s5 = inlined_call_operand.hbm [shape: f32[32,96], index: 5, kind: input, shape index: {}]
  %s6 = inlined_call_operand.vmem [shape: f32[1,96], index: 6, kind: input, shape index: {}]
  %s7 = inlined_call_operand.hbm [shape: f32[32,96], index: 7, kind: input, shape index: {}]
  %s8 = inlined_call_operand.vmem [shape: f32[1,96], index: 8, kind: input, shape index: {}]
  %s9 = inlined_call_operand.hbm [shape: f32[64,8], index: 9, kind: input, shape index: {}]
  %s10 = inlined_call_operand.vmem [shape: f32[1,8], index: 10, kind: input, shape index: {}]
  %s11 = inlined_call_operand.hbm [shape: f32[3,32,256], index: 11, kind: input, shape index: {}]
  %s12 = inlined_call_operand.vmem [shape: f32[1,256], index: 12, kind: input, shape index: {}]
  %s13 = inlined_call_operand.hbm [shape: f32[3,256,8], index: 13, kind: input, shape index: {}]
  %s14 = inlined_call_operand.vmem [shape: f32[1,8], index: 14, kind: input, shape index: {}]
  %s15 = inlined_call_operand.hbm [shape: f32[32,32], index: 15, kind: input, shape index: {}]
  %s16 = inlined_call_operand.vmem [shape: f32[1,32], index: 16, kind: input, shape index: {}]
  %s17 = inlined_call_operand.vmem [shape: f32[1,32], index: 17, kind: input, shape index: {}, may-alias: {17,23}]
  %s18 = inlined_call_operand.vmem [shape: f32[1,32], index: 18, kind: input, shape index: {}, may-alias: {18,24}]
  %s19 = inlined_call_operand.hbm [shape: f32[32,96], index: 19, kind: input, shape index: {}]
  %s20 = inlined_call_operand.vmem [shape: f32[1,96], index: 20, kind: input, shape index: {}]
  %s21 = inlined_call_operand.hbm [shape: f32[32,32], index: 21, kind: input, shape index: {}]
  %s22 = inlined_call_operand.vmem [shape: f32[1,32], index: 22, kind: input, shape index: {}]
  %s23 = inlined_call_operand.vmem [shape: f32[1,32], index: 23, kind: input, shape index: {}, may-alias: {17,23}]
  %s24 = inlined_call_operand.vmem [shape: f32[1,32], index: 24, kind: input, shape index: {}, may-alias: {18,24}]
  %s25 = inlined_call_operand.hbm [shape: f32[32,8], index: 25, kind: input, shape index: {}]
  %s26 = inlined_call_operand.vmem [shape: f32[1,8], index: 26, kind: input, shape index: {}]
  %s27 = inlined_call_operand.hbm [shape: f32[2,8,8], index: 27, kind: output, shape index: {}]
  %s28 = sld [smem:[#allocation0]]
  $region189: #{_lambda_.1} parent=0
    _
  %s30 = ssub.s32 1, %s28
  %s31 = scalar_select 0, %s30, %s28
  $region1: #{_lambda_.1} parent=0
    #allocation4 [shape = 'u8[8192]{0}', space=vmem, size = 0x2000, scoped, tag = 'input window, operand 0']
    #allocation5 [shape = 's32[2]{0}', space=sflag, size = 0x8, scoped, tag = 'scoped memory for _lambda_.1']
    #allocation6 [shape = 's32[2]{0}', space=sflag, size = 0x8, scoped, tag = 'scoped memory for _lambda_.1']
    #allocation7 [shape = 'u8[32768]{0}', space=vmem, size = 0x8000, scoped, tag = 'input window, operand 1, single buffered']
    #allocation8 [shape = 's32[1]{0}', space=sflag, size = 0x4, scoped, tag = 'scoped memory for _lambda_.1']
    #allocation9 [shape = 'u8[32768]{0}', space=vmem, size = 0x8000, scoped, tag = 'input window, operand 3, single buffered']
    #allocation10 [shape = 'u8[16384]{0}', space=vmem, size = 0x4000, scoped, tag = 'input window, operand 5, single buffered']
    #allocation11 [shape = 's32[1]{0}', space=sflag, size = 0x4, scoped, tag = 'scoped memory for _lambda_.1']
    #allocation12 [shape = 'u8[16384]{0}', space=vmem, size = 0x4000, scoped, tag = 'input window, operand 7, single buffered']
    #allocation13 [shape = 'u8[32768]{0}', space=vmem, size = 0x8000, scoped, tag = 'input window, operand 9, single buffered']
    #allocation14 [shape = 's32[1]{0}', space=sflag, size = 0x4, scoped, tag = 'scoped memory for _lambda_.1']
    #allocation15 [shape = 'u8[98304]{0}', space=vmem, size = 0x18000, scoped, tag = 'input window, operand 11, single buffered']
    #allocation16 [shape = 'u8[393216]{0}', space=vmem, size = 0x60000, scoped, tag = 'input window, operand 13, single buffered']
    #allocation17 [shape = 's32[1]{0}', space=sflag, size = 0x4, scoped, tag = 'scoped memory for _lambda_.1']
    #allocation18 [shape = 'u8[16384]{0}', space=vmem, size = 0x4000, scoped, tag = 'input window, operand 15, single buffered']
    #allocation19 [shape = 'u8[16384]{0}', space=vmem, size = 0x4000, scoped, tag = 'input window, operand 19, single buffered']
    #allocation20 [shape = 's32[1]{0}', space=sflag, size = 0x4, scoped, tag = 'scoped memory for _lambda_.1']
    #allocation21 [shape = 'u8[16384]{0}', space=vmem, size = 0x4000, scoped, tag = 'input window, operand 21, single buffered']
    #allocation22 [shape = 'u8[16384]{0}', space=vmem, size = 0x4000, scoped, tag = 'input window, operand 25, single buffered']
    #allocation23 [shape = 's32[1]{0}', space=sflag, size = 0x4, scoped, tag = 'scoped memory for _lambda_.1']
    #allocation24 [shape = 'u8[8192]{0}', space=vmem, size = 0x2000, scoped, tag = 'output window, operand 0']
    %32 = vsyncpa [#allocation5], 0
    %s33 = scalar_lea.sflag [#allocation5], 1
    %34 = vsyncpa %s33, 0
    %35 = vsyncpa [#allocation8], 0
    %36 = vsyncpa [#allocation11], 0
    %37 = vsyncpa [#allocation14], 0
    %38 = vsyncpa [#allocation17], 0
    %39 = vsyncpa [#allocation20], 0
    %40 = vsyncpa [#allocation23], 0
    %41 = vsyncpa [#allocation6], 0
    %s42 = scalar_lea.sflag [#allocation6], 1
    %43 = vsyncpa %s42, 0
    loop: start=0, step=1, limit=4
    $region2: #{_lambda_.1} parent=1 // loop_pre_header
      _
    $region3: #{_lambda_.1} parent=1 // loop_header
      %s45 = sphi 0, %s49
      %p46 = scmp.ge.s32.totalorder %s45, 4
      %s55 = sphi 0, %s57
      %s58 = sphi 0, %s55
      %s59 = sphi 0, %s58
      %s75 = sphi 0, %s59
      %s79 = sphi 0, %s79
      %s81 = sphi 0, %s79
      %s82 = sphi 0, %s81
      %s96 = sphi 0, %s82
      %s100 = sphi 0, %s100
      %s102 = sphi 0, %s100
      %s103 = sphi 0, %s102
      %s117 = sphi 0, %s103
      %s121 = sphi 0, %s121
      %s123 = sphi 0, %s121
      %s124 = sphi 0, %s123
      %s138 = sphi 0, %s124
      %s142 = sphi 0, %s142
      %s144 = sphi 0, %s142
      %s145 = sphi 0, %s144
      %s159 = sphi 0, %s145
      %s163 = sphi 0, %s163
      %s165 = sphi 0, %s163
      %s166 = sphi 0, %s165
      %s180 = sphi 0, %s166
      %s184 = sphi 0, %s184
      %s186 = sphi 0, %s184
      %s187 = sphi 0, %s186
      %s201 = sphi 0, %s187
      %s205 = sphi 0, %s205
      %s207 = sphi 0, %s205
      %s208 = sphi 0, %s207
      %s222 = sphi 0, %s208
      %s226 = sphi 0, %s226
      %s228 = sphi 0, %s226
      %s229 = sphi 0, %s228
      %s243 = sphi 0, %s229
      %s247 = sphi 0, %s247
      %s249 = sphi 0, %s247
      %s250 = sphi 0, %s249
      %s264 = sphi 0, %s250
      %s268 = sphi 0, %s268
      %s270 = sphi 0, %s268
      %s271 = sphi 0, %s270
      %s285 = sphi 0, %s271
      %s289 = sphi 0, %s289
      %s291 = sphi 0, %s289
      %s292 = sphi 0, %s291
      %s306 = sphi 0, %s292
      %s310 = sphi 0, %s310
      %s312 = sphi 0, %s310
      %s313 = sphi 0, %s312
      %s327 = sphi 0, %s313
      %s331 = sphi 0, %s331
      %s333 = sphi 0, %s331
      %s334 = sphi 0, %s333
      %s348 = sphi 0, %s334
      %s352 = sphi 0, %s352
      %s354 = sphi 0, %s352
      %s355 = sphi 0, %s354
      %s369 = sphi 0, %s355
      %s373 = sphi 0, %s373
      %s375 = sphi 0, %s373
      %s376 = sphi 0, %s375
      %s390 = sphi 0, %s376
      %s394 = sphi 0, %s394
      %s396 = sphi 0, %s394
      %s397 = sphi 0, %s396
      %s411 = sphi 0, %s397
      %s415 = sphi 0, %s415
      %s417 = sphi 0, %s415
      %s418 = sphi 0, %s417
      %s432 = sphi 0, %s418
      %s436 = sphi 0, %s436
      %s438 = sphi 0, %s436
      %s439 = sphi 0, %s438
      %s453 = sphi 0, %s439
      %s457 = sphi 0, %s457
      %s459 = sphi 0, %s457
      %s460 = sphi 0, %s459
      %s474 = sphi 0, %s460
      %s478 = sphi 0, %s478
      %s480 = sphi 0, %s478
      %s481 = sphi 0, %s480
      %s495 = sphi 0, %s481
      %s499 = sphi 0, %s499
      %s501 = sphi 0, %s499
      %s502 = sphi 0, %s501
      %s516 = sphi 0, %s502
      %s520 = sphi 0, %s520
      %s522 = sphi 0, %s520
      %s523 = sphi 0, %s522
      %s537 = sphi 0, %s523
      %s541 = sphi 0, %s541
      %s543 = sphi 0, %s541
      %s544 = sphi 0, %s543
      %s558 = sphi 0, %s544
      %s562 = sphi 0, %s562
      %s564 = sphi 0, %s562
      %s565 = sphi 0, %s564
      %s579 = sphi 0, %s565
      %s583 = sphi 0, %s583
      %s585 = sphi 0, %s583
      %s586 = sphi 0, %s585
      %s600 = sphi 0, %s586
      %s604 = sphi 0, %s604
      %s606 = sphi 0, %s604
      %s607 = sphi 0, %s606
      %s621 = sphi 0, %s607
      %s627 = sphi 0, %s629
      %s630 = sphi 0, %s627
      %s631 = sphi 0, %s630
      %s647 = sphi 0, %s631
    $region4: #{_lambda_.1} parent=1 // loop_header_branch
      %48 = sbr.rel (%p46) target = $region8
    $region5: #{_lambda_.1} parent=1 // loop_body
      %s50 = ssub.s32 %s45, 1
      %s51 = ssub.s32 %s45, 2
      %s52 = sadd.s32 %s45, 1
      %s53 = ssub.s32 %s45, %s52
      %p54 = scmp.eq.s32.totalorder %s53, 0
      %s56 = sadd.s32 %s55, 1
      %s57 = scalar_select %p54, %s55, %s56
      %p60 = pneg %p54
      %p61 = scmp.eq.s32.totalorder %s45, 1
      %p62 = por %p60, %p61
      %p63 = scmp.ne.s32.totalorder %s55, %s58
      %p64 = scmp.eq.s32.totalorder %s45, 0
      %p65 = por %p63, %p64
      %p66 = scmp.ne.s32.totalorder %s55, %s58
      %p67 = scmp.eq.s32.totalorder %s50, 1
      %p68 = por %p66, %p67
      %p69 = scmp.ne.s32.totalorder %s58, %s59
      %p70 = scmp.eq.s32.totalorder %s50, 0
      %p71 = por %p69, %p70
      %p72 = scmp.ne.s32.totalorder %s58, %s59
      %p73 = scmp.eq.s32.totalorder %s51, 1
      %p74 = por %p72, %p73
      %p76 = scmp.ne.s32.totalorder %s59, %s75
      %p77 = scmp.eq.s32.totalorder %s51, 0
      %p78 = por %p76, %p77
      %s80 = sadd.s32 %s79, 1
      %p83 = scmp.eq.s32.totalorder %s45, 1
      %p84 = scmp.ne.s32.totalorder %s79, %s81
      %p85 = scmp.eq.s32.totalorder %s45, 0
      %p86 = por %p84, %p85
      %p87 = scmp.ne.s32.totalorder %s79, %s81
      %p88 = scmp.eq.s32.totalorder %s50, 1
      %p89 = por %p87, %p88
      %p90 = scmp.ne.s32.totalorder %s81, %s82
      %p91 = scmp.eq.s32.totalorder %s50, 0
      %p92 = por %p90, %p91
      %p93 = scmp.ne.s32.totalorder %s81, %s82
      %p94 = scmp.eq.s32.totalorder %s51, 1
      %p95 = por %p93, %p94
      %p97 = scmp.ne.s32.totalorder %s82, %s96
      %p98 = scmp.eq.s32.totalorder %s51, 0
      %p99 = por %p97, %p98
      %s101 = sadd.s32 %s100, 1
      %p104 = scmp.eq.s32.totalorder %s45, 1
      %p105 = scmp.ne.s32.totalorder %s100, %s102
      %p106 = scmp.eq.s32.totalorder %s45, 0
      %p107 = por %p105, %p106
      %p108 = scmp.ne.s32.totalorder %s100, %s102
      %p109 = scmp.eq.s32.totalorder %s50, 1
      %p110 = por %p108, %p109
      %p111 = scmp.ne.s32.totalorder %s102, %s103
      %p112 = scmp.eq.s32.totalorder %s50, 0
      %p113 = por %p111, %p112
      %p114 = scmp.ne.s32.totalorder %s102, %s103
      %p115 = scmp.eq.s32.totalorder %s51, 1
      %p116 = por %p114, %p115
      %p118 = scmp.ne.s32.totalorder %s103, %s117
      %p119 = scmp.eq.s32.totalorder %s51, 0
      %p120 = por %p118, %p119
      %s122 = sadd.s32 %s121, 1
      %p125 = scmp.eq.s32.totalorder %s45, 1
      %p126 = scmp.ne.s32.totalorder %s121, %s123
      %p127 = scmp.eq.s32.totalorder %s45, 0
      %p128 = por %p126, %p127
      %p129 = scmp.ne.s32.totalorder %s121, %s123
      %p130 = scmp.eq.s32.totalorder %s50, 1
      %p131 = por %p129, %p130
      %p132 = scmp.ne.s32.totalorder %s123, %s124
      %p133 = scmp.eq.s32.totalorder %s50, 0
      %p134 = por %p132, %p133
      %p135 = scmp.ne.s32.totalorder %s123, %s124
      %p136 = scmp.eq.s32.totalorder %s51, 1
      %p137 = por %p135, %p136
      %p139 = scmp.ne.s32.totalorder %s124, %s138
      %p140 = scmp.eq.s32.totalorder %s51, 0
      %p141 = por %p139, %p140
      %s143 = sadd.s32 %s142, 1
      %p146 = scmp.eq.s32.totalorder %s45, 1
      %p147 = scmp.ne.s32.totalorder %s142, %s144
      %p148 = scmp.eq.s32.totalorder %s45, 0
      %p149 = por %p147, %p148
      %p150 = scmp.ne.s32.totalorder %s142, %s144
      %p151 = scmp.eq.s32.totalorder %s50, 1
      %p152 = por %p150, %p151
      %p153 = scmp.ne.s32.totalorder %s144, %s145
      %p154 = scmp.eq.s32.totalorder %s50, 0
      %p155 = por %p153, %p154
      %p156 = scmp.ne.s32.totalorder %s144, %s145
      %p157 = scmp.eq.s32.totalorder %s51, 1
      %p158 = por %p156, %p157
      %p160 = scmp.ne.s32.totalorder %s145, %s159
      %p161 = scmp.eq.s32.totalorder %s51, 0
      %p162 = por %p160, %p161
      %s164 = sadd.s32 %s163, 1
      %p167 = scmp.eq.s32.totalorder %s45, 1
      %p168 = scmp.ne.s32.totalorder %s163, %s165
      %p169 = scmp.eq.s32.totalorder %s45, 0
      %p170 = por %p168, %p169
      %p171 = scmp.ne.s32.totalorder %s163, %s165
      %p172 = scmp.eq.s32.totalorder %s50, 1
      %p173 = por %p171, %p172
      %p174 = scmp.ne.s32.totalorder %s165, %s166
      %p175 = scmp.eq.s32.totalorder %s50, 0
      %p176 = por %p174, %p175
      %p177 = scmp.ne.s32.totalorder %s165, %s166
      %p178 = scmp.eq.s32.totalorder %s51, 1
      %p179 = por %p177, %p178
      %p181 = scmp.ne.s32.totalorder %s166, %s180
      %p182 = scmp.eq.s32.totalorder %s51, 0
      %p183 = por %p181, %p182
      %s185 = sadd.s32 %s184, 1
      %p188 = scmp.eq.s32.totalorder %s45, 1
      %p189 = scmp.ne.s32.totalorder %s184, %s186
      %p190 = scmp.eq.s32.totalorder %s45, 0
      %p191 = por %p189, %p190
      %p192 = scmp.ne.s32.totalorder %s184, %s186
      %p193 = scmp.eq.s32.totalorder %s50, 1
      %p194 = por %p192, %p193
      %p195 = scmp.ne.s32.totalorder %s186, %s187
      %p196 = scmp.eq.s32.totalorder %s50, 0
      %p197 = por %p195, %p196
      %p198 = scmp.ne.s32.totalorder %s186, %s187
      %p199 = scmp.eq.s32.totalorder %s51, 1
      %p200 = por %p198, %p199
      %p202 = scmp.ne.s32.totalorder %s187, %s201
      %p203 = scmp.eq.s32.totalorder %s51, 0
      %p204 = por %p202, %p203
      %s206 = sadd.s32 %s205, 1
      %p209 = scmp.eq.s32.totalorder %s45, 1
      %p210 = scmp.ne.s32.totalorder %s205, %s207
      %p211 = scmp.eq.s32.totalorder %s45, 0
      %p212 = por %p210, %p211
      %p213 = scmp.ne.s32.totalorder %s205, %s207
      %p214 = scmp.eq.s32.totalorder %s50, 1
      %p215 = por %p213, %p214
      %p216 = scmp.ne.s32.totalorder %s207, %s208
      %p217 = scmp.eq.s32.totalorder %s50, 0
      %p218 = por %p216, %p217
      %p219 = scmp.ne.s32.totalorder %s207, %s208
      %p220 = scmp.eq.s32.totalorder %s51, 1
      %p221 = por %p219, %p220
      %p223 = scmp.ne.s32.totalorder %s208, %s222
      %p224 = scmp.eq.s32.totalorder %s51, 0
      %p225 = por %p223, %p224
      %s227 = sadd.s32 %s226, 1
      %p230 = scmp.eq.s32.totalorder %s45, 1
      %p231 = scmp.ne.s32.totalorder %s226, %s228
      %p232 = scmp.eq.s32.totalorder %s45, 0
      %p233 = por %p231, %p232
      %p234 = scmp.ne.s32.totalorder %s226, %s228
      %p235 = scmp.eq.s32.totalorder %s50, 1
      %p236 = por %p234, %p235
      %p237 = scmp.ne.s32.totalorder %s228, %s229
      %p238 = scmp.eq.s32.totalorder %s50, 0
      %p239 = por %p237, %p238
      %p240 = scmp.ne.s32.totalorder %s228, %s229
      %p241 = scmp.eq.s32.totalorder %s51, 1
      %p242 = por %p240, %p241
      %p244 = scmp.ne.s32.totalorder %s229, %s243
      %p245 = scmp.eq.s32.totalorder %s51, 0
      %p246 = por %p244, %p245
      %s248 = sadd.s32 %s247, 1
      %p251 = scmp.eq.s32.totalorder %s45, 1
      %p252 = scmp.ne.s32.totalorder %s247, %s249
      %p253 = scmp.eq.s32.totalorder %s45, 0
      %p254 = por %p252, %p253
      %p255 = scmp.ne.s32.totalorder %s247, %s249
      %p256 = scmp.eq.s32.totalorder %s50, 1
      %p257 = por %p255, %p256
      %p258 = scmp.ne.s32.totalorder %s249, %s250
      %p259 = scmp.eq.s32.totalorder %s50, 0
      %p260 = por %p258, %p259
      %p261 = scmp.ne.s32.totalorder %s249, %s250
      %p262 = scmp.eq.s32.totalorder %s51, 1
      %p263 = por %p261, %p262
      %p265 = scmp.ne.s32.totalorder %s250, %s264
      %p266 = scmp.eq.s32.totalorder %s51, 0
      %p267 = por %p265, %p266
      %s269 = sadd.s32 %s268, 1
      %p272 = scmp.eq.s32.totalorder %s45, 1
      %p273 = scmp.ne.s32.totalorder %s268, %s270
      %p274 = scmp.eq.s32.totalorder %s45, 0
      %p275 = por %p273, %p274
      %p276 = scmp.ne.s32.totalorder %s268, %s270
      %p277 = scmp.eq.s32.totalorder %s50, 1
      %p278 = por %p276, %p277
      %p279 = scmp.ne.s32.totalorder %s270, %s271
      %p280 = scmp.eq.s32.totalorder %s50, 0
      %p281 = por %p279, %p280
      %p282 = scmp.ne.s32.totalorder %s270, %s271
      %p283 = scmp.eq.s32.totalorder %s51, 1
      %p284 = por %p282, %p283
      %p286 = scmp.ne.s32.totalorder %s271, %s285
      %p287 = scmp.eq.s32.totalorder %s51, 0
      %p288 = por %p286, %p287
      %s290 = sadd.s32 %s289, 1
      %p293 = scmp.eq.s32.totalorder %s45, 1
      %p294 = scmp.ne.s32.totalorder %s289, %s291
      %p295 = scmp.eq.s32.totalorder %s45, 0
      %p296 = por %p294, %p295
      %p297 = scmp.ne.s32.totalorder %s289, %s291
      %p298 = scmp.eq.s32.totalorder %s50, 1
      %p299 = por %p297, %p298
      %p300 = scmp.ne.s32.totalorder %s291, %s292
      %p301 = scmp.eq.s32.totalorder %s50, 0
      %p302 = por %p300, %p301
      %p303 = scmp.ne.s32.totalorder %s291, %s292
      %p304 = scmp.eq.s32.totalorder %s51, 1
      %p305 = por %p303, %p304
      %p307 = scmp.ne.s32.totalorder %s292, %s306
      %p308 = scmp.eq.s32.totalorder %s51, 0
      %p309 = por %p307, %p308
      %s311 = sadd.s32 %s310, 1
      %p314 = scmp.eq.s32.totalorder %s45, 1
      %p315 = scmp.ne.s32.totalorder %s310, %s312
      %p316 = scmp.eq.s32.totalorder %s45, 0
      %p317 = por %p315, %p316
      %p318 = scmp.ne.s32.totalorder %s310, %s312
      %p319 = scmp.eq.s32.totalorder %s50, 1
      %p320 = por %p318, %p319
      %p321 = scmp.ne.s32.totalorder %s312, %s313
      %p322 = scmp.eq.s32.totalorder %s50, 0
      %p323 = por %p321, %p322
      %p324 = scmp.ne.s32.totalorder %s312, %s313
      %p325 = scmp.eq.s32.totalorder %s51, 1
      %p326 = por %p324, %p325
      %p328 = scmp.ne.s32.totalorder %s313, %s327
      %p329 = scmp.eq.s32.totalorder %s51, 0
      %p330 = por %p328, %p329
      %s332 = sadd.s32 %s331, 1
      %p335 = scmp.eq.s32.totalorder %s45, 1
      %p336 = scmp.ne.s32.totalorder %s331, %s333
      %p337 = scmp.eq.s32.totalorder %s45, 0
      %p338 = por %p336, %p337
      %p339 = scmp.ne.s32.totalorder %s331, %s333
      %p340 = scmp.eq.s32.totalorder %s50, 1
      %p341 = por %p339, %p340
      %p342 = scmp.ne.s32.totalorder %s333, %s334
      %p343 = scmp.eq.s32.totalorder %s50, 0
      %p344 = por %p342, %p343
      %p345 = scmp.ne.s32.totalorder %s333, %s334
      %p346 = scmp.eq.s32.totalorder %s51, 1
      %p347 = por %p345, %p346
      %p349 = scmp.ne.s32.totalorder %s334, %s348
      %p350 = scmp.eq.s32.totalorder %s51, 0
      %p351 = por %p349, %p350
      %s353 = sadd.s32 %s352, 1
      %p356 = scmp.eq.s32.totalorder %s45, 1
      %p357 = scmp.ne.s32.totalorder %s352, %s354
      %p358 = scmp.eq.s32.totalorder %s45, 0
      %p359 = por %p357, %p358
      %p360 = scmp.ne.s32.totalorder %s352, %s354
      %p361 = scmp.eq.s32.totalorder %s50, 1
      %p362 = por %p360, %p361
      %p363 = scmp.ne.s32.totalorder %s354, %s355
      %p364 = scmp.eq.s32.totalorder %s50, 0
      %p365 = por %p363, %p364
      %p366 = scmp.ne.s32.totalorder %s354, %s355
      %p367 = scmp.eq.s32.totalorder %s51, 1
      %p368 = por %p366, %p367
      %p370 = scmp.ne.s32.totalorder %s355, %s369
      %p371 = scmp.eq.s32.totalorder %s51, 0
      %p372 = por %p370, %p371
      %s374 = sadd.s32 %s373, 1
      %p377 = scmp.eq.s32.totalorder %s45, 1
      %p378 = scmp.ne.s32.totalorder %s373, %s375
      %p379 = scmp.eq.s32.totalorder %s45, 0
      %p380 = por %p378, %p379
      %p381 = scmp.ne.s32.totalorder %s373, %s375
      %p382 = scmp.eq.s32.totalorder %s50, 1
      %p383 = por %p381, %p382
      %p384 = scmp.ne.s32.totalorder %s375, %s376
      %p385 = scmp.eq.s32.totalorder %s50, 0
      %p386 = por %p384, %p385
      %p387 = scmp.ne.s32.totalorder %s375, %s376
      %p388 = scmp.eq.s32.totalorder %s51, 1
      %p389 = por %p387, %p388
      %p391 = scmp.ne.s32.totalorder %s376, %s390
      %p392 = scmp.eq.s32.totalorder %s51, 0
      %p393 = por %p391, %p392
      %s395 = sadd.s32 %s394, 1
      %p398 = scmp.eq.s32.totalorder %s45, 1
      %p399 = scmp.ne.s32.totalorder %s394, %s396
      %p400 = scmp.eq.s32.totalorder %s45, 0
      %p401 = por %p399, %p400
      %p402 = scmp.ne.s32.totalorder %s394, %s396
      %p403 = scmp.eq.s32.totalorder %s50, 1
      %p404 = por %p402, %p403
      %p405 = scmp.ne.s32.totalorder %s396, %s397
      %p406 = scmp.eq.s32.totalorder %s50, 0
      %p407 = por %p405, %p406
      %p408 = scmp.ne.s32.totalorder %s396, %s397
      %p409 = scmp.eq.s32.totalorder %s51, 1
      %p410 = por %p408, %p409
      %p412 = scmp.ne.s32.totalorder %s397, %s411
      %p413 = scmp.eq.s32.totalorder %s51, 0
      %p414 = por %p412, %p413
      %s416 = sadd.s32 %s415, 1
      %p419 = scmp.eq.s32.totalorder %s45, 1
      %p420 = scmp.ne.s32.totalorder %s415, %s417
      %p421 = scmp.eq.s32.totalorder %s45, 0
      %p422 = por %p420, %p421
      %p423 = scmp.ne.s32.totalorder %s415, %s417
      %p424 = scmp.eq.s32.totalorder %s50, 1
      %p425 = por %p423, %p424
      %p426 = scmp.ne.s32.totalorder %s417, %s418
      %p427 = scmp.eq.s32.totalorder %s50, 0
      %p428 = por %p426, %p427
      %p429 = scmp.ne.s32.totalorder %s417, %s418
      %p430 = scmp.eq.s32.totalorder %s51, 1
      %p431 = por %p429, %p430
      %p433 = scmp.ne.s32.totalorder %s418, %s432
      %p434 = scmp.eq.s32.totalorder %s51, 0
      %p435 = por %p433, %p434
      %s437 = sadd.s32 %s436, 1
      %p440 = scmp.eq.s32.totalorder %s45, 1
      %p441 = scmp.ne.s32.totalorder %s436, %s438
      %p442 = scmp.eq.s32.totalorder %s45, 0
      %p443 = por %p441, %p442
      %p444 = scmp.ne.s32.totalorder %s436, %s438
      %p445 = scmp.eq.s32.totalorder %s50, 1
      %p446 = por %p444, %p445
      %p447 = scmp.ne.s32.totalorder %s438, %s439
      %p448 = scmp.eq.s32.totalorder %s50, 0
      %p449 = por %p447, %p448
      %p450 = scmp.ne.s32.totalorder %s438, %s439
      %p451 = scmp.eq.s32.totalorder %s51, 1
      %p452 = por %p450, %p451
      %p454 = scmp.ne.s32.totalorder %s439, %s453
      %p455 = scmp.eq.s32.totalorder %s51, 0
      %p456 = por %p454, %p455
      %s458 = sadd.s32 %s457, 1
      %p461 = scmp.eq.s32.totalorder %s45, 1
      %p462 = scmp.ne.s32.totalorder %s457, %s459
      %p463 = scmp.eq.s32.totalorder %s45, 0
      %p464 = por %p462, %p463
      %p465 = scmp.ne.s32.totalorder %s457, %s459
      %p466 = scmp.eq.s32.totalorder %s50, 1
      %p467 = por %p465, %p466
      %p468 = scmp.ne.s32.totalorder %s459, %s460
      %p469 = scmp.eq.s32.totalorder %s50, 0
      %p470 = por %p468, %p469
      %p471 = scmp.ne.s32.totalorder %s459, %s460
      %p472 = scmp.eq.s32.totalorder %s51, 1
      %p473 = por %p471, %p472
      %p475 = scmp.ne.s32.totalorder %s460, %s474
      %p476 = scmp.eq.s32.totalorder %s51, 0
      %p477 = por %p475, %p476
      %s479 = sadd.s32 %s478, 1
      %p482 = scmp.eq.s32.totalorder %s45, 1
      %p483 = scmp.ne.s32.totalorder %s478, %s480
      %p484 = scmp.eq.s32.totalorder %s45, 0
      %p485 = por %p483, %p484
      %p486 = scmp.ne.s32.totalorder %s478, %s480
      %p487 = scmp.eq.s32.totalorder %s50, 1
      %p488 = por %p486, %p487
      %p489 = scmp.ne.s32.totalorder %s480, %s481
      %p490 = scmp.eq.s32.totalorder %s50, 0
      %p491 = por %p489, %p490
      %p492 = scmp.ne.s32.totalorder %s480, %s481
      %p493 = scmp.eq.s32.totalorder %s51, 1
      %p494 = por %p492, %p493
      %p496 = scmp.ne.s32.totalorder %s481, %s495
      %p497 = scmp.eq.s32.totalorder %s51, 0
      %p498 = por %p496, %p497
      %s500 = sadd.s32 %s499, 1
      %p503 = scmp.eq.s32.totalorder %s45, 1
      %p504 = scmp.ne.s32.totalorder %s499, %s501
      %p505 = scmp.eq.s32.totalorder %s45, 0
      %p506 = por %p504, %p505
      %p507 = scmp.ne.s32.totalorder %s499, %s501
      %p508 = scmp.eq.s32.totalorder %s50, 1
      %p509 = por %p507, %p508
      %p510 = scmp.ne.s32.totalorder %s501, %s502
      %p511 = scmp.eq.s32.totalorder %s50, 0
      %p512 = por %p510, %p511
      %p513 = scmp.ne.s32.totalorder %s501, %s502
      %p514 = scmp.eq.s32.totalorder %s51, 1
      %p515 = por %p513, %p514
      %p517 = scmp.ne.s32.totalorder %s502, %s516
      %p518 = scmp.eq.s32.totalorder %s51, 0
      %p519 = por %p517, %p518
      %s521 = sadd.s32 %s520, 1
      %p524 = scmp.eq.s32.totalorder %s45, 1
      %p525 = scmp.ne.s32.totalorder %s520, %s522
      %p526 = scmp.eq.s32.totalorder %s45, 0
      %p527 = por %p525, %p526
      %p528 = scmp.ne.s32.totalorder %s520, %s522
      %p529 = scmp.eq.s32.totalorder %s50, 1
      %p530 = por %p528, %p529
      %p531 = scmp.ne.s32.totalorder %s522, %s523
      %p532 = scmp.eq.s32.totalorder %s50, 0
      %p533 = por %p531, %p532
      %p534 = scmp.ne.s32.totalorder %s522, %s523
      %p535 = scmp.eq.s32.totalorder %s51, 1
      %p536 = por %p534, %p535
      %p538 = scmp.ne.s32.totalorder %s523, %s537
      %p539 = scmp.eq.s32.totalorder %s51, 0
      %p540 = por %p538, %p539
      %s542 = sadd.s32 %s541, 1
      %p545 = scmp.eq.s32.totalorder %s45, 1
      %p546 = scmp.ne.s32.totalorder %s541, %s543
      %p547 = scmp.eq.s32.totalorder %s45, 0
      %p548 = por %p546, %p547
      %p549 = scmp.ne.s32.totalorder %s541, %s543
      %p550 = scmp.eq.s32.totalorder %s50, 1
      %p551 = por %p549, %p550
      %p552 = scmp.ne.s32.totalorder %s543, %s544
      %p553 = scmp.eq.s32.totalorder %s50, 0
      %p554 = por %p552, %p553
      %p555 = scmp.ne.s32.totalorder %s543, %s544
      %p556 = scmp.eq.s32.totalorder %s51, 1
      %p557 = por %p555, %p556
      %p559 = scmp.ne.s32.totalorder %s544, %s558
      %p560 = scmp.eq.s32.totalorder %s51, 0
      %p561 = por %p559, %p560
      %s563 = sadd.s32 %s562, 1
      %p566 = scmp.eq.s32.totalorder %s45, 1
      %p567 = scmp.ne.s32.totalorder %s562, %s564
      %p568 = scmp.eq.s32.totalorder %s45, 0
      %p569 = por %p567, %p568
      %p570 = scmp.ne.s32.totalorder %s562, %s564
      %p571 = scmp.eq.s32.totalorder %s50, 1
      %p572 = por %p570, %p571
      %p573 = scmp.ne.s32.totalorder %s564, %s565
      %p574 = scmp.eq.s32.totalorder %s50, 0
      %p575 = por %p573, %p574
      %p576 = scmp.ne.s32.totalorder %s564, %s565
      %p577 = scmp.eq.s32.totalorder %s51, 1
      %p578 = por %p576, %p577
      %p580 = scmp.ne.s32.totalorder %s565, %s579
      %p581 = scmp.eq.s32.totalorder %s51, 0
      %p582 = por %p580, %p581
      %s584 = sadd.s32 %s583, 1
      %p587 = scmp.eq.s32.totalorder %s45, 1
      %p588 = scmp.ne.s32.totalorder %s583, %s585
      %p589 = scmp.eq.s32.totalorder %s45, 0
      %p590 = por %p588, %p589
      %p591 = scmp.ne.s32.totalorder %s583, %s585
      %p592 = scmp.eq.s32.totalorder %s50, 1
      %p593 = por %p591, %p592
      %p594 = scmp.ne.s32.totalorder %s585, %s586
      %p595 = scmp.eq.s32.totalorder %s50, 0
      %p596 = por %p594, %p595
      %p597 = scmp.ne.s32.totalorder %s585, %s586
      %p598 = scmp.eq.s32.totalorder %s51, 1
      %p599 = por %p597, %p598
      %p601 = scmp.ne.s32.totalorder %s586, %s600
      %p602 = scmp.eq.s32.totalorder %s51, 0
      %p603 = por %p601, %p602
      %s605 = sadd.s32 %s604, 1
      %p608 = scmp.eq.s32.totalorder %s45, 1
      %p609 = scmp.ne.s32.totalorder %s604, %s606
      %p610 = scmp.eq.s32.totalorder %s45, 0
      %p611 = por %p609, %p610
      %p612 = scmp.ne.s32.totalorder %s604, %s606
      %p613 = scmp.eq.s32.totalorder %s50, 1
      %p614 = por %p612, %p613
      %p615 = scmp.ne.s32.totalorder %s606, %s607
      %p616 = scmp.eq.s32.totalorder %s50, 0
      %p617 = por %p615, %p616
      %p618 = scmp.ne.s32.totalorder %s606, %s607
      %p619 = scmp.eq.s32.totalorder %s51, 1
      %p620 = por %p618, %p619
      %p622 = scmp.ne.s32.totalorder %s607, %s621
      %p623 = scmp.eq.s32.totalorder %s51, 0
      %p624 = por %p622, %p623
      %s625 = ssub.s32 %s45, %s52
      %p626 = scmp.eq.s32.totalorder %s625, 0
      %s628 = sadd.s32 %s627, 1
      %s629 = scalar_select %p626, %s627, %s628
      %p632 = pneg %p626
      %p633 = scmp.eq.s32.totalorder %s45, 1
      %p634 = por %p632, %p633
      %p635 = scmp.ne.s32.totalorder %s627, %s630
      %p636 = scmp.eq.s32.totalorder %s45, 0
      %p637 = por %p635, %p636
      %p638 = scmp.ne.s32.totalorder %s627, %s630
      %p639 = scmp.eq.s32.totalorder %s50, 1
      %p640 = por %p638, %p639
      %p641 = scmp.ne.s32.totalorder %s630, %s631
      %p642 = scmp.eq.s32.totalorder %s50, 0
      %p643 = por %p641, %p642
      %p644 = scmp.ne.s32.totalorder %s630, %s631
      %p645 = scmp.eq.s32.totalorder %s51, 1
      %p646 = por %p644, %p645
      %p648 = scmp.ne.s32.totalorder %s631, %s647
      %p649 = scmp.eq.s32.totalorder %s51, 0
      %p650 = por %p648, %p649
      %p651 = scmp.le.s32.totalorder 1, %s45
      %p652 = scmp.lt.s32.totalorder %s45, 3
      %p653 = pnand %p651, %p652
      %p654 = pneg %p653
      // Predicated region
      $region9: #{_lambda_.1} parent=5 // pred_check
        _
      $region10: #{_lambda_.1} parent=5 // pred_check_branch
        %656 = sbr.rel (%p653) target = $region12
      $region11: #{_lambda_.1} parent=5 // pred_region
        %s657 = ssub.s32 %s45, 1
        // Predicated region
        $region13: #{_lambda_.1} parent=11 // pred_check
          %p658 = pneg %p92
        $region14: #{_lambda_.1} parent=11 // pred_check_branch
          %660 = sbr.rel (%p658) target = $region16
        $region15: #{_lambda_.1} parent=11 // pred_region
          %s662 = ssub.s32 1024, 1024
          %663 = vsyncadd [#allocation8], %s662
          %s664 = sshll.u32 [#allocation7], 4
          %s665 = int_to_ptr.vmem [resolvable:$true] %s664
          %670 = dma.hbm_to_vmem [thread:$0]  %s1, 1024, %s665, [#allocation8], 256, 256, 16
        $region16: #{_lambda_.1} parent=11 // pred_fallthru
          _
        // Predicated region
        $region17: #{_lambda_.1} parent=11 // pred_check
          %p671 = pneg %p113
        $region18: #{_lambda_.1} parent=11 // pred_check_branch
          %673 = sbr.rel (%p671) target = $region20
        $region19: #{_lambda_.1} parent=11 // pred_region
          _
        $region20: #{_lambda_.1} parent=11 // pred_fallthru
          _
        // Predicated region
        $region21: #{_lambda_.1} parent=11 // pred_check
          %p674 = pneg %p134
        $region22: #{_lambda_.1} parent=11 // pred_check_branch
          %676 = sbr.rel (%p674) target = $region24
        $region23: #{_lambda_.1} parent=11 // pred_region
          %s678 = ssub.s32 1024, 1024
          %679 = vsyncadd [#allocation8], %s678
          %s680 = sshll.u32 [#allocation9], 4
          %s681 = int_to_ptr.vmem [resolvable:$true] %s680
          %686 = dma.hbm_to_vmem [thread:$0]  %s3, 1024, %s681, [#allocation8], 256, 256, 16
        $region24: #{_lambda_.1} parent=11 // pred_fallthru
          _
        // Predicated region
        $region25: #{_lambda_.1} parent=11 // pred_check
          %p687 = pneg %p155
        $region26: #{_lambda_.1} parent=11 // pred_check_branch
          %689 = sbr.rel (%p687) target = $region28
        $region27: #{_lambda_.1} parent=11 // pred_region
          _
        $region28: #{_lambda_.1} parent=11 // pred_fallthru
          _
        // Predicated region
        $region29: #{_lambda_.1} parent=11 // pred_check
          %p690 = pneg %p176
        $region30: #{_lambda_.1} parent=11 // pred_check_branch
          %692 = sbr.rel (%p690) target = $region32
        $region31: #{_lambda_.1} parent=11 // pred_region
          %s694 = ssub.s32 512, 512
          %695 = vsyncadd [#allocation11], %s694
          %s696 = sshll.u32 [#allocation10], 4
          %s697 = int_to_ptr.vmem [resolvable:$true] %s696
          %702 = dma.hbm_to_vmem [thread:$0]  %s5, 512, %s697, [#allocation11], 128, 128, 8
        $region32: #{_lambda_.1} parent=11 // pred_fallthru
          _
        // Predicated region
        $region33: #{_lambda_.1} parent=11 // pred_check
          %p703 = pneg %p197
        $region34: #{_lambda_.1} parent=11 // pred_check_branch
          %705 = sbr.rel (%p703) target = $region36
        $region35: #{_lambda_.1} parent=11 // pred_region
          _
        $region36: #{_lambda_.1} parent=11 // pred_fallthru
          _
        // Predicated region
        $region37: #{_lambda_.1} parent=11 // pred_check
          %p706 = pneg %p218
        $region38: #{_lambda_.1} parent=11 // pred_check_branch
          %708 = sbr.rel (%p706) target = $region40
        $region39: #{_lambda_.1} parent=11 // pred_region
          %s710 = ssub.s32 512, 512
          %711 = vsyncadd [#allocation11], %s710
          %s712 = sshll.u32 [#allocation12], 4
          %s713 = int_to_ptr.vmem [resolvable:$true] %s712
          %718 = dma.hbm_to_vmem [thread:$0]  %s7, 512, %s713, [#allocation11], 128, 128, 8
        $region40: #{_lambda_.1} parent=11 // pred_fallthru
          _
        // Predicated region
        $region41: #{_lambda_.1} parent=11 // pred_check
          %p719 = pneg %p239
        $region42: #{_lambda_.1} parent=11 // pred_check_branch
          %721 = sbr.rel (%p719) target = $region44
        $region43: #{_lambda_.1} parent=11 // pred_region
          _
        $region44: #{_lambda_.1} parent=11 // pred_fallthru
          _
        // Predicated region
        $region45: #{_lambda_.1} parent=11 // pred_check
          %p722 = pneg %p260
        $region46: #{_lambda_.1} parent=11 // pred_check_branch
          %724 = sbr.rel (%p722) target = $region48
        $region47: #{_lambda_.1} parent=11 // pred_region
          %s726 = ssub.s32 1024, 1024
          %727 = vsyncadd [#allocation14], %s726
          %s728 = sshll.u32 [#allocation13], 4
          %s729 = int_to_ptr.vmem [resolvable:$true] %s728
          %734 = dma.hbm_to_vmem [thread:$0]  %s9, 1024, %s729, [#allocation14], 128, 128, 8
        $region48: #{_lambda_.1} parent=11 // pred_fallthru
          _
        // Predicated region
        $region49: #{_lambda_.1} parent=11 // pred_check
          %p735 = pneg %p281
        $region50: #{_lambda_.1} parent=11 // pred_check_branch
          %737 = sbr.rel (%p735) target = $region52
        $region51: #{_lambda_.1} parent=11 // pred_region
          _
        $region52: #{_lambda_.1} parent=11 // pred_fallthru
          _
        // Predicated region
        $region53: #{_lambda_.1} parent=11 // pred_check
          %p738 = pneg %p302
        $region54: #{_lambda_.1} parent=11 // pred_check_branch
          %740 = sbr.rel (%p738) target = $region56
        $region55: #{_lambda_.1} parent=11 // pred_region
          %s742 = ssub.s32 3072, 3072
          %743 = vsyncadd [#allocation14], %s742
          %s744 = sshll.u32 [#allocation15], 4
          %s745 = int_to_ptr.vmem [resolvable:$true] %s744
          %750 = dma.hbm_to_vmem [thread:$0]  %s11, 3072, %s745, [#allocation14], 256, 256, 16
        $region56: #{_lambda_.1} parent=11 // pred_fallthru
          _
        // Predicated region
        $region57: #{_lambda_.1} parent=11 // pred_check
          %p751 = pneg %p323
        $region58: #{_lambda_.1} parent=11 // pred_check_branch
          %753 = sbr.rel (%p751) target = $region60
        $region59: #{_lambda_.1} parent=11 // pred_region
          _
        $region60: #{_lambda_.1} parent=11 // pred_fallthru
          _
        // Predicated region
        $region61: #{_lambda_.1} parent=11 // pred_check
          %p754 = pneg %p344
        $region62: #{_lambda_.1} parent=11 // pred_check_branch
          %756 = sbr.rel (%p754) target = $region64
        $region63: #{_lambda_.1} parent=11 // pred_region
          %s758 = ssub.s32 12288, 12288
          %759 = vsyncadd [#allocation17], %s758
          %s760 = sshll.u32 [#allocation16], 4
          %s761 = int_to_ptr.vmem [resolvable:$true] %s760
          %766 = dma.hbm_to_vmem [thread:$0]  %s13, 12288, %s761, [#allocation17], 128, 128, 8
        $region64: #{_lambda_.1} parent=11 // pred_fallthru
          _
        // Predicated region
        $region65: #{_lambda_.1} parent=11 // pred_check
          %p767 = pneg %p365
        $region66: #{_lambda_.1} parent=11 // pred_check_branch
          %769 = sbr.rel (%p767) target = $region68
        $region67: #{_lambda_.1} parent=11 // pred_region
          _
        $region68: #{_lambda_.1} parent=11 // pred_fallthru
          _
        // Predicated region
        $region69: #{_lambda_.1} parent=11 // pred_check
          %p770 = pneg %p386
        $region70: #{_lambda_.1} parent=11 // pred_check_branch
          %772 = sbr.rel (%p770) target = $region72
        $region71: #{_lambda_.1} parent=11 // pred_region
          %s774 = ssub.s32 512, 512
          %775 = vsyncadd [#allocation17], %s774
          %s776 = sshll.u32 [#allocation18], 4
          %s777 = int_to_ptr.vmem [resolvable:$true] %s776
          %782 = dma.hbm_to_vmem [thread:$0]  %s15, 512, %s777, [#allocation17], 128, 128, 8
        $region72: #{_lambda_.1} parent=11 // pred_fallthru
          _
        // Predicated region
        $region73: #{_lambda_.1} parent=11 // pred_check
          %p783 = pneg %p407
        $region74: #{_lambda_.1} parent=11 // pred_check_branch
          %785 = sbr.rel (%p783) target = $region76
        $region75: #{_lambda_.1} parent=11 // pred_region
          _
        $region76: #{_lambda_.1} parent=11 // pred_fallthru
          _
        // Predicated region
        $region77: #{_lambda_.1} parent=11 // pred_check
          %p786 = pneg %p428
        $region78: #{_lambda_.1} parent=11 // pred_check_branch
          %788 = sbr.rel (%p786) target = $region80
        $region79: #{_lambda_.1} parent=11 // pred_region
          _
        $region80: #{_lambda_.1} parent=11 // pred_fallthru
          _
        // Predicated region
        $region81: #{_lambda_.1} parent=11 // pred_check
          %p789 = pneg %p449
        $region82: #{_lambda_.1} parent=11 // pred_check_branch
          %791 = sbr.rel (%p789) target = $region84
        $region83: #{_lambda_.1} parent=11 // pred_region
          _
        $region84: #{_lambda_.1} parent=11 // pred_fallthru
          _
        // Predicated region
        $region85: #{_lambda_.1} parent=11 // pred_check
          %p792 = pneg %p470
        $region86: #{_lambda_.1} parent=11 // pred_check_branch
          %794 = sbr.rel (%p792) target = $region88
        $region87: #{_lambda_.1} parent=11 // pred_region
          %s796 = ssub.s32 512, 512
          %797 = vsyncadd [#allocation20], %s796
          %s798 = sshll.u32 [#allocation19], 4
          %s799 = int_to_ptr.vmem [resolvable:$true] %s798
          %804 = dma.hbm_to_vmem [thread:$0]  %s19, 512, %s799, [#allocation20], 128, 128, 8
        $region88: #{_lambda_.1} parent=11 // pred_fallthru
          _
        // Predicated region
        $region89: #{_lambda_.1} parent=11 // pred_check
          %p805 = pneg %p491
        $region90: #{_lambda_.1} parent=11 // pred_check_branch
          %807 = sbr.rel (%p805) target = $region92
        $region91: #{_lambda_.1} parent=11 // pred_region
          _
        $region92: #{_lambda_.1} parent=11 // pred_fallthru
          _
        // Predicated region
        $region93: #{_lambda_.1} parent=11 // pred_check
          %p808 = pneg %p512
        $region94: #{_lambda_.1} parent=11 // pred_check_branch
          %810 = sbr.rel (%p808) target = $region96
        $region95: #{_lambda_.1} parent=11 // pred_region
          %s812 = ssub.s32 512, 512
          %813 = vsyncadd [#allocation20], %s812
          %s814 = sshll.u32 [#allocation21], 4
          %s815 = int_to_ptr.vmem [resolvable:$true] %s814
          %820 = dma.hbm_to_vmem [thread:$0]  %s21, 512, %s815, [#allocation20], 128, 128, 8
        $region96: #{_lambda_.1} parent=11 // pred_fallthru
          _
        // Predicated region
        $region97: #{_lambda_.1} parent=11 // pred_check
          %p821 = pneg %p533
        $region98: #{_lambda_.1} parent=11 // pred_check_branch
          %823 = sbr.rel (%p821) target = $region100
        $region99: #{_lambda_.1} parent=11 // pred_region
          _
        $region100: #{_lambda_.1} parent=11 // pred_fallthru
          _
        // Predicated region
        $region101: #{_lambda_.1} parent=11 // pred_check
          %p824 = pneg %p554
        $region102: #{_lambda_.1} parent=11 // pred_check_branch
          %826 = sbr.rel (%p824) target = $region104
        $region103: #{_lambda_.1} parent=11 // pred_region
          _
        $region104: #{_lambda_.1} parent=11 // pred_fallthru
          _
        // Predicated region
        $region105: #{_lambda_.1} parent=11 // pred_check
          %p827 = pneg %p575
        $region106: #{_lambda_.1} parent=11 // pred_check_branch
          %829 = sbr.rel (%p827) target = $region108
        $region107: #{_lambda_.1} parent=11 // pred_region
          _
        $region108: #{_lambda_.1} parent=11 // pred_fallthru
          _
        // Predicated region
        $region109: #{_lambda_.1} parent=11 // pred_check
          %p830 = pneg %p596
        $region110: #{_lambda_.1} parent=11 // pred_check_branch
          %832 = sbr.rel (%p830) target = $region112
        $region111: #{_lambda_.1} parent=11 // pred_region
          %s834 = ssub.s32 512, 512
          %835 = vsyncadd [#allocation23], %s834
          %s836 = sshll.u32 [#allocation22], 4
          %s837 = int_to_ptr.vmem [resolvable:$true] %s836
          %842 = dma.hbm_to_vmem [thread:$0]  %s25, 512, %s837, [#allocation23], 128, 128, 8
        $region112: #{_lambda_.1} parent=11 // pred_fallthru
          _
        // Predicated region
        $region113: #{_lambda_.1} parent=11 // pred_check
          %p843 = pneg %p617
        $region114: #{_lambda_.1} parent=11 // pred_check_branch
          %845 = sbr.rel (%p843) target = $region116
        $region115: #{_lambda_.1} parent=11 // pred_region
          _
        $region116: #{_lambda_.1} parent=11 // pred_fallthru
          _
      $region12: #{_lambda_.1} parent=5 // pred_fallthru
        _
      %p846 = scmp.lt.s32.totalorder %s45, 2
      // Predicated region
      $region117: #{_lambda_.1} parent=5 // pred_check
        %p847 = pneg %p846
      $region118: #{_lambda_.1} parent=5 // pred_check_branch
        %849 = sbr.rel (%p847) target = $region120
      $region119: #{_lambda_.1} parent=5 // pred_region
        // Predicated region
        $region121: #{_lambda_.1} parent=119 // pred_check
          %p850 = pneg %p65
        $region122: #{_lambda_.1} parent=119 // pred_check_branch
          %852 = sbr.rel (%p850) target = $region124
        $region123: #{_lambda_.1} parent=119 // pred_region
          %s853 = sand.u32 %s55, 1
          %s854 = scalar_lea.sflag [#allocation5], %s853
          %s855 = sand.u32 %s55, 1
          %s856 = smul.addr %s855, 8
          %s857 = scalar_lea.vmem [#allocation4], %s856
          %s859 = ssub.s32 128, 128
          %860 = vsyncadd %s854, %s859
          %s861 = smul.addr %s45, 128
          %s862 = scalar_lea.hbm %s0, %s861
          %s864 = sshll.u32 %s857, 4
          %s865 = int_to_ptr.vmem [resolvable:$true] %s864
          %867 = dma.hbm_to_vmem [thread:$0]  %s862, 128, %s865, %s854
        $region124: #{_lambda_.1} parent=119 // pred_fallthru
          _
      $region120: #{_lambda_.1} parent=5 // pred_fallthru
        _
      %p868 = scmp.le.s32.totalorder 1, %s45
      %p869 = scmp.lt.s32.totalorder %s45, 3
      %p870 = pnand %p868, %p869
      %p871 = pneg %p870
      // Predicated region
      $region125: #{_lambda_.1} parent=5 // pred_check
        _
      $region126: #{_lambda_.1} parent=5 // pred_check_branch
        %873 = sbr.rel (%p870) target = $region128
      $region127: #{_lambda_.1} parent=5 // pred_region
        %s874 = ssub.s32 %s45, 1
        %s875 = sand.u32 %s58, 1
        %s876 = scalar_lea.sflag [#allocation5], %s875
        %s877 = sand.u32 %s58, 1
        %s878 = smul.addr %s877, 8
        %s879 = scalar_lea.vmem [#allocation4], %s878
        // Predicated region
        $region129: #{_lambda_.1} parent=127 // pred_check
          %p880 = pneg %p71
        $region130: #{_lambda_.1} parent=127 // pred_check_branch
          %882 = sbr.rel (%p880) target = $region132
        $region131: #{_lambda_.1} parent=127 // pred_region
          %883 = dma.done %s876, 128
        $region132: #{_lambda_.1} parent=127 // pred_fallthru
          _
        // Predicated region
        $region133: #{_lambda_.1} parent=127 // pred_check
          %p884 = pneg %p92
        $region134: #{_lambda_.1} parent=127 // pred_check_branch
          %886 = sbr.rel (%p884) target = $region136
        $region135: #{_lambda_.1} parent=127 // pred_region
          %887 = dma.done [#allocation8], 1024
        $region136: #{_lambda_.1} parent=127 // pred_fallthru
          _
        // Predicated region
        $region137: #{_lambda_.1} parent=127 // pred_check
          %p888 = pneg %p134
        $region138: #{_lambda_.1} parent=127 // pred_check_branch
          %890 = sbr.rel (%p888) target = $region140
        $region139: #{_lambda_.1} parent=127 // pred_region
          %891 = dma.done [#allocation8], 1024
        $region140: #{_lambda_.1} parent=127 // pred_fallthru
          _
        // Predicated region
        $region141: #{_lambda_.1} parent=127 // pred_check
          %p892 = pneg %p176
        $region142: #{_lambda_.1} parent=127 // pred_check_branch
          %894 = sbr.rel (%p892) target = $region144
        $region143: #{_lambda_.1} parent=127 // pred_region
          %895 = dma.done [#allocation11], 512
        $region144: #{_lambda_.1} parent=127 // pred_fallthru
          _
        // Predicated region
        $region145: #{_lambda_.1} parent=127 // pred_check
          %p896 = pneg %p218
        $region146: #{_lambda_.1} parent=127 // pred_check_branch
          %898 = sbr.rel (%p896) target = $region148
        $region147: #{_lambda_.1} parent=127 // pred_region
          %899 = dma.done [#allocation11], 512
        $region148: #{_lambda_.1} parent=127 // pred_fallthru
          _
        // Predicated region
        $region149: #{_lambda_.1} parent=127 // pred_check
          %p900 = pneg %p260
        $region150: #{_lambda_.1} parent=127 // pred_check_branch
          %902 = sbr.rel (%p900) target = $region152
        $region151: #{_lambda_.1} parent=127 // pred_region
          %903 = dma.done [#allocation14], 1024
        $region152: #{_lambda_.1} parent=127 // pred_fallthru
          _
        // Predicated region
        $region153: #{_lambda_.1} parent=127 // pred_check
          %p904 = pneg %p302
        $region154: #{_lambda_.1} parent=127 // pred_check_branch
          %906 = sbr.rel (%p904) target = $region156
        $region155: #{_lambda_.1} parent=127 // pred_region
          %907 = dma.done [#allocation14], 3072
        $region156: #{_lambda_.1} parent=127 // pred_fallthru
          _
        // Predicated region
        $region157: #{_lambda_.1} parent=127 // pred_check
          %p908 = pneg %p344
        $region158: #{_lambda_.1} parent=127 // pred_check_branch
          %910 = sbr.rel (%p908) target = $region160
        $region159: #{_lambda_.1} parent=127 // pred_region
          %911 = dma.done [#allocation17], 12288
        $region160: #{_lambda_.1} parent=127 // pred_fallthru
          _
        // Predicated region
        $region161: #{_lambda_.1} parent=127 // pred_check
          %p912 = pneg %p386
        $region162: #{_lambda_.1} parent=127 // pred_check_branch
          %914 = sbr.rel (%p912) target = $region164
        $region163: #{_lambda_.1} parent=127 // pred_region
          %915 = dma.done [#allocation17], 512
        $region164: #{_lambda_.1} parent=127 // pred_fallthru
          _
        // Predicated region
        $region165: #{_lambda_.1} parent=127 // pred_check
          %p916 = pneg %p470
        $region166: #{_lambda_.1} parent=127 // pred_check_branch
          %918 = sbr.rel (%p916) target = $region168
        $region167: #{_lambda_.1} parent=127 // pred_region
          %919 = dma.done [#allocation20], 512
        $region168: #{_lambda_.1} parent=127 // pred_fallthru
          _
        // Predicated region
        $region169: #{_lambda_.1} parent=127 // pred_check
          %p920 = pneg %p512
        $region170: #{_lambda_.1} parent=127 // pred_check_branch
          %922 = sbr.rel (%p920) target = $region172
        $region171: #{_lambda_.1} parent=127 // pred_region
          %923 = dma.done [#allocation20], 512
        $region172: #{_lambda_.1} parent=127 // pred_fallthru
          _
        // Predicated region
        $region173: #{_lambda_.1} parent=127 // pred_check
          %p924 = pneg %p596
        $region174: #{_lambda_.1} parent=127 // pred_check_branch
          %926 = sbr.rel (%p924) target = $region176
        $region175: #{_lambda_.1} parent=127 // pred_region
          %927 = dma.done [#allocation23], 512
        $region176: #{_lambda_.1} parent=127 // pred_fallthru
          _
        %s928 = sand.u32 %s58, 1
        %s929 = scalar_lea.sflag [#allocation5], %s928
        %s930 = sand.u32 %s58, 1
        %s931 = smul.addr %s930, 8
        %s932 = scalar_lea.vmem [#allocation4], %s931
        %p933 = pneg %p71
        %p934 = pneg %p68
        %p935 = pneg %p92
        %p936 = pneg %p89
        %p937 = pneg %p113
        %p938 = pneg %p110
        %p939 = pneg %p134
        %p940 = pneg %p131
        %p941 = pneg %p155
        %p942 = pneg %p152
        %p943 = pneg %p176
        %p944 = pneg %p173
        %p945 = pneg %p197
        %p946 = pneg %p194
        %p947 = pneg %p218
        %p948 = pneg %p215
        %p949 = pneg %p239
        %p950 = pneg %p236
        %p951 = pneg %p260
        %p952 = pneg %p257
        %p953 = pneg %p281
        %p954 = pneg %p278
        %p955 = pneg %p302
        %p956 = pneg %p299
        %p957 = pneg %p323
        %p958 = pneg %p320
        %p959 = pneg %p344
        %p960 = pneg %p341
        %p961 = pneg %p365
        %p962 = pneg %p362
        %p963 = pneg %p386
        %p964 = pneg %p383
        %p965 = pneg %p407
        %p966 = pneg %p404
        %p967 = pneg %p428
        %p968 = pneg %p425
        %p969 = pneg %p449
        %p970 = pneg %p446
        %p971 = pneg %p470
        %p972 = pneg %p467
        %p973 = pneg %p491
        %p974 = pneg %p488
        %p975 = pneg %p512
        %p976 = pneg %p509
        %p977 = pneg %p533
        %p978 = pneg %p530
        %p979 = pneg %p554
        %p980 = pneg %p551
        %p981 = pneg %p575
        %p982 = pneg %p572
        %p983 = pneg %p596
        %p984 = pneg %p593
        %p985 = pneg %p617
        %p986 = pneg %p614
        %p987 = pneg %p643
        %p988 = pneg %p640
        %s989 = sand.u32 %s630, 1
        %s990 = scalar_lea.sflag [#allocation6], %s989
        %s991 = sand.u32 %s630, 1
        %s992 = smul.addr %s991, 8
        %s993 = scalar_lea.vmem [#allocation24], %s992
        %v994 = vld [vmem:[%s879] sm:$0xff]
        %v995 = vld [vmem:[#allocation7] sm:$0xff]
        %v996 = vld [vmem:[#allocation7 + $0x8] sm:$0xff]
        %v997 = vld [vmem:[#allocation7 + $0x10] sm:$0xff]
        %v998 = vld [vmem:[#allocation7 + $0x18] sm:$0xff]
        %v999 = vld [vmem:[#allocation7 + $0x20] sm:$0xff]
        %v1000 = vld [vmem:[#allocation7 + $0x28] sm:$0xff]
        %v1001 = vld [vmem:[#allocation7 + $0x30] sm:$0xff]
        %v1002 = vld [vmem:[#allocation7 + $0x38] sm:$0xff]
        %v1003 = vld [vmem:[%s2] sm:$0x3]
        %v1005 = vlaneseq
        %v1006 = vshrl.u32 %v1005, 7
        %v1007 = vsub.s32 0, %v1006
        %v1008 = vrot.slane %v1003, %v1007
        %v1009 = vlaneseq
        %v1010 = vshrl.u32 %v1009, 7
        %v1011 = vsub.s32 1, %v1010
        %v1012 = vrot.slane %v1003, %v1011
        %vm1015 = vcmask 261120
        %v1017 = vsel %vm1015, %v994, 0
        %1019 = vmatprep.subr.mxu0 0.0
        %1020 = vmatpush1.msra.mxu0 0.0
        %1021 = vmatprep.subr.mxu0 0.0
        %1022 = vmatpush1.msra.mxu0 0.0
        %1023 = vmatprep.subr.mxu0 0.0
        %1024 = vmatpush1.msra.mxu0 0.0
        %1025 = vmatprep.subr.mxu0 0.0
        %1026 = vmatpush1.msra.mxu0 0.0
        %1027 = vmatprep.subr.mxu0 0.0
        %1028 = vmatpush1.msra.mxu0 0.0
        %1029 = vmatprep.subr.mxu0 0.0
        %1030 = vmatpush1.msra.mxu0 0.0
        %1031 = vmatprep.subr.mxu0 0.0
        %1032 = vmatpush1.msra.mxu0 0.0
        %1033 = vmatprep.subr.mxu0 0.0
        %1034 = vmatpush1.msra.mxu0 0.0
        %1035 = vmatprep.subr.mxu0 0.0
        %1036 = vmatpush1.msra.mxu0 0.0
        %1037 = vmatprep.subr.mxu0 0.0
        %1038 = vmatpush1.msra.mxu0 0.0
        %1039 = vmatprep.subr.mxu0 0.0
        %1040 = vmatpush1.msra.mxu0 0.0
        %1041 = vmatprep.subr.mxu0 0.0
        %1042 = vmatpush1.msra.mxu0 0.0
        %1043 = vmatprep.subr.mxu0 %v1002
        %1044 = vmatpush1.msra.mxu0 %v1001
        %1045 = vmatprep.subr.mxu0 %v1000
        %1046 = vmatpush1.msra.mxu0 %v999
        %1047 = vmatprep.subr.mxu0 %v998
        %1048 = vmatpush1.msra.mxu0 %v997
        %1049 = vmatprep.subr.mxu0 %v996
        %1050 = vmatpush1.msra.mxu0 %v995
        %1051 = vmatprep.subr.mxu0 0.0
        %1052 = vmatpush2.msra.mxu0 0.0
        %1053 = vmatprep.subr.mxu0 0.0
        %1054 = vmatpush2.msra.mxu0 0.0
        %1055 = vmatprep.subr.mxu0 0.0
        %1056 = vmatpush2.msra.mxu0 0.0
        %1057 = vmatprep.subr.mxu0 0.0
        %1058 = vmatpush2.msra.mxu0 0.0
        %1059 = vmatprep.subr.mxu0 0.0
        %1060 = vmatpush2.msra.mxu0 0.0
        %1061 = vmatprep.subr.mxu0 0.0
        %1062 = vmatpush2.msra.mxu0 0.0
        %1063 = vmatprep.subr.mxu0 0.0
        %1064 = vmatpush2.msra.mxu0 0.0
        %1065 = vmatprep.subr.mxu0 0.0
        %1066 = vmatpush2.msra.mxu0 0.0
        %1067 = vmatprep.subr.mxu0 0.0
        %1068 = vmatpush2.msra.mxu0 0.0
        %1069 = vmatprep.subr.mxu0 0.0
        %1070 = vmatpush2.msra.mxu0 0.0
        %1071 = vmatprep.subr.mxu0 0.0
        %1072 = vmatpush2.msra.mxu0 0.0
        %1073 = vmatprep.subr.mxu0 0.0
        %1074 = vmatpush2.msra.mxu0 0.0
        %1075 = vmatprep.subr.mxu0 0.0
        %1076 = vmatpush2.msra.mxu0 0.0
        %1077 = vmatprep.subr.mxu0 0.0
        %1078 = vmatpush2.msra.mxu0 0.0
        %1079 = vmatprep.subr.mxu0 0.0
        %1080 = vmatpush2.msra.mxu0 0.0
        %1081 = vmatprep.subr.mxu0 0.0
        %1082 = vmatpush2.msra.mxu0 0.0
        %1083 = vmatprep.mubr.f32.mxu0 0.0
        %1084 = vmatmul.mubr.f32.gmra.mxu0 %v1017
        %v1085 = vpop.f32.mrf.mxu0
        %v1086 = vadd.f32 %v1008, %v1085
        %v1087 = vpop.f32.mrf.mxu0
        %v1088 = vadd.f32 %v1012, %v1087
        %1089 = vdwg.mxu0
        %v1090 = vld [vmem:[#allocation9] sm:$0xff]
        %v1091 = vld [vmem:[#allocation9 + $0x8] sm:$0xff]
        %v1092 = vld [vmem:[#allocation9 + $0x10] sm:$0xff]
        %v1093 = vld [vmem:[#allocation9 + $0x18] sm:$0xff]
        %v1094 = vld [vmem:[#allocation9 + $0x20] sm:$0xff]
        %v1095 = vld [vmem:[#allocation9 + $0x28] sm:$0xff]
        %v1096 = vld [vmem:[#allocation9 + $0x30] sm:$0xff]
        %v1097 = vld [vmem:[#allocation9 + $0x38] sm:$0xff]
        %v1098 = vld [vmem:[%s4] sm:$0x3]
        %v1100 = vlaneseq
        %v1101 = vshrl.u32 %v1100, 7
        %v1102 = vsub.s32 0, %v1101
        %v1103 = vrot.slane %v1098, %v1102
        %v1104 = vlaneseq
        %v1105 = vshrl.u32 %v1104, 7
        %v1106 = vsub.s32 1, %v1105
        %v1107 = vrot.slane %v1098, %v1106
        %v1111 = vsel %vm1015, %v1086, 0
        %1113 = vmatprep.subr.mxu0 0.0
        %1114 = vmatpush1.msra.mxu0 0.0
        %1115 = vmatprep.subr.mxu0 0.0
        %1116 = vmatpush1.msra.mxu0 0.0
        %1117 = vmatprep.subr.mxu0 0.0
        %1118 = vmatpush1.msra.mxu0 0.0
        %1119 = vmatprep.subr.mxu0 0.0
        %1120 = vmatpush1.msra.mxu0 0.0
        %1121 = vmatprep.subr.mxu0 0.0
        %1122 = vmatpush1.msra.mxu0 0.0
        %1123 = vmatprep.subr.mxu0 0.0
        %1124 = vmatpush1.msra.mxu0 0.0
        %1125 = vmatprep.subr.mxu0 0.0
        %1126 = vmatpush1.msra.mxu0 0.0
        %1127 = vmatprep.subr.mxu0 0.0
        %1128 = vmatpush1.msra.mxu0 0.0
        %1129 = vmatprep.subr.mxu0 0.0
        %1130 = vmatpush1.msra.mxu0 0.0
        %1131 = vmatprep.subr.mxu0 0.0
        %1132 = vmatpush1.msra.mxu0 0.0
        %1133 = vmatprep.subr.mxu0 0.0
        %1134 = vmatpush1.msra.mxu0 0.0
        %1135 = vmatprep.subr.mxu0 0.0
        %1136 = vmatpush1.msra.mxu0 0.0
        %1137 = vmatprep.subr.mxu0 %v1097
        %1138 = vmatpush1.msra.mxu0 %v1096
        %1139 = vmatprep.subr.mxu0 %v1095
        %1140 = vmatpush1.msra.mxu0 %v1094
        %1141 = vmatprep.subr.mxu0 %v1093
        %1142 = vmatpush1.msra.mxu0 %v1092
        %1143 = vmatprep.subr.mxu0 %v1091
        %1144 = vmatpush1.msra.mxu0 %v1090
        %1145 = vmatprep.subr.mxu0 0.0
        %1146 = vmatpush2.msra.mxu0 0.0
        %1147 = vmatprep.subr.mxu0 0.0
        %1148 = vmatpush2.msra.mxu0 0.0
        %1149 = vmatprep.subr.mxu0 0.0
        %1150 = vmatpush2.msra.mxu0 0.0
        %1151 = vmatprep.subr.mxu0 0.0
        %1152 = vmatpush2.msra.mxu0 0.0
        %1153 = vmatprep.subr.mxu0 0.0
        %1154 = vmatpush2.msra.mxu0 0.0
        %1155 = vmatprep.subr.mxu0 0.0
        %1156 = vmatpush2.msra.mxu0 0.0
        %1157 = vmatprep.subr.mxu0 0.0
        %1158 = vmatpush2.msra.mxu0 0.0
        %1159 = vmatprep.subr.mxu0 0.0
        %1160 = vmatpush2.msra.mxu0 0.0
        %1161 = vmatprep.subr.mxu0 0.0
        %1162 = vmatpush2.msra.mxu0 0.0
        %1163 = vmatprep.subr.mxu0 0.0
        %1164 = vmatpush2.msra.mxu0 0.0
        %1165 = vmatprep.subr.mxu0 0.0
        %1166 = vmatpush2.msra.mxu0 0.0
        %1167 = vmatprep.subr.mxu0 0.0
        %1168 = vmatpush2.msra.mxu0 0.0
        %1169 = vmatprep.subr.mxu0 0.0
        %1170 = vmatpush2.msra.mxu0 0.0
        %1171 = vmatprep.subr.mxu0 0.0
        %1172 = vmatpush2.msra.mxu0 0.0
        %1173 = vmatprep.subr.mxu0 0.0
        %1174 = vmatpush2.msra.mxu0 0.0
        %1175 = vmatprep.subr.mxu0 0.0
        %1176 = vmatpush2.msra.mxu0 0.0
        %1177 = vmatprep.mubr.f32.mxu0 0.0
        %1178 = vmatmul.mubr.f32.gmra.mxu0 %v1111
        %v1179 = vpop.f32.mrf.mxu0
        %v1180 = vadd.f32 %v1103, %v1179
        %v1181 = vpop.f32.mrf.mxu0
        %v1182 = vadd.f32 %v1107, %v1181
        %1183 = vdwg.mxu0
        %v1184 = vld [vmem:[#allocation10] sm:$0xff]
        %v1185 = vld [vmem:[#allocation10 + $0x8] sm:$0xff]
        %v1186 = vld [vmem:[#allocation10 + $0x10] sm:$0xff]
        %v1187 = vld [vmem:[#allocation10 + $0x18] sm:$0xff]
        %v1188 = vld [vmem:[%s6] sm:$0x1]
        %v1189 = vld [vmem:[#allocation12] sm:$0xff]
        %v1190 = vld [vmem:[#allocation12 + $0x8] sm:$0xff]
        %v1191 = vld [vmem:[#allocation12 + $0x10] sm:$0xff]
        %v1192 = vld [vmem:[#allocation12 + $0x18] sm:$0xff]
        %v1193 = vld [vmem:[%s8] sm:$0x1]
        %v1195 = vsel %vm1015, 0.0, 0
        %1197 = vmatprep.subr.mxu0 0.0
        %1198 = vmatpush1.msra.mxu0 0.0
        %1199 = vmatprep.subr.mxu0 0.0
        %1200 = vmatpush1.msra.mxu0 0.0
        %1201 = vmatprep.subr.mxu0 0.0
        %1202 = vmatpush1.msra.mxu0 0.0
        %1203 = vmatprep.subr.mxu0 0.0
        %1204 = vmatpush1.msra.mxu0 0.0
        %1205 = vmatprep.subr.mxu0 0.0
        %1206 = vmatpush1.msra.mxu0 0.0
        %1207 = vmatprep.subr.mxu0 0.0
        %1208 = vmatpush1.msra.mxu0 0.0
        %1209 = vmatprep.subr.mxu0 0.0
        %1210 = vmatpush1.msra.mxu0 0.0
        %1211 = vmatprep.subr.mxu0 0.0
        %1212 = vmatpush1.msra.mxu0 0.0
        %1213 = vmatprep.subr.mxu0 0.0
        %1214 = vmatpush1.msra.mxu0 0.0
        %1215 = vmatprep.subr.mxu0 0.0
        %1216 = vmatpush1.msra.mxu0 0.0
        %1217 = vmatprep.subr.mxu0 0.0
        %1218 = vmatpush1.msra.mxu0 0.0
        %1219 = vmatprep.subr.mxu0 0.0
        %1220 = vmatpush1.msra.mxu0 0.0
        %1221 = vmatprep.subr.mxu0 0.0
        %1222 = vmatpush1.msra.mxu0 %v1187
        %1223 = vmatprep.subr.mxu0 0.0
        %1224 = vmatpush1.msra.mxu0 %v1186
        %1225 = vmatprep.subr.mxu0 0.0
        %1226 = vmatpush1.msra.mxu0 %v1185
        %1227 = vmatprep.subr.mxu0 0.0
        %1228 = vmatpush1.msra.mxu0 %v1184
        %1229 = vmatprep.subr.mxu0 0.0
        %1230 = vmatpush2.msra.mxu0 0.0
        %1231 = vmatprep.subr.mxu0 0.0
        %1232 = vmatpush2.msra.mxu0 0.0
        %1233 = vmatprep.subr.mxu0 0.0
        %1234 = vmatpush2.msra.mxu0 0.0
        %1235 = vmatprep.subr.mxu0 0.0
        %1236 = vmatpush2.msra.mxu0 0.0
        %1237 = vmatprep.subr.mxu0 0.0
        %1238 = vmatpush2.msra.mxu0 0.0
        %1239 = vmatprep.subr.mxu0 0.0
        %1240 = vmatpush2.msra.mxu0 0.0
        %1241 = vmatprep.subr.mxu0 0.0
        %1242 = vmatpush2.msra.mxu0 0.0
        %1243 = vmatprep.subr.mxu0 0.0
        %1244 = vmatpush2.msra.mxu0 0.0
        %1245 = vmatprep.subr.mxu0 0.0
        %1246 = vmatpush2.msra.mxu0 0.0
        %1247 = vmatprep.subr.mxu0 0.0
        %1248 = vmatpush2.msra.mxu0 0.0
        %1249 = vmatprep.subr.mxu0 0.0
        %1250 = vmatpush2.msra.mxu0 0.0
        %1251 = vmatprep.subr.mxu0 0.0
        %1252 = vmatpush2.msra.mxu0 0.0
        %1253 = vmatprep.subr.mxu0 0.0
        %1254 = vmatpush2.msra.mxu0 0.0
        %1255 = vmatprep.subr.mxu0 0.0
        %1256 = vmatpush2.msra.mxu0 0.0
        %1257 = vmatprep.subr.mxu0 0.0
        %1258 = vmatpush2.msra.mxu0 0.0
        %1259 = vmatprep.subr.mxu0 0.0
        %1260 = vmatpush2.msra.mxu0 0.0
        %1261 = vmatprep.mubr.f32.mxu0 0.0
        %1262 = vmatmul.mubr.f32.gmra.mxu0 %v1195
        %v1263 = vpop.f32.mrf.mxu0
        %v1264 = vadd.f32 %v1188, %v1263
        %v1265 = vpop.f32.mrf.mxu0
        %1266 = vdwg.mxu0
        %v1267 = vadd.f32 %v1180, %v1264
        %v1268 = vxor.u32 %v1267, 2147483648
        %v1269 = vmul.f32 %v1268, 1.442695
        %v1270 = vpow.pop %v1269
        %v1271 = vadd.f32 %v1270, 1.0
        %v1272 = vrcp.pop %v1271
        %v1273 = vmul.f32 1.0, %v1272
        %1275 = vrot.lane.b32.xlu0 %v1264, 64
        %v1276 = vpop.permute.xlu0 %1275
        %v1278 = vmul.f32 %v1273, %v1276
        %1280 = vrot.lane.b32.xlu0 %v1278, 64
        %v1281 = vpop.permute.xlu0 %1280
        %v1283 = vadd.f32 %v1180, %v1281
        %v1284 = vtanh.pop %v1283
        %v1285 = vsub.f32 1.0, %v1273
        %1287 = vrot.lane.b32.xlu0 %v1284, 96
        %v1288 = vpop.permute.xlu0 %1287
        %v1290 = vmul.f32 %v1285, %v1288
        %v1291 = vmul.f32 %v1273, 0.0
        %v1292 = vadd.f32 %v1290, %v1291
        %1293 = vmatprep.subr.mxu0 0.0
        %1294 = vmatpush1.msra.mxu0 0.0
        %1295 = vmatprep.subr.mxu0 0.0
        %1296 = vmatpush1.msra.mxu0 0.0
        %1297 = vmatprep.subr.mxu0 0.0
        %1298 = vmatpush1.msra.mxu0 0.0
        %1299 = vmatprep.subr.mxu0 0.0
        %1300 = vmatpush1.msra.mxu0 0.0
        %1301 = vmatprep.subr.mxu0 0.0
        %1302 = vmatpush1.msra.mxu0 0.0
        %1303 = vmatprep.subr.mxu0 0.0
        %1304 = vmatpush1.msra.mxu0 0.0
        %1305 = vmatprep.subr.mxu0 0.0
        %1306 = vmatpush1.msra.mxu0 0.0
        %1307 = vmatprep.subr.mxu0 0.0
        %1308 = vmatpush1.msra.mxu0 0.0
        %1309 = vmatprep.subr.mxu0 0.0
        %1310 = vmatpush1.msra.mxu0 0.0
        %1311 = vmatprep.subr.mxu0 0.0
        %1312 = vmatpush1.msra.mxu0 0.0
        %1313 = vmatprep.subr.mxu0 0.0
        %1314 = vmatpush1.msra.mxu0 0.0
        %1315 = vmatprep.subr.mxu0 0.0
        %1316 = vmatpush1.msra.mxu0 0.0
        %1317 = vmatprep.subr.mxu0 0.0
        %1318 = vmatpush1.msra.mxu0 %v1192
        %1319 = vmatprep.subr.mxu0 0.0
        %1320 = vmatpush1.msra.mxu0 %v1191
        %1321 = vmatprep.subr.mxu0 0.0
        %1322 = vmatpush1.msra.mxu0 %v1190
        %1323 = vmatprep.subr.mxu0 0.0
        %1324 = vmatpush1.msra.mxu0 %v1189
        %1325 = vmatprep.subr.mxu0 0.0
        %1326 = vmatpush2.msra.mxu0 0.0
        %1327 = vmatprep.subr.mxu0 0.0
        %1328 = vmatpush2.msra.mxu0 0.0
        %1329 = vmatprep.subr.mxu0 0.0
        %1330 = vmatpush2.msra.mxu0 0.0
        %1331 = vmatprep.subr.mxu0 0.0
        %1332 = vmatpush2.msra.mxu0 0.0
        %1333 = vmatprep.subr.mxu0 0.0
        %1334 = vmatpush2.msra.mxu0 0.0
        %1335 = vmatprep.subr.mxu0 0.0
        %1336 = vmatpush2.msra.mxu0 0.0
        %1337 = vmatprep.subr.mxu0 0.0
        %1338 = vmatpush2.msra.mxu0 0.0
        %1339 = vmatprep.subr.mxu0 0.0
        %1340 = vmatpush2.msra.mxu0 0.0
        %1341 = vmatprep.subr.mxu0 0.0
        %1342 = vmatpush2.msra.mxu0 0.0
        %1343 = vmatprep.subr.mxu0 0.0
        %1344 = vmatpush2.msra.mxu0 0.0
        %1345 = vmatprep.subr.mxu0 0.0
        %1346 = vmatpush2.msra.mxu0 0.0
        %1347 = vmatprep.subr.mxu0 0.0
        %1348 = vmatpush2.msra.mxu0 0.0
        %1349 = vmatprep.subr.mxu0 0.0
        %1350 = vmatpush2.msra.mxu0 0.0
        %1351 = vmatprep.subr.mxu0 0.0
        %1352 = vmatpush2.msra.mxu0 0.0
        %1353 = vmatprep.subr.mxu0 0.0
        %1354 = vmatpush2.msra.mxu0 0.0
        %1355 = vmatprep.subr.mxu0 0.0
        %1356 = vmatpush2.msra.mxu0 0.0
        %1357 = vmatprep.mubr.f32.mxu0 0.0
        %1358 = vmatmul.mubr.f32.gmra.mxu0 %v1195
        %v1359 = vpop.f32.mrf.mxu0
        %v1360 = vadd.f32 %v1193, %v1359
        %v1361 = vpop.f32.mrf.mxu0
        %1362 = vdwg.mxu0
        %v1364 = vrot.slane %v1360, 1
        %1365 = vrot.lane.b32.xlu0 %v1364, 96
        %v1366 = vpop.permute.xlu0 %1365
        %v1368 = vadd.f32 %v1180, %v1366
        %v1369 = vxor.u32 %v1368, 2147483648
        %v1370 = vmul.f32 %v1369, 1.442695
        %v1371 = vpow.pop %v1370
        %v1372 = vadd.f32 %v1371, 1.0
        %v1373 = vrcp.pop %v1372
        %v1374 = vmul.f32 1.0, %v1373
        %v1375 = vadd.f32 %v1182, %v1366
        %v1376 = vxor.u32 %v1375, 2147483648
        %v1377 = vmul.f32 %v1376, 1.442695
        %v1378 = vpow.pop %v1377
        %v1379 = vadd.f32 %v1378, 1.0
        %v1380 = vrcp.pop %v1379
        %v1381 = vmul.f32 1.0, %v1380
        %1382 = vrot.lane.b32.xlu0 %v1364, 32
        %v1383 = vpop.permute.xlu0 %1382
        %v1385 = vmul.f32 %v1374, %v1383
        %1387 = vrot.lane.b32.xlu0 %v1385, 64
        %v1388 = vpop.permute.xlu0 %1387
        %v1390 = vadd.f32 %v1182, %v1388
        %v1391 = vtanh.pop %v1390
        %v1392 = vsub.f32 1.0, %v1381
        %1394 = vrot.lane.b32.xlu0 %v1391, 96
        %v1395 = vpop.permute.xlu0 %1394
        %v1397 = vmul.f32 %v1392, %v1395
        %v1398 = vmul.f32 %v1381, 0.0
        %v1399 = vadd.f32 %v1397, %v1398
        %1401 = vrot.lane.b32.xlu0 %v1292, 96
        %v1402 = vpop.permute.xlu0 %1401
        %vm1404 = vcmask 253952
        %1405 = vst.msk [vmem:[#allocation2] sm:$0x1] %vm1404, %v1402
        %vm1406 = vcmask 261127
        %1407 = vst.msk [vmem:[#allocation3] sm:$0x80] %vm1406, %v1399
        %v1408 = vsel %vm1015, %v1402, 0
        %1410 = vmatprep.subr.mxu0 0.0
        %1411 = vmatpush1.msra.mxu0 0.0
        %1412 = vmatprep.subr.mxu0 0.0
        %1413 = vmatpush1.msra.mxu0 0.0
        %1414 = vmatprep.subr.mxu0 0.0
        %1415 = vmatpush1.msra.mxu0 0.0
        %1416 = vmatprep.subr.mxu0 0.0
        %1417 = vmatpush1.msra.mxu0 0.0
        %1418 = vmatprep.subr.mxu0 0.0
        %1419 = vmatpush1.msra.mxu0 0.0
        %1420 = vmatprep.subr.mxu0 0.0
        %1421 = vmatpush1.msra.mxu0 0.0
        %1422 = vmatprep.subr.mxu0 0.0
        %1423 = vmatpush1.msra.mxu0 0.0
        %1424 = vmatprep.subr.mxu0 0.0
        %1425 = vmatpush1.msra.mxu0 0.0
        %1426 = vmatprep.subr.mxu0 0.0
        %1427 = vmatpush1.msra.mxu0 0.0
        %1428 = vmatprep.subr.mxu0 0.0
        %1429 = vmatpush1.msra.mxu0 0.0
        %1430 = vmatprep.subr.mxu0 0.0
        %1431 = vmatpush1.msra.mxu0 0.0
        %1432 = vmatprep.subr.mxu0 0.0
        %1433 = vmatpush1.msra.mxu0 0.0
        %1434 = vmatprep.subr.mxu0 0.0
        %1435 = vmatpush1.msra.mxu0 %v1187
        %1436 = vmatprep.subr.mxu0 0.0
        %1437 = vmatpush1.msra.mxu0 %v1186
        %1438 = vmatprep.subr.mxu0 0.0
        %1439 = vmatpush1.msra.mxu0 %v1185
        %1440 = vmatprep.subr.mxu0 0.0
        %1441 = vmatpush1.msra.mxu0 %v1184
        %1442 = vmatprep.subr.mxu0 0.0
        %1443 = vmatpush2.msra.mxu0 0.0
        %1444 = vmatprep.subr.mxu0 0.0
        %1445 = vmatpush2.msra.mxu0 0.0
        %1446 = vmatprep.subr.mxu0 0.0
        %1447 = vmatpush2.msra.mxu0 0.0
        %1448 = vmatprep.subr.mxu0 0.0
        %1449 = vmatpush2.msra.mxu0 0.0
        %1450 = vmatprep.subr.mxu0 0.0
        %1451 = vmatpush2.msra.mxu0 0.0
        %1452 = vmatprep.subr.mxu0 0.0
        %1453 = vmatpush2.msra.mxu0 0.0
        %1454 = vmatprep.subr.mxu0 0.0
        %1455 = vmatpush2.msra.mxu0 0.0
        %1456 = vmatprep.subr.mxu0 0.0
        %1457 = vmatpush2.msra.mxu0 0.0
        %1458 = vmatprep.subr.mxu0 0.0
        %1459 = vmatpush2.msra.mxu0 0.0
        %1460 = vmatprep.subr.mxu0 0.0
        %1461 = vmatpush2.msra.mxu0 0.0
        %1462 = vmatprep.subr.mxu0 0.0
        %1463 = vmatpush2.msra.mxu0 0.0
        %1464 = vmatprep.subr.mxu0 0.0
        %1465 = vmatpush2.msra.mxu0 0.0
        %1466 = vmatprep.subr.mxu0 0.0
        %1467 = vmatpush2.msra.mxu0 0.0
        %1468 = vmatprep.subr.mxu0 0.0
        %1469 = vmatpush2.msra.mxu0 0.0
        %1470 = vmatprep.subr.mxu0 0.0
        %1471 = vmatpush2.msra.mxu0 0.0
        %1472 = vmatprep.subr.mxu0 0.0
        %1473 = vmatpush2.msra.mxu0 0.0
        %1474 = vmatprep.mubr.f32.mxu0 0.0
        %1475 = vmatmul.mubr.f32.gmra.mxu0 %v1408
        %v1476 = vpop.f32.mrf.mxu0
        %v1477 = vadd.f32 %v1188, %v1476
        %v1478 = vpop.f32.mrf.mxu0
        %1479 = vdwg.mxu0
        %v1481 = vrot.slane %v1477, 7
        %v1483 = vadd.f32 %v1180, %v1481
        %v1484 = vxor.u32 %v1483, 2147483648
        %v1485 = vmul.f32 %v1484, 1.442695
        %v1486 = vpow.pop %v1485
        %v1487 = vadd.f32 %v1486, 1.0
        %v1488 = vrcp.pop %v1487
        %v1489 = vmul.f32 1.0, %v1488
        %1490 = vrot.lane.b32.xlu0 %v1481, 64
        %v1491 = vpop.permute.xlu0 %1490
        %v1493 = vmul.f32 %v1489, %v1491
        %1495 = vrot.lane.b32.xlu0 %v1493, 64
        %v1496 = vpop.permute.xlu0 %1495
        %v1498 = vadd.f32 %v1180, %v1496
        %v1499 = vtanh.pop %v1498
        %v1500 = vsub.f32 1.0, %v1489
        %1502 = vrot.lane.b32.xlu0 %v1499, 96
        %v1503 = vpop.permute.xlu0 %1502
        %v1505 = vmul.f32 %v1500, %v1503
        %v1506 = vrot.slane %v1292, 7
        %v1508 = vmul.f32 %v1489, %v1506
        %v1509 = vadd.f32 %v1505, %v1508
        %v1511 = vrot.slane %v1399, 7
        %v1512 = vsel %vm1015, %v1511, 0
        %1514 = vmatprep.subr.mxu0 0.0
        %1515 = vmatpush1.msra.mxu0 0.0
        %1516 = vmatprep.subr.mxu0 0.0
        %1517 = vmatpush1.msra.mxu0 0.0
        %1518 = vmatprep.subr.mxu0 0.0
        %1519 = vmatpush1.msra.mxu0 0.0
        %1520 = vmatprep.subr.mxu0 0.0
        %1521 = vmatpush1.msra.mxu0 0.0
        %1522 = vmatprep.subr.mxu0 0.0
        %1523 = vmatpush1.msra.mxu0 0.0
        %1524 = vmatprep.subr.mxu0 0.0
        %1525 = vmatpush1.msra.mxu0 0.0
        %1526 = vmatprep.subr.mxu0 0.0
        %1527 = vmatpush1.msra.mxu0 0.0
        %1528 = vmatprep.subr.mxu0 0.0
        %1529 = vmatpush1.msra.mxu0 0.0
        %1530 = vmatprep.subr.mxu0 0.0
        %1531 = vmatpush1.msra.mxu0 0.0
        %1532 = vmatprep.subr.mxu0 0.0
        %1533 = vmatpush1.msra.mxu0 0.0
        %1534 = vmatprep.subr.mxu0 0.0
        %1535 = vmatpush1.msra.mxu0 0.0
        %1536 = vmatprep.subr.mxu0 0.0
        %1537 = vmatpush1.msra.mxu0 0.0
        %1538 = vmatprep.subr.mxu0 0.0
        %1539 = vmatpush1.msra.mxu0 %v1192
        %1540 = vmatprep.subr.mxu0 0.0
        %1541 = vmatpush1.msra.mxu0 %v1191
        %1542 = vmatprep.subr.mxu0 0.0
        %1543 = vmatpush1.msra.mxu0 %v1190
        %1544 = vmatprep.subr.mxu0 0.0
        %1545 = vmatpush1.msra.mxu0 %v1189
        %1546 = vmatprep.subr.mxu0 0.0
        %1547 = vmatpush2.msra.mxu0 0.0
        %1548 = vmatprep.subr.mxu0 0.0
        %1549 = vmatpush2.msra.mxu0 0.0
        %1550 = vmatprep.subr.mxu0 0.0
        %1551 = vmatpush2.msra.mxu0 0.0
        %1552 = vmatprep.subr.mxu0 0.0
        %1553 = vmatpush2.msra.mxu0 0.0
        %1554 = vmatprep.subr.mxu0 0.0
        %1555 = vmatpush2.msra.mxu0 0.0
        %1556 = vmatprep.subr.mxu0 0.0
        %1557 = vmatpush2.msra.mxu0 0.0
        %1558 = vmatprep.subr.mxu0 0.0
        %1559 = vmatpush2.msra.mxu0 0.0
        %1560 = vmatprep.subr.mxu0 0.0
        %1561 = vmatpush2.msra.mxu0 0.0
        %1562 = vmatprep.subr.mxu0 0.0
        %1563 = vmatpush2.msra.mxu0 0.0
        %1564 = vmatprep.subr.mxu0 0.0
        %1565 = vmatpush2.msra.mxu0 0.0
        %1566 = vmatprep.subr.mxu0 0.0
        %1567 = vmatpush2.msra.mxu0 0.0
        %1568 = vmatprep.subr.mxu0 0.0
        %1569 = vmatpush2.msra.mxu0 0.0
        %1570 = vmatprep.subr.mxu0 0.0
        %1571 = vmatpush2.msra.mxu0 0.0
        %1572 = vmatprep.subr.mxu0 0.0
        %1573 = vmatpush2.msra.mxu0 0.0
        %1574 = vmatprep.subr.mxu0 0.0
        %1575 = vmatpush2.msra.mxu0 0.0
        %1576 = vmatprep.subr.mxu0 0.0
        %1577 = vmatpush2.msra.mxu0 0.0
        %1578 = vmatprep.mubr.f32.mxu0 0.0
        %1579 = vmatmul.mubr.f32.gmra.mxu0 %v1512
        %v1580 = vpop.f32.mrf.mxu0
        %v1581 = vadd.f32 %v1193, %v1580
        %v1582 = vpop.f32.mrf.mxu0
        %1583 = vdwg.mxu0
        %v1585 = vrot.slane %v1581, 2
        %1586 = vrot.lane.b32.xlu0 %v1585, 96
        %v1587 = vpop.permute.xlu0 %1586
        %v1589 = vadd.f32 %v1180, %v1587
        %v1590 = vxor.u32 %v1589, 2147483648
        %v1591 = vmul.f32 %v1590, 1.442695
        %v1592 = vpow.pop %v1591
        %v1593 = vadd.f32 %v1592, 1.0
        %v1594 = vrcp.pop %v1593
        %v1595 = vmul.f32 1.0, %v1594
        %v1596 = vadd.f32 %v1182, %v1587
        %v1597 = vxor.u32 %v1596, 2147483648
        %v1598 = vmul.f32 %v1597, 1.442695
        %v1599 = vpow.pop %v1598
        %v1600 = vadd.f32 %v1599, 1.0
        %v1601 = vrcp.pop %v1600
        %v1602 = vmul.f32 1.0, %v1601
        %1603 = vrot.lane.b32.xlu0 %v1585, 32
        %v1604 = vpop.permute.xlu0 %1603
        %v1606 = vmul.f32 %v1595, %v1604
        %1608 = vrot.lane.b32.xlu0 %v1606, 64
        %v1609 = vpop.permute.xlu0 %1608
        %v1611 = vadd.f32 %v1182, %v1609
        %v1612 = vtanh.pop %v1611
        %v1613 = vsub.f32 1.0, %v1602
        %1615 = vrot.lane.b32.xlu0 %v1612, 96
        %v1616 = vpop.permute.xlu0 %1615
        %v1618 = vmul.f32 %v1613, %v1616
        %v1619 = vrot.slane %v1399, 1
        %v1621 = vmul.f32 %v1602, %v1619
        %v1622 = vadd.f32 %v1618, %v1621
        %1624 = vrot.lane.b32.xlu0 %v1509, 96
        %v1625 = vpop.permute.xlu0 %1624
        %vm1627 = vcmask 254977
        %1628 = vst.msk [vmem:[#allocation2] sm:$0x2] %vm1627, %v1625
        %vm1629 = vcmask 260102
        %1630 = vst.msk [vmem:[#allocation3] sm:$0x40] %vm1629, %v1622
        %v1631 = vrot.slane %v1509, 1
        %1632 = vrot.lane.b32.xlu0 %v1631, 96
        %v1633 = vpop.permute.xlu0 %1632
        %v1634 = vsel %vm1015, %v1633, 0
        %1636 = vmatprep.subr.mxu0 0.0
        %1637 = vmatpush1.msra.mxu0 0.0
        %1638 = vmatprep.subr.mxu0 0.0
        %1639 = vmatpush1.msra.mxu0 0.0
        %1640 = vmatprep.subr.mxu0 0.0
        %1641 = vmatpush1.msra.mxu0 0.0
        %1642 = vmatprep.subr.mxu0 0.0
        %1643 = vmatpush1.msra.mxu0 0.0
        %1644 = vmatprep.subr.mxu0 0.0
        %1645 = vmatpush1.msra.mxu0 0.0
        %1646 = vmatprep.subr.mxu0 0.0
        %1647 = vmatpush1.msra.mxu0 0.0
        %1648 = vmatprep.subr.mxu0 0.0
        %1649 = vmatpush1.msra.mxu0 0.0
        %1650 = vmatprep.subr.mxu0 0.0
        %1651 = vmatpush1.msra.mxu0 0.0
        %1652 = vmatprep.subr.mxu0 0.0
        %1653 = vmatpush1.msra.mxu0 0.0
        %1654 = vmatprep.subr.mxu0 0.0
        %1655 = vmatpush1.msra.mxu0 0.0
        %1656 = vmatprep.subr.mxu0 0.0
        %1657 = vmatpush1.msra.mxu0 0.0
        %1658 = vmatprep.subr.mxu0 0.0
        %1659 = vmatpush1.msra.mxu0 0.0
        %1660 = vmatprep.subr.mxu0 0.0
        %1661 = vmatpush1.msra.mxu0 %v1187
        %1662 = vmatprep.subr.mxu0 0.0
        %1663 = vmatpush1.msra.mxu0 %v1186
        %1664 = vmatprep.subr.mxu0 0.0
        %1665 = vmatpush1.msra.mxu0 %v1185
        %1666 = vmatprep.subr.mxu0 0.0
        %1667 = vmatpush1.msra.mxu0 %v1184
        %1668 = vmatprep.subr.mxu0 0.0
        %1669 = vmatpush2.msra.mxu0 0.0
        %1670 = vmatprep.subr.mxu0 0.0
        %1671 = vmatpush2.msra.mxu0 0.0
        %1672 = vmatprep.subr.mxu0 0.0
        %1673 = vmatpush2.msra.mxu0 0.0
        %1674 = vmatprep.subr.mxu0 0.0
        %1675 = vmatpush2.msra.mxu0 0.0
        %1676 = vmatprep.subr.mxu0 0.0
        %1677 = vmatpush2.msra.mxu0 0.0
        %1678 = vmatprep.subr.mxu0 0.0
        %1679 = vmatpush2.msra.mxu0 0.0
        %1680 = vmatprep.subr.mxu0 0.0
        %1681 = vmatpush2.msra.mxu0 0.0
        %1682 = vmatprep.subr.mxu0 0.0
        %1683 = vmatpush2.msra.mxu0 0.0
        %1684 = vmatprep.subr.mxu0 0.0
        %1685 = vmatpush2.msra.mxu0 0.0
        %1686 = vmatprep.subr.mxu0 0.0
        %1687 = vmatpush2.msra.mxu0 0.0
        %1688 = vmatprep.subr.mxu0 0.0
        %1689 = vmatpush2.msra.mxu0 0.0
        %1690 = vmatprep.subr.mxu0 0.0
        %1691 = vmatpush2.msra.mxu0 0.0
        %1692 = vmatprep.subr.mxu0 0.0
        %1693 = vmatpush2.msra.mxu0 0.0
        %1694 = vmatprep.subr.mxu0 0.0
        %1695 = vmatpush2.msra.mxu0 0.0
        %1696 = vmatprep.subr.mxu0 0.0
        %1697 = vmatpush2.msra.mxu0 0.0
        %1698 = vmatprep.subr.mxu0 0.0
        %1699 = vmatpush2.msra.mxu0 0.0
        %1700 = vmatprep.mubr.f32.mxu0 0.0
        %1701 = vmatmul.mubr.f32.gmra.mxu0 %v1634
        %v1702 = vpop.f32.mrf.mxu0
        %v1703 = vadd.f32 %v1188, %v1702
        %v1704 = vpop.f32.mrf.mxu0
        %1705 = vdwg.mxu0
        %v1707 = vrot.slane %v1703, 6
        %v1709 = vadd.f32 %v1180, %v1707
        %v1710 = vxor.u32 %v1709, 2147483648
        %v1711 = vmul.f32 %v1710, 1.442695
        %v1712 = vpow.pop %v1711
        %v1713 = vadd.f32 %v1712, 1.0
        %v1714 = vrcp.pop %v1713
        %v1715 = vmul.f32 1.0, %v1714
        %1716 = vrot.lane.b32.xlu0 %v1707, 64
        %v1717 = vpop.permute.xlu0 %1716
        %v1719 = vmul.f32 %v1715, %v1717
        %1721 = vrot.lane.b32.xlu0 %v1719, 64
        %v1722 = vpop.permute.xlu0 %1721
        %v1724 = vadd.f32 %v1180, %v1722
        %v1725 = vtanh.pop %v1724
        %v1726 = vsub.f32 1.0, %v1715
        %1728 = vrot.lane.b32.xlu0 %v1725, 96
        %v1729 = vpop.permute.xlu0 %1728
        %v1731 = vmul.f32 %v1726, %v1729
        %v1732 = vrot.slane %v1509, 7
        %v1734 = vmul.f32 %v1715, %v1732
        %v1735 = vadd.f32 %v1731, %v1734
        %v1737 = vrot.slane %v1622, 6
        %v1738 = vsel %vm1015, %v1737, 0
        %1740 = vmatprep.subr.mxu0 0.0
        %1741 = vmatpush1.msra.mxu0 0.0
        %1742 = vmatprep.subr.mxu0 0.0
        %1743 = vmatpush1.msra.mxu0 0.0
        %1744 = vmatprep.subr.mxu0 0.0
        %1745 = vmatpush1.msra.mxu0 0.0
        %1746 = vmatprep.subr.mxu0 0.0
        %1747 = vmatpush1.msra.mxu0 0.0
        %1748 = vmatprep.subr.mxu0 0.0
        %1749 = vmatpush1.msra.mxu0 0.0
        %1750 = vmatprep.subr.mxu0 0.0
        %1751 = vmatpush1.msra.mxu0 0.0
        %1752 = vmatprep.subr.mxu0 0.0
        %1753 = vmatpush1.msra.mxu0 0.0
        %1754 = vmatprep.subr.mxu0 0.0
        %1755 = vmatpush1.msra.mxu0 0.0
        %1756 = vmatprep.subr.mxu0 0.0
        %1757 = vmatpush1.msra.mxu0 0.0
        %1758 = vmatprep.subr.mxu0 0.0
        %1759 = vmatpush1.msra.mxu0 0.0
        %1760 = vmatprep.subr.mxu0 0.0
        %1761 = vmatpush1.msra.mxu0 0.0
        %1762 = vmatprep.subr.mxu0 0.0
        %1763 = vmatpush1.msra.mxu0 0.0
        %1764 = vmatprep.subr.mxu0 0.0
        %1765 = vmatpush1.msra.mxu0 %v1192
        %1766 = vmatprep.subr.mxu0 0.0
        %1767 = vmatpush1.msra.mxu0 %v1191
        %1768 = vmatprep.subr.mxu0 0.0
        %1769 = vmatpush1.msra.mxu0 %v1190
        %1770 = vmatprep.subr.mxu0 0.0
        %1771 = vmatpush1.msra.mxu0 %v1189
        %1772 = vmatprep.subr.mxu0 0.0
        %1773 = vmatpush2.msra.mxu0 0.0
        %1774 = vmatprep.subr.mxu0 0.0
        %1775 = vmatpush2.msra.mxu0 0.0
        %1776 = vmatprep.subr.mxu0 0.0
        %1777 = vmatpush2.msra.mxu0 0.0
        %1778 = vmatprep.subr.mxu0 0.0
        %1779 = vmatpush2.msra.mxu0 0.0
        %1780 = vmatprep.subr.mxu0 0.0
        %1781 = vmatpush2.msra.mxu0 0.0
        %1782 = vmatprep.subr.mxu0 0.0
        %1783 = vmatpush2.msra.mxu0 0.0
        %1784 = vmatprep.subr.mxu0 0.0
        %1785 = vmatpush2.msra.mxu0 0.0
        %1786 = vmatprep.subr.mxu0 0.0
        %1787 = vmatpush2.msra.mxu0 0.0
        %1788 = vmatprep.subr.mxu0 0.0
        %1789 = vmatpush2.msra.mxu0 0.0
        %1790 = vmatprep.subr.mxu0 0.0
        %1791 = vmatpush2.msra.mxu0 0.0
        %1792 = vmatprep.subr.mxu0 0.0
        %1793 = vmatpush2.msra.mxu0 0.0
        %1794 = vmatprep.subr.mxu0 0.0
        %1795 = vmatpush2.msra.mxu0 0.0
        %1796 = vmatprep.subr.mxu0 0.0
        %1797 = vmatpush2.msra.mxu0 0.0
        %1798 = vmatprep.subr.mxu0 0.0
        %1799 = vmatpush2.msra.mxu0 0.0
        %1800 = vmatprep.subr.mxu0 0.0
        %1801 = vmatpush2.msra.mxu0 0.0
        %1802 = vmatprep.subr.mxu0 0.0
        %1803 = vmatpush2.msra.mxu0 0.0
        %1804 = vmatprep.mubr.f32.mxu0 0.0
        %1805 = vmatmul.mubr.f32.gmra.mxu0 %v1738
        %v1806 = vpop.f32.mrf.mxu0
        %v1807 = vadd.f32 %v1193, %v1806
        %v1808 = vpop.f32.mrf.mxu0
        %1809 = vdwg.mxu0
        %v1811 = vrot.slane %v1807, 3
        %1812 = vrot.lane.b32.xlu0 %v1811, 96
        %v1813 = vpop.permute.xlu0 %1812
        %v1815 = vadd.f32 %v1180, %v1813
        %v1816 = vxor.u32 %v1815, 2147483648
        %v1817 = vmul.f32 %v1816, 1.442695
        %v1818 = vpow.pop %v1817
        %v1819 = vadd.f32 %v1818, 1.0
        %v1820 = vrcp.pop %v1819
        %v1821 = vmul.f32 1.0, %v1820
        %v1822 = vadd.f32 %v1182, %v1813
        %v1823 = vxor.u32 %v1822, 2147483648
        %v1824 = vmul.f32 %v1823, 1.442695
        %v1825 = vpow.pop %v1824
        %v1826 = vadd.f32 %v1825, 1.0
        %v1827 = vrcp.pop %v1826
        %v1828 = vmul.f32 1.0, %v1827
        %1829 = vrot.lane.b32.xlu0 %v1811, 32
        %v1830 = vpop.permute.xlu0 %1829
        %v1832 = vmul.f32 %v1821, %v1830
        %1834 = vrot.lane.b32.xlu0 %v1832, 64
        %v1835 = vpop.permute.xlu0 %1834
        %v1837 = vadd.f32 %v1182, %v1835
        %v1838 = vtanh.pop %v1837
        %v1839 = vsub.f32 1.0, %v1828
        %1841 = vrot.lane.b32.xlu0 %v1838, 96
        %v1842 = vpop.permute.xlu0 %1841
        %v1844 = vmul.f32 %v1839, %v1842
        %v1845 = vrot.slane %v1622, 1
        %v1847 = vmul.f32 %v1828, %v1845
        %v1848 = vadd.f32 %v1844, %v1847
        %1850 = vrot.lane.b32.xlu0 %v1735, 96
        %v1851 = vpop.permute.xlu0 %1850
        %vm1853 = vcmask 256002
        %1854 = vst.msk [vmem:[#allocation2] sm:$0x4] %vm1853, %v1851
        %vm1855 = vcmask 259077
        %1856 = vst.msk [vmem:[#allocation3] sm:$0x20] %vm1855, %v1848
        %v1857 = vrot.slane %v1735, 2
        %1858 = vrot.lane.b32.xlu0 %v1857, 96
        %v1859 = vpop.permute.xlu0 %1858
        %v1860 = vsel %vm1015, %v1859, 0
        %1862 = vmatprep.subr.mxu0 0.0
        %1863 = vmatpush1.msra.mxu0 0.0
        %1864 = vmatprep.subr.mxu0 0.0
        %1865 = vmatpush1.msra.mxu0 0.0
        %1866 = vmatprep.subr.mxu0 0.0
        %1867 = vmatpush1.msra.mxu0 0.0
        %1868 = vmatprep.subr.mxu0 0.0
        %1869 = vmatpush1.msra.mxu0 0.0
        %1870 = vmatprep.subr.mxu0 0.0
        %1871 = vmatpush1.msra.mxu0 0.0
        %1872 = vmatprep.subr.mxu0 0.0
        %1873 = vmatpush1.msra.mxu0 0.0
        %1874 = vmatprep.subr.mxu0 0.0
        %1875 = vmatpush1.msra.mxu0 0.0
        %1876 = vmatprep.subr.mxu0 0.0
        %1877 = vmatpush1.msra.mxu0 0.0
        %1878 = vmatprep.subr.mxu0 0.0
        %1879 = vmatpush1.msra.mxu0 0.0
        %1880 = vmatprep.subr.mxu0 0.0
        %1881 = vmatpush1.msra.mxu0 0.0
        %1882 = vmatprep.subr.mxu0 0.0
        %1883 = vmatpush1.msra.mxu0 0.0
        %1884 = vmatprep.subr.mxu0 0.0
        %1885 = vmatpush1.msra.mxu0 0.0
        %1886 = vmatprep.subr.mxu0 0.0
        %1887 = vmatpush1.msra.mxu0 %v1187
        %1888 = vmatprep.subr.mxu0 0.0
        %1889 = vmatpush1.msra.mxu0 %v1186
        %1890 = vmatprep.subr.mxu0 0.0
        %1891 = vmatpush1.msra.mxu0 %v1185
        %1892 = vmatprep.subr.mxu0 0.0
        %1893 = vmatpush1.msra.mxu0 %v1184
        %1894 = vmatprep.subr.mxu0 0.0
        %1895 = vmatpush2.msra.mxu0 0.0
        %1896 = vmatprep.subr.mxu0 0.0
        %1897 = vmatpush2.msra.mxu0 0.0
        %1898 = vmatprep.subr.mxu0 0.0
        %1899 = vmatpush2.msra.mxu0 0.0
        %1900 = vmatprep.subr.mxu0 0.0
        %1901 = vmatpush2.msra.mxu0 0.0
        %1902 = vmatprep.subr.mxu0 0.0
        %1903 = vmatpush2.msra.mxu0 0.0
        %1904 = vmatprep.subr.mxu0 0.0
        %1905 = vmatpush2.msra.mxu0 0.0
        %1906 = vmatprep.subr.mxu0 0.0
        %1907 = vmatpush2.msra.mxu0 0.0
        %1908 = vmatprep.subr.mxu0 0.0
        %1909 = vmatpush2.msra.mxu0 0.0
        %1910 = vmatprep.subr.mxu0 0.0
        %1911 = vmatpush2.msra.mxu0 0.0
        %1912 = vmatprep.subr.mxu0 0.0
        %1913 = vmatpush2.msra.mxu0 0.0
        %1914 = vmatprep.subr.mxu0 0.0
        %1915 = vmatpush2.msra.mxu0 0.0
        %1916 = vmatprep.subr.mxu0 0.0
        %1917 = vmatpush2.msra.mxu0 0.0
        %1918 = vmatprep.subr.mxu0 0.0
        %1919 = vmatpush2.msra.mxu0 0.0
        %1920 = vmatprep.subr.mxu0 0.0
        %1921 = vmatpush2.msra.mxu0 0.0
        %1922 = vmatprep.subr.mxu0 0.0
        %1923 = vmatpush2.msra.mxu0 0.0
        %1924 = vmatprep.subr.mxu0 0.0
        %1925 = vmatpush2.msra.mxu0 0.0
        %1926 = vmatprep.mubr.f32.mxu0 0.0
        %1927 = vmatmul.mubr.f32.gmra.mxu0 %v1860
        %v1928 = vpop.f32.mrf.mxu0
        %v1929 = vadd.f32 %v1188, %v1928
        %v1930 = vpop.f32.mrf.mxu0
        %1931 = vdwg.mxu0
        %v1933 = vrot.slane %v1929, 5
        %v1935 = vadd.f32 %v1180, %v1933
        %v1936 = vxor.u32 %v1935, 2147483648
        %v1937 = vmul.f32 %v1936, 1.442695
        %v1938 = vpow.pop %v1937
        %v1939 = vadd.f32 %v1938, 1.0
        %v1940 = vrcp.pop %v1939
        %v1941 = vmul.f32 1.0, %v1940
        %1942 = vrot.lane.b32.xlu0 %v1933, 64
        %v1943 = vpop.permute.xlu0 %1942
        %v1945 = vmul.f32 %v1941, %v1943
        %1947 = vrot.lane.b32.xlu0 %v1945, 64
        %v1948 = vpop.permute.xlu0 %1947
        %v1950 = vadd.f32 %v1180, %v1948
        %v1951 = vtanh.pop %v1950
        %v1952 = vsub.f32 1.0, %v1941
        %1954 = vrot.lane.b32.xlu0 %v1951, 96
        %v1955 = vpop.permute.xlu0 %1954
        %v1957 = vmul.f32 %v1952, %v1955
        %v1958 = vrot.slane %v1735, 7
        %v1960 = vmul.f32 %v1941, %v1958
        %v1961 = vadd.f32 %v1957, %v1960
        %v1963 = vrot.slane %v1848, 5
        %v1964 = vsel %vm1015, %v1963, 0
        %1966 = vmatprep.subr.mxu0 0.0
        %1967 = vmatpush1.msra.mxu0 0.0
        %1968 = vmatprep.subr.mxu0 0.0
        %1969 = vmatpush1.msra.mxu0 0.0
        %1970 = vmatprep.subr.mxu0 0.0
        %1971 = vmatpush1.msra.mxu0 0.0
        %1972 = vmatprep.subr.mxu0 0.0
        %1973 = vmatpush1.msra.mxu0 0.0
        %1974 = vmatprep.subr.mxu0 0.0
        %1975 = vmatpush1.msra.mxu0 0.0
        %1976 = vmatprep.subr.mxu0 0.0
        %1977 = vmatpush1.msra.mxu0 0.0
        %1978 = vmatprep.subr.mxu0 0.0
        %1979 = vmatpush1.msra.mxu0 0.0
        %1980 = vmatprep.subr.mxu0 0.0
        %1981 = vmatpush1.msra.mxu0 0.0
        %1982 = vmatprep.subr.mxu0 0.0
        %1983 = vmatpush1.msra.mxu0 0.0
        %1984 = vmatprep.subr.mxu0 0.0
        %1985 = vmatpush1.msra.mxu0 0.0
        %1986 = vmatprep.subr.mxu0 0.0
        %1987 = vmatpush1.msra.mxu0 0.0
        %1988 = vmatprep.subr.mxu0 0.0
        %1989 = vmatpush1.msra.mxu0 0.0
        %1990 = vmatprep.subr.mxu0 0.0
        %1991 = vmatpush1.msra.mxu0 %v1192
        %1992 = vmatprep.subr.mxu0 0.0
        %1993 = vmatpush1.msra.mxu0 %v1191
        %1994 = vmatprep.subr.mxu0 0.0
        %1995 = vmatpush1.msra.mxu0 %v1190
        %1996 = vmatprep.subr.mxu0 0.0
        %1997 = vmatpush1.msra.mxu0 %v1189
        %1998 = vmatprep.subr.mxu0 0.0
        %1999 = vmatpush2.msra.mxu0 0.0
        %2000 = vmatprep.subr.mxu0 0.0
        %2001 = vmatpush2.msra.mxu0 0.0
        %2002 = vmatprep.subr.mxu0 0.0
        %2003 = vmatpush2.msra.mxu0 0.0
        %2004 = vmatprep.subr.mxu0 0.0
        %2005 = vmatpush2.msra.mxu0 0.0
        %2006 = vmatprep.subr.mxu0 0.0
        %2007 = vmatpush2.msra.mxu0 0.0
        %2008 = vmatprep.subr.mxu0 0.0
        %2009 = vmatpush2.msra.mxu0 0.0
        %2010 = vmatprep.subr.mxu0 0.0
        %2011 = vmatpush2.msra.mxu0 0.0
        %2012 = vmatprep.subr.mxu0 0.0
        %2013 = vmatpush2.msra.mxu0 0.0
        %2014 = vmatprep.subr.mxu0 0.0
        %2015 = vmatpush2.msra.mxu0 0.0
        %2016 = vmatprep.subr.mxu0 0.0
        %2017 = vmatpush2.msra.mxu0 0.0
        %2018 = vmatprep.subr.mxu0 0.0
        %2019 = vmatpush2.msra.mxu0 0.0
        %2020 = vmatprep.subr.mxu0 0.0
        %2021 = vmatpush2.msra.mxu0 0.0
        %2022 = vmatprep.subr.mxu0 0.0
        %2023 = vmatpush2.msra.mxu0 0.0
        %2024 = vmatprep.subr.mxu0 0.0
        %2025 = vmatpush2.msra.mxu0 0.0
        %2026 = vmatprep.subr.mxu0 0.0
        %2027 = vmatpush2.msra.mxu0 0.0
        %2028 = vmatprep.subr.mxu0 0.0
        %2029 = vmatpush2.msra.mxu0 0.0
        %2030 = vmatprep.mubr.f32.mxu0 0.0
        %2031 = vmatmul.mubr.f32.gmra.mxu0 %v1964
        %v2032 = vpop.f32.mrf.mxu0
        %v2033 = vadd.f32 %v1193, %v2032
        %v2034 = vpop.f32.mrf.mxu0
        %2035 = vdwg.mxu0
        %v2037 = vrot.slane %v2033, 4
        %2038 = vrot.lane.b32.xlu0 %v2037, 96
        %v2039 = vpop.permute.xlu0 %2038
        %v2041 = vadd.f32 %v1180, %v2039
        %v2042 = vxor.u32 %v2041, 2147483648
        %v2043 = vmul.f32 %v2042, 1.442695
        %v2044 = vpow.pop %v2043
        %v2045 = vadd.f32 %v2044, 1.0
        %v2046 = vrcp.pop %v2045
        %v2047 = vmul.f32 1.0, %v2046
        %v2048 = vadd.f32 %v1182, %v2039
        %v2049 = vxor.u32 %v2048, 2147483648
        %v2050 = vmul.f32 %v2049, 1.442695
        %v2051 = vpow.pop %v2050
        %v2052 = vadd.f32 %v2051, 1.0
        %v2053 = vrcp.pop %v2052
        %v2054 = vmul.f32 1.0, %v2053
        %2055 = vrot.lane.b32.xlu0 %v2037, 32
        %v2056 = vpop.permute.xlu0 %2055
        %v2058 = vmul.f32 %v2047, %v2056
        %2060 = vrot.lane.b32.xlu0 %v2058, 64
        %v2061 = vpop.permute.xlu0 %2060
        %v2063 = vadd.f32 %v1182, %v2061
        %v2064 = vtanh.pop %v2063
        %v2065 = vsub.f32 1.0, %v2054
        %2067 = vrot.lane.b32.xlu0 %v2064, 96
        %v2068 = vpop.permute.xlu0 %2067
        %v2070 = vmul.f32 %v2065, %v2068
        %v2071 = vrot.slane %v1848, 1
        %v2073 = vmul.f32 %v2054, %v2071
        %v2074 = vadd.f32 %v2070, %v2073
        %2076 = vrot.lane.b32.xlu0 %v1961, 96
        %v2077 = vpop.permute.xlu0 %2076
        %vm2079 = vcmask 257027
        %2080 = vst.msk [vmem:[#allocation2] sm:$0x8] %vm2079, %v2077
        %vm2081 = vcmask 258052
        %2082 = vst.msk [vmem:[#allocation3] sm:$0x10] %vm2081, %v2074
        %v2083 = vrot.slane %v1961, 3
        %2084 = vrot.lane.b32.xlu0 %v2083, 96
        %v2085 = vpop.permute.xlu0 %2084
        %v2086 = vsel %vm1015, %v2085, 0
        %2088 = vmatprep.subr.mxu0 0.0
        %2089 = vmatpush1.msra.mxu0 0.0
        %2090 = vmatprep.subr.mxu0 0.0
        %2091 = vmatpush1.msra.mxu0 0.0
        %2092 = vmatprep.subr.mxu0 0.0
        %2093 = vmatpush1.msra.mxu0 0.0
        %2094 = vmatprep.subr.mxu0 0.0
        %2095 = vmatpush1.msra.mxu0 0.0
        %2096 = vmatprep.subr.mxu0 0.0
        %2097 = vmatpush1.msra.mxu0 0.0
        %2098 = vmatprep.subr.mxu0 0.0
        %2099 = vmatpush1.msra.mxu0 0.0
        %2100 = vmatprep.subr.mxu0 0.0
        %2101 = vmatpush1.msra.mxu0 0.0
        %2102 = vmatprep.subr.mxu0 0.0
        %2103 = vmatpush1.msra.mxu0 0.0
        %2104 = vmatprep.subr.mxu0 0.0
        %2105 = vmatpush1.msra.mxu0 0.0
        %2106 = vmatprep.subr.mxu0 0.0
        %2107 = vmatpush1.msra.mxu0 0.0
        %2108 = vmatprep.subr.mxu0 0.0
        %2109 = vmatpush1.msra.mxu0 0.0
        %2110 = vmatprep.subr.mxu0 0.0
        %2111 = vmatpush1.msra.mxu0 0.0
        %2112 = vmatprep.subr.mxu0 0.0
        %2113 = vmatpush1.msra.mxu0 %v1187
        %2114 = vmatprep.subr.mxu0 0.0
        %2115 = vmatpush1.msra.mxu0 %v1186
        %2116 = vmatprep.subr.mxu0 0.0
        %2117 = vmatpush1.msra.mxu0 %v1185
        %2118 = vmatprep.subr.mxu0 0.0
        %2119 = vmatpush1.msra.mxu0 %v1184
        %2120 = vmatprep.subr.mxu0 0.0
        %2121 = vmatpush2.msra.mxu0 0.0
        %2122 = vmatprep.subr.mxu0 0.0
        %2123 = vmatpush2.msra.mxu0 0.0
        %2124 = vmatprep.subr.mxu0 0.0
        %2125 = vmatpush2.msra.mxu0 0.0
        %2126 = vmatprep.subr.mxu0 0.0
        %2127 = vmatpush2.msra.mxu0 0.0
        %2128 = vmatprep.subr.mxu0 0.0
        %2129 = vmatpush2.msra.mxu0 0.0
        %2130 = vmatprep.subr.mxu0 0.0
        %2131 = vmatpush2.msra.mxu0 0.0
        %2132 = vmatprep.subr.mxu0 0.0
        %2133 = vmatpush2.msra.mxu0 0.0
        %2134 = vmatprep.subr.mxu0 0.0
        %2135 = vmatpush2.msra.mxu0 0.0
        %2136 = vmatprep.subr.mxu0 0.0
        %2137 = vmatpush2.msra.mxu0 0.0
        %2138 = vmatprep.subr.mxu0 0.0
        %2139 = vmatpush2.msra.mxu0 0.0
        %2140 = vmatprep.subr.mxu0 0.0
        %2141 = vmatpush2.msra.mxu0 0.0
        %2142 = vmatprep.subr.mxu0 0.0
        %2143 = vmatpush2.msra.mxu0 0.0
        %2144 = vmatprep.subr.mxu0 0.0
        %2145 = vmatpush2.msra.mxu0 0.0
        %2146 = vmatprep.subr.mxu0 0.0
        %2147 = vmatpush2.msra.mxu0 0.0
        %2148 = vmatprep.subr.mxu0 0.0
        %2149 = vmatpush2.msra.mxu0 0.0
        %2150 = vmatprep.subr.mxu0 0.0
        %2151 = vmatpush2.msra.mxu0 0.0
        %2152 = vmatprep.mubr.f32.mxu0 0.0
        %2153 = vmatmul.mubr.f32.gmra.mxu0 %v2086
        %v2154 = vpop.f32.mrf.mxu0
        %v2155 = vadd.f32 %v1188, %v2154
        %v2156 = vpop.f32.mrf.mxu0
        %2157 = vdwg.mxu0
        %v2159 = vrot.slane %v2155, 4
        %v2161 = vadd.f32 %v1180, %v2159
        %v2162 = vxor.u32 %v2161, 2147483648
        %v2163 = vmul.f32 %v2162, 1.442695
        %v2164 = vpow.pop %v2163
        %v2165 = vadd.f32 %v2164, 1.0
        %v2166 = vrcp.pop %v2165
        %v2167 = vmul.f32 1.0, %v2166
        %2168 = vrot.lane.b32.xlu0 %v2159, 64
        %v2169 = vpop.permute.xlu0 %2168
        %v2171 = vmul.f32 %v2167, %v2169
        %2173 = vrot.lane.b32.xlu0 %v2171, 64
        %v2174 = vpop.permute.xlu0 %2173
        %v2176 = vadd.f32 %v1180, %v2174
        %v2177 = vtanh.pop %v2176
        %v2178 = vsub.f32 1.0, %v2167
        %2180 = vrot.lane.b32.xlu0 %v2177, 96
        %v2181 = vpop.permute.xlu0 %2180
        %v2183 = vmul.f32 %v2178, %v2181
        %v2184 = vrot.slane %v1961, 7
        %v2186 = vmul.f32 %v2167, %v2184
        %v2187 = vadd.f32 %v2183, %v2186
        %v2189 = vrot.slane %v2074, 4
        %v2190 = vsel %vm1015, %v2189, 0
        %2192 = vmatprep.subr.mxu0 0.0
        %2193 = vmatpush1.msra.mxu0 0.0
        %2194 = vmatprep.subr.mxu0 0.0
        %2195 = vmatpush1.msra.mxu0 0.0
        %2196 = vmatprep.subr.mxu0 0.0
        %2197 = vmatpush1.msra.mxu0 0.0
        %2198 = vmatprep.subr.mxu0 0.0
        %2199 = vmatpush1.msra.mxu0 0.0
        %2200 = vmatprep.subr.mxu0 0.0
        %2201 = vmatpush1.msra.mxu0 0.0
        %2202 = vmatprep.subr.mxu0 0.0
        %2203 = vmatpush1.msra.mxu0 0.0
        %2204 = vmatprep.subr.mxu0 0.0
        %2205 = vmatpush1.msra.mxu0 0.0
        %2206 = vmatprep.subr.mxu0 0.0
        %2207 = vmatpush1.msra.mxu0 0.0
        %2208 = vmatprep.subr.mxu0 0.0
        %2209 = vmatpush1.msra.mxu0 0.0
        %2210 = vmatprep.subr.mxu0 0.0
        %2211 = vmatpush1.msra.mxu0 0.0
        %2212 = vmatprep.subr.mxu0 0.0
        %2213 = vmatpush1.msra.mxu0 0.0
        %2214 = vmatprep.subr.mxu0 0.0
        %2215 = vmatpush1.msra.mxu0 0.0
        %2216 = vmatprep.subr.mxu0 0.0
        %2217 = vmatpush1.msra.mxu0 %v1192
        %2218 = vmatprep.subr.mxu0 0.0
        %2219 = vmatpush1.msra.mxu0 %v1191
        %2220 = vmatprep.subr.mxu0 0.0
        %2221 = vmatpush1.msra.mxu0 %v1190
        %2222 = vmatprep.subr.mxu0 0.0
        %2223 = vmatpush1.msra.mxu0 %v1189
        %2224 = vmatprep.subr.mxu0 0.0
        %2225 = vmatpush2.msra.mxu0 0.0
        %2226 = vmatprep.subr.mxu0 0.0
        %2227 = vmatpush2.msra.mxu0 0.0
        %2228 = vmatprep.subr.mxu0 0.0
        %2229 = vmatpush2.msra.mxu0 0.0
        %2230 = vmatprep.subr.mxu0 0.0
        %2231 = vmatpush2.msra.mxu0 0.0
        %2232 = vmatprep.subr.mxu0 0.0
        %2233 = vmatpush2.msra.mxu0 0.0
        %2234 = vmatprep.subr.mxu0 0.0
        %2235 = vmatpush2.msra.mxu0 0.0
        %2236 = vmatprep.subr.mxu0 0.0
        %2237 = vmatpush2.msra.mxu0 0.0
        %2238 = vmatprep.subr.mxu0 0.0
        %2239 = vmatpush2.msra.mxu0 0.0
        %2240 = vmatprep.subr.mxu0 0.0
        %2241 = vmatpush2.msra.mxu0 0.0
        %2242 = vmatprep.subr.mxu0 0.0
        %2243 = vmatpush2.msra.mxu0 0.0
        %2244 = vmatprep.subr.mxu0 0.0
        %2245 = vmatpush2.msra.mxu0 0.0
        %2246 = vmatprep.subr.mxu0 0.0
        %2247 = vmatpush2.msra.mxu0 0.0
        %2248 = vmatprep.subr.mxu0 0.0
        %2249 = vmatpush2.msra.mxu0 0.0
        %2250 = vmatprep.subr.mxu0 0.0
        %2251 = vmatpush2.msra.mxu0 0.0
        %2252 = vmatprep.subr.mxu0 0.0
        %2253 = vmatpush2.msra.mxu0 0.0
        %2254 = vmatprep.subr.mxu0 0.0
        %2255 = vmatpush2.msra.mxu0 0.0
        %2256 = vmatprep.mubr.f32.mxu0 0.0
        %2257 = vmatmul.mubr.f32.gmra.mxu0 %v2190
        %v2258 = vpop.f32.mrf.mxu0
        %v2259 = vadd.f32 %v1193, %v2258
        %v2260 = vpop.f32.mrf.mxu0
        %2261 = vdwg.mxu0
        %v2263 = vrot.slane %v2259, 5
        %2264 = vrot.lane.b32.xlu0 %v2263, 96
        %v2265 = vpop.permute.xlu0 %2264
        %v2267 = vadd.f32 %v1180, %v2265
        %v2268 = vxor.u32 %v2267, 2147483648
        %v2269 = vmul.f32 %v2268, 1.442695
        %v2270 = vpow.pop %v2269
        %v2271 = vadd.f32 %v2270, 1.0
        %v2272 = vrcp.pop %v2271
        %v2273 = vmul.f32 1.0, %v2272
        %v2274 = vadd.f32 %v1182, %v2265
        %v2275 = vxor.u32 %v2274, 2147483648
        %v2276 = vmul.f32 %v2275, 1.442695
        %v2277 = vpow.pop %v2276
        %v2278 = vadd.f32 %v2277, 1.0
        %v2279 = vrcp.pop %v2278
        %v2280 = vmul.f32 1.0, %v2279
        %2281 = vrot.lane.b32.xlu0 %v2263, 32
        %v2282 = vpop.permute.xlu0 %2281
        %v2284 = vmul.f32 %v2273, %v2282
        %2286 = vrot.lane.b32.xlu0 %v2284, 64
        %v2287 = vpop.permute.xlu0 %2286
        %v2289 = vadd.f32 %v1182, %v2287
        %v2290 = vtanh.pop %v2289
        %v2291 = vsub.f32 1.0, %v2280
        %2293 = vrot.lane.b32.xlu0 %v2290, 96
        %v2294 = vpop.permute.xlu0 %2293
        %v2296 = vmul.f32 %v2291, %v2294
        %v2297 = vrot.slane %v2074, 1
        %v2299 = vmul.f32 %v2280, %v2297
        %v2300 = vadd.f32 %v2296, %v2299
        %2302 = vrot.lane.b32.xlu0 %v2187, 96
        %v2303 = vpop.permute.xlu0 %2302
        %2305 = vst.msk [vmem:[#allocation2] sm:$0x10] %vm2081, %v2303
        %2306 = vst.msk [vmem:[#allocation3] sm:$0x8] %vm2079, %v2300
        %v2307 = vrot.slane %v2187, 4
        %2308 = vrot.lane.b32.xlu0 %v2307, 96
        %v2309 = vpop.permute.xlu0 %2308
        %v2310 = vsel %vm1015, %v2309, 0
        %2312 = vmatprep.subr.mxu0 0.0
        %2313 = vmatpush1.msra.mxu0 0.0
        %2314 = vmatprep.subr.mxu0 0.0
        %2315 = vmatpush1.msra.mxu0 0.0
        %2316 = vmatprep.subr.mxu0 0.0
        %2317 = vmatpush1.msra.mxu0 0.0
        %2318 = vmatprep.subr.mxu0 0.0
        %2319 = vmatpush1.msra.mxu0 0.0
        %2320 = vmatprep.subr.mxu0 0.0
        %2321 = vmatpush1.msra.mxu0 0.0
        %2322 = vmatprep.subr.mxu0 0.0
        %2323 = vmatpush1.msra.mxu0 0.0
        %2324 = vmatprep.subr.mxu0 0.0
        %2325 = vmatpush1.msra.mxu0 0.0
        %2326 = vmatprep.subr.mxu0 0.0
        %2327 = vmatpush1.msra.mxu0 0.0
        %2328 = vmatprep.subr.mxu0 0.0
        %2329 = vmatpush1.msra.mxu0 0.0
        %2330 = vmatprep.subr.mxu0 0.0
        %2331 = vmatpush1.msra.mxu0 0.0
        %2332 = vmatprep.subr.mxu0 0.0
        %2333 = vmatpush1.msra.mxu0 0.0
        %2334 = vmatprep.subr.mxu0 0.0
        %2335 = vmatpush1.msra.mxu0 0.0
        %2336 = vmatprep.subr.mxu0 0.0
        %2337 = vmatpush1.msra.mxu0 %v1187
        %2338 = vmatprep.subr.mxu0 0.0
        %2339 = vmatpush1.msra.mxu0 %v1186
        %2340 = vmatprep.subr.mxu0 0.0
        %2341 = vmatpush1.msra.mxu0 %v1185
        %2342 = vmatprep.subr.mxu0 0.0
        %2343 = vmatpush1.msra.mxu0 %v1184
        %2344 = vmatprep.subr.mxu0 0.0
        %2345 = vmatpush2.msra.mxu0 0.0
        %2346 = vmatprep.subr.mxu0 0.0
        %2347 = vmatpush2.msra.mxu0 0.0
        %2348 = vmatprep.subr.mxu0 0.0
        %2349 = vmatpush2.msra.mxu0 0.0
        %2350 = vmatprep.subr.mxu0 0.0
        %2351 = vmatpush2.msra.mxu0 0.0
        %2352 = vmatprep.subr.mxu0 0.0
        %2353 = vmatpush2.msra.mxu0 0.0
        %2354 = vmatprep.subr.mxu0 0.0
        %2355 = vmatpush2.msra.mxu0 0.0
        %2356 = vmatprep.subr.mxu0 0.0
        %2357 = vmatpush2.msra.mxu0 0.0
        %2358 = vmatprep.subr.mxu0 0.0
        %2359 = vmatpush2.msra.mxu0 0.0
        %2360 = vmatprep.subr.mxu0 0.0
        %2361 = vmatpush2.msra.mxu0 0.0
        %2362 = vmatprep.subr.mxu0 0.0
        %2363 = vmatpush2.msra.mxu0 0.0
        %2364 = vmatprep.subr.mxu0 0.0
        %2365 = vmatpush2.msra.mxu0 0.0
        %2366 = vmatprep.subr.mxu0 0.0
        %2367 = vmatpush2.msra.mxu0 0.0
        %2368 = vmatprep.subr.mxu0 0.0
        %2369 = vmatpush2.msra.mxu0 0.0
        %2370 = vmatprep.subr.mxu0 0.0
        %2371 = vmatpush2.msra.mxu0 0.0
        %2372 = vmatprep.subr.mxu0 0.0
        %2373 = vmatpush2.msra.mxu0 0.0
        %2374 = vmatprep.subr.mxu0 0.0
        %2375 = vmatpush2.msra.mxu0 0.0
        %2376 = vmatprep.mubr.f32.mxu0 0.0
        %2377 = vmatmul.mubr.f32.gmra.mxu0 %v2310
        %v2378 = vpop.f32.mrf.mxu0
        %v2379 = vadd.f32 %v1188, %v2378
        %v2380 = vpop.f32.mrf.mxu0
        %2381 = vdwg.mxu0
        %v2383 = vrot.slane %v2379, 3
        %v2385 = vadd.f32 %v1180, %v2383
        %v2386 = vxor.u32 %v2385, 2147483648
        %v2387 = vmul.f32 %v2386, 1.442695
        %v2388 = vpow.pop %v2387
        %v2389 = vadd.f32 %v2388, 1.0
        %v2390 = vrcp.pop %v2389
        %v2391 = vmul.f32 1.0, %v2390
        %2392 = vrot.lane.b32.xlu0 %v2383, 64
        %v2393 = vpop.permute.xlu0 %2392
        %v2395 = vmul.f32 %v2391, %v2393
        %2397 = vrot.lane.b32.xlu0 %v2395, 64
        %v2398 = vpop.permute.xlu0 %2397
        %v2400 = vadd.f32 %v1180, %v2398
        %v2401 = vtanh.pop %v2400
        %v2402 = vsub.f32 1.0, %v2391
        %2404 = vrot.lane.b32.xlu0 %v2401, 96
        %v2405 = vpop.permute.xlu0 %2404
        %v2407 = vmul.f32 %v2402, %v2405
        %v2408 = vrot.slane %v2187, 7
        %v2410 = vmul.f32 %v2391, %v2408
        %v2411 = vadd.f32 %v2407, %v2410
        %v2413 = vrot.slane %v2300, 3
        %v2414 = vsel %vm1015, %v2413, 0
        %2416 = vmatprep.subr.mxu0 0.0
        %2417 = vmatpush1.msra.mxu0 0.0
        %2418 = vmatprep.subr.mxu0 0.0
        %2419 = vmatpush1.msra.mxu0 0.0
        %2420 = vmatprep.subr.mxu0 0.0
        %2421 = vmatpush1.msra.mxu0 0.0
        %2422 = vmatprep.subr.mxu0 0.0
        %2423 = vmatpush1.msra.mxu0 0.0
        %2424 = vmatprep.subr.mxu0 0.0
        %2425 = vmatpush1.msra.mxu0 0.0
        %2426 = vmatprep.subr.mxu0 0.0
        %2427 = vmatpush1.msra.mxu0 0.0
        %2428 = vmatprep.subr.mxu0 0.0
        %2429 = vmatpush1.msra.mxu0 0.0
        %2430 = vmatprep.subr.mxu0 0.0
        %2431 = vmatpush1.msra.mxu0 0.0
        %2432 = vmatprep.subr.mxu0 0.0
        %2433 = vmatpush1.msra.mxu0 0.0
        %2434 = vmatprep.subr.mxu0 0.0
        %2435 = vmatpush1.msra.mxu0 0.0
        %2436 = vmatprep.subr.mxu0 0.0
        %2437 = vmatpush1.msra.mxu0 0.0
        %2438 = vmatprep.subr.mxu0 0.0
        %2439 = vmatpush1.msra.mxu0 0.0
        %2440 = vmatprep.subr.mxu0 0.0
        %2441 = vmatpush1.msra.mxu0 %v1192
        %2442 = vmatprep.subr.mxu0 0.0
        %2443 = vmatpush1.msra.mxu0 %v1191
        %2444 = vmatprep.subr.mxu0 0.0
        %2445 = vmatpush1.msra.mxu0 %v1190
        %2446 = vmatprep.subr.mxu0 0.0
        %2447 = vmatpush1.msra.mxu0 %v1189
        %2448 = vmatprep.subr.mxu0 0.0
        %2449 = vmatpush2.msra.mxu0 0.0
        %2450 = vmatprep.subr.mxu0 0.0
        %2451 = vmatpush2.msra.mxu0 0.0
        %2452 = vmatprep.subr.mxu0 0.0
        %2453 = vmatpush2.msra.mxu0 0.0
        %2454 = vmatprep.subr.mxu0 0.0
        %2455 = vmatpush2.msra.mxu0 0.0
        %2456 = vmatprep.subr.mxu0 0.0
        %2457 = vmatpush2.msra.mxu0 0.0
        %2458 = vmatprep.subr.mxu0 0.0
        %2459 = vmatpush2.msra.mxu0 0.0
        %2460 = vmatprep.subr.mxu0 0.0
        %2461 = vmatpush2.msra.mxu0 0.0
        %2462 = vmatprep.subr.mxu0 0.0
        %2463 = vmatpush2.msra.mxu0 0.0
        %2464 = vmatprep.subr.mxu0 0.0
        %2465 = vmatpush2.msra.mxu0 0.0
        %2466 = vmatprep.subr.mxu0 0.0
        %2467 = vmatpush2.msra.mxu0 0.0
        %2468 = vmatprep.subr.mxu0 0.0
        %2469 = vmatpush2.msra.mxu0 0.0
        %2470 = vmatprep.subr.mxu0 0.0
        %2471 = vmatpush2.msra.mxu0 0.0
        %2472 = vmatprep.subr.mxu0 0.0
        %2473 = vmatpush2.msra.mxu0 0.0
        %2474 = vmatprep.subr.mxu0 0.0
        %2475 = vmatpush2.msra.mxu0 0.0
        %2476 = vmatprep.subr.mxu0 0.0
        %2477 = vmatpush2.msra.mxu0 0.0
        %2478 = vmatprep.subr.mxu0 0.0
        %2479 = vmatpush2.msra.mxu0 0.0
        %2480 = vmatprep.mubr.f32.mxu0 0.0
        %2481 = vmatmul.mubr.f32.gmra.mxu0 %v2414
        %v2482 = vpop.f32.mrf.mxu0
        %v2483 = vadd.f32 %v1193, %v2482
        %v2484 = vpop.f32.mrf.mxu0
        %2485 = vdwg.mxu0
        %v2487 = vrot.slane %v2483, 6
        %2488 = vrot.lane.b32.xlu0 %v2487, 96
        %v2489 = vpop.permute.xlu0 %2488
        %v2491 = vadd.f32 %v1180, %v2489
        %v2492 = vxor.u32 %v2491, 2147483648
        %v2493 = vmul.f32 %v2492, 1.442695
        %v2494 = vpow.pop %v2493
        %v2495 = vadd.f32 %v2494, 1.0
        %v2496 = vrcp.pop %v2495
        %v2497 = vmul.f32 1.0, %v2496
        %v2498 = vadd.f32 %v1182, %v2489
        %v2499 = vxor.u32 %v2498, 2147483648
        %v2500 = vmul.f32 %v2499, 1.442695
        %v2501 = vpow.pop %v2500
        %v2502 = vadd.f32 %v2501, 1.0
        %v2503 = vrcp.pop %v2502
        %v2504 = vmul.f32 1.0, %v2503
        %2505 = vrot.lane.b32.xlu0 %v2487, 32
        %v2506 = vpop.permute.xlu0 %2505
        %v2508 = vmul.f32 %v2497, %v2506
        %2510 = vrot.lane.b32.xlu0 %v2508, 64
        %v2511 = vpop.permute.xlu0 %2510
        %v2513 = vadd.f32 %v1182, %v2511
        %v2514 = vtanh.pop %v2513
        %v2515 = vsub.f32 1.0, %v2504
        %2517 = vrot.lane.b32.xlu0 %v2514, 96
        %v2518 = vpop.permute.xlu0 %2517
        %v2520 = vmul.f32 %v2515, %v2518
        %v2521 = vrot.slane %v2300, 1
        %v2523 = vmul.f32 %v2504, %v2521
        %v2524 = vadd.f32 %v2520, %v2523
        %2526 = vrot.lane.b32.xlu0 %v2411, 96
        %v2527 = vpop.permute.xlu0 %2526
        %2529 = vst.msk [vmem:[#allocation2] sm:$0x20] %vm1855, %v2527
        %2530 = vst.msk [vmem:[#allocation3] sm:$0x4] %vm1853, %v2524
        %v2531 = vrot.slane %v2411, 5
        %2532 = vrot.lane.b32.xlu0 %v2531, 96
        %v2533 = vpop.permute.xlu0 %2532
        %v2534 = vsel %vm1015, %v2533, 0
        %2536 = vmatprep.subr.mxu0 0.0
        %2537 = vmatpush1.msra.mxu0 0.0
        %2538 = vmatprep.subr.mxu0 0.0
        %2539 = vmatpush1.msra.mxu0 0.0
        %2540 = vmatprep.subr.mxu0 0.0
        %2541 = vmatpush1.msra.mxu0 0.0
        %2542 = vmatprep.subr.mxu0 0.0
        %2543 = vmatpush1.msra.mxu0 0.0
        %2544 = vmatprep.subr.mxu0 0.0
        %2545 = vmatpush1.msra.mxu0 0.0
        %2546 = vmatprep.subr.mxu0 0.0
        %2547 = vmatpush1.msra.mxu0 0.0
        %2548 = vmatprep.subr.mxu0 0.0
        %2549 = vmatpush1.msra.mxu0 0.0
        %2550 = vmatprep.subr.mxu0 0.0
        %2551 = vmatpush1.msra.mxu0 0.0
        %2552 = vmatprep.subr.mxu0 0.0
        %2553 = vmatpush1.msra.mxu0 0.0
        %2554 = vmatprep.subr.mxu0 0.0
        %2555 = vmatpush1.msra.mxu0 0.0
        %2556 = vmatprep.subr.mxu0 0.0
        %2557 = vmatpush1.msra.mxu0 0.0
        %2558 = vmatprep.subr.mxu0 0.0
        %2559 = vmatpush1.msra.mxu0 0.0
        %2560 = vmatprep.subr.mxu0 0.0
        %2561 = vmatpush1.msra.mxu0 %v1187
        %2562 = vmatprep.subr.mxu0 0.0
        %2563 = vmatpush1.msra.mxu0 %v1186
        %2564 = vmatprep.subr.mxu0 0.0
        %2565 = vmatpush1.msra.mxu0 %v1185
        %2566 = vmatprep.subr.mxu0 0.0
        %2567 = vmatpush1.msra.mxu0 %v1184
        %2568 = vmatprep.subr.mxu0 0.0
        %2569 = vmatpush2.msra.mxu0 0.0
        %2570 = vmatprep.subr.mxu0 0.0
        %2571 = vmatpush2.msra.mxu0 0.0
        %2572 = vmatprep.subr.mxu0 0.0
        %2573 = vmatpush2.msra.mxu0 0.0
        %2574 = vmatprep.subr.mxu0 0.0
        %2575 = vmatpush2.msra.mxu0 0.0
        %2576 = vmatprep.subr.mxu0 0.0
        %2577 = vmatpush2.msra.mxu0 0.0
        %2578 = vmatprep.subr.mxu0 0.0
        %2579 = vmatpush2.msra.mxu0 0.0
        %2580 = vmatprep.subr.mxu0 0.0
        %2581 = vmatpush2.msra.mxu0 0.0
        %2582 = vmatprep.subr.mxu0 0.0
        %2583 = vmatpush2.msra.mxu0 0.0
        %2584 = vmatprep.subr.mxu0 0.0
        %2585 = vmatpush2.msra.mxu0 0.0
        %2586 = vmatprep.subr.mxu0 0.0
        %2587 = vmatpush2.msra.mxu0 0.0
        %2588 = vmatprep.subr.mxu0 0.0
        %2589 = vmatpush2.msra.mxu0 0.0
        %2590 = vmatprep.subr.mxu0 0.0
        %2591 = vmatpush2.msra.mxu0 0.0
        %2592 = vmatprep.subr.mxu0 0.0
        %2593 = vmatpush2.msra.mxu0 0.0
        %2594 = vmatprep.subr.mxu0 0.0
        %2595 = vmatpush2.msra.mxu0 0.0
        %2596 = vmatprep.subr.mxu0 0.0
        %2597 = vmatpush2.msra.mxu0 0.0
        %2598 = vmatprep.subr.mxu0 0.0
        %2599 = vmatpush2.msra.mxu0 0.0
        %2600 = vmatprep.mubr.f32.mxu0 0.0
        %2601 = vmatmul.mubr.f32.gmra.mxu0 %v2534
        %v2602 = vpop.f32.mrf.mxu0
        %v2603 = vadd.f32 %v1188, %v2602
        %v2604 = vpop.f32.mrf.mxu0
        %2605 = vdwg.mxu0
        %v2607 = vrot.slane %v2603, 2
        %v2609 = vadd.f32 %v1180, %v2607
        %v2610 = vxor.u32 %v2609, 2147483648
        %v2611 = vmul.f32 %v2610, 1.442695
        %v2612 = vpow.pop %v2611
        %v2613 = vadd.f32 %v2612, 1.0
        %v2614 = vrcp.pop %v2613
        %v2615 = vmul.f32 1.0, %v2614
        %2616 = vrot.lane.b32.xlu0 %v2607, 64
        %v2617 = vpop.permute.xlu0 %2616
        %v2619 = vmul.f32 %v2615, %v2617
        %2621 = vrot.lane.b32.xlu0 %v2619, 64
        %v2622 = vpop.permute.xlu0 %2621
        %v2624 = vadd.f32 %v1180, %v2622
        %v2625 = vtanh.pop %v2624
        %v2626 = vsub.f32 1.0, %v2615
        %2628 = vrot.lane.b32.xlu0 %v2625, 96
        %v2629 = vpop.permute.xlu0 %2628
        %v2631 = vmul.f32 %v2626, %v2629
        %v2632 = vrot.slane %v2411, 7
        %v2634 = vmul.f32 %v2615, %v2632
        %v2635 = vadd.f32 %v2631, %v2634
        %v2637 = vrot.slane %v2524, 2
        %v2638 = vsel %vm1015, %v2637, 0
        %2640 = vmatprep.subr.mxu0 0.0
        %2641 = vmatpush1.msra.mxu0 0.0
        %2642 = vmatprep.subr.mxu0 0.0
        %2643 = vmatpush1.msra.mxu0 0.0
        %2644 = vmatprep.subr.mxu0 0.0
        %2645 = vmatpush1.msra.mxu0 0.0
        %2646 = vmatprep.subr.mxu0 0.0
        %2647 = vmatpush1.msra.mxu0 0.0
        %2648 = vmatprep.subr.mxu0 0.0
        %2649 = vmatpush1.msra.mxu0 0.0
        %2650 = vmatprep.subr.mxu0 0.0
        %2651 = vmatpush1.msra.mxu0 0.0
        %2652 = vmatprep.subr.mxu0 0.0
        %2653 = vmatpush1.msra.mxu0 0.0
        %2654 = vmatprep.subr.mxu0 0.0
        %2655 = vmatpush1.msra.mxu0 0.0
        %2656 = vmatprep.subr.mxu0 0.0
        %2657 = vmatpush1.msra.mxu0 0.0
        %2658 = vmatprep.subr.mxu0 0.0
        %2659 = vmatpush1.msra.mxu0 0.0
        %2660 = vmatprep.subr.mxu0 0.0
        %2661 = vmatpush1.msra.mxu0 0.0
        %2662 = vmatprep.subr.mxu0 0.0
        %2663 = vmatpush1.msra.mxu0 0.0
        %2664 = vmatprep.subr.mxu0 0.0
        %2665 = vmatpush1.msra.mxu0 %v1192
        %2666 = vmatprep.subr.mxu0 0.0
        %2667 = vmatpush1.msra.mxu0 %v1191
        %2668 = vmatprep.subr.mxu0 0.0
        %2669 = vmatpush1.msra.mxu0 %v1190
        %2670 = vmatprep.subr.mxu0 0.0
        %2671 = vmatpush1.msra.mxu0 %v1189
        %2672 = vmatprep.subr.mxu0 0.0
        %2673 = vmatpush2.msra.mxu0 0.0
        %2674 = vmatprep.subr.mxu0 0.0
        %2675 = vmatpush2.msra.mxu0 0.0
        %2676 = vmatprep.subr.mxu0 0.0
        %2677 = vmatpush2.msra.mxu0 0.0
        %2678 = vmatprep.subr.mxu0 0.0
        %2679 = vmatpush2.msra.mxu0 0.0
        %2680 = vmatprep.subr.mxu0 0.0
        %2681 = vmatpush2.msra.mxu0 0.0
        %2682 = vmatprep.subr.mxu0 0.0
        %2683 = vmatpush2.msra.mxu0 0.0
        %2684 = vmatprep.subr.mxu0 0.0
        %2685 = vmatpush2.msra.mxu0 0.0
        %2686 = vmatprep.subr.mxu0 0.0
        %2687 = vmatpush2.msra.mxu0 0.0
        %2688 = vmatprep.subr.mxu0 0.0
        %2689 = vmatpush2.msra.mxu0 0.0
        %2690 = vmatprep.subr.mxu0 0.0
        %2691 = vmatpush2.msra.mxu0 0.0
        %2692 = vmatprep.subr.mxu0 0.0
        %2693 = vmatpush2.msra.mxu0 0.0
        %2694 = vmatprep.subr.mxu0 0.0
        %2695 = vmatpush2.msra.mxu0 0.0
        %2696 = vmatprep.subr.mxu0 0.0
        %2697 = vmatpush2.msra.mxu0 0.0
        %2698 = vmatprep.subr.mxu0 0.0
        %2699 = vmatpush2.msra.mxu0 0.0
        %2700 = vmatprep.subr.mxu0 0.0
        %2701 = vmatpush2.msra.mxu0 0.0
        %2702 = vmatprep.subr.mxu0 0.0
        %2703 = vmatpush2.msra.mxu0 0.0
        %2704 = vmatprep.mubr.f32.mxu0 0.0
        %2705 = vmatmul.mubr.f32.gmra.mxu0 %v2638
        %v2706 = vpop.f32.mrf.mxu0
        %v2707 = vadd.f32 %v1193, %v2706
        %v2708 = vpop.f32.mrf.mxu0
        %2709 = vdwg.mxu0
        %v2711 = vrot.slane %v2707, 7
        %2712 = vrot.lane.b32.xlu0 %v2711, 96
        %v2713 = vpop.permute.xlu0 %2712
        %v2715 = vadd.f32 %v1180, %v2713
        %v2716 = vxor.u32 %v2715, 2147483648
        %v2717 = vmul.f32 %v2716, 1.442695
        %v2718 = vpow.pop %v2717
        %v2719 = vadd.f32 %v2718, 1.0
        %v2720 = vrcp.pop %v2719
        %v2721 = vmul.f32 1.0, %v2720
        %v2722 = vadd.f32 %v1182, %v2713
        %v2723 = vxor.u32 %v2722, 2147483648
        %v2724 = vmul.f32 %v2723, 1.442695
        %v2725 = vpow.pop %v2724
        %v2726 = vadd.f32 %v2725, 1.0
        %v2727 = vrcp.pop %v2726
        %v2728 = vmul.f32 1.0, %v2727
        %2729 = vrot.lane.b32.xlu0 %v2711, 32
        %v2730 = vpop.permute.xlu0 %2729
        %v2732 = vmul.f32 %v2721, %v2730
        %2734 = vrot.lane.b32.xlu0 %v2732, 64
        %v2735 = vpop.permute.xlu0 %2734
        %v2737 = vadd.f32 %v1182, %v2735
        %v2738 = vtanh.pop %v2737
        %v2739 = vsub.f32 1.0, %v2728
        %2741 = vrot.lane.b32.xlu0 %v2738, 96
        %v2742 = vpop.permute.xlu0 %2741
        %v2744 = vmul.f32 %v2739, %v2742
        %v2745 = vrot.slane %v2524, 1
        %v2747 = vmul.f32 %v2728, %v2745
        %v2748 = vadd.f32 %v2744, %v2747
        %2750 = vrot.lane.b32.xlu0 %v2635, 96
        %v2751 = vpop.permute.xlu0 %2750
        %2753 = vst.msk [vmem:[#allocation2] sm:$0x40] %vm1629, %v2751
        %2754 = vst.msk [vmem:[#allocation3] sm:$0x2] %vm1627, %v2748
        %v2755 = vrot.slane %v2635, 6
        %2756 = vrot.lane.b32.xlu0 %v2755, 96
        %v2757 = vpop.permute.xlu0 %2756
        %v2758 = vsel %vm1015, %v2757, 0
        %2760 = vmatprep.subr.mxu0 0.0
        %2761 = vmatpush1.msra.mxu0 0.0
        %2762 = vmatprep.subr.mxu0 0.0
        %2763 = vmatpush1.msra.mxu0 0.0
        %2764 = vmatprep.subr.mxu0 0.0
        %2765 = vmatpush1.msra.mxu0 0.0
        %2766 = vmatprep.subr.mxu0 0.0
        %2767 = vmatpush1.msra.mxu0 0.0
        %2768 = vmatprep.subr.mxu0 0.0
        %2769 = vmatpush1.msra.mxu0 0.0
        %2770 = vmatprep.subr.mxu0 0.0
        %2771 = vmatpush1.msra.mxu0 0.0
        %2772 = vmatprep.subr.mxu0 0.0
        %2773 = vmatpush1.msra.mxu0 0.0
        %2774 = vmatprep.subr.mxu0 0.0
        %2775 = vmatpush1.msra.mxu0 0.0
        %2776 = vmatprep.subr.mxu0 0.0
        %2777 = vmatpush1.msra.mxu0 0.0
        %2778 = vmatprep.subr.mxu0 0.0
        %2779 = vmatpush1.msra.mxu0 0.0
        %2780 = vmatprep.subr.mxu0 0.0
        %2781 = vmatpush1.msra.mxu0 0.0
        %2782 = vmatprep.subr.mxu0 0.0
        %2783 = vmatpush1.msra.mxu0 0.0
        %2784 = vmatprep.subr.mxu0 0.0
        %2785 = vmatpush1.msra.mxu0 %v1187
        %2786 = vmatprep.subr.mxu0 0.0
        %2787 = vmatpush1.msra.mxu0 %v1186
        %2788 = vmatprep.subr.mxu0 0.0
        %2789 = vmatpush1.msra.mxu0 %v1185
        %2790 = vmatprep.subr.mxu0 0.0
        %2791 = vmatpush1.msra.mxu0 %v1184
        %2792 = vmatprep.subr.mxu0 0.0
        %2793 = vmatpush2.msra.mxu0 0.0
        %2794 = vmatprep.subr.mxu0 0.0
        %2795 = vmatpush2.msra.mxu0 0.0
        %2796 = vmatprep.subr.mxu0 0.0
        %2797 = vmatpush2.msra.mxu0 0.0
        %2798 = vmatprep.subr.mxu0 0.0
        %2799 = vmatpush2.msra.mxu0 0.0
        %2800 = vmatprep.subr.mxu0 0.0
        %2801 = vmatpush2.msra.mxu0 0.0
        %2802 = vmatprep.subr.mxu0 0.0
        %2803 = vmatpush2.msra.mxu0 0.0
        %2804 = vmatprep.subr.mxu0 0.0
        %2805 = vmatpush2.msra.mxu0 0.0
        %2806 = vmatprep.subr.mxu0 0.0
        %2807 = vmatpush2.msra.mxu0 0.0
        %2808 = vmatprep.subr.mxu0 0.0
        %2809 = vmatpush2.msra.mxu0 0.0
        %2810 = vmatprep.subr.mxu0 0.0
        %2811 = vmatpush2.msra.mxu0 0.0
        %2812 = vmatprep.subr.mxu0 0.0
        %2813 = vmatpush2.msra.mxu0 0.0
        %2814 = vmatprep.subr.mxu0 0.0
        %2815 = vmatpush2.msra.mxu0 0.0
        %2816 = vmatprep.subr.mxu0 0.0
        %2817 = vmatpush2.msra.mxu0 0.0
        %2818 = vmatprep.subr.mxu0 0.0
        %2819 = vmatpush2.msra.mxu0 0.0
        %2820 = vmatprep.subr.mxu0 0.0
        %2821 = vmatpush2.msra.mxu0 0.0
        %2822 = vmatprep.subr.mxu0 0.0
        %2823 = vmatpush2.msra.mxu0 0.0
        %2824 = vmatprep.mubr.f32.mxu0 0.0
        %2825 = vmatmul.mubr.f32.gmra.mxu0 %v2758
        %v2826 = vpop.f32.mrf.mxu0
        %v2827 = vadd.f32 %v1188, %v2826
        %v2828 = vpop.f32.mrf.mxu0
        %2829 = vdwg.mxu0
        %v2831 = vrot.slane %v2827, 1
        %v2833 = vadd.f32 %v1180, %v2831
        %v2834 = vxor.u32 %v2833, 2147483648
        %v2835 = vmul.f32 %v2834, 1.442695
        %v2836 = vpow.pop %v2835
        %v2837 = vadd.f32 %v2836, 1.0
        %v2838 = vrcp.pop %v2837
        %v2839 = vmul.f32 1.0, %v2838
        %2840 = vrot.lane.b32.xlu0 %v2831, 64
        %v2841 = vpop.permute.xlu0 %2840
        %v2843 = vmul.f32 %v2839, %v2841
        %2845 = vrot.lane.b32.xlu0 %v2843, 64
        %v2846 = vpop.permute.xlu0 %2845
        %v2848 = vadd.f32 %v1180, %v2846
        %v2849 = vtanh.pop %v2848
        %v2850 = vsub.f32 1.0, %v2839
        %2852 = vrot.lane.b32.xlu0 %v2849, 96
        %v2853 = vpop.permute.xlu0 %2852
        %v2855 = vmul.f32 %v2850, %v2853
        %v2856 = vrot.slane %v2635, 7
        %v2858 = vmul.f32 %v2839, %v2856
        %v2859 = vadd.f32 %v2855, %v2858
        %v2861 = vrot.slane %v2748, 1
        %v2862 = vsel %vm1015, %v2861, 0
        %2864 = vmatprep.subr.mxu0 0.0
        %2865 = vmatpush1.msra.mxu0 0.0
        %2866 = vmatprep.subr.mxu0 0.0
        %2867 = vmatpush1.msra.mxu0 0.0
        %2868 = vmatprep.subr.mxu0 0.0
        %2869 = vmatpush1.msra.mxu0 0.0
        %2870 = vmatprep.subr.mxu0 0.0
        %2871 = vmatpush1.msra.mxu0 0.0
        %2872 = vmatprep.subr.mxu0 0.0
        %2873 = vmatpush1.msra.mxu0 0.0
        %2874 = vmatprep.subr.mxu0 0.0
        %2875 = vmatpush1.msra.mxu0 0.0
        %2876 = vmatprep.subr.mxu0 0.0
        %2877 = vmatpush1.msra.mxu0 0.0
        %2878 = vmatprep.subr.mxu0 0.0
        %2879 = vmatpush1.msra.mxu0 0.0
        %2880 = vmatprep.subr.mxu0 0.0
        %2881 = vmatpush1.msra.mxu0 0.0
        %2882 = vmatprep.subr.mxu0 0.0
        %2883 = vmatpush1.msra.mxu0 0.0
        %2884 = vmatprep.subr.mxu0 0.0
        %2885 = vmatpush1.msra.mxu0 0.0
        %2886 = vmatprep.subr.mxu0 0.0
        %2887 = vmatpush1.msra.mxu0 0.0
        %2888 = vmatprep.subr.mxu0 0.0
        %2889 = vmatpush1.msra.mxu0 %v1192
        %2890 = vmatprep.subr.mxu0 0.0
        %2891 = vmatpush1.msra.mxu0 %v1191
        %2892 = vmatprep.subr.mxu0 0.0
        %2893 = vmatpush1.msra.mxu0 %v1190
        %2894 = vmatprep.subr.mxu0 0.0
        %2895 = vmatpush1.msra.mxu0 %v1189
        %2896 = vmatprep.subr.mxu0 0.0
        %2897 = vmatpush2.msra.mxu0 0.0
        %2898 = vmatprep.subr.mxu0 0.0
        %2899 = vmatpush2.msra.mxu0 0.0
        %2900 = vmatprep.subr.mxu0 0.0
        %2901 = vmatpush2.msra.mxu0 0.0
        %2902 = vmatprep.subr.mxu0 0.0
        %2903 = vmatpush2.msra.mxu0 0.0
        %2904 = vmatprep.subr.mxu0 0.0
        %2905 = vmatpush2.msra.mxu0 0.0
        %2906 = vmatprep.subr.mxu0 0.0
        %2907 = vmatpush2.msra.mxu0 0.0
        %2908 = vmatprep.subr.mxu0 0.0
        %2909 = vmatpush2.msra.mxu0 0.0
        %2910 = vmatprep.subr.mxu0 0.0
        %2911 = vmatpush2.msra.mxu0 0.0
        %2912 = vmatprep.subr.mxu0 0.0
        %2913 = vmatpush2.msra.mxu0 0.0
        %2914 = vmatprep.subr.mxu0 0.0
        %2915 = vmatpush2.msra.mxu0 0.0
        %2916 = vmatprep.subr.mxu0 0.0
        %2917 = vmatpush2.msra.mxu0 0.0
        %2918 = vmatprep.subr.mxu0 0.0
        %2919 = vmatpush2.msra.mxu0 0.0
        %2920 = vmatprep.subr.mxu0 0.0
        %2921 = vmatpush2.msra.mxu0 0.0
        %2922 = vmatprep.subr.mxu0 0.0
        %2923 = vmatpush2.msra.mxu0 0.0
        %2924 = vmatprep.subr.mxu0 0.0
        %2925 = vmatpush2.msra.mxu0 0.0
        %2926 = vmatprep.subr.mxu0 0.0
        %2927 = vmatpush2.msra.mxu0 0.0
        %2928 = vmatprep.mubr.f32.mxu0 0.0
        %2929 = vmatmul.mubr.f32.gmra.mxu0 %v2862
        %v2930 = vpop.f32.mrf.mxu0
        %v2931 = vadd.f32 %v1193, %v2930
        %v2932 = vpop.f32.mrf.mxu0
        %2933 = vdwg.mxu0
        %2935 = vrot.lane.b32.xlu0 %v2931, 96
        %v2936 = vpop.permute.xlu0 %2935
        %v2938 = vadd.f32 %v1180, %v2936
        %v2939 = vxor.u32 %v2938, 2147483648
        %v2940 = vmul.f32 %v2939, 1.442695
        %v2941 = vpow.pop %v2940
        %v2942 = vadd.f32 %v2941, 1.0
        %v2943 = vrcp.pop %v2942
        %v2944 = vmul.f32 1.0, %v2943
        %v2945 = vadd.f32 %v1182, %v2936
        %v2946 = vxor.u32 %v2945, 2147483648
        %v2947 = vmul.f32 %v2946, 1.442695
        %v2948 = vpow.pop %v2947
        %v2949 = vadd.f32 %v2948, 1.0
        %v2950 = vrcp.pop %v2949
        %v2951 = vmul.f32 1.0, %v2950
        %2952 = vrot.lane.b32.xlu0 %v2931, 32
        %v2953 = vpop.permute.xlu0 %2952
        %v2955 = vmul.f32 %v2944, %v2953
        %2957 = vrot.lane.b32.xlu0 %v2955, 64
        %v2958 = vpop.permute.xlu0 %2957
        %v2960 = vadd.f32 %v1182, %v2958
        %v2961 = vtanh.pop %v2960
        %v2962 = vsub.f32 1.0, %v2951
        %2964 = vrot.lane.b32.xlu0 %v2961, 96
        %v2965 = vpop.permute.xlu0 %2964
        %v2967 = vmul.f32 %v2962, %v2965
        %v2969 = vmul.f32 %v2951, %v2861
        %v2970 = vadd.f32 %v2967, %v2969
        %2972 = vrot.lane.b32.xlu0 %v2859, 96
        %v2973 = vpop.permute.xlu0 %2972
        %2975 = vst.msk [vmem:[#allocation2] sm:$0x80] %vm1406, %v2973
        %2976 = vst.msk [vmem:[#allocation3] sm:$0x1] %vm1404, %v2970
        %v2977 = vld [vmem:[#allocation13] sm:$0xff]
        %v2978 = vld [vmem:[#allocation13 + $0x8] sm:$0xff]
        %v2979 = vld [vmem:[#allocation13 + $0x10] sm:$0xff]
        %v2980 = vld [vmem:[#allocation13 + $0x18] sm:$0xff]
        %v2981 = vld [vmem:[#allocation13 + $0x20] sm:$0xff]
        %v2982 = vld [vmem:[#allocation13 + $0x28] sm:$0xff]
        %v2983 = vld [vmem:[#allocation13 + $0x30] sm:$0xff]
        %v2984 = vld [vmem:[#allocation13 + $0x38] sm:$0xff]
        %v2985 = vld [vmem:[#allocation2] sm:$0xff]
        %v2986 = vtanh.pop %v2985
        %v2987 = vld [vmem:[#allocation3] sm:$0xff]
        %v2988 = vtanh.pop %v2987
        %v2990 = vsel %vm1015, %v2988, 0
        %2992 = vmatprep.subr.mxu0 0.0
        %2993 = vmatpush1.msra.mxu0 0.0
        %2994 = vmatprep.subr.mxu0 0.0
        %2995 = vmatpush1.msra.mxu0 0.0
        %2996 = vmatprep.subr.mxu0 0.0
        %2997 = vmatpush1.msra.mxu0 0.0
        %2998 = vmatprep.subr.mxu0 0.0
        %2999 = vmatpush1.msra.mxu0 0.0
        %3000 = vmatprep.subr.mxu0 0.0
        %3001 = vmatpush1.msra.mxu0 0.0
        %3002 = vmatprep.subr.mxu0 0.0
        %3003 = vmatpush1.msra.mxu0 0.0
        %3004 = vmatprep.subr.mxu0 0.0
        %3005 = vmatpush1.msra.mxu0 0.0
        %3006 = vmatprep.subr.mxu0 0.0
        %3007 = vmatpush1.msra.mxu0 0.0
        %3008 = vmatprep.subr.mxu0 0.0
        %3009 = vmatpush1.msra.mxu0 0.0
        %3010 = vmatprep.subr.mxu0 0.0
        %3011 = vmatpush1.msra.mxu0 0.0
        %3012 = vmatprep.subr.mxu0 0.0
        %3013 = vmatpush1.msra.mxu0 0.0
        %3014 = vmatprep.subr.mxu0 0.0
        %3015 = vmatpush1.msra.mxu0 0.0
        %3016 = vmatprep.subr.mxu0 0.0
        %3017 = vmatpush1.msra.mxu0 %v2984
        %3018 = vmatprep.subr.mxu0 0.0
        %3019 = vmatpush1.msra.mxu0 %v2983
        %3020 = vmatprep.subr.mxu0 0.0
        %3021 = vmatpush1.msra.mxu0 %v2982
        %3022 = vmatprep.subr.mxu0 0.0
        %3023 = vmatpush1.msra.mxu0 %v2981
        %3024 = vmatprep.subr.mxu0 0.0
        %3025 = vmatpush2.msra.mxu0 0.0
        %3026 = vmatprep.subr.mxu0 0.0
        %3027 = vmatpush2.msra.mxu0 0.0
        %3028 = vmatprep.subr.mxu0 0.0
        %3029 = vmatpush2.msra.mxu0 0.0
        %3030 = vmatprep.subr.mxu0 0.0
        %3031 = vmatpush2.msra.mxu0 0.0
        %3032 = vmatprep.subr.mxu0 0.0
        %3033 = vmatpush2.msra.mxu0 0.0
        %3034 = vmatprep.subr.mxu0 0.0
        %3035 = vmatpush2.msra.mxu0 0.0
        %3036 = vmatprep.subr.mxu0 0.0
        %3037 = vmatpush2.msra.mxu0 0.0
        %3038 = vmatprep.subr.mxu0 0.0
        %3039 = vmatpush2.msra.mxu0 0.0
        %3040 = vmatprep.subr.mxu0 0.0
        %3041 = vmatpush2.msra.mxu0 0.0
        %3042 = vmatprep.subr.mxu0 0.0
        %3043 = vmatpush2.msra.mxu0 0.0
        %3044 = vmatprep.subr.mxu0 0.0
        %3045 = vmatpush2.msra.mxu0 0.0
        %3046 = vmatprep.subr.mxu0 0.0
        %3047 = vmatpush2.msra.mxu0 0.0
        %3048 = vmatprep.subr.mxu0 0.0
        %3049 = vmatpush2.msra.mxu0 0.0
        %3050 = vmatprep.subr.mxu0 0.0
        %3051 = vmatpush2.msra.mxu0 0.0
        %3052 = vmatprep.subr.mxu0 0.0
        %3053 = vmatpush2.msra.mxu0 0.0
        %3054 = vmatprep.subr.mxu0 0.0
        %3055 = vmatpush2.msra.mxu0 0.0
        %3056 = vmatprep.mubr.f32.mxu0 0.0
        %3057 = vmatmul.mubr.f32.gmra.mxu0 %v2990
        %v3058 = vpop.f32.mrf.mxu0
        %v3059 = vadd.f32 0.0, %v3058
        %v3060 = vpop.f32.mrf.mxu0
        %3061 = vdwg.mxu0
        %v3063 = vsel %vm1015, %v2986, 0
        %3065 = vmatprep.subr.mxu0 0.0
        %3066 = vmatpush1.msra.mxu0 0.0
        %3067 = vmatprep.subr.mxu0 0.0
        %3068 = vmatpush1.msra.mxu0 0.0
        %3069 = vmatprep.subr.mxu0 0.0
        %3070 = vmatpush1.msra.mxu0 0.0
        %3071 = vmatprep.subr.mxu0 0.0
        %3072 = vmatpush1.msra.mxu0 0.0
        %3073 = vmatprep.subr.mxu0 0.0
        %3074 = vmatpush1.msra.mxu0 0.0
        %3075 = vmatprep.subr.mxu0 0.0
        %3076 = vmatpush1.msra.mxu0 0.0
        %3077 = vmatprep.subr.mxu0 0.0
        %3078 = vmatpush1.msra.mxu0 0.0
        %3079 = vmatprep.subr.mxu0 0.0
        %3080 = vmatpush1.msra.mxu0 0.0
        %3081 = vmatprep.subr.mxu0 0.0
        %3082 = vmatpush1.msra.mxu0 0.0
        %3083 = vmatprep.subr.mxu0 0.0
        %3084 = vmatpush1.msra.mxu0 0.0
        %3085 = vmatprep.subr.mxu0 0.0
        %3086 = vmatpush1.msra.mxu0 0.0
        %3087 = vmatprep.subr.mxu0 0.0
        %3088 = vmatpush1.msra.mxu0 0.0
        %3089 = vmatprep.subr.mxu0 0.0
        %3090 = vmatpush1.msra.mxu0 %v2980
        %3091 = vmatprep.subr.mxu0 0.0
        %3092 = vmatpush1.msra.mxu0 %v2979
        %3093 = vmatprep.subr.mxu0 0.0
        %3094 = vmatpush1.msra.mxu0 %v2978
        %3095 = vmatprep.subr.mxu0 0.0
        %3096 = vmatpush1.msra.mxu0 %v2977
        %3097 = vmatprep.subr.mxu0 0.0
        %3098 = vmatpush2.msra.mxu0 0.0
        %3099 = vmatprep.subr.mxu0 0.0
        %3100 = vmatpush2.msra.mxu0 0.0
        %3101 = vmatprep.subr.mxu0 0.0
        %3102 = vmatpush2.msra.mxu0 0.0
        %3103 = vmatprep.subr.mxu0 0.0
        %3104 = vmatpush2.msra.mxu0 0.0
        %3105 = vmatprep.subr.mxu0 0.0
        %3106 = vmatpush2.msra.mxu0 0.0
        %3107 = vmatprep.subr.mxu0 0.0
        %3108 = vmatpush2.msra.mxu0 0.0
        %3109 = vmatprep.subr.mxu0 0.0
        %3110 = vmatpush2.msra.mxu0 0.0
        %3111 = vmatprep.subr.mxu0 0.0
        %3112 = vmatpush2.msra.mxu0 0.0
        %3113 = vmatprep.subr.mxu0 0.0
        %3114 = vmatpush2.msra.mxu0 0.0
        %3115 = vmatprep.subr.mxu0 0.0
        %3116 = vmatpush2.msra.mxu0 0.0
        %3117 = vmatprep.subr.mxu0 0.0
        %3118 = vmatpush2.msra.mxu0 0.0
        %3119 = vmatprep.subr.mxu0 0.0
        %3120 = vmatpush2.msra.mxu0 0.0
        %3121 = vmatprep.subr.mxu0 0.0
        %3122 = vmatpush2.msra.mxu0 0.0
        %3123 = vmatprep.subr.mxu0 0.0
        %3124 = vmatpush2.msra.mxu0 0.0
        %3125 = vmatprep.subr.mxu0 0.0
        %3126 = vmatpush2.msra.mxu0 0.0
        %3127 = vmatprep.subr.mxu0 0.0
        %3128 = vmatpush2.msra.mxu0 0.0
        %3129 = vmatprep.mubr.f32.mxu0 0.0
        %3130 = vmatmul.mubr.f32.gmra.mxu0 %v3063
        %v3131 = vpop.f32.mrf.mxu0
        %v3132 = vadd.f32 %v3059, %v3131
        %v3133 = vpop.f32.mrf.mxu0
        %3134 = vdwg.mxu0
        %v3135 = vld [vmem:[%s10] sm:$0x1]
        %v3137 = vlaneseq
        %v3138 = vshrl.u32 %v3137, 7
        %v3139 = vsub.s32 0, %v3138
        %v3140 = vrot.slane %v3135, %v3139
        %v3142 = vadd.f32 %v3132, %v3140
        %v3143 = vlaneseq
        %v3144 = vshrl.u32 %v3143, 7
        %v3145 = vlaneseq
        %v3146 = vand.u32 %v3145, 127
        %v3147 = vadd.s32 %v3146, 1
        %vm3148 = vcmp.eq.s32.totalorder %v3144, %v3147
        %v3149 = vsel %vm3148, 1, 0
        %v3150 = vcvt.s32.f32 %v3149
        %v3151 = vadd.s32 %v3144, 1
        %vm3152 = vcmp.eq.s32.totalorder %v3151, %v3146
        %v3153 = vsel %vm3152, 1, 0
        %v3154 = vcvt.s32.f32 %v3153
        %vm3155 = vcmask 64512
        %v3157 = vsel %vm3155, %v3150, 0
        %3159 = vmatprep.subr.mxu0 0.0
        %3160 = vmatpush1.msra.mxu0 0.0
        %3161 = vmatprep.subr.mxu0 0.0
        %3162 = vmatpush1.msra.mxu0 0.0
        %3163 = vmatprep.subr.mxu0 0.0
        %3164 = vmatpush1.msra.mxu0 0.0
        %3165 = vmatprep.subr.mxu0 0.0
        %3166 = vmatpush1.msra.mxu0 0.0
        %3167 = vmatprep.subr.mxu0 0.0
        %3168 = vmatpush1.msra.mxu0 0.0
        %3169 = vmatprep.subr.mxu0 0.0
        %3170 = vmatpush1.msra.mxu0 0.0
        %3171 = vmatprep.subr.mxu0 0.0
        %3172 = vmatpush1.msra.mxu0 0.0
        %3173 = vmatprep.subr.mxu0 0.0
        %3174 = vmatpush1.msra.mxu0 0.0
        %3175 = vmatprep.subr.mxu0 0.0
        %3176 = vmatpush1.msra.mxu0 0.0
        %3177 = vmatprep.subr.mxu0 0.0
        %3178 = vmatpush1.msra.mxu0 0.0
        %3179 = vmatprep.subr.mxu0 0.0
        %3180 = vmatpush1.msra.mxu0 0.0
        %3181 = vmatprep.subr.mxu0 0.0
        %3182 = vmatpush1.msra.mxu0 0.0
        %3183 = vmatprep.subr.mxu0 0.0
        %3184 = vmatpush1.msra.mxu0 0.0
        %3185 = vmatprep.subr.mxu0 0.0
        %3186 = vmatpush1.msra.mxu0 0.0
        %3187 = vmatprep.subr.mxu0 0.0
        %3188 = vmatpush1.msra.mxu0 0.0
        %3189 = vmatprep.subr.mxu0 0.0
        %3190 = vmatpush1.msra.mxu0 %v994
        %3191 = vmatprep.subr.mxu0 0.0
        %3192 = vmatpush2.msra.mxu0 0.0
        %3193 = vmatprep.subr.mxu0 0.0
        %3194 = vmatpush2.msra.mxu0 0.0
        %3195 = vmatprep.subr.mxu0 0.0
        %3196 = vmatpush2.msra.mxu0 0.0
        %3197 = vmatprep.subr.mxu0 0.0
        %3198 = vmatpush2.msra.mxu0 0.0
        %3199 = vmatprep.subr.mxu0 0.0
        %3200 = vmatpush2.msra.mxu0 0.0
        %3201 = vmatprep.subr.mxu0 0.0
        %3202 = vmatpush2.msra.mxu0 0.0
        %3203 = vmatprep.subr.mxu0 0.0
        %3204 = vmatpush2.msra.mxu0 0.0
        %3205 = vmatprep.subr.mxu0 0.0
        %3206 = vmatpush2.msra.mxu0 0.0
        %3207 = vmatprep.subr.mxu0 0.0
        %3208 = vmatpush2.msra.mxu0 0.0
        %3209 = vmatprep.subr.mxu0 0.0
        %3210 = vmatpush2.msra.mxu0 0.0
        %3211 = vmatprep.subr.mxu0 0.0
        %3212 = vmatpush2.msra.mxu0 0.0
        %3213 = vmatprep.subr.mxu0 0.0
        %3214 = vmatpush2.msra.mxu0 0.0
        %3215 = vmatprep.subr.mxu0 0.0
        %3216 = vmatpush2.msra.mxu0 0.0
        %3217 = vmatprep.subr.mxu0 0.0
        %3218 = vmatpush2.msra.mxu0 0.0
        %3219 = vmatprep.subr.mxu0 0.0
        %3220 = vmatpush2.msra.mxu0 0.0
        %3221 = vmatprep.subr.mxu0 0.0
        %3222 = vmatpush2.msra.mxu0 0.0
        %3223 = vmatprep.mubr.f32.mxu0 0.0
        %3224 = vmatmul.mubr.f32.gmra.mxu0 %v3157
        %v3225 = vpop.f32.mrf.mxu0
        %v3226 = vadd.f32 0.0, %v3225
        %v3227 = vpop.f32.mrf.mxu0
        %3228 = vdwg.mxu0
        %v3230 = vsel %vm3155, %v3154, 0
        %3232 = vmatprep.subr.mxu0 0.0
        %3233 = vmatpush1.msra.mxu0 0.0
        %3234 = vmatprep.subr.mxu0 0.0
        %3235 = vmatpush1.msra.mxu0 0.0
        %3236 = vmatprep.subr.mxu0 0.0
        %3237 = vmatpush1.msra.mxu0 0.0
        %3238 = vmatprep.subr.mxu0 0.0
        %3239 = vmatpush1.msra.mxu0 0.0
        %3240 = vmatprep.subr.mxu0 0.0
        %3241 = vmatpush1.msra.mxu0 0.0
        %3242 = vmatprep.subr.mxu0 0.0
        %3243 = vmatpush1.msra.mxu0 0.0
        %3244 = vmatprep.subr.mxu0 0.0
        %3245 = vmatpush1.msra.mxu0 0.0
        %3246 = vmatprep.subr.mxu0 0.0
        %3247 = vmatpush1.msra.mxu0 0.0
        %3248 = vmatprep.subr.mxu0 0.0
        %3249 = vmatpush1.msra.mxu0 0.0
        %3250 = vmatprep.subr.mxu0 0.0
        %3251 = vmatpush1.msra.mxu0 0.0
        %3252 = vmatprep.subr.mxu0 0.0
        %3253 = vmatpush1.msra.mxu0 0.0
        %3254 = vmatprep.subr.mxu0 0.0
        %3255 = vmatpush1.msra.mxu0 0.0
        %3256 = vmatprep.subr.mxu0 0.0
        %3257 = vmatpush1.msra.mxu0 0.0
        %3258 = vmatprep.subr.mxu0 0.0
        %3259 = vmatpush1.msra.mxu0 0.0
        %3260 = vmatprep.subr.mxu0 0.0
        %3261 = vmatpush1.msra.mxu0 0.0
        %3262 = vmatprep.subr.mxu0 0.0
        %3263 = vmatpush1.msra.mxu0 %v994
        %3264 = vmatprep.subr.mxu0 0.0
        %3265 = vmatpush2.msra.mxu0 0.0
        %3266 = vmatprep.subr.mxu0 0.0
        %3267 = vmatpush2.msra.mxu0 0.0
        %3268 = vmatprep.subr.mxu0 0.0
        %3269 = vmatpush2.msra.mxu0 0.0
        %3270 = vmatprep.subr.mxu0 0.0
        %3271 = vmatpush2.msra.mxu0 0.0
        %3272 = vmatprep.subr.mxu0 0.0
        %3273 = vmatpush2.msra.mxu0 0.0
        %3274 = vmatprep.subr.mxu0 0.0
        %3275 = vmatpush2.msra.mxu0 0.0
        %3276 = vmatprep.subr.mxu0 0.0
        %3277 = vmatpush2.msra.mxu0 0.0
        %3278 = vmatprep.subr.mxu0 0.0
        %3279 = vmatpush2.msra.mxu0 0.0
        %3280 = vmatprep.subr.mxu0 0.0
        %3281 = vmatpush2.msra.mxu0 0.0
        %3282 = vmatprep.subr.mxu0 0.0
        %3283 = vmatpush2.msra.mxu0 0.0
        %3284 = vmatprep.subr.mxu0 0.0
        %3285 = vmatpush2.msra.mxu0 0.0
        %3286 = vmatprep.subr.mxu0 0.0
        %3287 = vmatpush2.msra.mxu0 0.0
        %3288 = vmatprep.subr.mxu0 0.0
        %3289 = vmatpush2.msra.mxu0 0.0
        %3290 = vmatprep.subr.mxu0 0.0
        %3291 = vmatpush2.msra.mxu0 0.0
        %3292 = vmatprep.subr.mxu0 0.0
        %3293 = vmatpush2.msra.mxu0 0.0
        %3294 = vmatprep.subr.mxu0 0.0
        %3295 = vmatpush2.msra.mxu0 0.0
        %3296 = vmatprep.mubr.f32.mxu0 0.0
        %3297 = vmatmul.mubr.f32.gmra.mxu0 %v3230
        %v3298 = vpop.f32.mrf.mxu0
        %v3299 = vadd.f32 0.0, %v3298
        %v3300 = vpop.f32.mrf.mxu0
        %3301 = vdwg.mxu0
        %v3302 = vld [vmem:[#allocation15] sm:$0xff]
        %v3303 = vld [vmem:[#allocation15 + $0x8] sm:$0xff]
        %v3304 = vld [vmem:[#allocation15 + $0x10] sm:$0xff]
        %v3305 = vld [vmem:[#allocation15 + $0x18] sm:$0xff]
        %v3306 = vld [vmem:[#allocation15 + $0x20] sm:$0xff]
        %v3307 = vld [vmem:[#allocation15 + $0x28] sm:$0xff]
        %v3308 = vld [vmem:[#allocation15 + $0x30] sm:$0xff]
        %v3309 = vld [vmem:[#allocation15 + $0x38] sm:$0xff]
        %s3310 = scalar_lea.vmem [#allocation15], 64
        %v3311 = vld [vmem:[%s3310] sm:$0xff]
        %v3312 = vld [vmem:[%s3310 + $0x8] sm:$0xff]
        %v3313 = vld [vmem:[%s3310 + $0x10] sm:$0xff]
        %v3314 = vld [vmem:[%s3310 + $0x18] sm:$0xff]
        %v3315 = vld [vmem:[%s3310 + $0x20] sm:$0xff]
        %v3316 = vld [vmem:[%s3310 + $0x28] sm:$0xff]
        %v3317 = vld [vmem:[%s3310 + $0x30] sm:$0xff]
        %v3318 = vld [vmem:[%s3310 + $0x38] sm:$0xff]
        %3319 = vmatprep.subr.mxu0 0.0
        %3320 = vmatpush1.msra.mxu0 0.0
        %3321 = vmatprep.subr.mxu0 0.0
        %3322 = vmatpush1.msra.mxu0 0.0
        %3323 = vmatprep.subr.mxu0 0.0
        %3324 = vmatpush1.msra.mxu0 0.0
        %3325 = vmatprep.subr.mxu0 0.0
        %3326 = vmatpush1.msra.mxu0 0.0
        %3327 = vmatprep.subr.mxu0 0.0
        %3328 = vmatpush1.msra.mxu0 0.0
        %3329 = vmatprep.subr.mxu0 0.0
        %3330 = vmatpush1.msra.mxu0 0.0
        %3331 = vmatprep.subr.mxu0 0.0
        %3332 = vmatpush1.msra.mxu0 0.0
        %3333 = vmatprep.subr.mxu0 0.0
        %3334 = vmatpush1.msra.mxu0 0.0
        %3335 = vmatprep.subr.mxu0 0.0
        %3336 = vmatpush1.msra.mxu0 0.0
        %3337 = vmatprep.subr.mxu0 0.0
        %3338 = vmatpush1.msra.mxu0 0.0
        %3339 = vmatprep.subr.mxu0 0.0
        %3340 = vmatpush1.msra.mxu0 0.0
        %3341 = vmatprep.subr.mxu0 0.0
        %3342 = vmatpush1.msra.mxu0 0.0
        %3343 = vmatprep.subr.mxu0 %v3318
        %3344 = vmatpush1.msra.mxu0 %v3317
        %3345 = vmatprep.subr.mxu0 %v3316
        %3346 = vmatpush1.msra.mxu0 %v3315
        %3347 = vmatprep.subr.mxu0 %v3314
        %3348 = vmatpush1.msra.mxu0 %v3313
        %3349 = vmatprep.subr.mxu0 %v3312
        %3350 = vmatpush1.msra.mxu0 %v3311
        %3351 = vmatprep.subr.mxu0 0.0
        %3352 = vmatpush2.msra.mxu0 0.0
        %3353 = vmatprep.subr.mxu0 0.0
        %3354 = vmatpush2.msra.mxu0 0.0
        %3355 = vmatprep.subr.mxu0 0.0
        %3356 = vmatpush2.msra.mxu0 0.0
        %3357 = vmatprep.subr.mxu0 0.0
        %3358 = vmatpush2.msra.mxu0 0.0
        %3359 = vmatprep.subr.mxu0 0.0
        %3360 = vmatpush2.msra.mxu0 0.0
        %3361 = vmatprep.subr.mxu0 0.0
        %3362 = vmatpush2.msra.mxu0 0.0
        %3363 = vmatprep.subr.mxu0 0.0
        %3364 = vmatpush2.msra.mxu0 0.0
        %3365 = vmatprep.subr.mxu0 0.0
        %3366 = vmatpush2.msra.mxu0 0.0
        %3367 = vmatprep.subr.mxu0 0.0
        %3368 = vmatpush2.msra.mxu0 0.0
        %3369 = vmatprep.subr.mxu0 0.0
        %3370 = vmatpush2.msra.mxu0 0.0
        %3371 = vmatprep.subr.mxu0 0.0
        %3372 = vmatpush2.msra.mxu0 0.0
        %3373 = vmatprep.subr.mxu0 0.0
        %3374 = vmatpush2.msra.mxu0 0.0
        %3375 = vmatprep.subr.mxu0 0.0
        %3376 = vmatpush2.msra.mxu0 0.0
        %3377 = vmatprep.subr.mxu0 0.0
        %3378 = vmatpush2.msra.mxu0 0.0
        %3379 = vmatprep.subr.mxu0 0.0
        %3380 = vmatpush2.msra.mxu0 0.0
        %3381 = vmatprep.subr.mxu0 0.0
        %3382 = vmatpush2.msra.mxu0 0.0
        %3383 = vmatprep.mubr.f32.mxu0 0.0
        %3384 = vmatmul.mubr.f32.gmra.mxu0 %v1017
        %v3385 = vpop.f32.mrf.mxu0
        %v3386 = vadd.f32 0.0, %v3385
        %v3387 = vpop.f32.mrf.mxu0
        %v3388 = vadd.f32 0.0, %v3387
        %3389 = vdwg.mxu0
        %v3391 = vsel %vm1015, %v3226, 0
        %3393 = vmatprep.subr.mxu0 0.0
        %3394 = vmatpush1.msra.mxu0 0.0
        %3395 = vmatprep.subr.mxu0 0.0
        %3396 = vmatpush1.msra.mxu0 0.0
        %3397 = vmatprep.subr.mxu0 0.0
        %3398 = vmatpush1.msra.mxu0 0.0
        %3399 = vmatprep.subr.mxu0 0.0
        %3400 = vmatpush1.msra.mxu0 0.0
        %3401 = vmatprep.subr.mxu0 0.0
        %3402 = vmatpush1.msra.mxu0 0.0
        %3403 = vmatprep.subr.mxu0 0.0
        %3404 = vmatpush1.msra.mxu0 0.0
        %3405 = vmatprep.subr.mxu0 0.0
        %3406 = vmatpush1.msra.mxu0 0.0
        %3407 = vmatprep.subr.mxu0 0.0
        %3408 = vmatpush1.msra.mxu0 0.0
        %3409 = vmatprep.subr.mxu0 0.0
        %3410 = vmatpush1.msra.mxu0 0.0
        %3411 = vmatprep.subr.mxu0 0.0
        %3412 = vmatpush1.msra.mxu0 0.0
        %3413 = vmatprep.subr.mxu0 0.0
        %3414 = vmatpush1.msra.mxu0 0.0
        %3415 = vmatprep.subr.mxu0 0.0
        %3416 = vmatpush1.msra.mxu0 0.0
        %3417 = vmatprep.subr.mxu0 %v3309
        %3418 = vmatpush1.msra.mxu0 %v3308
        %3419 = vmatprep.subr.mxu0 %v3307
        %3420 = vmatpush1.msra.mxu0 %v3306
        %3421 = vmatprep.subr.mxu0 %v3305
        %3422 = vmatpush1.msra.mxu0 %v3304
        %3423 = vmatprep.subr.mxu0 %v3303
        %3424 = vmatpush1.msra.mxu0 %v3302
        %3425 = vmatprep.subr.mxu0 0.0
        %3426 = vmatpush2.msra.mxu0 0.0
        %3427 = vmatprep.subr.mxu0 0.0
        %3428 = vmatpush2.msra.mxu0 0.0
        %3429 = vmatprep.subr.mxu0 0.0
        %3430 = vmatpush2.msra.mxu0 0.0
        %3431 = vmatprep.subr.mxu0 0.0
        %3432 = vmatpush2.msra.mxu0 0.0
        %3433 = vmatprep.subr.mxu0 0.0
        %3434 = vmatpush2.msra.mxu0 0.0
        %3435 = vmatprep.subr.mxu0 0.0
        %3436 = vmatpush2.msra.mxu0 0.0
        %3437 = vmatprep.subr.mxu0 0.0
        %3438 = vmatpush2.msra.mxu0 0.0
        %3439 = vmatprep.subr.mxu0 0.0
        %3440 = vmatpush2.msra.mxu0 0.0
        %3441 = vmatprep.subr.mxu0 0.0
        %3442 = vmatpush2.msra.mxu0 0.0
        %3443 = vmatprep.subr.mxu0 0.0
        %3444 = vmatpush2.msra.mxu0 0.0
        %3445 = vmatprep.subr.mxu0 0.0
        %3446 = vmatpush2.msra.mxu0 0.0
        %3447 = vmatprep.subr.mxu0 0.0
        %3448 = vmatpush2.msra.mxu0 0.0
        %3449 = vmatprep.subr.mxu0 0.0
        %3450 = vmatpush2.msra.mxu0 0.0
        %3451 = vmatprep.subr.mxu0 0.0
        %3452 = vmatpush2.msra.mxu0 0.0
        %3453 = vmatprep.subr.mxu0 0.0
        %3454 = vmatpush2.msra.mxu0 0.0
        %3455 = vmatprep.subr.mxu0 0.0
        %3456 = vmatpush2.msra.mxu0 0.0
        %3457 = vmatprep.mubr.f32.mxu0 0.0
        %3458 = vmatmul.mubr.f32.gmra.mxu0 %v3391
        %v3459 = vpop.f32.mrf.mxu0
        %v3460 = vadd.f32 %v3386, %v3459
        %v3461 = vpop.f32.mrf.mxu0
        %v3462 = vadd.f32 %v3388, %v3461
        %3463 = vdwg.mxu0
        %s3464 = scalar_lea.vmem [#allocation15], 128
        %v3465 = vld [vmem:[%s3464] sm:$0xff]
        %v3466 = vld [vmem:[%s3464 + $0x8] sm:$0xff]
        %v3467 = vld [vmem:[%s3464 + $0x10] sm:$0xff]
        %v3468 = vld [vmem:[%s3464 + $0x18] sm:$0xff]
        %v3469 = vld [vmem:[%s3464 + $0x20] sm:$0xff]
        %v3470 = vld [vmem:[%s3464 + $0x28] sm:$0xff]
        %v3471 = vld [vmem:[%s3464 + $0x30] sm:$0xff]
        %v3472 = vld [vmem:[%s3464 + $0x38] sm:$0xff]
        %v3474 = vsel %vm1015, %v3299, 0
        %3476 = vmatprep.subr.mxu0 0.0
        %3477 = vmatpush1.msra.mxu0 0.0
        %3478 = vmatprep.subr.mxu0 0.0
        %3479 = vmatpush1.msra.mxu0 0.0
        %3480 = vmatprep.subr.mxu0 0.0
        %3481 = vmatpush1.msra.mxu0 0.0
        %3482 = vmatprep.subr.mxu0 0.0
        %3483 = vmatpush1.msra.mxu0 0.0
        %3484 = vmatprep.subr.mxu0 0.0
        %3485 = vmatpush1.msra.mxu0 0.0
        %3486 = vmatprep.subr.mxu0 0.0
        %3487 = vmatpush1.msra.mxu0 0.0
        %3488 = vmatprep.subr.mxu0 0.0
        %3489 = vmatpush1.msra.mxu0 0.0
        %3490 = vmatprep.subr.mxu0 0.0
        %3491 = vmatpush1.msra.mxu0 0.0
        %3492 = vmatprep.subr.mxu0 0.0
        %3493 = vmatpush1.msra.mxu0 0.0
        %3494 = vmatprep.subr.mxu0 0.0
        %3495 = vmatpush1.msra.mxu0 0.0
        %3496 = vmatprep.subr.mxu0 0.0
        %3497 = vmatpush1.msra.mxu0 0.0
        %3498 = vmatprep.subr.mxu0 0.0
        %3499 = vmatpush1.msra.mxu0 0.0
        %3500 = vmatprep.subr.mxu0 %v3472
        %3501 = vmatpush1.msra.mxu0 %v3471
        %3502 = vmatprep.subr.mxu0 %v3470
        %3503 = vmatpush1.msra.mxu0 %v3469
        %3504 = vmatprep.subr.mxu0 %v3468
        %3505 = vmatpush1.msra.mxu0 %v3467
        %3506 = vmatprep.subr.mxu0 %v3466
        %3507 = vmatpush1.msra.mxu0 %v3465
        %3508 = vmatprep.subr.mxu0 0.0
        %3509 = vmatpush2.msra.mxu0 0.0
        %3510 = vmatprep.subr.mxu0 0.0
        %3511 = vmatpush2.msra.mxu0 0.0
        %3512 = vmatprep.subr.mxu0 0.0
        %3513 = vmatpush2.msra.mxu0 0.0
        %3514 = vmatprep.subr.mxu0 0.0
        %3515 = vmatpush2.msra.mxu0 0.0
        %3516 = vmatprep.subr.mxu0 0.0
        %3517 = vmatpush2.msra.mxu0 0.0
        %3518 = vmatprep.subr.mxu0 0.0
        %3519 = vmatpush2.msra.mxu0 0.0
        %3520 = vmatprep.subr.mxu0 0.0
        %3521 = vmatpush2.msra.mxu0 0.0
        %3522 = vmatprep.subr.mxu0 0.0
        %3523 = vmatpush2.msra.mxu0 0.0
        %3524 = vmatprep.subr.mxu0 0.0
        %3525 = vmatpush2.msra.mxu0 0.0
        %3526 = vmatprep.subr.mxu0 0.0
        %3527 = vmatpush2.msra.mxu0 0.0
        %3528 = vmatprep.subr.mxu0 0.0
        %3529 = vmatpush2.msra.mxu0 0.0
        %3530 = vmatprep.subr.mxu0 0.0
        %3531 = vmatpush2.msra.mxu0 0.0
        %3532 = vmatprep.subr.mxu0 0.0
        %3533 = vmatpush2.msra.mxu0 0.0
        %3534 = vmatprep.subr.mxu0 0.0
        %3535 = vmatpush2.msra.mxu0 0.0
        %3536 = vmatprep.subr.mxu0 0.0
        %3537 = vmatpush2.msra.mxu0 0.0
        %3538 = vmatprep.subr.mxu0 0.0
        %3539 = vmatpush2.msra.mxu0 0.0
        %3540 = vmatprep.mubr.f32.mxu0 0.0
        %3541 = vmatmul.mubr.f32.gmra.mxu0 %v3474
        %v3542 = vpop.f32.mrf.mxu0
        %v3543 = vadd.f32 0.0, %v3542
        %v3544 = vpop.f32.mrf.mxu0
        %v3545 = vadd.f32 0.0, %v3544
        %3546 = vdwg.mxu0
        %v3547 = vadd.f32 %v3460, %v3543
        %v3548 = vadd.f32 %v3462, %v3545
        %v3549 = vld [vmem:[%s12] sm:$0x3]
        %v3551 = vlaneseq
        %v3552 = vshrl.u32 %v3551, 7
        %v3553 = vsub.s32 0, %v3552
        %v3554 = vrot.slane %v3549, %v3553
        %v3555 = vlaneseq
        %v3556 = vshrl.u32 %v3555, 7
        %v3557 = vsub.s32 1, %v3556
        %v3558 = vrot.slane %v3549, %v3557
        %v3561 = vadd.f32 %v3547, %v3554
        %v3562 = vadd.f32 %v3548, %v3558
        %v3563 = vmax.f32 %v3561, 0.0
        %v3564 = vmax.f32 %v3562, 0.0
        %3565 = vmatprep.subr.mxu0 0.0
        %3566 = vmatpush1.msra.mxu0 0.0
        %3567 = vmatprep.subr.mxu0 0.0
        %3568 = vmatpush1.msra.mxu0 0.0
        %3569 = vmatprep.subr.mxu0 0.0
        %3570 = vmatpush1.msra.mxu0 0.0
        %3571 = vmatprep.subr.mxu0 0.0
        %3572 = vmatpush1.msra.mxu0 0.0
        %3573 = vmatprep.subr.mxu0 0.0
        %3574 = vmatpush1.msra.mxu0 0.0
        %3575 = vmatprep.subr.mxu0 0.0
        %3576 = vmatpush1.msra.mxu0 0.0
        %3577 = vmatprep.subr.mxu0 0.0
        %3578 = vmatpush1.msra.mxu0 0.0
        %3579 = vmatprep.subr.mxu0 0.0
        %3580 = vmatpush1.msra.mxu0 0.0
        %3581 = vmatprep.subr.mxu0 0.0
        %3582 = vmatpush1.msra.mxu0 0.0
        %3583 = vmatprep.subr.mxu0 0.0
        %3584 = vmatpush1.msra.mxu0 0.0
        %3585 = vmatprep.subr.mxu0 0.0
        %3586 = vmatpush1.msra.mxu0 0.0
        %3587 = vmatprep.subr.mxu0 0.0
        %3588 = vmatpush1.msra.mxu0 0.0
        %3589 = vmatprep.subr.mxu0 0.0
        %3590 = vmatpush1.msra.mxu0 0.0
        %3591 = vmatprep.subr.mxu0 0.0
        %3592 = vmatpush1.msra.mxu0 0.0
        %3593 = vmatprep.subr.mxu0 0.0
        %3594 = vmatpush1.msra.mxu0 0.0
        %3595 = vmatprep.subr.mxu0 %v3564
        %3596 = vmatpush1.msra.mxu0 %v3563
        %3597 = vmatprep.subr.mxu0 0.0
        %3598 = vmatpush2.msra.mxu0 0.0
        %3599 = vmatprep.subr.mxu0 0.0
        %3600 = vmatpush2.msra.mxu0 0.0
        %3601 = vmatprep.subr.mxu0 0.0
        %3602 = vmatpush2.msra.mxu0 0.0
        %3603 = vmatprep.subr.mxu0 0.0
        %3604 = vmatpush2.msra.mxu0 0.0
        %3605 = vmatprep.subr.mxu0 0.0
        %3606 = vmatpush2.msra.mxu0 0.0
        %3607 = vmatprep.subr.mxu0 0.0
        %3608 = vmatpush2.msra.mxu0 0.0
        %3609 = vmatprep.subr.mxu0 0.0
        %3610 = vmatpush2.msra.mxu0 0.0
        %3611 = vmatprep.subr.mxu0 0.0
        %3612 = vmatpush2.msra.mxu0 0.0
        %3613 = vmatprep.subr.mxu0 0.0
        %3614 = vmatpush2.msra.mxu0 0.0
        %3615 = vmatprep.subr.mxu0 0.0
        %3616 = vmatpush2.msra.mxu0 0.0
        %3617 = vmatprep.subr.mxu0 0.0
        %3618 = vmatpush2.msra.mxu0 0.0
        %3619 = vmatprep.subr.mxu0 0.0
        %3620 = vmatpush2.msra.mxu0 0.0
        %3621 = vmatprep.subr.mxu0 0.0
        %3622 = vmatpush2.msra.mxu0 0.0
        %3623 = vmatprep.subr.mxu0 0.0
        %3624 = vmatpush2.msra.mxu0 0.0
        %3625 = vmatprep.subr.mxu0 0.0
        %3626 = vmatpush2.msra.mxu0 0.0
        %3627 = vmatprep.subr.mxu0 0.0
        %3628 = vmatpush2.msra.mxu0 0.0
        %3629 = vmatprep.mubr.f32.mxu0 0.0
        %3630 = vmatmul.mubr.f32.gmra.mxu0 %v3157
        %v3631 = vpop.f32.mrf.mxu0
        %v3632 = vadd.f32 0.0, %v3631
        %v3633 = vpop.f32.mrf.mxu0
        %v3634 = vadd.f32 0.0, %v3633
        %3635 = vdwg.mxu0
        %3636 = vmatprep.subr.mxu0 0.0
        %3637 = vmatpush1.msra.mxu0 0.0
        %3638 = vmatprep.subr.mxu0 0.0
        %3639 = vmatpush1.msra.mxu0 0.0
        %3640 = vmatprep.subr.mxu0 0.0
        %3641 = vmatpush1.msra.mxu0 0.0
        %3642 = vmatprep.subr.mxu0 0.0
        %3643 = vmatpush1.msra.mxu0 0.0
        %3644 = vmatprep.subr.mxu0 0.0
        %3645 = vmatpush1.msra.mxu0 0.0
        %3646 = vmatprep.subr.mxu0 0.0
        %3647 = vmatpush1.msra.mxu0 0.0
        %3648 = vmatprep.subr.mxu0 0.0
        %3649 = vmatpush1.msra.mxu0 0.0
        %3650 = vmatprep.subr.mxu0 0.0
        %3651 = vmatpush1.msra.mxu0 0.0
        %3652 = vmatprep.subr.mxu0 0.0
        %3653 = vmatpush1.msra.mxu0 0.0
        %3654 = vmatprep.subr.mxu0 0.0
        %3655 = vmatpush1.msra.mxu0 0.0
        %3656 = vmatprep.subr.mxu0 0.0
        %3657 = vmatpush1.msra.mxu0 0.0
        %3658 = vmatprep.subr.mxu0 0.0
        %3659 = vmatpush1.msra.mxu0 0.0
        %3660 = vmatprep.subr.mxu0 0.0
        %3661 = vmatpush1.msra.mxu0 0.0
        %3662 = vmatprep.subr.mxu0 0.0
        %3663 = vmatpush1.msra.mxu0 0.0
        %3664 = vmatprep.subr.mxu0 0.0
        %3665 = vmatpush1.msra.mxu0 0.0
        %3666 = vmatprep.subr.mxu0 %v3564
        %3667 = vmatpush1.msra.mxu0 %v3563
        %3668 = vmatprep.subr.mxu0 0.0
        %3669 = vmatpush2.msra.mxu0 0.0
        %3670 = vmatprep.subr.mxu0 0.0
        %3671 = vmatpush2.msra.mxu0 0.0
        %3672 = vmatprep.subr.mxu0 0.0
        %3673 = vmatpush2.msra.mxu0 0.0
        %3674 = vmatprep.subr.mxu0 0.0
        %3675 = vmatpush2.msra.mxu0 0.0
        %3676 = vmatprep.subr.mxu0 0.0
        %3677 = vmatpush2.msra.mxu0 0.0
        %3678 = vmatprep.subr.mxu0 0.0
        %3679 = vmatpush2.msra.mxu0 0.0
        %3680 = vmatprep.subr.mxu0 0.0
        %3681 = vmatpush2.msra.mxu0 0.0
        %3682 = vmatprep.subr.mxu0 0.0
        %3683 = vmatpush2.msra.mxu0 0.0
        %3684 = vmatprep.subr.mxu0 0.0
        %3685 = vmatpush2.msra.mxu0 0.0
        %3686 = vmatprep.subr.mxu0 0.0
        %3687 = vmatpush2.msra.mxu0 0.0
        %3688 = vmatprep.subr.mxu0 0.0
        %3689 = vmatpush2.msra.mxu0 0.0
        %3690 = vmatprep.subr.mxu0 0.0
        %3691 = vmatpush2.msra.mxu0 0.0
        %3692 = vmatprep.subr.mxu0 0.0
        %3693 = vmatpush2.msra.mxu0 0.0
        %3694 = vmatprep.subr.mxu0 0.0
        %3695 = vmatpush2.msra.mxu0 0.0
        %3696 = vmatprep.subr.mxu0 0.0
        %3697 = vmatpush2.msra.mxu0 0.0
        %3698 = vmatprep.subr.mxu0 0.0
        %3699 = vmatpush2.msra.mxu0 0.0
        %3700 = vmatprep.mubr.f32.mxu0 0.0
        %3701 = vmatmul.mubr.f32.gmra.mxu0 %v3230
        %v3702 = vpop.f32.mrf.mxu0
        %v3703 = vadd.f32 0.0, %v3702
        %v3704 = vpop.f32.mrf.mxu0
        %v3705 = vadd.f32 0.0, %v3704
        %3706 = vdwg.mxu0
        %v3707 = vld [vmem:[#allocation16] sm:$0xff]
        %v3708 = vld [vmem:[#allocation16 + $0x8] sm:$0xff]
        %v3709 = vld [vmem:[#allocation16 + $0x10] sm:$0xff]
        %v3710 = vld [vmem:[#allocation16 + $0x18] sm:$0xff]
        %v3711 = vld [vmem:[#allocation16 + $0x20] sm:$0xff]
        %v3712 = vld [vmem:[#allocation16 + $0x28] sm:$0xff]
        %v3713 = vld [vmem:[#allocation16 + $0x30] sm:$0xff]
        %v3714 = vld [vmem:[#allocation16 + $0x38] sm:$0xff]
        %v3715 = vld [vmem:[#allocation16 + $0x40] sm:$0xff]
        %v3716 = vld [vmem:[#allocation16 + $0x48] sm:$0xff]
        %v3717 = vld [vmem:[#allocation16 + $0x50] sm:$0xff]
        %v3718 = vld [vmem:[#allocation16 + $0x58] sm:$0xff]
        %v3719 = vld [vmem:[#allocation16 + $0x60] sm:$0xff]
        %v3720 = vld [vmem:[#allocation16 + $0x68] sm:$0xff]
        %v3721 = vld [vmem:[#allocation16 + $0x70] sm:$0xff]
        %v3722 = vld [vmem:[#allocation16 + $0x78] sm:$0xff]
        %v3723 = vld [vmem:[#allocation16 + $0x80] sm:$0xff]
        %v3724 = vld [vmem:[#allocation16 + $0x88] sm:$0xff]
        %v3725 = vld [vmem:[#allocation16 + $0x90] sm:$0xff]
        %v3726 = vld [vmem:[#allocation16 + $0x98] sm:$0xff]
        %v3727 = vld [vmem:[#allocation16 + $0xa0] sm:$0xff]
        %v3728 = vld [vmem:[#allocation16 + $0xa8] sm:$0xff]
        %v3729 = vld [vmem:[#allocation16 + $0xb0] sm:$0xff]
        %v3730 = vld [vmem:[#allocation16 + $0xb8] sm:$0xff]
        %v3731 = vld [vmem:[#allocation16 + $0xc0] sm:$0xff]
        %v3732 = vld [vmem:[#allocation16 + $0xc8] sm:$0xff]
        %v3733 = vld [vmem:[#allocation16 + $0xd0] sm:$0xff]
        %v3734 = vld [vmem:[#allocation16 + $0xd8] sm:$0xff]
        %v3735 = vld [vmem:[#allocation16 + $0xe0] sm:$0xff]
        %v3736 = vld [vmem:[#allocation16 + $0xe8] sm:$0xff]
        %v3737 = vld [vmem:[#allocation16 + $0xf0] sm:$0xff]
        %v3738 = vld [vmem:[#allocation16 + $0xf8] sm:$0xff]
        %s3739 = scalar_lea.vmem [#allocation16], 256
        %v3740 = vld [vmem:[%s3739] sm:$0xff]
        %v3741 = vld [vmem:[%s3739 + $0x8] sm:$0xff]
        %v3742 = vld [vmem:[%s3739 + $0x10] sm:$0xff]
        %v3743 = vld [vmem:[%s3739 + $0x18] sm:$0xff]
        %v3744 = vld [vmem:[%s3739 + $0x20] sm:$0xff]
        %v3745 = vld [vmem:[%s3739 + $0x28] sm:$0xff]
        %v3746 = vld [vmem:[%s3739 + $0x30] sm:$0xff]
        %v3747 = vld [vmem:[%s3739 + $0x38] sm:$0xff]
        %v3748 = vld [vmem:[%s3739 + $0x40] sm:$0xff]
        %v3749 = vld [vmem:[%s3739 + $0x48] sm:$0xff]
        %v3750 = vld [vmem:[%s3739 + $0x50] sm:$0xff]
        %v3751 = vld [vmem:[%s3739 + $0x58] sm:$0xff]
        %v3752 = vld [vmem:[%s3739 + $0x60] sm:$0xff]
        %v3753 = vld [vmem:[%s3739 + $0x68] sm:$0xff]
        %v3754 = vld [vmem:[%s3739 + $0x70] sm:$0xff]
        %v3755 = vld [vmem:[%s3739 + $0x78] sm:$0xff]
        %v3756 = vld [vmem:[%s3739 + $0x80] sm:$0xff]
        %v3757 = vld [vmem:[%s3739 + $0x88] sm:$0xff]
        %v3758 = vld [vmem:[%s3739 + $0x90] sm:$0xff]
        %v3759 = vld [vmem:[%s3739 + $0x98] sm:$0xff]
        %v3760 = vld [vmem:[%s3739 + $0xa0] sm:$0xff]
        %v3761 = vld [vmem:[%s3739 + $0xa8] sm:$0xff]
        %v3762 = vld [vmem:[%s3739 + $0xb0] sm:$0xff]
        %v3763 = vld [vmem:[%s3739 + $0xb8] sm:$0xff]
        %v3764 = vld [vmem:[%s3739 + $0xc0] sm:$0xff]
        %v3765 = vld [vmem:[%s3739 + $0xc8] sm:$0xff]
        %v3766 = vld [vmem:[%s3739 + $0xd0] sm:$0xff]
        %v3767 = vld [vmem:[%s3739 + $0xd8] sm:$0xff]
        %v3768 = vld [vmem:[%s3739 + $0xe0] sm:$0xff]
        %v3769 = vld [vmem:[%s3739 + $0xe8] sm:$0xff]
        %v3770 = vld [vmem:[%s3739 + $0xf0] sm:$0xff]
        %v3771 = vld [vmem:[%s3739 + $0xf8] sm:$0xff]
        %3772 = vmatprep.subr.mxu0 0.0
        %3773 = vmatpush1.msra.mxu0 %v3755
        %3774 = vmatprep.subr.mxu0 0.0
        %3775 = vmatpush1.msra.mxu0 %v3754
        %3776 = vmatprep.subr.mxu0 0.0
        %3777 = vmatpush1.msra.mxu0 %v3753
        %3778 = vmatprep.subr.mxu0 0.0
        %3779 = vmatpush1.msra.mxu0 %v3752
        %3780 = vmatprep.subr.mxu0 0.0
        %3781 = vmatpush1.msra.mxu0 %v3751
        %3782 = vmatprep.subr.mxu0 0.0
        %3783 = vmatpush1.msra.mxu0 %v3750
        %3784 = vmatprep.subr.mxu0 0.0
        %3785 = vmatpush1.msra.mxu0 %v3749
        %3786 = vmatprep.subr.mxu0 0.0
        %3787 = vmatpush1.msra.mxu0 %v3748
        %3788 = vmatprep.subr.mxu0 0.0
        %3789 = vmatpush1.msra.mxu0 %v3747
        %3790 = vmatprep.subr.mxu0 0.0
        %3791 = vmatpush1.msra.mxu0 %v3746
        %3792 = vmatprep.subr.mxu0 0.0
        %3793 = vmatpush1.msra.mxu0 %v3745
        %3794 = vmatprep.subr.mxu0 0.0
        %3795 = vmatpush1.msra.mxu0 %v3744
        %3796 = vmatprep.subr.mxu0 0.0
        %3797 = vmatpush1.msra.mxu0 %v3743
        %3798 = vmatprep.subr.mxu0 0.0
        %3799 = vmatpush1.msra.mxu0 %v3742
        %3800 = vmatprep.subr.mxu0 0.0
        %3801 = vmatpush1.msra.mxu0 %v3741
        %3802 = vmatprep.subr.mxu0 0.0
        %3803 = vmatpush1.msra.mxu0 %v3740
        %3804 = vmatprep.subr.mxu0 0.0
        %3805 = vmatpush2.msra.mxu0 %v3771
        %3806 = vmatprep.subr.mxu0 0.0
        %3807 = vmatpush2.msra.mxu0 %v3770
        %3808 = vmatprep.subr.mxu0 0.0
        %3809 = vmatpush2.msra.mxu0 %v3769
        %3810 = vmatprep.subr.mxu0 0.0
        %3811 = vmatpush2.msra.mxu0 %v3768
        %3812 = vmatprep.subr.mxu0 0.0
        %3813 = vmatpush2.msra.mxu0 %v3767
        %3814 = vmatprep.subr.mxu0 0.0
        %3815 = vmatpush2.msra.mxu0 %v3766
        %3816 = vmatprep.subr.mxu0 0.0
        %3817 = vmatpush2.msra.mxu0 %v3765
        %3818 = vmatprep.subr.mxu0 0.0
        %3819 = vmatpush2.msra.mxu0 %v3764
        %3820 = vmatprep.subr.mxu0 0.0
        %3821 = vmatpush2.msra.mxu0 %v3763
        %3822 = vmatprep.subr.mxu0 0.0
        %3823 = vmatpush2.msra.mxu0 %v3762
        %3824 = vmatprep.subr.mxu0 0.0
        %3825 = vmatpush2.msra.mxu0 %v3761
        %3826 = vmatprep.subr.mxu0 0.0
        %3827 = vmatpush2.msra.mxu0 %v3760
        %3828 = vmatprep.subr.mxu0 0.0
        %3829 = vmatpush2.msra.mxu0 %v3759
        %3830 = vmatprep.subr.mxu0 0.0
        %3831 = vmatpush2.msra.mxu0 %v3758
        %3832 = vmatprep.subr.mxu0 0.0
        %3833 = vmatpush2.msra.mxu0 %v3757
        %3834 = vmatprep.subr.mxu0 0.0
        %3835 = vmatpush2.msra.mxu0 %v3756
        %3836 = vmatprep.mubr.f32.mxu0 %v3564
        %3837 = vmatmul.mubr.f32.gmra.mxu0 %v3563
        %v3838 = vpop.f32.mrf.mxu0
        %v3839 = vadd.f32 0.0, %v3838
        %v3840 = vpop.f32.mrf.mxu0
        %3841 = vdwg.mxu0
        %3842 = vmatprep.subr.mxu0 0.0
        %3843 = vmatpush1.msra.mxu0 %v3722
        %3844 = vmatprep.subr.mxu0 0.0
        %3845 = vmatpush1.msra.mxu0 %v3721
        %3846 = vmatprep.subr.mxu0 0.0
        %3847 = vmatpush1.msra.mxu0 %v3720
        %3848 = vmatprep.subr.mxu0 0.0
        %3849 = vmatpush1.msra.mxu0 %v3719
        %3850 = vmatprep.subr.mxu0 0.0
        %3851 = vmatpush1.msra.mxu0 %v3718
        %3852 = vmatprep.subr.mxu0 0.0
        %3853 = vmatpush1.msra.mxu0 %v3717
        %3854 = vmatprep.subr.mxu0 0.0
        %3855 = vmatpush1.msra.mxu0 %v3716
        %3856 = vmatprep.subr.mxu0 0.0
        %3857 = vmatpush1.msra.mxu0 %v3715
        %3858 = vmatprep.subr.mxu0 0.0
        %3859 = vmatpush1.msra.mxu0 %v3714
        %3860 = vmatprep.subr.mxu0 0.0
        %3861 = vmatpush1.msra.mxu0 %v3713
        %3862 = vmatprep.subr.mxu0 0.0
        %3863 = vmatpush1.msra.mxu0 %v3712
        %3864 = vmatprep.subr.mxu0 0.0
        %3865 = vmatpush1.msra.mxu0 %v3711
        %3866 = vmatprep.subr.mxu0 0.0
        %3867 = vmatpush1.msra.mxu0 %v3710
        %3868 = vmatprep.subr.mxu0 0.0
        %3869 = vmatpush1.msra.mxu0 %v3709
        %3870 = vmatprep.subr.mxu0 0.0
        %3871 = vmatpush1.msra.mxu0 %v3708
        %3872 = vmatprep.subr.mxu0 0.0
        %3873 = vmatpush1.msra.mxu0 %v3707
        %3874 = vmatprep.subr.mxu0 0.0
        %3875 = vmatpush2.msra.mxu0 %v3738
        %3876 = vmatprep.subr.mxu0 0.0
        %3877 = vmatpush2.msra.mxu0 %v3737
        %3878 = vmatprep.subr.mxu0 0.0
        %3879 = vmatpush2.msra.mxu0 %v3736
        %3880 = vmatprep.subr.mxu0 0.0
        %3881 = vmatpush2.msra.mxu0 %v3735
        %3882 = vmatprep.subr.mxu0 0.0
        %3883 = vmatpush2.msra.mxu0 %v3734
        %3884 = vmatprep.subr.mxu0 0.0
        %3885 = vmatpush2.msra.mxu0 %v3733
        %3886 = vmatprep.subr.mxu0 0.0
        %3887 = vmatpush2.msra.mxu0 %v3732
        %3888 = vmatprep.subr.mxu0 0.0
        %3889 = vmatpush2.msra.mxu0 %v3731
        %3890 = vmatprep.subr.mxu0 0.0
        %3891 = vmatpush2.msra.mxu0 %v3730
        %3892 = vmatprep.subr.mxu0 0.0
        %3893 = vmatpush2.msra.mxu0 %v3729
        %3894 = vmatprep.subr.mxu0 0.0
        %3895 = vmatpush2.msra.mxu0 %v3728
        %3896 = vmatprep.subr.mxu0 0.0
        %3897 = vmatpush2.msra.mxu0 %v3727
        %3898 = vmatprep.subr.mxu0 0.0
        %3899 = vmatpush2.msra.mxu0 %v3726
        %3900 = vmatprep.subr.mxu0 0.0
        %3901 = vmatpush2.msra.mxu0 %v3725
        %3902 = vmatprep.subr.mxu0 0.0
        %3903 = vmatpush2.msra.mxu0 %v3724
        %3904 = vmatprep.subr.mxu0 0.0
        %3905 = vmatpush2.msra.mxu0 %v3723
        %3906 = vmatprep.mubr.f32.mxu0 %v3634
        %3907 = vmatmul.mubr.f32.gmra.mxu0 %v3632
        %v3908 = vpop.f32.mrf.mxu0
        %v3909 = vadd.f32 %v3839, %v3908
        %v3910 = vpop.f32.mrf.mxu0
        %3911 = vdwg.mxu0
        %s3912 = scalar_lea.vmem [#allocation16], 512
        %v3913 = vld [vmem:[%s3912] sm:$0xff]
        %v3914 = vld [vmem:[%s3912 + $0x8] sm:$0xff]
        %v3915 = vld [vmem:[%s3912 + $0x10] sm:$0xff]
        %v3916 = vld [vmem:[%s3912 + $0x18] sm:$0xff]
        %v3917 = vld [vmem:[%s3912 + $0x20] sm:$0xff]
        %v3918 = vld [vmem:[%s3912 + $0x28] sm:$0xff]
        %v3919 = vld [vmem:[%s3912 + $0x30] sm:$0xff]
        %v3920 = vld [vmem:[%s3912 + $0x38] sm:$0xff]
        %v3921 = vld [vmem:[%s3912 + $0x40] sm:$0xff]
        %v3922 = vld [vmem:[%s3912 + $0x48] sm:$0xff]
        %v3923 = vld [vmem:[%s3912 + $0x50] sm:$0xff]
        %v3924 = vld [vmem:[%s3912 + $0x58] sm:$0xff]
        %v3925 = vld [vmem:[%s3912 + $0x60] sm:$0xff]
        %v3926 = vld [vmem:[%s3912 + $0x68] sm:$0xff]
        %v3927 = vld [vmem:[%s3912 + $0x70] sm:$0xff]
        %v3928 = vld [vmem:[%s3912 + $0x78] sm:$0xff]
        %v3929 = vld [vmem:[%s3912 + $0x80] sm:$0xff]
        %v3930 = vld [vmem:[%s3912 + $0x88] sm:$0xff]
        %v3931 = vld [vmem:[%s3912 + $0x90] sm:$0xff]
        %v3932 = vld [vmem:[%s3912 + $0x98] sm:$0xff]
        %v3933 = vld [vmem:[%s3912 + $0xa0] sm:$0xff]
        %v3934 = vld [vmem:[%s3912 + $0xa8] sm:$0xff]
        %v3935 = vld [vmem:[%s3912 + $0xb0] sm:$0xff]
        %v3936 = vld [vmem:[%s3912 + $0xb8] sm:$0xff]
        %v3937 = vld [vmem:[%s3912 + $0xc0] sm:$0xff]
        %v3938 = vld [vmem:[%s3912 + $0xc8] sm:$0xff]
        %v3939 = vld [vmem:[%s3912 + $0xd0] sm:$0xff]
        %v3940 = vld [vmem:[%s3912 + $0xd8] sm:$0xff]
        %v3941 = vld [vmem:[%s3912 + $0xe0] sm:$0xff]
        %v3942 = vld [vmem:[%s3912 + $0xe8] sm:$0xff]
        %v3943 = vld [vmem:[%s3912 + $0xf0] sm:$0xff]
        %v3944 = vld [vmem:[%s3912 + $0xf8] sm:$0xff]
        %3945 = vmatprep.subr.mxu0 0.0
        %3946 = vmatpush1.msra.mxu0 %v3928
        %3947 = vmatprep.subr.mxu0 0.0
        %3948 = vmatpush1.msra.mxu0 %v3927
        %3949 = vmatprep.subr.mxu0 0.0
        %3950 = vmatpush1.msra.mxu0 %v3926
        %3951 = vmatprep.subr.mxu0 0.0
        %3952 = vmatpush1.msra.mxu0 %v3925
        %3953 = vmatprep.subr.mxu0 0.0
        %3954 = vmatpush1.msra.mxu0 %v3924
        %3955 = vmatprep.subr.mxu0 0.0
        %3956 = vmatpush1.msra.mxu0 %v3923
        %3957 = vmatprep.subr.mxu0 0.0
        %3958 = vmatpush1.msra.mxu0 %v3922
        %3959 = vmatprep.subr.mxu0 0.0
        %3960 = vmatpush1.msra.mxu0 %v3921
        %3961 = vmatprep.subr.mxu0 0.0
        %3962 = vmatpush1.msra.mxu0 %v3920
        %3963 = vmatprep.subr.mxu0 0.0
        %3964 = vmatpush1.msra.mxu0 %v3919
        %3965 = vmatprep.subr.mxu0 0.0
        %3966 = vmatpush1.msra.mxu0 %v3918
        %3967 = vmatprep.subr.mxu0 0.0
        %3968 = vmatpush1.msra.mxu0 %v3917
        %3969 = vmatprep.subr.mxu0 0.0
        %3970 = vmatpush1.msra.mxu0 %v3916
        %3971 = vmatprep.subr.mxu0 0.0
        %3972 = vmatpush1.msra.mxu0 %v3915
        %3973 = vmatprep.subr.mxu0 0.0
        %3974 = vmatpush1.msra.mxu0 %v3914
        %3975 = vmatprep.subr.mxu0 0.0
        %3976 = vmatpush1.msra.mxu0 %v3913
        %3977 = vmatprep.subr.mxu0 0.0
        %3978 = vmatpush2.msra.mxu0 %v3944
        %3979 = vmatprep.subr.mxu0 0.0
        %3980 = vmatpush2.msra.mxu0 %v3943
        %3981 = vmatprep.subr.mxu0 0.0
        %3982 = vmatpush2.msra.mxu0 %v3942
        %3983 = vmatprep.subr.mxu0 0.0
        %3984 = vmatpush2.msra.mxu0 %v3941
        %3985 = vmatprep.subr.mxu0 0.0
        %3986 = vmatpush2.msra.mxu0 %v3940
        %3987 = vmatprep.subr.mxu0 0.0
        %3988 = vmatpush2.msra.mxu0 %v3939
        %3989 = vmatprep.subr.mxu0 0.0
        %3990 = vmatpush2.msra.mxu0 %v3938
        %3991 = vmatprep.subr.mxu0 0.0
        %3992 = vmatpush2.msra.mxu0 %v3937
        %3993 = vmatprep.subr.mxu0 0.0
        %3994 = vmatpush2.msra.mxu0 %v3936
        %3995 = vmatprep.subr.mxu0 0.0
        %3996 = vmatpush2.msra.mxu0 %v3935
        %3997 = vmatprep.subr.mxu0 0.0
        %3998 = vmatpush2.msra.mxu0 %v3934
        %3999 = vmatprep.subr.mxu0 0.0
        %4000 = vmatpush2.msra.mxu0 %v3933
        %4001 = vmatprep.subr.mxu0 0.0
        %4002 = vmatpush2.msra.mxu0 %v3932
        %4003 = vmatprep.subr.mxu0 0.0
        %4004 = vmatpush2.msra.mxu0 %v3931
        %4005 = vmatprep.subr.mxu0 0.0
        %4006 = vmatpush2.msra.mxu0 %v3930
        %4007 = vmatprep.subr.mxu0 0.0
        %4008 = vmatpush2.msra.mxu0 %v3929
        %4009 = vmatprep.mubr.f32.mxu0 %v3705
        %4010 = vmatmul.mubr.f32.gmra.mxu0 %v3703
        %v4011 = vpop.f32.mrf.mxu0
        %v4012 = vadd.f32 0.0, %v4011
        %v4013 = vpop.f32.mrf.mxu0
        %4014 = vdwg.mxu0
        %v4015 = vadd.f32 %v3909, %v4012
        %v4016 = vld [vmem:[%s14] sm:$0x1]
        %v4018 = vlaneseq
        %v4019 = vshrl.u32 %v4018, 7
        %v4020 = vsub.s32 0, %v4019
        %v4021 = vrot.slane %v4016, %v4020
        %v4023 = vadd.f32 %v4015, %v4021
        %v4024 = vld [vmem:[#allocation18] sm:$0xff]
        %v4025 = vld [vmem:[#allocation18 + $0x8] sm:$0xff]
        %v4026 = vld [vmem:[#allocation18 + $0x10] sm:$0xff]
        %v4027 = vld [vmem:[#allocation18 + $0x18] sm:$0xff]
        %4028 = vrot.lane.b32.xlu0 %v1086, 96
        %v4029 = vpop.permute.xlu0 %4028
        %4030 = vrot.lane.b32.xlu0 %v1086, 64
        %v4031 = vpop.permute.xlu0 %4030
        %vm4032 = vcmask 31744
        %v4033 = vsel %vm4032, %v4029, 0
        %v4035 = vsel %vm4032, %v4031, 0
        %4037 = vmatprep.subr.mxu0 0.0
        %4038 = vmatpush1.xpose.msra.mxu0 0.0
        %4039 = vmatprep.subr.mxu0 0.0
        %4040 = vmatpush1.xpose.msra.mxu0 0.0
        %4041 = vmatprep.subr.mxu0 0.0
        %4042 = vmatpush1.xpose.msra.mxu0 0.0
        %4043 = vmatprep.subr.mxu0 0.0
        %4044 = vmatpush1.xpose.msra.mxu0 0.0
        %4045 = vmatprep.subr.mxu0 0.0
        %4046 = vmatpush1.xpose.msra.mxu0 0.0
        %4047 = vmatprep.subr.mxu0 0.0
        %4048 = vmatpush1.xpose.msra.mxu0 0.0
        %4049 = vmatprep.subr.mxu0 0.0
        %4050 = vmatpush1.xpose.msra.mxu0 0.0
        %4051 = vmatprep.subr.mxu0 0.0
        %4052 = vmatpush1.xpose.msra.mxu0 0.0
        %4053 = vmatprep.subr.mxu0 0.0
        %4054 = vmatpush1.xpose.msra.mxu0 0.0
        %4055 = vmatprep.subr.mxu0 0.0
        %4056 = vmatpush1.xpose.msra.mxu0 0.0
        %4057 = vmatprep.subr.mxu0 0.0
        %4058 = vmatpush1.xpose.msra.mxu0 0.0
        %4059 = vmatprep.subr.mxu0 0.0
        %4060 = vmatpush1.xpose.msra.mxu0 0.0
        %4061 = vmatprep.subr.mxu0 0.0
        %4062 = vmatpush1.xpose.msra.mxu0 0.0
        %4063 = vmatprep.subr.mxu0 0.0
        %4064 = vmatpush1.xpose.msra.mxu0 0.0
        %4065 = vmatprep.subr.mxu0 0.0
        %4066 = vmatpush1.xpose.msra.mxu0 0.0
        %4067 = vmatprep.subr.mxu0 0.0
        %4068 = vmatpush1.xpose.msra.mxu0 %v4035
        %4069 = vmatprep.subr.mxu0 0.0
        %4070 = vmatpush2.xpose.msra.mxu0 0.0
        %4071 = vmatprep.subr.mxu0 0.0
        %4072 = vmatpush2.xpose.msra.mxu0 0.0
        %4073 = vmatprep.subr.mxu0 0.0
        %4074 = vmatpush2.xpose.msra.mxu0 0.0
        %4075 = vmatprep.subr.mxu0 0.0
        %4076 = vmatpush2.xpose.msra.mxu0 0.0
        %4077 = vmatprep.subr.mxu0 0.0
        %4078 = vmatpush2.xpose.msra.mxu0 0.0
        %4079 = vmatprep.subr.mxu0 0.0
        %4080 = vmatpush2.xpose.msra.mxu0 0.0
        %4081 = vmatprep.subr.mxu0 0.0
        %4082 = vmatpush2.xpose.msra.mxu0 0.0
        %4083 = vmatprep.subr.mxu0 0.0
        %4084 = vmatpush2.xpose.msra.mxu0 0.0
        %4085 = vmatprep.subr.mxu0 0.0
        %4086 = vmatpush2.xpose.msra.mxu0 0.0
        %4087 = vmatprep.subr.mxu0 0.0
        %4088 = vmatpush2.xpose.msra.mxu0 0.0
        %4089 = vmatprep.subr.mxu0 0.0
        %4090 = vmatpush2.xpose.msra.mxu0 0.0
        %4091 = vmatprep.subr.mxu0 0.0
        %4092 = vmatpush2.xpose.msra.mxu0 0.0
        %4093 = vmatprep.subr.mxu0 0.0
        %4094 = vmatpush2.xpose.msra.mxu0 0.0
        %4095 = vmatprep.subr.mxu0 0.0
        %4096 = vmatpush2.xpose.msra.mxu0 0.0
        %4097 = vmatprep.subr.mxu0 0.0
        %4098 = vmatpush2.xpose.msra.mxu0 0.0
        %4099 = vmatprep.subr.mxu0 0.0
        %4100 = vmatpush2.xpose.msra.mxu0 0.0
        %4101 = vmatprep.mubr.f32.mxu0 0.0
        %4102 = vmatmul.mubr.f32.gmra.mxu0 %v4033
        %v4103 = vpop.f32.mrf.mxu0
        %v4104 = vadd.f32 0.0, %v4103
        %v4105 = vpop.f32.mrf.mxu0
        %4106 = vdwg.mxu0
        %v4107 = vmul.f32 %v4104, 0.03608439
        %v4108 = vsel %vm3155, %v4107, -inf
        %4109 = vmax.xlane.f32.xlu0 %v4108
        %v4110 = vpop.xlane.xlu0 %4109
        %v4111 = vsub.f32 %v4107, %v4110
        %v4112 = vmul.f32 %v4111, 1.442695
        %v4113 = vpow.pop %v4112
        %v4114 = vsel %vm3155, %v4113, 0.0
        %4115 = vadd.xlane.f32.xlu0 %v4114
        %v4116 = vpop.xlane.xlu0 %4115
        %v4117 = vrcp.pop %v4116
        %v4118 = vmul.f32 %v4113, %v4117
        %4119 = vrot.lane.b32.xlu0 %v1086, 32
        %v4120 = vpop.permute.xlu0 %4119
        %v4123 = vsel %vm3155, %v4118, 0
        %4125 = vmatprep.subr.mxu0 0.0
        %4126 = vmatpush1.msra.mxu0 0.0
        %4127 = vmatprep.subr.mxu0 0.0
        %4128 = vmatpush1.msra.mxu0 0.0
        %4129 = vmatprep.subr.mxu0 0.0
        %4130 = vmatpush1.msra.mxu0 0.0
        %4131 = vmatprep.subr.mxu0 0.0
        %4132 = vmatpush1.msra.mxu0 0.0
        %4133 = vmatprep.subr.mxu0 0.0
        %4134 = vmatpush1.msra.mxu0 0.0
        %4135 = vmatprep.subr.mxu0 0.0
        %4136 = vmatpush1.msra.mxu0 0.0
        %4137 = vmatprep.subr.mxu0 0.0
        %4138 = vmatpush1.msra.mxu0 0.0
        %4139 = vmatprep.subr.mxu0 0.0
        %4140 = vmatpush1.msra.mxu0 0.0
        %4141 = vmatprep.subr.mxu0 0.0
        %4142 = vmatpush1.msra.mxu0 0.0
        %4143 = vmatprep.subr.mxu0 0.0
        %4144 = vmatpush1.msra.mxu0 0.0
        %4145 = vmatprep.subr.mxu0 0.0
        %4146 = vmatpush1.msra.mxu0 0.0
        %4147 = vmatprep.subr.mxu0 0.0
        %4148 = vmatpush1.msra.mxu0 0.0
        %4149 = vmatprep.subr.mxu0 0.0
        %4150 = vmatpush1.msra.mxu0 0.0
        %4151 = vmatprep.subr.mxu0 0.0
        %4152 = vmatpush1.msra.mxu0 0.0
        %4153 = vmatprep.subr.mxu0 0.0
        %4154 = vmatpush1.msra.mxu0 0.0
        %4155 = vmatprep.subr.mxu0 0.0
        %4156 = vmatpush1.msra.mxu0 %v4120
        %4157 = vmatprep.subr.mxu0 0.0
        %4158 = vmatpush2.msra.mxu0 0.0
        %4159 = vmatprep.subr.mxu0 0.0
        %4160 = vmatpush2.msra.mxu0 0.0
        %4161 = vmatprep.subr.mxu0 0.0
        %4162 = vmatpush2.msra.mxu0 0.0
        %4163 = vmatprep.subr.mxu0 0.0
        %4164 = vmatpush2.msra.mxu0 0.0
        %4165 = vmatprep.subr.mxu0 0.0
        %4166 = vmatpush2.msra.mxu0 0.0
        %4167 = vmatprep.subr.mxu0 0.0
        %4168 = vmatpush2.msra.mxu0 0.0
        %4169 = vmatprep.subr.mxu0 0.0
        %4170 = vmatpush2.msra.mxu0 0.0
        %4171 = vmatprep.subr.mxu0 0.0
        %4172 = vmatpush2.msra.mxu0 0.0
        %4173 = vmatprep.subr.mxu0 0.0
        %4174 = vmatpush2.msra.mxu0 0.0
        %4175 = vmatprep.subr.mxu0 0.0
        %4176 = vmatpush2.msra.mxu0 0.0
        %4177 = vmatprep.subr.mxu0 0.0
        %4178 = vmatpush2.msra.mxu0 0.0
        %4179 = vmatprep.subr.mxu0 0.0
        %4180 = vmatpush2.msra.mxu0 0.0
        %4181 = vmatprep.subr.mxu0 0.0
        %4182 = vmatpush2.msra.mxu0 0.0
        %4183 = vmatprep.subr.mxu0 0.0
        %4184 = vmatpush2.msra.mxu0 0.0
        %4185 = vmatprep.subr.mxu0 0.0
        %4186 = vmatpush2.msra.mxu0 0.0
        %4187 = vmatprep.subr.mxu0 0.0
        %4188 = vmatpush2.msra.mxu0 0.0
        %4189 = vmatprep.mubr.f32.mxu0 0.0
        %4190 = vmatmul.mubr.f32.gmra.mxu0 %v4123
        %v4191 = vpop.f32.mrf.mxu0
        %v4192 = vadd.f32 0.0, %v4191
        %v4193 = vpop.f32.mrf.mxu0
        %4194 = vdwg.mxu0
        %4195 = vrot.lane.b32.xlu0 %v1086, 92
        %v4196 = vpop.permute.xlu0 %4195
        %4197 = vrot.lane.b32.xlu0 %v1086, 60
        %v4198 = vpop.permute.xlu0 %4197
        %v4199 = vsel %vm4032, %v4196, 0
        %v4201 = vsel %vm4032, %v4198, 0
        %4203 = vmatprep.subr.mxu0 0.0
        %4204 = vmatpush1.xpose.msra.mxu0 0.0
        %4205 = vmatprep.subr.mxu0 0.0
        %4206 = vmatpush1.xpose.msra.mxu0 0.0
        %4207 = vmatprep.subr.mxu0 0.0
        %4208 = vmatpush1.xpose.msra.mxu0 0.0
        %4209 = vmatprep.subr.mxu0 0.0
        %4210 = vmatpush1.xpose.msra.mxu0 0.0
        %4211 = vmatprep.subr.mxu0 0.0
        %4212 = vmatpush1.xpose.msra.mxu0 0.0
        %4213 = vmatprep.subr.mxu0 0.0
        %4214 = vmatpush1.xpose.msra.mxu0 0.0
        %4215 = vmatprep.subr.mxu0 0.0
        %4216 = vmatpush1.xpose.msra.mxu0 0.0
        %4217 = vmatprep.subr.mxu0 0.0
        %4218 = vmatpush1.xpose.msra.mxu0 0.0
        %4219 = vmatprep.subr.mxu0 0.0
        %4220 = vmatpush1.xpose.msra.mxu0 0.0
        %4221 = vmatprep.subr.mxu0 0.0
        %4222 = vmatpush1.xpose.msra.mxu0 0.0
        %4223 = vmatprep.subr.mxu0 0.0
        %4224 = vmatpush1.xpose.msra.mxu0 0.0
        %4225 = vmatprep.subr.mxu0 0.0
        %4226 = vmatpush1.xpose.msra.mxu0 0.0
        %4227 = vmatprep.subr.mxu0 0.0
        %4228 = vmatpush1.xpose.msra.mxu0 0.0
        %4229 = vmatprep.subr.mxu0 0.0
        %4230 = vmatpush1.xpose.msra.mxu0 0.0
        %4231 = vmatprep.subr.mxu0 0.0
        %4232 = vmatpush1.xpose.msra.mxu0 0.0
        %4233 = vmatprep.subr.mxu0 0.0
        %4234 = vmatpush1.xpose.msra.mxu0 %v4201
        %4235 = vmatprep.subr.mxu0 0.0
        %4236 = vmatpush2.xpose.msra.mxu0 0.0
        %4237 = vmatprep.subr.mxu0 0.0
        %4238 = vmatpush2.xpose.msra.mxu0 0.0
        %4239 = vmatprep.subr.mxu0 0.0
        %4240 = vmatpush2.xpose.msra.mxu0 0.0
        %4241 = vmatprep.subr.mxu0 0.0
        %4242 = vmatpush2.xpose.msra.mxu0 0.0
        %4243 = vmatprep.subr.mxu0 0.0
        %4244 = vmatpush2.xpose.msra.mxu0 0.0
        %4245 = vmatprep.subr.mxu0 0.0
        %4246 = vmatpush2.xpose.msra.mxu0 0.0
        %4247 = vmatprep.subr.mxu0 0.0
        %4248 = vmatpush2.xpose.msra.mxu0 0.0
        %4249 = vmatprep.subr.mxu0 0.0
        %4250 = vmatpush2.xpose.msra.mxu0 0.0
        %4251 = vmatprep.subr.mxu0 0.0
        %4252 = vmatpush2.xpose.msra.mxu0 0.0
        %4253 = vmatprep.subr.mxu0 0.0
        %4254 = vmatpush2.xpose.msra.mxu0 0.0
        %4255 = vmatprep.subr.mxu0 0.0
        %4256 = vmatpush2.xpose.msra.mxu0 0.0
        %4257 = vmatprep.subr.mxu0 0.0
        %4258 = vmatpush2.xpose.msra.mxu0 0.0
        %4259 = vmatprep.subr.mxu0 0.0
        %4260 = vmatpush2.xpose.msra.mxu0 0.0
        %4261 = vmatprep.subr.mxu0 0.0
        %4262 = vmatpush2.xpose.msra.mxu0 0.0
        %4263 = vmatprep.subr.mxu0 0.0
        %4264 = vmatpush2.xpose.msra.mxu0 0.0
        %4265 = vmatprep.subr.mxu0 0.0
        %4266 = vmatpush2.xpose.msra.mxu0 0.0
        %4267 = vmatprep.mubr.f32.mxu0 0.0
        %4268 = vmatmul.mubr.f32.gmra.mxu0 %v4199
        %v4269 = vpop.f32.mrf.mxu0
        %v4270 = vadd.f32 0.0, %v4269
        %v4271 = vpop.f32.mrf.mxu0
        %4272 = vdwg.mxu0
        %v4273 = vmul.f32 %v4270, 0.03608439
        %v4274 = vsel %vm3155, %v4273, -inf
        %4275 = vmax.xlane.f32.xlu0 %v4274
        %v4276 = vpop.xlane.xlu0 %4275
        %v4277 = vsub.f32 %v4273, %v4276
        %v4278 = vmul.f32 %v4277, 1.442695
        %v4279 = vpow.pop %v4278
        %v4280 = vsel %vm3155, %v4279, 0.0
        %4281 = vadd.xlane.f32.xlu0 %v4280
        %v4282 = vpop.xlane.xlu0 %4281
        %v4283 = vrcp.pop %v4282
        %v4284 = vmul.f32 %v4279, %v4283
        %4285 = vrot.lane.b32.xlu0 %v1086, 28
        %v4286 = vpop.permute.xlu0 %4285
        %v4289 = vsel %vm3155, %v4284, 0
        %4291 = vmatprep.subr.mxu0 0.0
        %4292 = vmatpush1.msra.mxu0 0.0
        %4293 = vmatprep.subr.mxu0 0.0
        %4294 = vmatpush1.msra.mxu0 0.0
        %4295 = vmatprep.subr.mxu0 0.0
        %4296 = vmatpush1.msra.mxu0 0.0
        %4297 = vmatprep.subr.mxu0 0.0
        %4298 = vmatpush1.msra.mxu0 0.0
        %4299 = vmatprep.subr.mxu0 0.0
        %4300 = vmatpush1.msra.mxu0 0.0
        %4301 = vmatprep.subr.mxu0 0.0
        %4302 = vmatpush1.msra.mxu0 0.0
        %4303 = vmatprep.subr.mxu0 0.0
        %4304 = vmatpush1.msra.mxu0 0.0
        %4305 = vmatprep.subr.mxu0 0.0
        %4306 = vmatpush1.msra.mxu0 0.0
        %4307 = vmatprep.subr.mxu0 0.0
        %4308 = vmatpush1.msra.mxu0 0.0
        %4309 = vmatprep.subr.mxu0 0.0
        %4310 = vmatpush1.msra.mxu0 0.0
        %4311 = vmatprep.subr.mxu0 0.0
        %4312 = vmatpush1.msra.mxu0 0.0
        %4313 = vmatprep.subr.mxu0 0.0
        %4314 = vmatpush1.msra.mxu0 0.0
        %4315 = vmatprep.subr.mxu0 0.0
        %4316 = vmatpush1.msra.mxu0 0.0
        %4317 = vmatprep.subr.mxu0 0.0
        %4318 = vmatpush1.msra.mxu0 0.0
        %4319 = vmatprep.subr.mxu0 0.0
        %4320 = vmatpush1.msra.mxu0 0.0
        %4321 = vmatprep.subr.mxu0 0.0
        %4322 = vmatpush1.msra.mxu0 %v4286
        %4323 = vmatprep.subr.mxu0 0.0
        %4324 = vmatpush2.msra.mxu0 0.0
        %4325 = vmatprep.subr.mxu0 0.0
        %4326 = vmatpush2.msra.mxu0 0.0
        %4327 = vmatprep.subr.mxu0 0.0
        %4328 = vmatpush2.msra.mxu0 0.0
        %4329 = vmatprep.subr.mxu0 0.0
        %4330 = vmatpush2.msra.mxu0 0.0
        %4331 = vmatprep.subr.mxu0 0.0
        %4332 = vmatpush2.msra.mxu0 0.0
        %4333 = vmatprep.subr.mxu0 0.0
        %4334 = vmatpush2.msra.mxu0 0.0
        %4335 = vmatprep.subr.mxu0 0.0
        %4336 = vmatpush2.msra.mxu0 0.0
        %4337 = vmatprep.subr.mxu0 0.0
        %4338 = vmatpush2.msra.mxu0 0.0
        %4339 = vmatprep.subr.mxu0 0.0
        %4340 = vmatpush2.msra.mxu0 0.0
        %4341 = vmatprep.subr.mxu0 0.0
        %4342 = vmatpush2.msra.mxu0 0.0
        %4343 = vmatprep.subr.mxu0 0.0
        %4344 = vmatpush2.msra.mxu0 0.0
        %4345 = vmatprep.subr.mxu0 0.0
        %4346 = vmatpush2.msra.mxu0 0.0
        %4347 = vmatprep.subr.mxu0 0.0
        %4348 = vmatpush2.msra.mxu0 0.0
        %4349 = vmatprep.subr.mxu0 0.0
        %4350 = vmatpush2.msra.mxu0 0.0
        %4351 = vmatprep.subr.mxu0 0.0
        %4352 = vmatpush2.msra.mxu0 0.0
        %4353 = vmatprep.subr.mxu0 0.0
        %4354 = vmatpush2.msra.mxu0 0.0
        %4355 = vmatprep.mubr.f32.mxu0 0.0
        %4356 = vmatmul.mubr.f32.gmra.mxu0 %v4289
        %v4357 = vpop.f32.mrf.mxu0
        %v4358 = vadd.f32 0.0, %v4357
        %v4359 = vpop.f32.mrf.mxu0
        %4360 = vdwg.mxu0
        %v4362 = vrot.slane %v4024, 4
        %v4364 = vsel %vm4032, %v4358, 0
        %vm4366 = vcmask 1043456
        %v4367 = vsel %vm4366, %v4362, 0
        %4369 = vmatprep.subr.mxu0 0.0
        %4370 = vmatpush1.msra.mxu0 0.0
        %4371 = vmatprep.subr.mxu0 0.0
        %4372 = vmatpush1.msra.mxu0 0.0
        %4373 = vmatprep.subr.mxu0 0.0
        %4374 = vmatpush1.msra.mxu0 0.0
        %4375 = vmatprep.subr.mxu0 0.0
        %4376 = vmatpush1.msra.mxu0 0.0
        %4377 = vmatprep.subr.mxu0 0.0
        %4378 = vmatpush1.msra.mxu0 0.0
        %4379 = vmatprep.subr.mxu0 0.0
        %4380 = vmatpush1.msra.mxu0 0.0
        %4381 = vmatprep.subr.mxu0 0.0
        %4382 = vmatpush1.msra.mxu0 0.0
        %4383 = vmatprep.subr.mxu0 0.0
        %4384 = vmatpush1.msra.mxu0 0.0
        %4385 = vmatprep.subr.mxu0 0.0
        %4386 = vmatpush1.msra.mxu0 0.0
        %4387 = vmatprep.subr.mxu0 0.0
        %4388 = vmatpush1.msra.mxu0 0.0
        %4389 = vmatprep.subr.mxu0 0.0
        %4390 = vmatpush1.msra.mxu0 0.0
        %4391 = vmatprep.subr.mxu0 0.0
        %4392 = vmatpush1.msra.mxu0 0.0
        %4393 = vmatprep.subr.mxu0 0.0
        %4394 = vmatpush1.msra.mxu0 0.0
        %4395 = vmatprep.subr.mxu0 0.0
        %4396 = vmatpush1.msra.mxu0 0.0
        %4397 = vmatprep.subr.mxu0 0.0
        %4398 = vmatpush1.msra.mxu0 0.0
        %4399 = vmatprep.subr.mxu0 0.0
        %4400 = vmatpush1.msra.mxu0 %v4367
        %4401 = vmatprep.subr.mxu0 0.0
        %4402 = vmatpush2.msra.mxu0 0.0
        %4403 = vmatprep.subr.mxu0 0.0
        %4404 = vmatpush2.msra.mxu0 0.0
        %4405 = vmatprep.subr.mxu0 0.0
        %4406 = vmatpush2.msra.mxu0 0.0
        %4407 = vmatprep.subr.mxu0 0.0
        %4408 = vmatpush2.msra.mxu0 0.0
        %4409 = vmatprep.subr.mxu0 0.0
        %4410 = vmatpush2.msra.mxu0 0.0
        %4411 = vmatprep.subr.mxu0 0.0
        %4412 = vmatpush2.msra.mxu0 0.0
        %4413 = vmatprep.subr.mxu0 0.0
        %4414 = vmatpush2.msra.mxu0 0.0
        %4415 = vmatprep.subr.mxu0 0.0
        %4416 = vmatpush2.msra.mxu0 0.0
        %4417 = vmatprep.subr.mxu0 0.0
        %4418 = vmatpush2.msra.mxu0 0.0
        %4419 = vmatprep.subr.mxu0 0.0
        %4420 = vmatpush2.msra.mxu0 0.0
        %4421 = vmatprep.subr.mxu0 0.0
        %4422 = vmatpush2.msra.mxu0 0.0
        %4423 = vmatprep.subr.mxu0 0.0
        %4424 = vmatpush2.msra.mxu0 0.0
        %4425 = vmatprep.subr.mxu0 0.0
        %4426 = vmatpush2.msra.mxu0 0.0
        %4427 = vmatprep.subr.mxu0 0.0
        %4428 = vmatpush2.msra.mxu0 0.0
        %4429 = vmatprep.subr.mxu0 0.0
        %4430 = vmatpush2.msra.mxu0 0.0
        %4431 = vmatprep.subr.mxu0 0.0
        %4432 = vmatpush2.msra.mxu0 0.0
        %4433 = vmatprep.mubr.f32.mxu0 0.0
        %4434 = vmatmul.mubr.f32.gmra.mxu0 %v4364
        %v4435 = vpop.f32.mrf.mxu0
        %v4436 = vadd.f32 0.0, %v4435
        %v4437 = vpop.f32.mrf.mxu0
        %4438 = vdwg.mxu0
        %v4440 = vsel %vm4032, %v4192, 0
        %v4442 = vsel %vm4366, %v4024, 0
        %4444 = vmatprep.subr.mxu0 0.0
        %4445 = vmatpush1.msra.mxu0 0.0
        %4446 = vmatprep.subr.mxu0 0.0
        %4447 = vmatpush1.msra.mxu0 0.0
        %4448 = vmatprep.subr.mxu0 0.0
        %4449 = vmatpush1.msra.mxu0 0.0
        %4450 = vmatprep.subr.mxu0 0.0
        %4451 = vmatpush1.msra.mxu0 0.0
        %4452 = vmatprep.subr.mxu0 0.0
        %4453 = vmatpush1.msra.mxu0 0.0
        %4454 = vmatprep.subr.mxu0 0.0
        %4455 = vmatpush1.msra.mxu0 0.0
        %4456 = vmatprep.subr.mxu0 0.0
        %4457 = vmatpush1.msra.mxu0 0.0
        %4458 = vmatprep.subr.mxu0 0.0
        %4459 = vmatpush1.msra.mxu0 0.0
        %4460 = vmatprep.subr.mxu0 0.0
        %4461 = vmatpush1.msra.mxu0 0.0
        %4462 = vmatprep.subr.mxu0 0.0
        %4463 = vmatpush1.msra.mxu0 0.0
        %4464 = vmatprep.subr.mxu0 0.0
        %4465 = vmatpush1.msra.mxu0 0.0
        %4466 = vmatprep.subr.mxu0 0.0
        %4467 = vmatpush1.msra.mxu0 0.0
        %4468 = vmatprep.subr.mxu0 0.0
        %4469 = vmatpush1.msra.mxu0 0.0
        %4470 = vmatprep.subr.mxu0 0.0
        %4471 = vmatpush1.msra.mxu0 0.0
        %4472 = vmatprep.subr.mxu0 0.0
        %4473 = vmatpush1.msra.mxu0 0.0
        %4474 = vmatprep.subr.mxu0 0.0
        %4475 = vmatpush1.msra.mxu0 %v4442
        %4476 = vmatprep.subr.mxu0 0.0
        %4477 = vmatpush2.msra.mxu0 0.0
        %4478 = vmatprep.subr.mxu0 0.0
        %4479 = vmatpush2.msra.mxu0 0.0
        %4480 = vmatprep.subr.mxu0 0.0
        %4481 = vmatpush2.msra.mxu0 0.0
        %4482 = vmatprep.subr.mxu0 0.0
        %4483 = vmatpush2.msra.mxu0 0.0
        %4484 = vmatprep.subr.mxu0 0.0
        %4485 = vmatpush2.msra.mxu0 0.0
        %4486 = vmatprep.subr.mxu0 0.0
        %4487 = vmatpush2.msra.mxu0 0.0
        %4488 = vmatprep.subr.mxu0 0.0
        %4489 = vmatpush2.msra.mxu0 0.0
        %4490 = vmatprep.subr.mxu0 0.0
        %4491 = vmatpush2.msra.mxu0 0.0
        %4492 = vmatprep.subr.mxu0 0.0
        %4493 = vmatpush2.msra.mxu0 0.0
        %4494 = vmatprep.subr.mxu0 0.0
        %4495 = vmatpush2.msra.mxu0 0.0
        %4496 = vmatprep.subr.mxu0 0.0
        %4497 = vmatpush2.msra.mxu0 0.0
        %4498 = vmatprep.subr.mxu0 0.0
        %4499 = vmatpush2.msra.mxu0 0.0
        %4500 = vmatprep.subr.mxu0 0.0
        %4501 = vmatpush2.msra.mxu0 0.0
        %4502 = vmatprep.subr.mxu0 0.0
        %4503 = vmatpush2.msra.mxu0 0.0
        %4504 = vmatprep.subr.mxu0 0.0
        %4505 = vmatpush2.msra.mxu0 0.0
        %4506 = vmatprep.subr.mxu0 0.0
        %4507 = vmatpush2.msra.mxu0 0.0
        %4508 = vmatprep.mubr.f32.mxu0 0.0
        %4509 = vmatmul.mubr.f32.gmra.mxu0 %v4440
        %v4510 = vpop.f32.mrf.mxu0
        %v4511 = vadd.f32 %v4436, %v4510
        %v4512 = vpop.f32.mrf.mxu0
        %4513 = vdwg.mxu0
        %4514 = vrot.lane.b32.xlu0 %v1086, 88
        %v4515 = vpop.permute.xlu0 %4514
        %4516 = vrot.lane.b32.xlu0 %v1086, 56
        %v4517 = vpop.permute.xlu0 %4516
        %v4518 = vsel %vm4032, %v4515, 0
        %v4520 = vsel %vm4032, %v4517, 0
        %4522 = vmatprep.subr.mxu0 0.0
        %4523 = vmatpush1.xpose.msra.mxu0 0.0
        %4524 = vmatprep.subr.mxu0 0.0
        %4525 = vmatpush1.xpose.msra.mxu0 0.0
        %4526 = vmatprep.subr.mxu0 0.0
        %4527 = vmatpush1.xpose.msra.mxu0 0.0
        %4528 = vmatprep.subr.mxu0 0.0
        %4529 = vmatpush1.xpose.msra.mxu0 0.0
        %4530 = vmatprep.subr.mxu0 0.0
        %4531 = vmatpush1.xpose.msra.mxu0 0.0
        %4532 = vmatprep.subr.mxu0 0.0
        %4533 = vmatpush1.xpose.msra.mxu0 0.0
        %4534 = vmatprep.subr.mxu0 0.0
        %4535 = vmatpush1.xpose.msra.mxu0 0.0
        %4536 = vmatprep.subr.mxu0 0.0
        %4537 = vmatpush1.xpose.msra.mxu0 0.0
        %4538 = vmatprep.subr.mxu0 0.0
        %4539 = vmatpush1.xpose.msra.mxu0 0.0
        %4540 = vmatprep.subr.mxu0 0.0
        %4541 = vmatpush1.xpose.msra.mxu0 0.0
        %4542 = vmatprep.subr.mxu0 0.0
        %4543 = vmatpush1.xpose.msra.mxu0 0.0
        %4544 = vmatprep.subr.mxu0 0.0
        %4545 = vmatpush1.xpose.msra.mxu0 0.0
        %4546 = vmatprep.subr.mxu0 0.0
        %4547 = vmatpush1.xpose.msra.mxu0 0.0
        %4548 = vmatprep.subr.mxu0 0.0
        %4549 = vmatpush1.xpose.msra.mxu0 0.0
        %4550 = vmatprep.subr.mxu0 0.0
        %4551 = vmatpush1.xpose.msra.mxu0 0.0
        %4552 = vmatprep.subr.mxu0 0.0
        %4553 = vmatpush1.xpose.msra.mxu0 %v4520
        %4554 = vmatprep.subr.mxu0 0.0
        %4555 = vmatpush2.xpose.msra.mxu0 0.0
        %4556 = vmatprep.subr.mxu0 0.0
        %4557 = vmatpush2.xpose.msra.mxu0 0.0
        %4558 = vmatprep.subr.mxu0 0.0
        %4559 = vmatpush2.xpose.msra.mxu0 0.0
        %4560 = vmatprep.subr.mxu0 0.0
        %4561 = vmatpush2.xpose.msra.mxu0 0.0
        %4562 = vmatprep.subr.mxu0 0.0
        %4563 = vmatpush2.xpose.msra.mxu0 0.0
        %4564 = vmatprep.subr.mxu0 0.0
        %4565 = vmatpush2.xpose.msra.mxu0 0.0
        %4566 = vmatprep.subr.mxu0 0.0
        %4567 = vmatpush2.xpose.msra.mxu0 0.0
        %4568 = vmatprep.subr.mxu0 0.0
        %4569 = vmatpush2.xpose.msra.mxu0 0.0
        %4570 = vmatprep.subr.mxu0 0.0
        %4571 = vmatpush2.xpose.msra.mxu0 0.0
        %4572 = vmatprep.subr.mxu0 0.0
        %4573 = vmatpush2.xpose.msra.mxu0 0.0
        %4574 = vmatprep.subr.mxu0 0.0
        %4575 = vmatpush2.xpose.msra.mxu0 0.0
        %4576 = vmatprep.subr.mxu0 0.0
        %4577 = vmatpush2.xpose.msra.mxu0 0.0
        %4578 = vmatprep.subr.mxu0 0.0
        %4579 = vmatpush2.xpose.msra.mxu0 0.0
        %4580 = vmatprep.subr.mxu0 0.0
        %4581 = vmatpush2.xpose.msra.mxu0 0.0
        %4582 = vmatprep.subr.mxu0 0.0
        %4583 = vmatpush2.xpose.msra.mxu0 0.0
        %4584 = vmatprep.subr.mxu0 0.0
        %4585 = vmatpush2.xpose.msra.mxu0 0.0
        %4586 = vmatprep.mubr.f32.mxu0 0.0
        %4587 = vmatmul.mubr.f32.gmra.mxu0 %v4518
        %v4588 = vpop.f32.mrf.mxu0
        %v4589 = vadd.f32 0.0, %v4588
        %v4590 = vpop.f32.mrf.mxu0
        %4591 = vdwg.mxu0
        %v4592 = vmul.f32 %v4589, 0.03608439
        %v4593 = vsel %vm3155, %v4592, -inf
        %4594 = vmax.xlane.f32.xlu0 %v4593
        %v4595 = vpop.xlane.xlu0 %4594
        %v4596 = vsub.f32 %v4592, %v4595
        %v4597 = vmul.f32 %v4596, 1.442695
        %v4598 = vpow.pop %v4597
        %v4599 = vsel %vm3155, %v4598, 0.0
        %4600 = vadd.xlane.f32.xlu0 %v4599
        %v4601 = vpop.xlane.xlu0 %4600
        %v4602 = vrcp.pop %v4601
        %v4603 = vmul.f32 %v4598, %v4602
        %4604 = vrot.lane.b32.xlu0 %v1086, 24
        %v4605 = vpop.permute.xlu0 %4604
        %v4608 = vsel %vm3155, %v4603, 0
        %4610 = vmatprep.subr.mxu0 0.0
        %4611 = vmatpush1.msra.mxu0 0.0
        %4612 = vmatprep.subr.mxu0 0.0
        %4613 = vmatpush1.msra.mxu0 0.0
        %4614 = vmatprep.subr.mxu0 0.0
        %4615 = vmatpush1.msra.mxu0 0.0
        %4616 = vmatprep.subr.mxu0 0.0
        %4617 = vmatpush1.msra.mxu0 0.0
        %4618 = vmatprep.subr.mxu0 0.0
        %4619 = vmatpush1.msra.mxu0 0.0
        %4620 = vmatprep.subr.mxu0 0.0
        %4621 = vmatpush1.msra.mxu0 0.0
        %4622 = vmatprep.subr.mxu0 0.0
        %4623 = vmatpush1.msra.mxu0 0.0
        %4624 = vmatprep.subr.mxu0 0.0
        %4625 = vmatpush1.msra.mxu0 0.0
        %4626 = vmatprep.subr.mxu0 0.0
        %4627 = vmatpush1.msra.mxu0 0.0
        %4628 = vmatprep.subr.mxu0 0.0
        %4629 = vmatpush1.msra.mxu0 0.0
        %4630 = vmatprep.subr.mxu0 0.0
        %4631 = vmatpush1.msra.mxu0 0.0
        %4632 = vmatprep.subr.mxu0 0.0
        %4633 = vmatpush1.msra.mxu0 0.0
        %4634 = vmatprep.subr.mxu0 0.0
        %4635 = vmatpush1.msra.mxu0 0.0
        %4636 = vmatprep.subr.mxu0 0.0
        %4637 = vmatpush1.msra.mxu0 0.0
        %4638 = vmatprep.subr.mxu0 0.0
        %4639 = vmatpush1.msra.mxu0 0.0
        %4640 = vmatprep.subr.mxu0 0.0
        %4641 = vmatpush1.msra.mxu0 %v4605
        %4642 = vmatprep.subr.mxu0 0.0
        %4643 = vmatpush2.msra.mxu0 0.0
        %4644 = vmatprep.subr.mxu0 0.0
        %4645 = vmatpush2.msra.mxu0 0.0
        %4646 = vmatprep.subr.mxu0 0.0
        %4647 = vmatpush2.msra.mxu0 0.0
        %4648 = vmatprep.subr.mxu0 0.0
        %4649 = vmatpush2.msra.mxu0 0.0
        %4650 = vmatprep.subr.mxu0 0.0
        %4651 = vmatpush2.msra.mxu0 0.0
        %4652 = vmatprep.subr.mxu0 0.0
        %4653 = vmatpush2.msra.mxu0 0.0
        %4654 = vmatprep.subr.mxu0 0.0
        %4655 = vmatpush2.msra.mxu0 0.0
        %4656 = vmatprep.subr.mxu0 0.0
        %4657 = vmatpush2.msra.mxu0 0.0
        %4658 = vmatprep.subr.mxu0 0.0
        %4659 = vmatpush2.msra.mxu0 0.0
        %4660 = vmatprep.subr.mxu0 0.0
        %4661 = vmatpush2.msra.mxu0 0.0
        %4662 = vmatprep.subr.mxu0 0.0
        %4663 = vmatpush2.msra.mxu0 0.0
        %4664 = vmatprep.subr.mxu0 0.0
        %4665 = vmatpush2.msra.mxu0 0.0
        %4666 = vmatprep.subr.mxu0 0.0
        %4667 = vmatpush2.msra.mxu0 0.0
        %4668 = vmatprep.subr.mxu0 0.0
        %4669 = vmatpush2.msra.mxu0 0.0
        %4670 = vmatprep.subr.mxu0 0.0
        %4671 = vmatpush2.msra.mxu0 0.0
        %4672 = vmatprep.subr.mxu0 0.0
        %4673 = vmatpush2.msra.mxu0 0.0
        %4674 = vmatprep.mubr.f32.mxu0 0.0
        %4675 = vmatmul.mubr.f32.gmra.mxu0 %v4608
        %v4676 = vpop.f32.mrf.mxu0
        %v4677 = vadd.f32 0.0, %v4676
        %v4678 = vpop.f32.mrf.mxu0
        %4679 = vdwg.mxu0
        %v4681 = vsel %vm4032, %v4677, 0
        %v4684 = vsel %vm4366, %v4025, 0
        %4686 = vmatprep.subr.mxu0 0.0
        %4687 = vmatpush1.msra.mxu0 0.0
        %4688 = vmatprep.subr.mxu0 0.0
        %4689 = vmatpush1.msra.mxu0 0.0
        %4690 = vmatprep.subr.mxu0 0.0
        %4691 = vmatpush1.msra.mxu0 0.0
        %4692 = vmatprep.subr.mxu0 0.0
        %4693 = vmatpush1.msra.mxu0 0.0
        %4694 = vmatprep.subr.mxu0 0.0
        %4695 = vmatpush1.msra.mxu0 0.0
        %4696 = vmatprep.subr.mxu0 0.0
        %4697 = vmatpush1.msra.mxu0 0.0
        %4698 = vmatprep.subr.mxu0 0.0
        %4699 = vmatpush1.msra.mxu0 0.0
        %4700 = vmatprep.subr.mxu0 0.0
        %4701 = vmatpush1.msra.mxu0 0.0
        %4702 = vmatprep.subr.mxu0 0.0
        %4703 = vmatpush1.msra.mxu0 0.0
        %4704 = vmatprep.subr.mxu0 0.0
        %4705 = vmatpush1.msra.mxu0 0.0
        %4706 = vmatprep.subr.mxu0 0.0
        %4707 = vmatpush1.msra.mxu0 0.0
        %4708 = vmatprep.subr.mxu0 0.0
        %4709 = vmatpush1.msra.mxu0 0.0
        %4710 = vmatprep.subr.mxu0 0.0
        %4711 = vmatpush1.msra.mxu0 0.0
        %4712 = vmatprep.subr.mxu0 0.0
        %4713 = vmatpush1.msra.mxu0 0.0
        %4714 = vmatprep.subr.mxu0 0.0
        %4715 = vmatpush1.msra.mxu0 0.0
        %4716 = vmatprep.subr.mxu0 0.0
        %4717 = vmatpush1.msra.mxu0 %v4684
        %4718 = vmatprep.subr.mxu0 0.0
        %4719 = vmatpush2.msra.mxu0 0.0
        %4720 = vmatprep.subr.mxu0 0.0
        %4721 = vmatpush2.msra.mxu0 0.0
        %4722 = vmatprep.subr.mxu0 0.0
        %4723 = vmatpush2.msra.mxu0 0.0
        %4724 = vmatprep.subr.mxu0 0.0
        %4725 = vmatpush2.msra.mxu0 0.0
        %4726 = vmatprep.subr.mxu0 0.0
        %4727 = vmatpush2.msra.mxu0 0.0
        %4728 = vmatprep.subr.mxu0 0.0
        %4729 = vmatpush2.msra.mxu0 0.0
        %4730 = vmatprep.subr.mxu0 0.0
        %4731 = vmatpush2.msra.mxu0 0.0
        %4732 = vmatprep.subr.mxu0 0.0
        %4733 = vmatpush2.msra.mxu0 0.0
        %4734 = vmatprep.subr.mxu0 0.0
        %4735 = vmatpush2.msra.mxu0 0.0
        %4736 = vmatprep.subr.mxu0 0.0
        %4737 = vmatpush2.msra.mxu0 0.0
        %4738 = vmatprep.subr.mxu0 0.0
        %4739 = vmatpush2.msra.mxu0 0.0
        %4740 = vmatprep.subr.mxu0 0.0
        %4741 = vmatpush2.msra.mxu0 0.0
        %4742 = vmatprep.subr.mxu0 0.0
        %4743 = vmatpush2.msra.mxu0 0.0
        %4744 = vmatprep.subr.mxu0 0.0
        %4745 = vmatpush2.msra.mxu0 0.0
        %4746 = vmatprep.subr.mxu0 0.0
        %4747 = vmatpush2.msra.mxu0 0.0
        %4748 = vmatprep.subr.mxu0 0.0
        %4749 = vmatpush2.msra.mxu0 0.0
        %4750 = vmatprep.mubr.f32.mxu0 0.0
        %4751 = vmatmul.mubr.f32.gmra.mxu0 %v4681
        %v4752 = vpop.f32.mrf.mxu0
        %v4753 = vadd.f32 0.0, %v4752
        %v4754 = vpop.f32.mrf.mxu0
        %4755 = vdwg.mxu0
        %v4756 = vadd.f32 %v4511, %v4753
        %4757 = vrot.lane.b32.xlu0 %v1086, 84
        %v4758 = vpop.permute.xlu0 %4757
        %4759 = vrot.lane.b32.xlu0 %v1086, 52
        %v4760 = vpop.permute.xlu0 %4759
        %v4761 = vsel %vm4032, %v4758, 0
        %v4763 = vsel %vm4032, %v4760, 0
        %4765 = vmatprep.subr.mxu0 0.0
        %4766 = vmatpush1.xpose.msra.mxu0 0.0
        %4767 = vmatprep.subr.mxu0 0.0
        %4768 = vmatpush1.xpose.msra.mxu0 0.0
        %4769 = vmatprep.subr.mxu0 0.0
        %4770 = vmatpush1.xpose.msra.mxu0 0.0
        %4771 = vmatprep.subr.mxu0 0.0
        %4772 = vmatpush1.xpose.msra.mxu0 0.0
        %4773 = vmatprep.subr.mxu0 0.0
        %4774 = vmatpush1.xpose.msra.mxu0 0.0
        %4775 = vmatprep.subr.mxu0 0.0
        %4776 = vmatpush1.xpose.msra.mxu0 0.0
        %4777 = vmatprep.subr.mxu0 0.0
        %4778 = vmatpush1.xpose.msra.mxu0 0.0
        %4779 = vmatprep.subr.mxu0 0.0
        %4780 = vmatpush1.xpose.msra.mxu0 0.0
        %4781 = vmatprep.subr.mxu0 0.0
        %4782 = vmatpush1.xpose.msra.mxu0 0.0
        %4783 = vmatprep.subr.mxu0 0.0
        %4784 = vmatpush1.xpose.msra.mxu0 0.0
        %4785 = vmatprep.subr.mxu0 0.0
        %4786 = vmatpush1.xpose.msra.mxu0 0.0
        %4787 = vmatprep.subr.mxu0 0.0
        %4788 = vmatpush1.xpose.msra.mxu0 0.0
        %4789 = vmatprep.subr.mxu0 0.0
        %4790 = vmatpush1.xpose.msra.mxu0 0.0
        %4791 = vmatprep.subr.mxu0 0.0
        %4792 = vmatpush1.xpose.msra.mxu0 0.0
        %4793 = vmatprep.subr.mxu0 0.0
        %4794 = vmatpush1.xpose.msra.mxu0 0.0
        %4795 = vmatprep.subr.mxu0 0.0
        %4796 = vmatpush1.xpose.msra.mxu0 %v4763
        %4797 = vmatprep.subr.mxu0 0.0
        %4798 = vmatpush2.xpose.msra.mxu0 0.0
        %4799 = vmatprep.subr.mxu0 0.0
        %4800 = vmatpush2.xpose.msra.mxu0 0.0
        %4801 = vmatprep.subr.mxu0 0.0
        %4802 = vmatpush2.xpose.msra.mxu0 0.0
        %4803 = vmatprep.subr.mxu0 0.0
        %4804 = vmatpush2.xpose.msra.mxu0 0.0
        %4805 = vmatprep.subr.mxu0 0.0
        %4806 = vmatpush2.xpose.msra.mxu0 0.0
        %4807 = vmatprep.subr.mxu0 0.0
        %4808 = vmatpush2.xpose.msra.mxu0 0.0
        %4809 = vmatprep.subr.mxu0 0.0
        %4810 = vmatpush2.xpose.msra.mxu0 0.0
        %4811 = vmatprep.subr.mxu0 0.0
        %4812 = vmatpush2.xpose.msra.mxu0 0.0
        %4813 = vmatprep.subr.mxu0 0.0
        %4814 = vmatpush2.xpose.msra.mxu0 0.0
        %4815 = vmatprep.subr.mxu0 0.0
        %4816 = vmatpush2.xpose.msra.mxu0 0.0
        %4817 = vmatprep.subr.mxu0 0.0
        %4818 = vmatpush2.xpose.msra.mxu0 0.0
        %4819 = vmatprep.subr.mxu0 0.0
        %4820 = vmatpush2.xpose.msra.mxu0 0.0
        %4821 = vmatprep.subr.mxu0 0.0
        %4822 = vmatpush2.xpose.msra.mxu0 0.0
        %4823 = vmatprep.subr.mxu0 0.0
        %4824 = vmatpush2.xpose.msra.mxu0 0.0
        %4825 = vmatprep.subr.mxu0 0.0
        %4826 = vmatpush2.xpose.msra.mxu0 0.0
        %4827 = vmatprep.subr.mxu0 0.0
        %4828 = vmatpush2.xpose.msra.mxu0 0.0
        %4829 = vmatprep.mubr.f32.mxu0 0.0
        %4830 = vmatmul.mubr.f32.gmra.mxu0 %v4761
        %v4831 = vpop.f32.mrf.mxu0
        %v4832 = vadd.f32 0.0, %v4831
        %v4833 = vpop.f32.mrf.mxu0
        %4834 = vdwg.mxu0
        %v4835 = vmul.f32 %v4832, 0.03608439
        %v4836 = vsel %vm3155, %v4835, -inf
        %4837 = vmax.xlane.f32.xlu0 %v4836
        %v4838 = vpop.xlane.xlu0 %4837
        %v4839 = vsub.f32 %v4835, %v4838
        %v4840 = vmul.f32 %v4839, 1.442695
        %v4841 = vpow.pop %v4840
        %v4842 = vsel %vm3155, %v4841, 0.0
        %4843 = vadd.xlane.f32.xlu0 %v4842
        %v4844 = vpop.xlane.xlu0 %4843
        %v4845 = vrcp.pop %v4844
        %v4846 = vmul.f32 %v4841, %v4845
        %4847 = vrot.lane.b32.xlu0 %v1086, 20
        %v4848 = vpop.permute.xlu0 %4847
        %v4851 = vsel %vm3155, %v4846, 0
        %4853 = vmatprep.subr.mxu0 0.0
        %4854 = vmatpush1.msra.mxu0 0.0
        %4855 = vmatprep.subr.mxu0 0.0
        %4856 = vmatpush1.msra.mxu0 0.0
        %4857 = vmatprep.subr.mxu0 0.0
        %4858 = vmatpush1.msra.mxu0 0.0
        %4859 = vmatprep.subr.mxu0 0.0
        %4860 = vmatpush1.msra.mxu0 0.0
        %4861 = vmatprep.subr.mxu0 0.0
        %4862 = vmatpush1.msra.mxu0 0.0
        %4863 = vmatprep.subr.mxu0 0.0
        %4864 = vmatpush1.msra.mxu0 0.0
        %4865 = vmatprep.subr.mxu0 0.0
        %4866 = vmatpush1.msra.mxu0 0.0
        %4867 = vmatprep.subr.mxu0 0.0
        %4868 = vmatpush1.msra.mxu0 0.0
        %4869 = vmatprep.subr.mxu0 0.0
        %4870 = vmatpush1.msra.mxu0 0.0
        %4871 = vmatprep.subr.mxu0 0.0
        %4872 = vmatpush1.msra.mxu0 0.0
        %4873 = vmatprep.subr.mxu0 0.0
        %4874 = vmatpush1.msra.mxu0 0.0
        %4875 = vmatprep.subr.mxu0 0.0
        %4876 = vmatpush1.msra.mxu0 0.0
        %4877 = vmatprep.subr.mxu0 0.0
        %4878 = vmatpush1.msra.mxu0 0.0
        %4879 = vmatprep.subr.mxu0 0.0
        %4880 = vmatpush1.msra.mxu0 0.0
        %4881 = vmatprep.subr.mxu0 0.0
        %4882 = vmatpush1.msra.mxu0 0.0
        %4883 = vmatprep.subr.mxu0 0.0
        %4884 = vmatpush1.msra.mxu0 %v4848
        %4885 = vmatprep.subr.mxu0 0.0
        %4886 = vmatpush2.msra.mxu0 0.0
        %4887 = vmatprep.subr.mxu0 0.0
        %4888 = vmatpush2.msra.mxu0 0.0
        %4889 = vmatprep.subr.mxu0 0.0
        %4890 = vmatpush2.msra.mxu0 0.0
        %4891 = vmatprep.subr.mxu0 0.0
        %4892 = vmatpush2.msra.mxu0 0.0
        %4893 = vmatprep.subr.mxu0 0.0
        %4894 = vmatpush2.msra.mxu0 0.0
        %4895 = vmatprep.subr.mxu0 0.0
        %4896 = vmatpush2.msra.mxu0 0.0
        %4897 = vmatprep.subr.mxu0 0.0
        %4898 = vmatpush2.msra.mxu0 0.0
        %4899 = vmatprep.subr.mxu0 0.0
        %4900 = vmatpush2.msra.mxu0 0.0
        %4901 = vmatprep.subr.mxu0 0.0
        %4902 = vmatpush2.msra.mxu0 0.0
        %4903 = vmatprep.subr.mxu0 0.0
        %4904 = vmatpush2.msra.mxu0 0.0
        %4905 = vmatprep.subr.mxu0 0.0
        %4906 = vmatpush2.msra.mxu0 0.0
        %4907 = vmatprep.subr.mxu0 0.0
        %4908 = vmatpush2.msra.mxu0 0.0
        %4909 = vmatprep.subr.mxu0 0.0
        %4910 = vmatpush2.msra.mxu0 0.0
        %4911 = vmatprep.subr.mxu0 0.0
        %4912 = vmatpush2.msra.mxu0 0.0
        %4913 = vmatprep.subr.mxu0 0.0
        %4914 = vmatpush2.msra.mxu0 0.0
        %4915 = vmatprep.subr.mxu0 0.0
        %4916 = vmatpush2.msra.mxu0 0.0
        %4917 = vmatprep.mubr.f32.mxu0 0.0
        %4918 = vmatmul.mubr.f32.gmra.mxu0 %v4851
        %v4919 = vpop.f32.mrf.mxu0
        %v4920 = vadd.f32 0.0, %v4919
        %v4921 = vpop.f32.mrf.mxu0
        %4922 = vdwg.mxu0
        %v4923 = vrot.slane %v4025, 4
        %v4925 = vsel %vm4032, %v4920, 0
        %v4927 = vsel %vm4366, %v4923, 0
        %4929 = vmatprep.subr.mxu0 0.0
        %4930 = vmatpush1.msra.mxu0 0.0
        %4931 = vmatprep.subr.mxu0 0.0
        %4932 = vmatpush1.msra.mxu0 0.0
        %4933 = vmatprep.subr.mxu0 0.0
        %4934 = vmatpush1.msra.mxu0 0.0
        %4935 = vmatprep.subr.mxu0 0.0
        %4936 = vmatpush1.msra.mxu0 0.0
        %4937 = vmatprep.subr.mxu0 0.0
        %4938 = vmatpush1.msra.mxu0 0.0
        %4939 = vmatprep.subr.mxu0 0.0
        %4940 = vmatpush1.msra.mxu0 0.0
        %4941 = vmatprep.subr.mxu0 0.0
        %4942 = vmatpush1.msra.mxu0 0.0
        %4943 = vmatprep.subr.mxu0 0.0
        %4944 = vmatpush1.msra.mxu0 0.0
        %4945 = vmatprep.subr.mxu0 0.0
        %4946 = vmatpush1.msra.mxu0 0.0
        %4947 = vmatprep.subr.mxu0 0.0
        %4948 = vmatpush1.msra.mxu0 0.0
        %4949 = vmatprep.subr.mxu0 0.0
        %4950 = vmatpush1.msra.mxu0 0.0
        %4951 = vmatprep.subr.mxu0 0.0
        %4952 = vmatpush1.msra.mxu0 0.0
        %4953 = vmatprep.subr.mxu0 0.0
        %4954 = vmatpush1.msra.mxu0 0.0
        %4955 = vmatprep.subr.mxu0 0.0
        %4956 = vmatpush1.msra.mxu0 0.0
        %4957 = vmatprep.subr.mxu0 0.0
        %4958 = vmatpush1.msra.mxu0 0.0
        %4959 = vmatprep.subr.mxu0 0.0
        %4960 = vmatpush1.msra.mxu0 %v4927
        %4961 = vmatprep.subr.mxu0 0.0
        %4962 = vmatpush2.msra.mxu0 0.0
        %4963 = vmatprep.subr.mxu0 0.0
        %4964 = vmatpush2.msra.mxu0 0.0
        %4965 = vmatprep.subr.mxu0 0.0
        %4966 = vmatpush2.msra.mxu0 0.0
        %4967 = vmatprep.subr.mxu0 0.0
        %4968 = vmatpush2.msra.mxu0 0.0
        %4969 = vmatprep.subr.mxu0 0.0
        %4970 = vmatpush2.msra.mxu0 0.0
        %4971 = vmatprep.subr.mxu0 0.0
        %4972 = vmatpush2.msra.mxu0 0.0
        %4973 = vmatprep.subr.mxu0 0.0
        %4974 = vmatpush2.msra.mxu0 0.0
        %4975 = vmatprep.subr.mxu0 0.0
        %4976 = vmatpush2.msra.mxu0 0.0
        %4977 = vmatprep.subr.mxu0 0.0
        %4978 = vmatpush2.msra.mxu0 0.0
        %4979 = vmatprep.subr.mxu0 0.0
        %4980 = vmatpush2.msra.mxu0 0.0
        %4981 = vmatprep.subr.mxu0 0.0
        %4982 = vmatpush2.msra.mxu0 0.0
        %4983 = vmatprep.subr.mxu0 0.0
        %4984 = vmatpush2.msra.mxu0 0.0
        %4985 = vmatprep.subr.mxu0 0.0
        %4986 = vmatpush2.msra.mxu0 0.0
        %4987 = vmatprep.subr.mxu0 0.0
        %4988 = vmatpush2.msra.mxu0 0.0
        %4989 = vmatprep.subr.mxu0 0.0
        %4990 = vmatpush2.msra.mxu0 0.0
        %4991 = vmatprep.subr.mxu0 0.0
        %4992 = vmatpush2.msra.mxu0 0.0
        %4993 = vmatprep.mubr.f32.mxu0 0.0
        %4994 = vmatmul.mubr.f32.gmra.mxu0 %v4925
        %v4995 = vpop.f32.mrf.mxu0
        %v4996 = vadd.f32 0.0, %v4995
        %v4997 = vpop.f32.mrf.mxu0
        %4998 = vdwg.mxu0
        %v4999 = vadd.f32 %v4756, %v4996
        %5000 = vrot.lane.b32.xlu0 %v1086, 80
        %v5001 = vpop.permute.xlu0 %5000
        %5002 = vrot.lane.b32.xlu0 %v1086, 48
        %v5003 = vpop.permute.xlu0 %5002
        %v5004 = vsel %vm4032, %v5001, 0
        %v5006 = vsel %vm4032, %v5003, 0
        %5008 = vmatprep.subr.mxu0 0.0
        %5009 = vmatpush1.xpose.msra.mxu0 0.0
        %5010 = vmatprep.subr.mxu0 0.0
        %5011 = vmatpush1.xpose.msra.mxu0 0.0
        %5012 = vmatprep.subr.mxu0 0.0
        %5013 = vmatpush1.xpose.msra.mxu0 0.0
        %5014 = vmatprep.subr.mxu0 0.0
        %5015 = vmatpush1.xpose.msra.mxu0 0.0
        %5016 = vmatprep.subr.mxu0 0.0
        %5017 = vmatpush1.xpose.msra.mxu0 0.0
        %5018 = vmatprep.subr.mxu0 0.0
        %5019 = vmatpush1.xpose.msra.mxu0 0.0
        %5020 = vmatprep.subr.mxu0 0.0
        %5021 = vmatpush1.xpose.msra.mxu0 0.0
        %5022 = vmatprep.subr.mxu0 0.0
        %5023 = vmatpush1.xpose.msra.mxu0 0.0
        %5024 = vmatprep.subr.mxu0 0.0
        %5025 = vmatpush1.xpose.msra.mxu0 0.0
        %5026 = vmatprep.subr.mxu0 0.0
        %5027 = vmatpush1.xpose.msra.mxu0 0.0
        %5028 = vmatprep.subr.mxu0 0.0
        %5029 = vmatpush1.xpose.msra.mxu0 0.0
        %5030 = vmatprep.subr.mxu0 0.0
        %5031 = vmatpush1.xpose.msra.mxu0 0.0
        %5032 = vmatprep.subr.mxu0 0.0
        %5033 = vmatpush1.xpose.msra.mxu0 0.0
        %5034 = vmatprep.subr.mxu0 0.0
        %5035 = vmatpush1.xpose.msra.mxu0 0.0
        %5036 = vmatprep.subr.mxu0 0.0
        %5037 = vmatpush1.xpose.msra.mxu0 0.0
        %5038 = vmatprep.subr.mxu0 0.0
        %5039 = vmatpush1.xpose.msra.mxu0 %v5006
        %5040 = vmatprep.subr.mxu0 0.0
        %5041 = vmatpush2.xpose.msra.mxu0 0.0
        %5042 = vmatprep.subr.mxu0 0.0
        %5043 = vmatpush2.xpose.msra.mxu0 0.0
        %5044 = vmatprep.subr.mxu0 0.0
        %5045 = vmatpush2.xpose.msra.mxu0 0.0
        %5046 = vmatprep.subr.mxu0 0.0
        %5047 = vmatpush2.xpose.msra.mxu0 0.0
        %5048 = vmatprep.subr.mxu0 0.0
        %5049 = vmatpush2.xpose.msra.mxu0 0.0
        %5050 = vmatprep.subr.mxu0 0.0
        %5051 = vmatpush2.xpose.msra.mxu0 0.0
        %5052 = vmatprep.subr.mxu0 0.0
        %5053 = vmatpush2.xpose.msra.mxu0 0.0
        %5054 = vmatprep.subr.mxu0 0.0
        %5055 = vmatpush2.xpose.msra.mxu0 0.0
        %5056 = vmatprep.subr.mxu0 0.0
        %5057 = vmatpush2.xpose.msra.mxu0 0.0
        %5058 = vmatprep.subr.mxu0 0.0
        %5059 = vmatpush2.xpose.msra.mxu0 0.0
        %5060 = vmatprep.subr.mxu0 0.0
        %5061 = vmatpush2.xpose.msra.mxu0 0.0
        %5062 = vmatprep.subr.mxu0 0.0
        %5063 = vmatpush2.xpose.msra.mxu0 0.0
        %5064 = vmatprep.subr.mxu0 0.0
        %5065 = vmatpush2.xpose.msra.mxu0 0.0
        %5066 = vmatprep.subr.mxu0 0.0
        %5067 = vmatpush2.xpose.msra.mxu0 0.0
        %5068 = vmatprep.subr.mxu0 0.0
        %5069 = vmatpush2.xpose.msra.mxu0 0.0
        %5070 = vmatprep.subr.mxu0 0.0
        %5071 = vmatpush2.xpose.msra.mxu0 0.0
        %5072 = vmatprep.mubr.f32.mxu0 0.0
        %5073 = vmatmul.mubr.f32.gmra.mxu0 %v5004
        %v5074 = vpop.f32.mrf.mxu0
        %v5075 = vadd.f32 0.0, %v5074
        %v5076 = vpop.f32.mrf.mxu0
        %5077 = vdwg.mxu0
        %v5078 = vmul.f32 %v5075, 0.03608439
        %v5079 = vsel %vm3155, %v5078, -inf
        %5080 = vmax.xlane.f32.xlu0 %v5079
        %v5081 = vpop.xlane.xlu0 %5080
        %v5082 = vsub.f32 %v5078, %v5081
        %v5083 = vmul.f32 %v5082, 1.442695
        %v5084 = vpow.pop %v5083
        %v5085 = vsel %vm3155, %v5084, 0.0
        %5086 = vadd.xlane.f32.xlu0 %v5085
        %v5087 = vpop.xlane.xlu0 %5086
        %v5088 = vrcp.pop %v5087
        %v5089 = vmul.f32 %v5084, %v5088
        %5090 = vrot.lane.b32.xlu0 %v1086, 16
        %v5091 = vpop.permute.xlu0 %5090
        %v5094 = vsel %vm3155, %v5089, 0
        %5096 = vmatprep.subr.mxu0 0.0
        %5097 = vmatpush1.msra.mxu0 0.0
        %5098 = vmatprep.subr.mxu0 0.0
        %5099 = vmatpush1.msra.mxu0 0.0
        %5100 = vmatprep.subr.mxu0 0.0
        %5101 = vmatpush1.msra.mxu0 0.0
        %5102 = vmatprep.subr.mxu0 0.0
        %5103 = vmatpush1.msra.mxu0 0.0
        %5104 = vmatprep.subr.mxu0 0.0
        %5105 = vmatpush1.msra.mxu0 0.0
        %5106 = vmatprep.subr.mxu0 0.0
        %5107 = vmatpush1.msra.mxu0 0.0
        %5108 = vmatprep.subr.mxu0 0.0
        %5109 = vmatpush1.msra.mxu0 0.0
        %5110 = vmatprep.subr.mxu0 0.0
        %5111 = vmatpush1.msra.mxu0 0.0
        %5112 = vmatprep.subr.mxu0 0.0
        %5113 = vmatpush1.msra.mxu0 0.0
        %5114 = vmatprep.subr.mxu0 0.0
        %5115 = vmatpush1.msra.mxu0 0.0
        %5116 = vmatprep.subr.mxu0 0.0
        %5117 = vmatpush1.msra.mxu0 0.0
        %5118 = vmatprep.subr.mxu0 0.0
        %5119 = vmatpush1.msra.mxu0 0.0
        %5120 = vmatprep.subr.mxu0 0.0
        %5121 = vmatpush1.msra.mxu0 0.0
        %5122 = vmatprep.subr.mxu0 0.0
        %5123 = vmatpush1.msra.mxu0 0.0
        %5124 = vmatprep.subr.mxu0 0.0
        %5125 = vmatpush1.msra.mxu0 0.0
        %5126 = vmatprep.subr.mxu0 0.0
        %5127 = vmatpush1.msra.mxu0 %v5091
        %5128 = vmatprep.subr.mxu0 0.0
        %5129 = vmatpush2.msra.mxu0 0.0
        %5130 = vmatprep.subr.mxu0 0.0
        %5131 = vmatpush2.msra.mxu0 0.0
        %5132 = vmatprep.subr.mxu0 0.0
        %5133 = vmatpush2.msra.mxu0 0.0
        %5134 = vmatprep.subr.mxu0 0.0
        %5135 = vmatpush2.msra.mxu0 0.0
        %5136 = vmatprep.subr.mxu0 0.0
        %5137 = vmatpush2.msra.mxu0 0.0
        %5138 = vmatprep.subr.mxu0 0.0
        %5139 = vmatpush2.msra.mxu0 0.0
        %5140 = vmatprep.subr.mxu0 0.0
        %5141 = vmatpush2.msra.mxu0 0.0
        %5142 = vmatprep.subr.mxu0 0.0
        %5143 = vmatpush2.msra.mxu0 0.0
        %5144 = vmatprep.subr.mxu0 0.0
        %5145 = vmatpush2.msra.mxu0 0.0
        %5146 = vmatprep.subr.mxu0 0.0
        %5147 = vmatpush2.msra.mxu0 0.0
        %5148 = vmatprep.subr.mxu0 0.0
        %5149 = vmatpush2.msra.mxu0 0.0
        %5150 = vmatprep.subr.mxu0 0.0
        %5151 = vmatpush2.msra.mxu0 0.0
        %5152 = vmatprep.subr.mxu0 0.0
        %5153 = vmatpush2.msra.mxu0 0.0
        %5154 = vmatprep.subr.mxu0 0.0
        %5155 = vmatpush2.msra.mxu0 0.0
        %5156 = vmatprep.subr.mxu0 0.0
        %5157 = vmatpush2.msra.mxu0 0.0
        %5158 = vmatprep.subr.mxu0 0.0
        %5159 = vmatpush2.msra.mxu0 0.0
        %5160 = vmatprep.mubr.f32.mxu0 0.0
        %5161 = vmatmul.mubr.f32.gmra.mxu0 %v5094
        %v5162 = vpop.f32.mrf.mxu0
        %v5163 = vadd.f32 0.0, %v5162
        %v5164 = vpop.f32.mrf.mxu0
        %5165 = vdwg.mxu0
        %v5167 = vsel %vm4032, %v5163, 0
        %v5170 = vsel %vm4366, %v4026, 0
        %5172 = vmatprep.subr.mxu0 0.0
        %5173 = vmatpush1.msra.mxu0 0.0
        %5174 = vmatprep.subr.mxu0 0.0
        %5175 = vmatpush1.msra.mxu0 0.0
        %5176 = vmatprep.subr.mxu0 0.0
        %5177 = vmatpush1.msra.mxu0 0.0
        %5178 = vmatprep.subr.mxu0 0.0
        %5179 = vmatpush1.msra.mxu0 0.0
        %5180 = vmatprep.subr.mxu0 0.0
        %5181 = vmatpush1.msra.mxu0 0.0
        %5182 = vmatprep.subr.mxu0 0.0
        %5183 = vmatpush1.msra.mxu0 0.0
        %5184 = vmatprep.subr.mxu0 0.0
        %5185 = vmatpush1.msra.mxu0 0.0
        %5186 = vmatprep.subr.mxu0 0.0
        %5187 = vmatpush1.msra.mxu0 0.0
        %5188 = vmatprep.subr.mxu0 0.0
        %5189 = vmatpush1.msra.mxu0 0.0
        %5190 = vmatprep.subr.mxu0 0.0
        %5191 = vmatpush1.msra.mxu0 0.0
        %5192 = vmatprep.subr.mxu0 0.0
        %5193 = vmatpush1.msra.mxu0 0.0
        %5194 = vmatprep.subr.mxu0 0.0
        %5195 = vmatpush1.msra.mxu0 0.0
        %5196 = vmatprep.subr.mxu0 0.0
        %5197 = vmatpush1.msra.mxu0 0.0
        %5198 = vmatprep.subr.mxu0 0.0
        %5199 = vmatpush1.msra.mxu0 0.0
        %5200 = vmatprep.subr.mxu0 0.0
        %5201 = vmatpush1.msra.mxu0 0.0
        %5202 = vmatprep.subr.mxu0 0.0
        %5203 = vmatpush1.msra.mxu0 %v5170
        %5204 = vmatprep.subr.mxu0 0.0
        %5205 = vmatpush2.msra.mxu0 0.0
        %5206 = vmatprep.subr.mxu0 0.0
        %5207 = vmatpush2.msra.mxu0 0.0
        %5208 = vmatprep.subr.mxu0 0.0
        %5209 = vmatpush2.msra.mxu0 0.0
        %5210 = vmatprep.subr.mxu0 0.0
        %5211 = vmatpush2.msra.mxu0 0.0
        %5212 = vmatprep.subr.mxu0 0.0
        %5213 = vmatpush2.msra.mxu0 0.0
        %5214 = vmatprep.subr.mxu0 0.0
        %5215 = vmatpush2.msra.mxu0 0.0
        %5216 = vmatprep.subr.mxu0 0.0
        %5217 = vmatpush2.msra.mxu0 0.0
        %5218 = vmatprep.subr.mxu0 0.0
        %5219 = vmatpush2.msra.mxu0 0.0
        %5220 = vmatprep.subr.mxu0 0.0
        %5221 = vmatpush2.msra.mxu0 0.0
        %5222 = vmatprep.subr.mxu0 0.0
        %5223 = vmatpush2.msra.mxu0 0.0
        %5224 = vmatprep.subr.mxu0 0.0
        %5225 = vmatpush2.msra.mxu0 0.0
        %5226 = vmatprep.subr.mxu0 0.0
        %5227 = vmatpush2.msra.mxu0 0.0
        %5228 = vmatprep.subr.mxu0 0.0
        %5229 = vmatpush2.msra.mxu0 0.0
        %5230 = vmatprep.subr.mxu0 0.0
        %5231 = vmatpush2.msra.mxu0 0.0
        %5232 = vmatprep.subr.mxu0 0.0
        %5233 = vmatpush2.msra.mxu0 0.0
        %5234 = vmatprep.subr.mxu0 0.0
        %5235 = vmatpush2.msra.mxu0 0.0
        %5236 = vmatprep.mubr.f32.mxu0 0.0
        %5237 = vmatmul.mubr.f32.gmra.mxu0 %v5167
        %v5238 = vpop.f32.mrf.mxu0
        %v5239 = vadd.f32 0.0, %v5238
        %v5240 = vpop.f32.mrf.mxu0
        %5241 = vdwg.mxu0
        %v5242 = vadd.f32 %v4999, %v5239
        %5243 = vrot.lane.b32.xlu0 %v1086, 76
        %v5244 = vpop.permute.xlu0 %5243
        %5245 = vrot.lane.b32.xlu0 %v1086, 44
        %v5246 = vpop.permute.xlu0 %5245
        %v5247 = vsel %vm4032, %v5244, 0
        %v5249 = vsel %vm4032, %v5246, 0
        %5251 = vmatprep.subr.mxu0 0.0
        %5252 = vmatpush1.xpose.msra.mxu0 0.0
        %5253 = vmatprep.subr.mxu0 0.0
        %5254 = vmatpush1.xpose.msra.mxu0 0.0
        %5255 = vmatprep.subr.mxu0 0.0
        %5256 = vmatpush1.xpose.msra.mxu0 0.0
        %5257 = vmatprep.subr.mxu0 0.0
        %5258 = vmatpush1.xpose.msra.mxu0 0.0
        %5259 = vmatprep.subr.mxu0 0.0
        %5260 = vmatpush1.xpose.msra.mxu0 0.0
        %5261 = vmatprep.subr.mxu0 0.0
        %5262 = vmatpush1.xpose.msra.mxu0 0.0
        %5263 = vmatprep.subr.mxu0 0.0
        %5264 = vmatpush1.xpose.msra.mxu0 0.0
        %5265 = vmatprep.subr.mxu0 0.0
        %5266 = vmatpush1.xpose.msra.mxu0 0.0
        %5267 = vmatprep.subr.mxu0 0.0
        %5268 = vmatpush1.xpose.msra.mxu0 0.0
        %5269 = vmatprep.subr.mxu0 0.0
        %5270 = vmatpush1.xpose.msra.mxu0 0.0
        %5271 = vmatprep.subr.mxu0 0.0
        %5272 = vmatpush1.xpose.msra.mxu0 0.0
        %5273 = vmatprep.subr.mxu0 0.0
        %5274 = vmatpush1.xpose.msra.mxu0 0.0
        %5275 = vmatprep.subr.mxu0 0.0
        %5276 = vmatpush1.xpose.msra.mxu0 0.0
        %5277 = vmatprep.subr.mxu0 0.0
        %5278 = vmatpush1.xpose.msra.mxu0 0.0
        %5279 = vmatprep.subr.mxu0 0.0
        %5280 = vmatpush1.xpose.msra.mxu0 0.0
        %5281 = vmatprep.subr.mxu0 0.0
        %5282 = vmatpush1.xpose.msra.mxu0 %v5249
        %5283 = vmatprep.subr.mxu0 0.0
        %5284 = vmatpush2.xpose.msra.mxu0 0.0
        %5285 = vmatprep.subr.mxu0 0.0
        %5286 = vmatpush2.xpose.msra.mxu0 0.0
        %5287 = vmatprep.subr.mxu0 0.0
        %5288 = vmatpush2.xpose.msra.mxu0 0.0
        %5289 = vmatprep.subr.mxu0 0.0
        %5290 = vmatpush2.xpose.msra.mxu0 0.0
        %5291 = vmatprep.subr.mxu0 0.0
        %5292 = vmatpush2.xpose.msra.mxu0 0.0
        %5293 = vmatprep.subr.mxu0 0.0
        %5294 = vmatpush2.xpose.msra.mxu0 0.0
        %5295 = vmatprep.subr.mxu0 0.0
        %5296 = vmatpush2.xpose.msra.mxu0 0.0
        %5297 = vmatprep.subr.mxu0 0.0
        %5298 = vmatpush2.xpose.msra.mxu0 0.0
        %5299 = vmatprep.subr.mxu0 0.0
        %5300 = vmatpush2.xpose.msra.mxu0 0.0
        %5301 = vmatprep.subr.mxu0 0.0
        %5302 = vmatpush2.xpose.msra.mxu0 0.0
        %5303 = vmatprep.subr.mxu0 0.0
        %5304 = vmatpush2.xpose.msra.mxu0 0.0
        %5305 = vmatprep.subr.mxu0 0.0
        %5306 = vmatpush2.xpose.msra.mxu0 0.0
        %5307 = vmatprep.subr.mxu0 0.0
        %5308 = vmatpush2.xpose.msra.mxu0 0.0
        %5309 = vmatprep.subr.mxu0 0.0
        %5310 = vmatpush2.xpose.msra.mxu0 0.0
        %5311 = vmatprep.subr.mxu0 0.0
        %5312 = vmatpush2.xpose.msra.mxu0 0.0
        %5313 = vmatprep.subr.mxu0 0.0
        %5314 = vmatpush2.xpose.msra.mxu0 0.0
        %5315 = vmatprep.mubr.f32.mxu0 0.0
        %5316 = vmatmul.mubr.f32.gmra.mxu0 %v5247
        %v5317 = vpop.f32.mrf.mxu0
        %v5318 = vadd.f32 0.0, %v5317
        %v5319 = vpop.f32.mrf.mxu0
        %5320 = vdwg.mxu0
        %v5321 = vmul.f32 %v5318, 0.03608439
        %v5322 = vsel %vm3155, %v5321, -inf
        %5323 = vmax.xlane.f32.xlu0 %v5322
        %v5324 = vpop.xlane.xlu0 %5323
        %v5325 = vsub.f32 %v5321, %v5324
        %v5326 = vmul.f32 %v5325, 1.442695
        %v5327 = vpow.pop %v5326
        %v5328 = vsel %vm3155, %v5327, 0.0
        %5329 = vadd.xlane.f32.xlu0 %v5328
        %v5330 = vpop.xlane.xlu0 %5329
        %v5331 = vrcp.pop %v5330
        %v5332 = vmul.f32 %v5327, %v5331
        %5333 = vrot.lane.b32.xlu0 %v1086, 12
        %v5334 = vpop.permute.xlu0 %5333
        %v5337 = vsel %vm3155, %v5332, 0
        %5339 = vmatprep.subr.mxu0 0.0
        %5340 = vmatpush1.msra.mxu0 0.0
        %5341 = vmatprep.subr.mxu0 0.0
        %5342 = vmatpush1.msra.mxu0 0.0
        %5343 = vmatprep.subr.mxu0 0.0
        %5344 = vmatpush1.msra.mxu0 0.0
        %5345 = vmatprep.subr.mxu0 0.0
        %5346 = vmatpush1.msra.mxu0 0.0
        %5347 = vmatprep.subr.mxu0 0.0
        %5348 = vmatpush1.msra.mxu0 0.0
        %5349 = vmatprep.subr.mxu0 0.0
        %5350 = vmatpush1.msra.mxu0 0.0
        %5351 = vmatprep.subr.mxu0 0.0
        %5352 = vmatpush1.msra.mxu0 0.0
        %5353 = vmatprep.subr.mxu0 0.0
        %5354 = vmatpush1.msra.mxu0 0.0
        %5355 = vmatprep.subr.mxu0 0.0
        %5356 = vmatpush1.msra.mxu0 0.0
        %5357 = vmatprep.subr.mxu0 0.0
        %5358 = vmatpush1.msra.mxu0 0.0
        %5359 = vmatprep.subr.mxu0 0.0
        %5360 = vmatpush1.msra.mxu0 0.0
        %5361 = vmatprep.subr.mxu0 0.0
        %5362 = vmatpush1.msra.mxu0 0.0
        %5363 = vmatprep.subr.mxu0 0.0
        %5364 = vmatpush1.msra.mxu0 0.0
        %5365 = vmatprep.subr.mxu0 0.0
        %5366 = vmatpush1.msra.mxu0 0.0
        %5367 = vmatprep.subr.mxu0 0.0
        %5368 = vmatpush1.msra.mxu0 0.0
        %5369 = vmatprep.subr.mxu0 0.0
        %5370 = vmatpush1.msra.mxu0 %v5334
        %5371 = vmatprep.subr.mxu0 0.0
        %5372 = vmatpush2.msra.mxu0 0.0
        %5373 = vmatprep.subr.mxu0 0.0
        %5374 = vmatpush2.msra.mxu0 0.0
        %5375 = vmatprep.subr.mxu0 0.0
        %5376 = vmatpush2.msra.mxu0 0.0
        %5377 = vmatprep.subr.mxu0 0.0
        %5378 = vmatpush2.msra.mxu0 0.0
        %5379 = vmatprep.subr.mxu0 0.0
        %5380 = vmatpush2.msra.mxu0 0.0
        %5381 = vmatprep.subr.mxu0 0.0
        %5382 = vmatpush2.msra.mxu0 0.0
        %5383 = vmatprep.subr.mxu0 0.0
        %5384 = vmatpush2.msra.mxu0 0.0
        %5385 = vmatprep.subr.mxu0 0.0
        %5386 = vmatpush2.msra.mxu0 0.0
        %5387 = vmatprep.subr.mxu0 0.0
        %5388 = vmatpush2.msra.mxu0 0.0
        %5389 = vmatprep.subr.mxu0 0.0
        %5390 = vmatpush2.msra.mxu0 0.0
        %5391 = vmatprep.subr.mxu0 0.0
        %5392 = vmatpush2.msra.mxu0 0.0
        %5393 = vmatprep.subr.mxu0 0.0
        %5394 = vmatpush2.msra.mxu0 0.0
        %5395 = vmatprep.subr.mxu0 0.0
        %5396 = vmatpush2.msra.mxu0 0.0
        %5397 = vmatprep.subr.mxu0 0.0
        %5398 = vmatpush2.msra.mxu0 0.0
        %5399 = vmatprep.subr.mxu0 0.0
        %5400 = vmatpush2.msra.mxu0 0.0
        %5401 = vmatprep.subr.mxu0 0.0
        %5402 = vmatpush2.msra.mxu0 0.0
        %5403 = vmatprep.mubr.f32.mxu0 0.0
        %5404 = vmatmul.mubr.f32.gmra.mxu0 %v5337
        %v5405 = vpop.f32.mrf.mxu0
        %v5406 = vadd.f32 0.0, %v5405
        %v5407 = vpop.f32.mrf.mxu0
        %5408 = vdwg.mxu0
        %v5409 = vrot.slane %v4026, 4
        %v5411 = vsel %vm4032, %v5406, 0
        %v5413 = vsel %vm4366, %v5409, 0
        %5415 = vmatprep.subr.mxu0 0.0
        %5416 = vmatpush1.msra.mxu0 0.0
        %5417 = vmatprep.subr.mxu0 0.0
        %5418 = vmatpush1.msra.mxu0 0.0
        %5419 = vmatprep.subr.mxu0 0.0
        %5420 = vmatpush1.msra.mxu0 0.0
        %5421 = vmatprep.subr.mxu0 0.0
        %5422 = vmatpush1.msra.mxu0 0.0
        %5423 = vmatprep.subr.mxu0 0.0
        %5424 = vmatpush1.msra.mxu0 0.0
        %5425 = vmatprep.subr.mxu0 0.0
        %5426 = vmatpush1.msra.mxu0 0.0
        %5427 = vmatprep.subr.mxu0 0.0
        %5428 = vmatpush1.msra.mxu0 0.0
        %5429 = vmatprep.subr.mxu0 0.0
        %5430 = vmatpush1.msra.mxu0 0.0
        %5431 = vmatprep.subr.mxu0 0.0
        %5432 = vmatpush1.msra.mxu0 0.0
        %5433 = vmatprep.subr.mxu0 0.0
        %5434 = vmatpush1.msra.mxu0 0.0
        %5435 = vmatprep.subr.mxu0 0.0
        %5436 = vmatpush1.msra.mxu0 0.0
        %5437 = vmatprep.subr.mxu0 0.0
        %5438 = vmatpush1.msra.mxu0 0.0
        %5439 = vmatprep.subr.mxu0 0.0
        %5440 = vmatpush1.msra.mxu0 0.0
        %5441 = vmatprep.subr.mxu0 0.0
        %5442 = vmatpush1.msra.mxu0 0.0
        %5443 = vmatprep.subr.mxu0 0.0
        %5444 = vmatpush1.msra.mxu0 0.0
        %5445 = vmatprep.subr.mxu0 0.0
        %5446 = vmatpush1.msra.mxu0 %v5413
        %5447 = vmatprep.subr.mxu0 0.0
        %5448 = vmatpush2.msra.mxu0 0.0
        %5449 = vmatprep.subr.mxu0 0.0
        %5450 = vmatpush2.msra.mxu0 0.0
        %5451 = vmatprep.subr.mxu0 0.0
        %5452 = vmatpush2.msra.mxu0 0.0
        %5453 = vmatprep.subr.mxu0 0.0
        %5454 = vmatpush2.msra.mxu0 0.0
        %5455 = vmatprep.subr.mxu0 0.0
        %5456 = vmatpush2.msra.mxu0 0.0
        %5457 = vmatprep.subr.mxu0 0.0
        %5458 = vmatpush2.msra.mxu0 0.0
        %5459 = vmatprep.subr.mxu0 0.0
        %5460 = vmatpush2.msra.mxu0 0.0
        %5461 = vmatprep.subr.mxu0 0.0
        %5462 = vmatpush2.msra.mxu0 0.0
        %5463 = vmatprep.subr.mxu0 0.0
        %5464 = vmatpush2.msra.mxu0 0.0
        %5465 = vmatprep.subr.mxu0 0.0
        %5466 = vmatpush2.msra.mxu0 0.0
        %5467 = vmatprep.subr.mxu0 0.0
        %5468 = vmatpush2.msra.mxu0 0.0
        %5469 = vmatprep.subr.mxu0 0.0
        %5470 = vmatpush2.msra.mxu0 0.0
        %5471 = vmatprep.subr.mxu0 0.0
        %5472 = vmatpush2.msra.mxu0 0.0
        %5473 = vmatprep.subr.mxu0 0.0
        %5474 = vmatpush2.msra.mxu0 0.0
        %5475 = vmatprep.subr.mxu0 0.0
        %5476 = vmatpush2.msra.mxu0 0.0
        %5477 = vmatprep.subr.mxu0 0.0
        %5478 = vmatpush2.msra.mxu0 0.0
        %5479 = vmatprep.mubr.f32.mxu0 0.0
        %5480 = vmatmul.mubr.f32.gmra.mxu0 %v5411
        %v5481 = vpop.f32.mrf.mxu0
        %v5482 = vadd.f32 0.0, %v5481
        %v5483 = vpop.f32.mrf.mxu0
        %5484 = vdwg.mxu0
        %v5485 = vadd.f32 %v5242, %v5482
        %5486 = vrot.lane.b32.xlu0 %v1086, 72
        %v5487 = vpop.permute.xlu0 %5486
        %5488 = vrot.lane.b32.xlu0 %v1086, 40
        %v5489 = vpop.permute.xlu0 %5488
        %v5490 = vsel %vm4032, %v5487, 0
        %v5492 = vsel %vm4032, %v5489, 0
        %5494 = vmatprep.subr.mxu0 0.0
        %5495 = vmatpush1.xpose.msra.mxu0 0.0
        %5496 = vmatprep.subr.mxu0 0.0
        %5497 = vmatpush1.xpose.msra.mxu0 0.0
        %5498 = vmatprep.subr.mxu0 0.0
        %5499 = vmatpush1.xpose.msra.mxu0 0.0
        %5500 = vmatprep.subr.mxu0 0.0
        %5501 = vmatpush1.xpose.msra.mxu0 0.0
        %5502 = vmatprep.subr.mxu0 0.0
        %5503 = vmatpush1.xpose.msra.mxu0 0.0
        %5504 = vmatprep.subr.mxu0 0.0
        %5505 = vmatpush1.xpose.msra.mxu0 0.0
        %5506 = vmatprep.subr.mxu0 0.0
        %5507 = vmatpush1.xpose.msra.mxu0 0.0
        %5508 = vmatprep.subr.mxu0 0.0
        %5509 = vmatpush1.xpose.msra.mxu0 0.0
        %5510 = vmatprep.subr.mxu0 0.0
        %5511 = vmatpush1.xpose.msra.mxu0 0.0
        %5512 = vmatprep.subr.mxu0 0.0
        %5513 = vmatpush1.xpose.msra.mxu0 0.0
        %5514 = vmatprep.subr.mxu0 0.0
        %5515 = vmatpush1.xpose.msra.mxu0 0.0
        %5516 = vmatprep.subr.mxu0 0.0
        %5517 = vmatpush1.xpose.msra.mxu0 0.0
        %5518 = vmatprep.subr.mxu0 0.0
        %5519 = vmatpush1.xpose.msra.mxu0 0.0
        %5520 = vmatprep.subr.mxu0 0.0
        %5521 = vmatpush1.xpose.msra.mxu0 0.0
        %5522 = vmatprep.subr.mxu0 0.0
        %5523 = vmatpush1.xpose.msra.mxu0 0.0
        %5524 = vmatprep.subr.mxu0 0.0
        %5525 = vmatpush1.xpose.msra.mxu0 %v5492
        %5526 = vmatprep.subr.mxu0 0.0
        %5527 = vmatpush2.xpose.msra.mxu0 0.0
        %5528 = vmatprep.subr.mxu0 0.0
        %5529 = vmatpush2.xpose.msra.mxu0 0.0
        %5530 = vmatprep.subr.mxu0 0.0
        %5531 = vmatpush2.xpose.msra.mxu0 0.0
        %5532 = vmatprep.subr.mxu0 0.0
        %5533 = vmatpush2.xpose.msra.mxu0 0.0
        %5534 = vmatprep.subr.mxu0 0.0
        %5535 = vmatpush2.xpose.msra.mxu0 0.0
        %5536 = vmatprep.subr.mxu0 0.0
        %5537 = vmatpush2.xpose.msra.mxu0 0.0
        %5538 = vmatprep.subr.mxu0 0.0
        %5539 = vmatpush2.xpose.msra.mxu0 0.0
        %5540 = vmatprep.subr.mxu0 0.0
        %5541 = vmatpush2.xpose.msra.mxu0 0.0
        %5542 = vmatprep.subr.mxu0 0.0
        %5543 = vmatpush2.xpose.msra.mxu0 0.0
        %5544 = vmatprep.subr.mxu0 0.0
        %5545 = vmatpush2.xpose.msra.mxu0 0.0
        %5546 = vmatprep.subr.mxu0 0.0
        %5547 = vmatpush2.xpose.msra.mxu0 0.0
        %5548 = vmatprep.subr.mxu0 0.0
        %5549 = vmatpush2.xpose.msra.mxu0 0.0
        %5550 = vmatprep.subr.mxu0 0.0
        %5551 = vmatpush2.xpose.msra.mxu0 0.0
        %5552 = vmatprep.subr.mxu0 0.0
        %5553 = vmatpush2.xpose.msra.mxu0 0.0
        %5554 = vmatprep.subr.mxu0 0.0
        %5555 = vmatpush2.xpose.msra.mxu0 0.0
        %5556 = vmatprep.subr.mxu0 0.0
        %5557 = vmatpush2.xpose.msra.mxu0 0.0
        %5558 = vmatprep.mubr.f32.mxu0 0.0
        %5559 = vmatmul.mubr.f32.gmra.mxu0 %v5490
        %v5560 = vpop.f32.mrf.mxu0
        %v5561 = vadd.f32 0.0, %v5560
        %v5562 = vpop.f32.mrf.mxu0
        %5563 = vdwg.mxu0
        %v5564 = vmul.f32 %v5561, 0.03608439
        %v5565 = vsel %vm3155, %v5564, -inf
        %5566 = vmax.xlane.f32.xlu0 %v5565
        %v5567 = vpop.xlane.xlu0 %5566
        %v5568 = vsub.f32 %v5564, %v5567
        %v5569 = vmul.f32 %v5568, 1.442695
        %v5570 = vpow.pop %v5569
        %v5571 = vsel %vm3155, %v5570, 0.0
        %5572 = vadd.xlane.f32.xlu0 %v5571
        %v5573 = vpop.xlane.xlu0 %5572
        %v5574 = vrcp.pop %v5573
        %v5575 = vmul.f32 %v5570, %v5574
        %5576 = vrot.lane.b32.xlu0 %v1086, 8
        %v5577 = vpop.permute.xlu0 %5576
        %v5580 = vsel %vm3155, %v5575, 0
        %5582 = vmatprep.subr.mxu0 0.0
        %5583 = vmatpush1.msra.mxu0 0.0
        %5584 = vmatprep.subr.mxu0 0.0
        %5585 = vmatpush1.msra.mxu0 0.0
        %5586 = vmatprep.subr.mxu0 0.0
        %5587 = vmatpush1.msra.mxu0 0.0
        %5588 = vmatprep.subr.mxu0 0.0
        %5589 = vmatpush1.msra.mxu0 0.0
        %5590 = vmatprep.subr.mxu0 0.0
        %5591 = vmatpush1.msra.mxu0 0.0
        %5592 = vmatprep.subr.mxu0 0.0
        %5593 = vmatpush1.msra.mxu0 0.0
        %5594 = vmatprep.subr.mxu0 0.0
        %5595 = vmatpush1.msra.mxu0 0.0
        %5596 = vmatprep.subr.mxu0 0.0
        %5597 = vmatpush1.msra.mxu0 0.0
        %5598 = vmatprep.subr.mxu0 0.0
        %5599 = vmatpush1.msra.mxu0 0.0
        %5600 = vmatprep.subr.mxu0 0.0
        %5601 = vmatpush1.msra.mxu0 0.0
        %5602 = vmatprep.subr.mxu0 0.0
        %5603 = vmatpush1.msra.mxu0 0.0
        %5604 = vmatprep.subr.mxu0 0.0
        %5605 = vmatpush1.msra.mxu0 0.0
        %5606 = vmatprep.subr.mxu0 0.0
        %5607 = vmatpush1.msra.mxu0 0.0
        %5608 = vmatprep.subr.mxu0 0.0
        %5609 = vmatpush1.msra.mxu0 0.0
        %5610 = vmatprep.subr.mxu0 0.0
        %5611 = vmatpush1.msra.mxu0 0.0
        %5612 = vmatprep.subr.mxu0 0.0
        %5613 = vmatpush1.msra.mxu0 %v5577
        %5614 = vmatprep.subr.mxu0 0.0
        %5615 = vmatpush2.msra.mxu0 0.0
        %5616 = vmatprep.subr.mxu0 0.0
        %5617 = vmatpush2.msra.mxu0 0.0
        %5618 = vmatprep.subr.mxu0 0.0
        %5619 = vmatpush2.msra.mxu0 0.0
        %5620 = vmatprep.subr.mxu0 0.0
        %5621 = vmatpush2.msra.mxu0 0.0
        %5622 = vmatprep.subr.mxu0 0.0
        %5623 = vmatpush2.msra.mxu0 0.0
        %5624 = vmatprep.subr.mxu0 0.0
        %5625 = vmatpush2.msra.mxu0 0.0
        %5626 = vmatprep.subr.mxu0 0.0
        %5627 = vmatpush2.msra.mxu0 0.0
        %5628 = vmatprep.subr.mxu0 0.0
        %5629 = vmatpush2.msra.mxu0 0.0
        %5630 = vmatprep.subr.mxu0 0.0
        %5631 = vmatpush2.msra.mxu0 0.0
        %5632 = vmatprep.subr.mxu0 0.0
        %5633 = vmatpush2.msra.mxu0 0.0
        %5634 = vmatprep.subr.mxu0 0.0
        %5635 = vmatpush2.msra.mxu0 0.0
        %5636 = vmatprep.subr.mxu0 0.0
        %5637 = vmatpush2.msra.mxu0 0.0
        %5638 = vmatprep.subr.mxu0 0.0
        %5639 = vmatpush2.msra.mxu0 0.0
        %5640 = vmatprep.subr.mxu0 0.0
        %5641 = vmatpush2.msra.mxu0 0.0
        %5642 = vmatprep.subr.mxu0 0.0
        %5643 = vmatpush2.msra.mxu0 0.0
        %5644 = vmatprep.subr.mxu0 0.0
        %5645 = vmatpush2.msra.mxu0 0.0
        %5646 = vmatprep.mubr.f32.mxu0 0.0
        %5647 = vmatmul.mubr.f32.gmra.mxu0 %v5580
        %v5648 = vpop.f32.mrf.mxu0
        %v5649 = vadd.f32 0.0, %v5648
        %v5650 = vpop.f32.mrf.mxu0
        %5651 = vdwg.mxu0
        %v5653 = vsel %vm4032, %v5649, 0
        %v5656 = vsel %vm4366, %v4027, 0
        %5658 = vmatprep.subr.mxu0 0.0
        %5659 = vmatpush1.msra.mxu0 0.0
        %5660 = vmatprep.subr.mxu0 0.0
        %5661 = vmatpush1.msra.mxu0 0.0
        %5662 = vmatprep.subr.mxu0 0.0
        %5663 = vmatpush1.msra.mxu0 0.0
        %5664 = vmatprep.subr.mxu0 0.0
        %5665 = vmatpush1.msra.mxu0 0.0
        %5666 = vmatprep.subr.mxu0 0.0
        %5667 = vmatpush1.msra.mxu0 0.0
        %5668 = vmatprep.subr.mxu0 0.0
        %5669 = vmatpush1.msra.mxu0 0.0
        %5670 = vmatprep.subr.mxu0 0.0
        %5671 = vmatpush1.msra.mxu0 0.0
        %5672 = vmatprep.subr.mxu0 0.0
        %5673 = vmatpush1.msra.mxu0 0.0
        %5674 = vmatprep.subr.mxu0 0.0
        %5675 = vmatpush1.msra.mxu0 0.0
        %5676 = vmatprep.subr.mxu0 0.0
        %5677 = vmatpush1.msra.mxu0 0.0
        %5678 = vmatprep.subr.mxu0 0.0
        %5679 = vmatpush1.msra.mxu0 0.0
        %5680 = vmatprep.subr.mxu0 0.0
        %5681 = vmatpush1.msra.mxu0 0.0
        %5682 = vmatprep.subr.mxu0 0.0
        %5683 = vmatpush1.msra.mxu0 0.0
        %5684 = vmatprep.subr.mxu0 0.0
        %5685 = vmatpush1.msra.mxu0 0.0
        %5686 = vmatprep.subr.mxu0 0.0
        %5687 = vmatpush1.msra.mxu0 0.0
        %5688 = vmatprep.subr.mxu0 0.0
        %5689 = vmatpush1.msra.mxu0 %v5656
        %5690 = vmatprep.subr.mxu0 0.0
        %5691 = vmatpush2.msra.mxu0 0.0
        %5692 = vmatprep.subr.mxu0 0.0
        %5693 = vmatpush2.msra.mxu0 0.0
        %5694 = vmatprep.subr.mxu0 0.0
        %5695 = vmatpush2.msra.mxu0 0.0
        %5696 = vmatprep.subr.mxu0 0.0
        %5697 = vmatpush2.msra.mxu0 0.0
        %5698 = vmatprep.subr.mxu0 0.0
        %5699 = vmatpush2.msra.mxu0 0.0
        %5700 = vmatprep.subr.mxu0 0.0
        %5701 = vmatpush2.msra.mxu0 0.0
        %5702 = vmatprep.subr.mxu0 0.0
        %5703 = vmatpush2.msra.mxu0 0.0
        %5704 = vmatprep.subr.mxu0 0.0
        %5705 = vmatpush2.msra.mxu0 0.0
        %5706 = vmatprep.subr.mxu0 0.0
        %5707 = vmatpush2.msra.mxu0 0.0
        %5708 = vmatprep.subr.mxu0 0.0
        %5709 = vmatpush2.msra.mxu0 0.0
        %5710 = vmatprep.subr.mxu0 0.0
        %5711 = vmatpush2.msra.mxu0 0.0
        %5712 = vmatprep.subr.mxu0 0.0
        %5713 = vmatpush2.msra.mxu0 0.0
        %5714 = vmatprep.subr.mxu0 0.0
        %5715 = vmatpush2.msra.mxu0 0.0
        %5716 = vmatprep.subr.mxu0 0.0
        %5717 = vmatpush2.msra.mxu0 0.0
        %5718 = vmatprep.subr.mxu0 0.0
        %5719 = vmatpush2.msra.mxu0 0.0
        %5720 = vmatprep.subr.mxu0 0.0
        %5721 = vmatpush2.msra.mxu0 0.0
        %5722 = vmatprep.mubr.f32.mxu0 0.0
        %5723 = vmatmul.mubr.f32.gmra.mxu0 %v5653
        %v5724 = vpop.f32.mrf.mxu0
        %v5725 = vadd.f32 0.0, %v5724
        %v5726 = vpop.f32.mrf.mxu0
        %5727 = vdwg.mxu0
        %v5728 = vadd.f32 %v5485, %v5725
        %5729 = vrot.lane.b32.xlu0 %v1086, 68
        %v5730 = vpop.permute.xlu0 %5729
        %5731 = vrot.lane.b32.xlu0 %v1086, 36
        %v5732 = vpop.permute.xlu0 %5731
        %v5733 = vsel %vm4032, %v5730, 0
        %v5735 = vsel %vm4032, %v5732, 0
        %5737 = vmatprep.subr.mxu0 0.0
        %5738 = vmatpush1.xpose.msra.mxu0 0.0
        %5739 = vmatprep.subr.mxu0 0.0
        %5740 = vmatpush1.xpose.msra.mxu0 0.0
        %5741 = vmatprep.subr.mxu0 0.0
        %5742 = vmatpush1.xpose.msra.mxu0 0.0
        %5743 = vmatprep.subr.mxu0 0.0
        %5744 = vmatpush1.xpose.msra.mxu0 0.0
        %5745 = vmatprep.subr.mxu0 0.0
        %5746 = vmatpush1.xpose.msra.mxu0 0.0
        %5747 = vmatprep.subr.mxu0 0.0
        %5748 = vmatpush1.xpose.msra.mxu0 0.0
        %5749 = vmatprep.subr.mxu0 0.0
        %5750 = vmatpush1.xpose.msra.mxu0 0.0
        %5751 = vmatprep.subr.mxu0 0.0
        %5752 = vmatpush1.xpose.msra.mxu0 0.0
        %5753 = vmatprep.subr.mxu0 0.0
        %5754 = vmatpush1.xpose.msra.mxu0 0.0
        %5755 = vmatprep.subr.mxu0 0.0
        %5756 = vmatpush1.xpose.msra.mxu0 0.0
        %5757 = vmatprep.subr.mxu0 0.0
        %5758 = vmatpush1.xpose.msra.mxu0 0.0
        %5759 = vmatprep.subr.mxu0 0.0
        %5760 = vmatpush1.xpose.msra.mxu0 0.0
        %5761 = vmatprep.subr.mxu0 0.0
        %5762 = vmatpush1.xpose.msra.mxu0 0.0
        %5763 = vmatprep.subr.mxu0 0.0
        %5764 = vmatpush1.xpose.msra.mxu0 0.0
        %5765 = vmatprep.subr.mxu0 0.0
        %5766 = vmatpush1.xpose.msra.mxu0 0.0
        %5767 = vmatprep.subr.mxu0 0.0
        %5768 = vmatpush1.xpose.msra.mxu0 %v5735
        %5769 = vmatprep.subr.mxu0 0.0
        %5770 = vmatpush2.xpose.msra.mxu0 0.0
        %5771 = vmatprep.subr.mxu0 0.0
        %5772 = vmatpush2.xpose.msra.mxu0 0.0
        %5773 = vmatprep.subr.mxu0 0.0
        %5774 = vmatpush2.xpose.msra.mxu0 0.0
        %5775 = vmatprep.subr.mxu0 0.0
        %5776 = vmatpush2.xpose.msra.mxu0 0.0
        %5777 = vmatprep.subr.mxu0 0.0
        %5778 = vmatpush2.xpose.msra.mxu0 0.0
        %5779 = vmatprep.subr.mxu0 0.0
        %5780 = vmatpush2.xpose.msra.mxu0 0.0
        %5781 = vmatprep.subr.mxu0 0.0
        %5782 = vmatpush2.xpose.msra.mxu0 0.0
        %5783 = vmatprep.subr.mxu0 0.0
        %5784 = vmatpush2.xpose.msra.mxu0 0.0
        %5785 = vmatprep.subr.mxu0 0.0
        %5786 = vmatpush2.xpose.msra.mxu0 0.0
        %5787 = vmatprep.subr.mxu0 0.0
        %5788 = vmatpush2.xpose.msra.mxu0 0.0
        %5789 = vmatprep.subr.mxu0 0.0
        %5790 = vmatpush2.xpose.msra.mxu0 0.0
        %5791 = vmatprep.subr.mxu0 0.0
        %5792 = vmatpush2.xpose.msra.mxu0 0.0
        %5793 = vmatprep.subr.mxu0 0.0
        %5794 = vmatpush2.xpose.msra.mxu0 0.0
        %5795 = vmatprep.subr.mxu0 0.0
        %5796 = vmatpush2.xpose.msra.mxu0 0.0
        %5797 = vmatprep.subr.mxu0 0.0
        %5798 = vmatpush2.xpose.msra.mxu0 0.0
        %5799 = vmatprep.subr.mxu0 0.0
        %5800 = vmatpush2.xpose.msra.mxu0 0.0
        %5801 = vmatprep.mubr.f32.mxu0 0.0
        %5802 = vmatmul.mubr.f32.gmra.mxu0 %v5733
        %v5803 = vpop.f32.mrf.mxu0
        %v5804 = vadd.f32 0.0, %v5803
        %v5805 = vpop.f32.mrf.mxu0
        %5806 = vdwg.mxu0
        %v5807 = vmul.f32 %v5804, 0.03608439
        %v5808 = vsel %vm3155, %v5807, -inf
        %5809 = vmax.xlane.f32.xlu0 %v5808
        %v5810 = vpop.xlane.xlu0 %5809
        %v5811 = vsub.f32 %v5807, %v5810
        %v5812 = vmul.f32 %v5811, 1.442695
        %v5813 = vpow.pop %v5812
        %v5814 = vsel %vm3155, %v5813, 0.0
        %5815 = vadd.xlane.f32.xlu0 %v5814
        %v5816 = vpop.xlane.xlu0 %5815
        %v5817 = vrcp.pop %v5816
        %v5818 = vmul.f32 %v5813, %v5817
        %5819 = vrot.lane.b32.xlu0 %v1086, 4
        %v5820 = vpop.permute.xlu0 %5819
        %v5823 = vsel %vm3155, %v5818, 0
        %5825 = vmatprep.subr.mxu0 0.0
        %5826 = vmatpush1.msra.mxu0 0.0
        %5827 = vmatprep.subr.mxu0 0.0
        %5828 = vmatpush1.msra.mxu0 0.0
        %5829 = vmatprep.subr.mxu0 0.0
        %5830 = vmatpush1.msra.mxu0 0.0
        %5831 = vmatprep.subr.mxu0 0.0
        %5832 = vmatpush1.msra.mxu0 0.0
        %5833 = vmatprep.subr.mxu0 0.0
        %5834 = vmatpush1.msra.mxu0 0.0
        %5835 = vmatprep.subr.mxu0 0.0
        %5836 = vmatpush1.msra.mxu0 0.0
        %5837 = vmatprep.subr.mxu0 0.0
        %5838 = vmatpush1.msra.mxu0 0.0
        %5839 = vmatprep.subr.mxu0 0.0
        %5840 = vmatpush1.msra.mxu0 0.0
        %5841 = vmatprep.subr.mxu0 0.0
        %5842 = vmatpush1.msra.mxu0 0.0
        %5843 = vmatprep.subr.mxu0 0.0
        %5844 = vmatpush1.msra.mxu0 0.0
        %5845 = vmatprep.subr.mxu0 0.0
        %5846 = vmatpush1.msra.mxu0 0.0
        %5847 = vmatprep.subr.mxu0 0.0
        %5848 = vmatpush1.msra.mxu0 0.0
        %5849 = vmatprep.subr.mxu0 0.0
        %5850 = vmatpush1.msra.mxu0 0.0
        %5851 = vmatprep.subr.mxu0 0.0
        %5852 = vmatpush1.msra.mxu0 0.0
        %5853 = vmatprep.subr.mxu0 0.0
        %5854 = vmatpush1.msra.mxu0 0.0
        %5855 = vmatprep.subr.mxu0 0.0
        %5856 = vmatpush1.msra.mxu0 %v5820
        %5857 = vmatprep.subr.mxu0 0.0
        %5858 = vmatpush2.msra.mxu0 0.0
        %5859 = vmatprep.subr.mxu0 0.0
        %5860 = vmatpush2.msra.mxu0 0.0
        %5861 = vmatprep.subr.mxu0 0.0
        %5862 = vmatpush2.msra.mxu0 0.0
        %5863 = vmatprep.subr.mxu0 0.0
        %5864 = vmatpush2.msra.mxu0 0.0
        %5865 = vmatprep.subr.mxu0 0.0
        %5866 = vmatpush2.msra.mxu0 0.0
        %5867 = vmatprep.subr.mxu0 0.0
        %5868 = vmatpush2.msra.mxu0 0.0
        %5869 = vmatprep.subr.mxu0 0.0
        %5870 = vmatpush2.msra.mxu0 0.0
        %5871 = vmatprep.subr.mxu0 0.0
        %5872 = vmatpush2.msra.mxu0 0.0
        %5873 = vmatprep.subr.mxu0 0.0
        %5874 = vmatpush2.msra.mxu0 0.0
        %5875 = vmatprep.subr.mxu0 0.0
        %5876 = vmatpush2.msra.mxu0 0.0
        %5877 = vmatprep.subr.mxu0 0.0
        %5878 = vmatpush2.msra.mxu0 0.0
        %5879 = vmatprep.subr.mxu0 0.0
        %5880 = vmatpush2.msra.mxu0 0.0
        %5881 = vmatprep.subr.mxu0 0.0
        %5882 = vmatpush2.msra.mxu0 0.0
        %5883 = vmatprep.subr.mxu0 0.0
        %5884 = vmatpush2.msra.mxu0 0.0
        %5885 = vmatprep.subr.mxu0 0.0
        %5886 = vmatpush2.msra.mxu0 0.0
        %5887 = vmatprep.subr.mxu0 0.0
        %5888 = vmatpush2.msra.mxu0 0.0
        %5889 = vmatprep.mubr.f32.mxu0 0.0
        %5890 = vmatmul.mubr.f32.gmra.mxu0 %v5823
        %v5891 = vpop.f32.mrf.mxu0
        %v5892 = vadd.f32 0.0, %v5891
        %v5893 = vpop.f32.mrf.mxu0
        %5894 = vdwg.mxu0
        %v5895 = vrot.slane %v4027, 4
        %v5897 = vsel %vm4032, %v5892, 0
        %v5899 = vsel %vm4366, %v5895, 0
        %5901 = vmatprep.subr.mxu0 0.0
        %5902 = vmatpush1.msra.mxu0 0.0
        %5903 = vmatprep.subr.mxu0 0.0
        %5904 = vmatpush1.msra.mxu0 0.0
        %5905 = vmatprep.subr.mxu0 0.0
        %5906 = vmatpush1.msra.mxu0 0.0
        %5907 = vmatprep.subr.mxu0 0.0
        %5908 = vmatpush1.msra.mxu0 0.0
        %5909 = vmatprep.subr.mxu0 0.0
        %5910 = vmatpush1.msra.mxu0 0.0
        %5911 = vmatprep.subr.mxu0 0.0
        %5912 = vmatpush1.msra.mxu0 0.0
        %5913 = vmatprep.subr.mxu0 0.0
        %5914 = vmatpush1.msra.mxu0 0.0
        %5915 = vmatprep.subr.mxu0 0.0
        %5916 = vmatpush1.msra.mxu0 0.0
        %5917 = vmatprep.subr.mxu0 0.0
        %5918 = vmatpush1.msra.mxu0 0.0
        %5919 = vmatprep.subr.mxu0 0.0
        %5920 = vmatpush1.msra.mxu0 0.0
        %5921 = vmatprep.subr.mxu0 0.0
        %5922 = vmatpush1.msra.mxu0 0.0
        %5923 = vmatprep.subr.mxu0 0.0
        %5924 = vmatpush1.msra.mxu0 0.0
        %5925 = vmatprep.subr.mxu0 0.0
        %5926 = vmatpush1.msra.mxu0 0.0
        %5927 = vmatprep.subr.mxu0 0.0
        %5928 = vmatpush1.msra.mxu0 0.0
        %5929 = vmatprep.subr.mxu0 0.0
        %5930 = vmatpush1.msra.mxu0 0.0
        %5931 = vmatprep.subr.mxu0 0.0
        %5932 = vmatpush1.msra.mxu0 %v5899
        %5933 = vmatprep.subr.mxu0 0.0
        %5934 = vmatpush2.msra.mxu0 0.0
        %5935 = vmatprep.subr.mxu0 0.0
        %5936 = vmatpush2.msra.mxu0 0.0
        %5937 = vmatprep.subr.mxu0 0.0
        %5938 = vmatpush2.msra.mxu0 0.0
        %5939 = vmatprep.subr.mxu0 0.0
        %5940 = vmatpush2.msra.mxu0 0.0
        %5941 = vmatprep.subr.mxu0 0.0
        %5942 = vmatpush2.msra.mxu0 0.0
        %5943 = vmatprep.subr.mxu0 0.0
        %5944 = vmatpush2.msra.mxu0 0.0
        %5945 = vmatprep.subr.mxu0 0.0
        %5946 = vmatpush2.msra.mxu0 0.0
        %5947 = vmatprep.subr.mxu0 0.0
        %5948 = vmatpush2.msra.mxu0 0.0
        %5949 = vmatprep.subr.mxu0 0.0
        %5950 = vmatpush2.msra.mxu0 0.0
        %5951 = vmatprep.subr.mxu0 0.0
        %5952 = vmatpush2.msra.mxu0 0.0
        %5953 = vmatprep.subr.mxu0 0.0
        %5954 = vmatpush2.msra.mxu0 0.0
        %5955 = vmatprep.subr.mxu0 0.0
        %5956 = vmatpush2.msra.mxu0 0.0
        %5957 = vmatprep.subr.mxu0 0.0
        %5958 = vmatpush2.msra.mxu0 0.0
        %5959 = vmatprep.subr.mxu0 0.0
        %5960 = vmatpush2.msra.mxu0 0.0
        %5961 = vmatprep.subr.mxu0 0.0
        %5962 = vmatpush2.msra.mxu0 0.0
        %5963 = vmatprep.subr.mxu0 0.0
        %5964 = vmatpush2.msra.mxu0 0.0
        %5965 = vmatprep.mubr.f32.mxu0 0.0
        %5966 = vmatmul.mubr.f32.gmra.mxu0 %v5897
        %v5967 = vpop.f32.mrf.mxu0
        %v5968 = vadd.f32 0.0, %v5967
        %v5969 = vpop.f32.mrf.mxu0
        %5970 = vdwg.mxu0
        %v5971 = vadd.f32 %v5728, %v5968
        %v5972 = vadd.f32 %v994, %v5971
        %v5973 = vld [vmem:[%s16] sm:$0x1]
        %v5975 = vlaneseq
        %v5976 = vshrl.u32 %v5975, 7
        %v5977 = vsub.s32 0, %v5976
        %v5978 = vrot.slane %v5973, %v5977
        %v5980 = vadd.f32 %v5972, %v5978
        %v5981 = vsel %vm1015, %v5980, 0.0
        %5982 = vadd.xlane.f32.xlu0 %v5981
        %v5983 = vpop.xlane.xlu0 %5982
        %v5984 = vrcp.pop 32.0
        %v5985 = vmul.f32 %v5983, %v5984
        %v5986 = vsub.f32 %v5980, %v5985
        %v5987 = vmul.f32 %v5986, %v5986
        %v5988 = vsel %vm1015, %v5987, 0.0
        %5989 = vadd.xlane.f32.xlu0 %v5988
        %v5990 = vpop.xlane.xlu0 %5989
        %v5991 = vmul.f32 %v5990, %v5984
        %v5992 = vadd.f32 %v5991, 1e-05
        %v5993 = vrsqrt.pop %v5992
        %v5994 = vmul.f32 %v5986, %v5993
        %v5995 = vld [vmem:[%s17] sm:$0x1]
        %v5997 = vlaneseq
        %v5998 = vshrl.u32 %v5997, 7
        %v5999 = vsub.s32 0, %v5998
        %v6000 = vrot.slane %v5995, %v5999
        %v6002 = vmul.f32 %v5994, %v6000
        %v6003 = vld [vmem:[%s18] sm:$0x1]
        %v6005 = vlaneseq
        %v6006 = vshrl.u32 %v6005, 7
        %v6007 = vsub.s32 0, %v6006
        %v6008 = vrot.slane %v6003, %v6007
        %v6010 = vadd.f32 %v6002, %v6008
        %v6011 = vld [vmem:[#allocation19] sm:$0xff]
        %v6012 = vld [vmem:[#allocation19 + $0x8] sm:$0xff]
        %v6013 = vld [vmem:[#allocation19 + $0x10] sm:$0xff]
        %v6014 = vld [vmem:[#allocation19 + $0x18] sm:$0xff]
        %v6015 = vld [vmem:[%s20] sm:$0x1]
        %v6017 = vlaneseq
        %v6018 = vshrl.u32 %v6017, 7
        %v6019 = vsub.s32 0, %v6018
        %v6020 = vrot.slane %v6015, %v6019
        %v6023 = vsel %vm1015, %v6010, 0
        %6025 = vmatprep.subr.mxu0 0.0
        %6026 = vmatpush1.msra.mxu0 0.0
        %6027 = vmatprep.subr.mxu0 0.0
        %6028 = vmatpush1.msra.mxu0 0.0
        %6029 = vmatprep.subr.mxu0 0.0
        %6030 = vmatpush1.msra.mxu0 0.0
        %6031 = vmatprep.subr.mxu0 0.0
        %6032 = vmatpush1.msra.mxu0 0.0
        %6033 = vmatprep.subr.mxu0 0.0
        %6034 = vmatpush1.msra.mxu0 0.0
        %6035 = vmatprep.subr.mxu0 0.0
        %6036 = vmatpush1.msra.mxu0 0.0
        %6037 = vmatprep.subr.mxu0 0.0
        %6038 = vmatpush1.msra.mxu0 0.0
        %6039 = vmatprep.subr.mxu0 0.0
        %6040 = vmatpush1.msra.mxu0 0.0
        %6041 = vmatprep.subr.mxu0 0.0
        %6042 = vmatpush1.msra.mxu0 0.0
        %6043 = vmatprep.subr.mxu0 0.0
        %6044 = vmatpush1.msra.mxu0 0.0
        %6045 = vmatprep.subr.mxu0 0.0
        %6046 = vmatpush1.msra.mxu0 0.0
        %6047 = vmatprep.subr.mxu0 0.0
        %6048 = vmatpush1.msra.mxu0 0.0
        %6049 = vmatprep.subr.mxu0 0.0
        %6050 = vmatpush1.msra.mxu0 %v6014
        %6051 = vmatprep.subr.mxu0 0.0
        %6052 = vmatpush1.msra.mxu0 %v6013
        %6053 = vmatprep.subr.mxu0 0.0
        %6054 = vmatpush1.msra.mxu0 %v6012
        %6055 = vmatprep.subr.mxu0 0.0
        %6056 = vmatpush1.msra.mxu0 %v6011
        %6057 = vmatprep.subr.mxu0 0.0
        %6058 = vmatpush2.msra.mxu0 0.0
        %6059 = vmatprep.subr.mxu0 0.0
        %6060 = vmatpush2.msra.mxu0 0.0
        %6061 = vmatprep.subr.mxu0 0.0
        %6062 = vmatpush2.msra.mxu0 0.0
        %6063 = vmatprep.subr.mxu0 0.0
        %6064 = vmatpush2.msra.mxu0 0.0
        %6065 = vmatprep.subr.mxu0 0.0
        %6066 = vmatpush2.msra.mxu0 0.0
        %6067 = vmatprep.subr.mxu0 0.0
        %6068 = vmatpush2.msra.mxu0 0.0
        %6069 = vmatprep.subr.mxu0 0.0
        %6070 = vmatpush2.msra.mxu0 0.0
        %6071 = vmatprep.subr.mxu0 0.0
        %6072 = vmatpush2.msra.mxu0 0.0
        %6073 = vmatprep.subr.mxu0 0.0
        %6074 = vmatpush2.msra.mxu0 0.0
        %6075 = vmatprep.subr.mxu0 0.0
        %6076 = vmatpush2.msra.mxu0 0.0
        %6077 = vmatprep.subr.mxu0 0.0
        %6078 = vmatpush2.msra.mxu0 0.0
        %6079 = vmatprep.subr.mxu0 0.0
        %6080 = vmatpush2.msra.mxu0 0.0
        %6081 = vmatprep.subr.mxu0 0.0
        %6082 = vmatpush2.msra.mxu0 0.0
        %6083 = vmatprep.subr.mxu0 0.0
        %6084 = vmatpush2.msra.mxu0 0.0
        %6085 = vmatprep.subr.mxu0 0.0
        %6086 = vmatpush2.msra.mxu0 0.0
        %6087 = vmatprep.subr.mxu0 0.0
        %6088 = vmatpush2.msra.mxu0 0.0
        %6089 = vmatprep.mubr.f32.mxu0 0.0
        %6090 = vmatmul.mubr.f32.gmra.mxu0 %v6023
        %v6091 = vpop.f32.mrf.mxu0
        %v6092 = vadd.f32 %v6020, %v6091
        %v6093 = vpop.f32.mrf.mxu0
        %6094 = vdwg.mxu0
        %v6095 = vld [vmem:[#allocation21] sm:$0xff]
        %v6096 = vld [vmem:[#allocation21 + $0x8] sm:$0xff]
        %v6097 = vld [vmem:[#allocation21 + $0x10] sm:$0xff]
        %v6098 = vld [vmem:[#allocation21 + $0x18] sm:$0xff]
        %6100 = vrot.lane.b32.xlu0 %v6092, 96
        %v6101 = vpop.permute.xlu0 %6100
        %v6102 = vsel %vm4032, %v6092, 0
        %v6104 = vsel %vm4032, %v6101, 0
        %6106 = vmatprep.subr.mxu0 0.0
        %6107 = vmatpush1.xpose.msra.mxu0 0.0
        %6108 = vmatprep.subr.mxu0 0.0
        %6109 = vmatpush1.xpose.msra.mxu0 0.0
        %6110 = vmatprep.subr.mxu0 0.0
        %6111 = vmatpush1.xpose.msra.mxu0 0.0
        %6112 = vmatprep.subr.mxu0 0.0
        %6113 = vmatpush1.xpose.msra.mxu0 0.0
        %6114 = vmatprep.subr.mxu0 0.0
        %6115 = vmatpush1.xpose.msra.mxu0 0.0
        %6116 = vmatprep.subr.mxu0 0.0
        %6117 = vmatpush1.xpose.msra.mxu0 0.0
        %6118 = vmatprep.subr.mxu0 0.0
        %6119 = vmatpush1.xpose.msra.mxu0 0.0
        %6120 = vmatprep.subr.mxu0 0.0
        %6121 = vmatpush1.xpose.msra.mxu0 0.0
        %6122 = vmatprep.subr.mxu0 0.0
        %6123 = vmatpush1.xpose.msra.mxu0 0.0
        %6124 = vmatprep.subr.mxu0 0.0
        %6125 = vmatpush1.xpose.msra.mxu0 0.0
        %6126 = vmatprep.subr.mxu0 0.0
        %6127 = vmatpush1.xpose.msra.mxu0 0.0
        %6128 = vmatprep.subr.mxu0 0.0
        %6129 = vmatpush1.xpose.msra.mxu0 0.0
        %6130 = vmatprep.subr.mxu0 0.0
        %6131 = vmatpush1.xpose.msra.mxu0 0.0
        %6132 = vmatprep.subr.mxu0 0.0
        %6133 = vmatpush1.xpose.msra.mxu0 0.0
        %6134 = vmatprep.subr.mxu0 0.0
        %6135 = vmatpush1.xpose.msra.mxu0 0.0
        %6136 = vmatprep.subr.mxu0 0.0
        %6137 = vmatpush1.xpose.msra.mxu0 %v6104
        %6138 = vmatprep.subr.mxu0 0.0
        %6139 = vmatpush2.xpose.msra.mxu0 0.0
        %6140 = vmatprep.subr.mxu0 0.0
        %6141 = vmatpush2.xpose.msra.mxu0 0.0
        %6142 = vmatprep.subr.mxu0 0.0
        %6143 = vmatpush2.xpose.msra.mxu0 0.0
        %6144 = vmatprep.subr.mxu0 0.0
        %6145 = vmatpush2.xpose.msra.mxu0 0.0
        %6146 = vmatprep.subr.mxu0 0.0
        %6147 = vmatpush2.xpose.msra.mxu0 0.0
        %6148 = vmatprep.subr.mxu0 0.0
        %6149 = vmatpush2.xpose.msra.mxu0 0.0
        %6150 = vmatprep.subr.mxu0 0.0
        %6151 = vmatpush2.xpose.msra.mxu0 0.0
        %6152 = vmatprep.subr.mxu0 0.0
        %6153 = vmatpush2.xpose.msra.mxu0 0.0
        %6154 = vmatprep.subr.mxu0 0.0
        %6155 = vmatpush2.xpose.msra.mxu0 0.0
        %6156 = vmatprep.subr.mxu0 0.0
        %6157 = vmatpush2.xpose.msra.mxu0 0.0
        %6158 = vmatprep.subr.mxu0 0.0
        %6159 = vmatpush2.xpose.msra.mxu0 0.0
        %6160 = vmatprep.subr.mxu0 0.0
        %6161 = vmatpush2.xpose.msra.mxu0 0.0
        %6162 = vmatprep.subr.mxu0 0.0
        %6163 = vmatpush2.xpose.msra.mxu0 0.0
        %6164 = vmatprep.subr.mxu0 0.0
        %6165 = vmatpush2.xpose.msra.mxu0 0.0
        %6166 = vmatprep.subr.mxu0 0.0
        %6167 = vmatpush2.xpose.msra.mxu0 0.0
        %6168 = vmatprep.subr.mxu0 0.0
        %6169 = vmatpush2.xpose.msra.mxu0 0.0
        %6170 = vmatprep.mubr.f32.mxu0 0.0
        %6171 = vmatmul.mubr.f32.gmra.mxu0 %v6102
        %v6172 = vpop.f32.mrf.mxu0
        %v6173 = vadd.f32 0.0, %v6172
        %v6174 = vpop.f32.mrf.mxu0
        %6175 = vdwg.mxu0
        %v6176 = vmul.f32 %v6173, 0.03608439
        %v6177 = vsel %vm3155, %v6176, -inf
        %6178 = vmax.xlane.f32.xlu0 %v6177
        %v6179 = vpop.xlane.xlu0 %6178
        %v6180 = vsub.f32 %v6176, %v6179
        %v6181 = vmul.f32 %v6180, 1.442695
        %v6182 = vpow.pop %v6181
        %v6183 = vsel %vm3155, %v6182, 0.0
        %6184 = vadd.xlane.f32.xlu0 %v6183
        %v6185 = vpop.xlane.xlu0 %6184
        %v6186 = vrcp.pop %v6185
        %v6187 = vmul.f32 %v6182, %v6186
        %6188 = vrot.lane.b32.xlu0 %v6092, 64
        %v6189 = vpop.permute.xlu0 %6188
        %v6192 = vsel %vm3155, %v6187, 0
        %6194 = vmatprep.subr.mxu0 0.0
        %6195 = vmatpush1.msra.mxu0 0.0
        %6196 = vmatprep.subr.mxu0 0.0
        %6197 = vmatpush1.msra.mxu0 0.0
        %6198 = vmatprep.subr.mxu0 0.0
        %6199 = vmatpush1.msra.mxu0 0.0
        %6200 = vmatprep.subr.mxu0 0.0
        %6201 = vmatpush1.msra.mxu0 0.0
        %6202 = vmatprep.subr.mxu0 0.0
        %6203 = vmatpush1.msra.mxu0 0.0
        %6204 = vmatprep.subr.mxu0 0.0
        %6205 = vmatpush1.msra.mxu0 0.0
        %6206 = vmatprep.subr.mxu0 0.0
        %6207 = vmatpush1.msra.mxu0 0.0
        %6208 = vmatprep.subr.mxu0 0.0
        %6209 = vmatpush1.msra.mxu0 0.0
        %6210 = vmatprep.subr.mxu0 0.0
        %6211 = vmatpush1.msra.mxu0 0.0
        %6212 = vmatprep.subr.mxu0 0.0
        %6213 = vmatpush1.msra.mxu0 0.0
        %6214 = vmatprep.subr.mxu0 0.0
        %6215 = vmatpush1.msra.mxu0 0.0
        %6216 = vmatprep.subr.mxu0 0.0
        %6217 = vmatpush1.msra.mxu0 0.0
        %6218 = vmatprep.subr.mxu0 0.0
        %6219 = vmatpush1.msra.mxu0 0.0
        %6220 = vmatprep.subr.mxu0 0.0
        %6221 = vmatpush1.msra.mxu0 0.0
        %6222 = vmatprep.subr.mxu0 0.0
        %6223 = vmatpush1.msra.mxu0 0.0
        %6224 = vmatprep.subr.mxu0 0.0
        %6225 = vmatpush1.msra.mxu0 %v6189
        %6226 = vmatprep.subr.mxu0 0.0
        %6227 = vmatpush2.msra.mxu0 0.0
        %6228 = vmatprep.subr.mxu0 0.0
        %6229 = vmatpush2.msra.mxu0 0.0
        %6230 = vmatprep.subr.mxu0 0.0
        %6231 = vmatpush2.msra.mxu0 0.0
        %6232 = vmatprep.subr.mxu0 0.0
        %6233 = vmatpush2.msra.mxu0 0.0
        %6234 = vmatprep.subr.mxu0 0.0
        %6235 = vmatpush2.msra.mxu0 0.0
        %6236 = vmatprep.subr.mxu0 0.0
        %6237 = vmatpush2.msra.mxu0 0.0
        %6238 = vmatprep.subr.mxu0 0.0
        %6239 = vmatpush2.msra.mxu0 0.0
        %6240 = vmatprep.subr.mxu0 0.0
        %6241 = vmatpush2.msra.mxu0 0.0
        %6242 = vmatprep.subr.mxu0 0.0
        %6243 = vmatpush2.msra.mxu0 0.0
        %6244 = vmatprep.subr.mxu0 0.0
        %6245 = vmatpush2.msra.mxu0 0.0
        %6246 = vmatprep.subr.mxu0 0.0
        %6247 = vmatpush2.msra.mxu0 0.0
        %6248 = vmatprep.subr.mxu0 0.0
        %6249 = vmatpush2.msra.mxu0 0.0
        %6250 = vmatprep.subr.mxu0 0.0
        %6251 = vmatpush2.msra.mxu0 0.0
        %6252 = vmatprep.subr.mxu0 0.0
        %6253 = vmatpush2.msra.mxu0 0.0
        %6254 = vmatprep.subr.mxu0 0.0
        %6255 = vmatpush2.msra.mxu0 0.0
        %6256 = vmatprep.subr.mxu0 0.0
        %6257 = vmatpush2.msra.mxu0 0.0
        %6258 = vmatprep.mubr.f32.mxu0 0.0
        %6259 = vmatmul.mubr.f32.gmra.mxu0 %v6192
        %v6260 = vpop.f32.mrf.mxu0
        %v6261 = vadd.f32 0.0, %v6260
        %v6262 = vpop.f32.mrf.mxu0
        %6263 = vdwg.mxu0
        %6264 = vrot.lane.b32.xlu0 %v6092, 124
        %v6265 = vpop.permute.xlu0 %6264
        %6266 = vrot.lane.b32.xlu0 %v6092, 92
        %v6267 = vpop.permute.xlu0 %6266
        %v6268 = vsel %vm4032, %v6265, 0
        %v6270 = vsel %vm4032, %v6267, 0
        %6272 = vmatprep.subr.mxu0 0.0
        %6273 = vmatpush1.xpose.msra.mxu0 0.0
        %6274 = vmatprep.subr.mxu0 0.0
        %6275 = vmatpush1.xpose.msra.mxu0 0.0
        %6276 = vmatprep.subr.mxu0 0.0
        %6277 = vmatpush1.xpose.msra.mxu0 0.0
        %6278 = vmatprep.subr.mxu0 0.0
        %6279 = vmatpush1.xpose.msra.mxu0 0.0
        %6280 = vmatprep.subr.mxu0 0.0
        %6281 = vmatpush1.xpose.msra.mxu0 0.0
        %6282 = vmatprep.subr.mxu0 0.0
        %6283 = vmatpush1.xpose.msra.mxu0 0.0
        %6284 = vmatprep.subr.mxu0 0.0
        %6285 = vmatpush1.xpose.msra.mxu0 0.0
        %6286 = vmatprep.subr.mxu0 0.0
        %6287 = vmatpush1.xpose.msra.mxu0 0.0
        %6288 = vmatprep.subr.mxu0 0.0
        %6289 = vmatpush1.xpose.msra.mxu0 0.0
        %6290 = vmatprep.subr.mxu0 0.0
        %6291 = vmatpush1.xpose.msra.mxu0 0.0
        %6292 = vmatprep.subr.mxu0 0.0
        %6293 = vmatpush1.xpose.msra.mxu0 0.0
        %6294 = vmatprep.subr.mxu0 0.0
        %6295 = vmatpush1.xpose.msra.mxu0 0.0
        %6296 = vmatprep.subr.mxu0 0.0
        %6297 = vmatpush1.xpose.msra.mxu0 0.0
        %6298 = vmatprep.subr.mxu0 0.0
        %6299 = vmatpush1.xpose.msra.mxu0 0.0
        %6300 = vmatprep.subr.mxu0 0.0
        %6301 = vmatpush1.xpose.msra.mxu0 0.0
        %6302 = vmatprep.subr.mxu0 0.0
        %6303 = vmatpush1.xpose.msra.mxu0 %v6270
        %6304 = vmatprep.subr.mxu0 0.0
        %6305 = vmatpush2.xpose.msra.mxu0 0.0
        %6306 = vmatprep.subr.mxu0 0.0
        %6307 = vmatpush2.xpose.msra.mxu0 0.0
        %6308 = vmatprep.subr.mxu0 0.0
        %6309 = vmatpush2.xpose.msra.mxu0 0.0
        %6310 = vmatprep.subr.mxu0 0.0
        %6311 = vmatpush2.xpose.msra.mxu0 0.0
        %6312 = vmatprep.subr.mxu0 0.0
        %6313 = vmatpush2.xpose.msra.mxu0 0.0
        %6314 = vmatprep.subr.mxu0 0.0
        %6315 = vmatpush2.xpose.msra.mxu0 0.0
        %6316 = vmatprep.subr.mxu0 0.0
        %6317 = vmatpush2.xpose.msra.mxu0 0.0
        %6318 = vmatprep.subr.mxu0 0.0
        %6319 = vmatpush2.xpose.msra.mxu0 0.0
        %6320 = vmatprep.subr.mxu0 0.0
        %6321 = vmatpush2.xpose.msra.mxu0 0.0
        %6322 = vmatprep.subr.mxu0 0.0
        %6323 = vmatpush2.xpose.msra.mxu0 0.0
        %6324 = vmatprep.subr.mxu0 0.0
        %6325 = vmatpush2.xpose.msra.mxu0 0.0
        %6326 = vmatprep.subr.mxu0 0.0
        %6327 = vmatpush2.xpose.msra.mxu0 0.0
        %6328 = vmatprep.subr.mxu0 0.0
        %6329 = vmatpush2.xpose.msra.mxu0 0.0
        %6330 = vmatprep.subr.mxu0 0.0
        %6331 = vmatpush2.xpose.msra.mxu0 0.0
        %6332 = vmatprep.subr.mxu0 0.0
        %6333 = vmatpush2.xpose.msra.mxu0 0.0
        %6334 = vmatprep.subr.mxu0 0.0
        %6335 = vmatpush2.xpose.msra.mxu0 0.0
        %6336 = vmatprep.mubr.f32.mxu0 0.0
        %6337 = vmatmul.mubr.f32.gmra.mxu0 %v6268
        %v6338 = vpop.f32.mrf.mxu0
        %v6339 = vadd.f32 0.0, %v6338
        %v6340 = vpop.f32.mrf.mxu0
        %6341 = vdwg.mxu0
        %v6342 = vmul.f32 %v6339, 0.03608439
        %v6343 = vsel %vm3155, %v6342, -inf
        %6344 = vmax.xlane.f32.xlu0 %v6343
        %v6345 = vpop.xlane.xlu0 %6344
        %v6346 = vsub.f32 %v6342, %v6345
        %v6347 = vmul.f32 %v6346, 1.442695
        %v6348 = vpow.pop %v6347
        %v6349 = vsel %vm3155, %v6348, 0.0
        %6350 = vadd.xlane.f32.xlu0 %v6349
        %v6351 = vpop.xlane.xlu0 %6350
        %v6352 = vrcp.pop %v6351
        %v6353 = vmul.f32 %v6348, %v6352
        %6354 = vrot.lane.b32.xlu0 %v6092, 60
        %v6355 = vpop.permute.xlu0 %6354
        %v6358 = vsel %vm3155, %v6353, 0
        %6360 = vmatprep.subr.mxu0 0.0
        %6361 = vmatpush1.msra.mxu0 0.0
        %6362 = vmatprep.subr.mxu0 0.0
        %6363 = vmatpush1.msra.mxu0 0.0
        %6364 = vmatprep.subr.mxu0 0.0
        %6365 = vmatpush1.msra.mxu0 0.0
        %6366 = vmatprep.subr.mxu0 0.0
        %6367 = vmatpush1.msra.mxu0 0.0
        %6368 = vmatprep.subr.mxu0 0.0
        %6369 = vmatpush1.msra.mxu0 0.0
        %6370 = vmatprep.subr.mxu0 0.0
        %6371 = vmatpush1.msra.mxu0 0.0
        %6372 = vmatprep.subr.mxu0 0.0
        %6373 = vmatpush1.msra.mxu0 0.0
        %6374 = vmatprep.subr.mxu0 0.0
        %6375 = vmatpush1.msra.mxu0 0.0
        %6376 = vmatprep.subr.mxu0 0.0
        %6377 = vmatpush1.msra.mxu0 0.0
        %6378 = vmatprep.subr.mxu0 0.0
        %6379 = vmatpush1.msra.mxu0 0.0
        %6380 = vmatprep.subr.mxu0 0.0
        %6381 = vmatpush1.msra.mxu0 0.0
        %6382 = vmatprep.subr.mxu0 0.0
        %6383 = vmatpush1.msra.mxu0 0.0
        %6384 = vmatprep.subr.mxu0 0.0
        %6385 = vmatpush1.msra.mxu0 0.0
        %6386 = vmatprep.subr.mxu0 0.0
        %6387 = vmatpush1.msra.mxu0 0.0
        %6388 = vmatprep.subr.mxu0 0.0
        %6389 = vmatpush1.msra.mxu0 0.0
        %6390 = vmatprep.subr.mxu0 0.0
        %6391 = vmatpush1.msra.mxu0 %v6355
        %6392 = vmatprep.subr.mxu0 0.0
        %6393 = vmatpush2.msra.mxu0 0.0
        %6394 = vmatprep.subr.mxu0 0.0
        %6395 = vmatpush2.msra.mxu0 0.0
        %6396 = vmatprep.subr.mxu0 0.0
        %6397 = vmatpush2.msra.mxu0 0.0
        %6398 = vmatprep.subr.mxu0 0.0
        %6399 = vmatpush2.msra.mxu0 0.0
        %6400 = vmatprep.subr.mxu0 0.0
        %6401 = vmatpush2.msra.mxu0 0.0
        %6402 = vmatprep.subr.mxu0 0.0
        %6403 = vmatpush2.msra.mxu0 0.0
        %6404 = vmatprep.subr.mxu0 0.0
        %6405 = vmatpush2.msra.mxu0 0.0
        %6406 = vmatprep.subr.mxu0 0.0
        %6407 = vmatpush2.msra.mxu0 0.0
        %6408 = vmatprep.subr.mxu0 0.0
        %6409 = vmatpush2.msra.mxu0 0.0
        %6410 = vmatprep.subr.mxu0 0.0
        %6411 = vmatpush2.msra.mxu0 0.0
        %6412 = vmatprep.subr.mxu0 0.0
        %6413 = vmatpush2.msra.mxu0 0.0
        %6414 = vmatprep.subr.mxu0 0.0
        %6415 = vmatpush2.msra.mxu0 0.0
        %6416 = vmatprep.subr.mxu0 0.0
        %6417 = vmatpush2.msra.mxu0 0.0
        %6418 = vmatprep.subr.mxu0 0.0
        %6419 = vmatpush2.msra.mxu0 0.0
        %6420 = vmatprep.subr.mxu0 0.0
        %6421 = vmatpush2.msra.mxu0 0.0
        %6422 = vmatprep.subr.mxu0 0.0
        %6423 = vmatpush2.msra.mxu0 0.0
        %6424 = vmatprep.mubr.f32.mxu0 0.0
        %6425 = vmatmul.mubr.f32.gmra.mxu0 %v6358
        %v6426 = vpop.f32.mrf.mxu0
        %v6427 = vadd.f32 0.0, %v6426
        %v6428 = vpop.f32.mrf.mxu0
        %6429 = vdwg.mxu0
        %v6431 = vrot.slane %v6095, 4
        %v6433 = vsel %vm4032, %v6427, 0
        %v6435 = vsel %vm4366, %v6431, 0
        %6437 = vmatprep.subr.mxu0 0.0
        %6438 = vmatpush1.msra.mxu0 0.0
        %6439 = vmatprep.subr.mxu0 0.0
        %6440 = vmatpush1.msra.mxu0 0.0
        %6441 = vmatprep.subr.mxu0 0.0
        %6442 = vmatpush1.msra.mxu0 0.0
        %6443 = vmatprep.subr.mxu0 0.0
        %6444 = vmatpush1.msra.mxu0 0.0
        %6445 = vmatprep.subr.mxu0 0.0
        %6446 = vmatpush1.msra.mxu0 0.0
        %6447 = vmatprep.subr.mxu0 0.0
        %6448 = vmatpush1.msra.mxu0 0.0
        %6449 = vmatprep.subr.mxu0 0.0
        %6450 = vmatpush1.msra.mxu0 0.0
        %6451 = vmatprep.subr.mxu0 0.0
        %6452 = vmatpush1.msra.mxu0 0.0
        %6453 = vmatprep.subr.mxu0 0.0
        %6454 = vmatpush1.msra.mxu0 0.0
        %6455 = vmatprep.subr.mxu0 0.0
        %6456 = vmatpush1.msra.mxu0 0.0
        %6457 = vmatprep.subr.mxu0 0.0
        %6458 = vmatpush1.msra.mxu0 0.0
        %6459 = vmatprep.subr.mxu0 0.0
        %6460 = vmatpush1.msra.mxu0 0.0
        %6461 = vmatprep.subr.mxu0 0.0
        %6462 = vmatpush1.msra.mxu0 0.0
        %6463 = vmatprep.subr.mxu0 0.0
        %6464 = vmatpush1.msra.mxu0 0.0
        %6465 = vmatprep.subr.mxu0 0.0
        %6466 = vmatpush1.msra.mxu0 0.0
        %6467 = vmatprep.subr.mxu0 0.0
        %6468 = vmatpush1.msra.mxu0 %v6435
        %6469 = vmatprep.subr.mxu0 0.0
        %6470 = vmatpush2.msra.mxu0 0.0
        %6471 = vmatprep.subr.mxu0 0.0
        %6472 = vmatpush2.msra.mxu0 0.0
        %6473 = vmatprep.subr.mxu0 0.0
        %6474 = vmatpush2.msra.mxu0 0.0
        %6475 = vmatprep.subr.mxu0 0.0
        %6476 = vmatpush2.msra.mxu0 0.0
        %6477 = vmatprep.subr.mxu0 0.0
        %6478 = vmatpush2.msra.mxu0 0.0
        %6479 = vmatprep.subr.mxu0 0.0
        %6480 = vmatpush2.msra.mxu0 0.0
        %6481 = vmatprep.subr.mxu0 0.0
        %6482 = vmatpush2.msra.mxu0 0.0
        %6483 = vmatprep.subr.mxu0 0.0
        %6484 = vmatpush2.msra.mxu0 0.0
        %6485 = vmatprep.subr.mxu0 0.0
        %6486 = vmatpush2.msra.mxu0 0.0
        %6487 = vmatprep.subr.mxu0 0.0
        %6488 = vmatpush2.msra.mxu0 0.0
        %6489 = vmatprep.subr.mxu0 0.0
        %6490 = vmatpush2.msra.mxu0 0.0
        %6491 = vmatprep.subr.mxu0 0.0
        %6492 = vmatpush2.msra.mxu0 0.0
        %6493 = vmatprep.subr.mxu0 0.0
        %6494 = vmatpush2.msra.mxu0 0.0
        %6495 = vmatprep.subr.mxu0 0.0
        %6496 = vmatpush2.msra.mxu0 0.0
        %6497 = vmatprep.subr.mxu0 0.0
        %6498 = vmatpush2.msra.mxu0 0.0
        %6499 = vmatprep.subr.mxu0 0.0
        %6500 = vmatpush2.msra.mxu0 0.0
        %6501 = vmatprep.mubr.f32.mxu0 0.0
        %6502 = vmatmul.mubr.f32.gmra.mxu0 %v6433
        %v6503 = vpop.f32.mrf.mxu0
        %v6504 = vadd.f32 0.0, %v6503
        %v6505 = vpop.f32.mrf.mxu0
        %6506 = vdwg.mxu0
        %v6508 = vsel %vm4032, %v6261, 0
        %v6510 = vsel %vm4366, %v6095, 0
        %6512 = vmatprep.subr.mxu0 0.0
        %6513 = vmatpush1.msra.mxu0 0.0
        %6514 = vmatprep.subr.mxu0 0.0
        %6515 = vmatpush1.msra.mxu0 0.0
        %6516 = vmatprep.subr.mxu0 0.0
        %6517 = vmatpush1.msra.mxu0 0.0
        %6518 = vmatprep.subr.mxu0 0.0
        %6519 = vmatpush1.msra.mxu0 0.0
        %6520 = vmatprep.subr.mxu0 0.0
        %6521 = vmatpush1.msra.mxu0 0.0
        %6522 = vmatprep.subr.mxu0 0.0
        %6523 = vmatpush1.msra.mxu0 0.0
        %6524 = vmatprep.subr.mxu0 0.0
        %6525 = vmatpush1.msra.mxu0 0.0
        %6526 = vmatprep.subr.mxu0 0.0
        %6527 = vmatpush1.msra.mxu0 0.0
        %6528 = vmatprep.subr.mxu0 0.0
        %6529 = vmatpush1.msra.mxu0 0.0
        %6530 = vmatprep.subr.mxu0 0.0
        %6531 = vmatpush1.msra.mxu0 0.0
        %6532 = vmatprep.subr.mxu0 0.0
        %6533 = vmatpush1.msra.mxu0 0.0
        %6534 = vmatprep.subr.mxu0 0.0
        %6535 = vmatpush1.msra.mxu0 0.0
        %6536 = vmatprep.subr.mxu0 0.0
        %6537 = vmatpush1.msra.mxu0 0.0
        %6538 = vmatprep.subr.mxu0 0.0
        %6539 = vmatpush1.msra.mxu0 0.0
        %6540 = vmatprep.subr.mxu0 0.0
        %6541 = vmatpush1.msra.mxu0 0.0
        %6542 = vmatprep.subr.mxu0 0.0
        %6543 = vmatpush1.msra.mxu0 %v6510
        %6544 = vmatprep.subr.mxu0 0.0
        %6545 = vmatpush2.msra.mxu0 0.0
        %6546 = vmatprep.subr.mxu0 0.0
        %6547 = vmatpush2.msra.mxu0 0.0
        %6548 = vmatprep.subr.mxu0 0.0
        %6549 = vmatpush2.msra.mxu0 0.0
        %6550 = vmatprep.subr.mxu0 0.0
        %6551 = vmatpush2.msra.mxu0 0.0
        %6552 = vmatprep.subr.mxu0 0.0
        %6553 = vmatpush2.msra.mxu0 0.0
        %6554 = vmatprep.subr.mxu0 0.0
        %6555 = vmatpush2.msra.mxu0 0.0
        %6556 = vmatprep.subr.mxu0 0.0
        %6557 = vmatpush2.msra.mxu0 0.0
        %6558 = vmatprep.subr.mxu0 0.0
        %6559 = vmatpush2.msra.mxu0 0.0
        %6560 = vmatprep.subr.mxu0 0.0
        %6561 = vmatpush2.msra.mxu0 0.0
        %6562 = vmatprep.subr.mxu0 0.0
        %6563 = vmatpush2.msra.mxu0 0.0
        %6564 = vmatprep.subr.mxu0 0.0
        %6565 = vmatpush2.msra.mxu0 0.0
        %6566 = vmatprep.subr.mxu0 0.0
        %6567 = vmatpush2.msra.mxu0 0.0
        %6568 = vmatprep.subr.mxu0 0.0
        %6569 = vmatpush2.msra.mxu0 0.0
        %6570 = vmatprep.subr.mxu0 0.0
        %6571 = vmatpush2.msra.mxu0 0.0
        %6572 = vmatprep.subr.mxu0 0.0
        %6573 = vmatpush2.msra.mxu0 0.0
        %6574 = vmatprep.subr.mxu0 0.0
        %6575 = vmatpush2.msra.mxu0 0.0
        %6576 = vmatprep.mubr.f32.mxu0 0.0
        %6577 = vmatmul.mubr.f32.gmra.mxu0 %v6508
        %v6578 = vpop.f32.mrf.mxu0
        %v6579 = vadd.f32 %v6504, %v6578
        %v6580 = vpop.f32.mrf.mxu0
        %6581 = vdwg.mxu0
        %6582 = vrot.lane.b32.xlu0 %v6092, 120
        %v6583 = vpop.permute.xlu0 %6582
        %6584 = vrot.lane.b32.xlu0 %v6092, 88
        %v6585 = vpop.permute.xlu0 %6584
        %v6586 = vsel %vm4032, %v6583, 0
        %v6588 = vsel %vm4032, %v6585, 0
        %6590 = vmatprep.subr.mxu0 0.0
        %6591 = vmatpush1.xpose.msra.mxu0 0.0
        %6592 = vmatprep.subr.mxu0 0.0
        %6593 = vmatpush1.xpose.msra.mxu0 0.0
        %6594 = vmatprep.subr.mxu0 0.0
        %6595 = vmatpush1.xpose.msra.mxu0 0.0
        %6596 = vmatprep.subr.mxu0 0.0
        %6597 = vmatpush1.xpose.msra.mxu0 0.0
        %6598 = vmatprep.subr.mxu0 0.0
        %6599 = vmatpush1.xpose.msra.mxu0 0.0
        %6600 = vmatprep.subr.mxu0 0.0
        %6601 = vmatpush1.xpose.msra.mxu0 0.0
        %6602 = vmatprep.subr.mxu0 0.0
        %6603 = vmatpush1.xpose.msra.mxu0 0.0
        %6604 = vmatprep.subr.mxu0 0.0
        %6605 = vmatpush1.xpose.msra.mxu0 0.0
        %6606 = vmatprep.subr.mxu0 0.0
        %6607 = vmatpush1.xpose.msra.mxu0 0.0
        %6608 = vmatprep.subr.mxu0 0.0
        %6609 = vmatpush1.xpose.msra.mxu0 0.0
        %6610 = vmatprep.subr.mxu0 0.0
        %6611 = vmatpush1.xpose.msra.mxu0 0.0
        %6612 = vmatprep.subr.mxu0 0.0
        %6613 = vmatpush1.xpose.msra.mxu0 0.0
        %6614 = vmatprep.subr.mxu0 0.0
        %6615 = vmatpush1.xpose.msra.mxu0 0.0
        %6616 = vmatprep.subr.mxu0 0.0
        %6617 = vmatpush1.xpose.msra.mxu0 0.0
        %6618 = vmatprep.subr.mxu0 0.0
        %6619 = vmatpush1.xpose.msra.mxu0 0.0
        %6620 = vmatprep.subr.mxu0 0.0
        %6621 = vmatpush1.xpose.msra.mxu0 %v6588
        %6622 = vmatprep.subr.mxu0 0.0
        %6623 = vmatpush2.xpose.msra.mxu0 0.0
        %6624 = vmatprep.subr.mxu0 0.0
        %6625 = vmatpush2.xpose.msra.mxu0 0.0
        %6626 = vmatprep.subr.mxu0 0.0
        %6627 = vmatpush2.xpose.msra.mxu0 0.0
        %6628 = vmatprep.subr.mxu0 0.0
        %6629 = vmatpush2.xpose.msra.mxu0 0.0
        %6630 = vmatprep.subr.mxu0 0.0
        %6631 = vmatpush2.xpose.msra.mxu0 0.0
        %6632 = vmatprep.subr.mxu0 0.0
        %6633 = vmatpush2.xpose.msra.mxu0 0.0
        %6634 = vmatprep.subr.mxu0 0.0
        %6635 = vmatpush2.xpose.msra.mxu0 0.0
        %6636 = vmatprep.subr.mxu0 0.0
        %6637 = vmatpush2.xpose.msra.mxu0 0.0
        %6638 = vmatprep.subr.mxu0 0.0
        %6639 = vmatpush2.xpose.msra.mxu0 0.0
        %6640 = vmatprep.subr.mxu0 0.0
        %6641 = vmatpush2.xpose.msra.mxu0 0.0
        %6642 = vmatprep.subr.mxu0 0.0
        %6643 = vmatpush2.xpose.msra.mxu0 0.0
        %6644 = vmatprep.subr.mxu0 0.0
        %6645 = vmatpush2.xpose.msra.mxu0 0.0
        %6646 = vmatprep.subr.mxu0 0.0
        %6647 = vmatpush2.xpose.msra.mxu0 0.0
        %6648 = vmatprep.subr.mxu0 0.0
        %6649 = vmatpush2.xpose.msra.mxu0 0.0
        %6650 = vmatprep.subr.mxu0 0.0
        %6651 = vmatpush2.xpose.msra.mxu0 0.0
        %6652 = vmatprep.subr.mxu0 0.0
        %6653 = vmatpush2.xpose.msra.mxu0 0.0
        %6654 = vmatprep.mubr.f32.mxu0 0.0
        %6655 = vmatmul.mubr.f32.gmra.mxu0 %v6586
        %v6656 = vpop.f32.mrf.mxu0
        %v6657 = vadd.f32 0.0, %v6656
        %v6658 = vpop.f32.mrf.mxu0
        %6659 = vdwg.mxu0
        %v6660 = vmul.f32 %v6657, 0.03608439
        %v6661 = vsel %vm3155, %v6660, -inf
        %6662 = vmax.xlane.f32.xlu0 %v6661
        %v6663 = vpop.xlane.xlu0 %6662
        %v6664 = vsub.f32 %v6660, %v6663
        %v6665 = vmul.f32 %v6664, 1.442695
        %v6666 = vpow.pop %v6665
        %v6667 = vsel %vm3155, %v6666, 0.0
        %6668 = vadd.xlane.f32.xlu0 %v6667
        %v6669 = vpop.xlane.xlu0 %6668
        %v6670 = vrcp.pop %v6669
        %v6671 = vmul.f32 %v6666, %v6670
        %6672 = vrot.lane.b32.xlu0 %v6092, 56
        %v6673 = vpop.permute.xlu0 %6672
        %v6676 = vsel %vm3155, %v6671, 0
        %6678 = vmatprep.subr.mxu0 0.0
        %6679 = vmatpush1.msra.mxu0 0.0
        %6680 = vmatprep.subr.mxu0 0.0
        %6681 = vmatpush1.msra.mxu0 0.0
        %6682 = vmatprep.subr.mxu0 0.0
        %6683 = vmatpush1.msra.mxu0 0.0
        %6684 = vmatprep.subr.mxu0 0.0
        %6685 = vmatpush1.msra.mxu0 0.0
        %6686 = vmatprep.subr.mxu0 0.0
        %6687 = vmatpush1.msra.mxu0 0.0
        %6688 = vmatprep.subr.mxu0 0.0
        %6689 = vmatpush1.msra.mxu0 0.0
        %6690 = vmatprep.subr.mxu0 0.0
        %6691 = vmatpush1.msra.mxu0 0.0
        %6692 = vmatprep.subr.mxu0 0.0
        %6693 = vmatpush1.msra.mxu0 0.0
        %6694 = vmatprep.subr.mxu0 0.0
        %6695 = vmatpush1.msra.mxu0 0.0
        %6696 = vmatprep.subr.mxu0 0.0
        %6697 = vmatpush1.msra.mxu0 0.0
        %6698 = vmatprep.subr.mxu0 0.0
        %6699 = vmatpush1.msra.mxu0 0.0
        %6700 = vmatprep.subr.mxu0 0.0
        %6701 = vmatpush1.msra.mxu0 0.0
        %6702 = vmatprep.subr.mxu0 0.0
        %6703 = vmatpush1.msra.mxu0 0.0
        %6704 = vmatprep.subr.mxu0 0.0
        %6705 = vmatpush1.msra.mxu0 0.0
        %6706 = vmatprep.subr.mxu0 0.0
        %6707 = vmatpush1.msra.mxu0 0.0
        %6708 = vmatprep.subr.mxu0 0.0
        %6709 = vmatpush1.msra.mxu0 %v6673
        %6710 = vmatprep.subr.mxu0 0.0
        %6711 = vmatpush2.msra.mxu0 0.0
        %6712 = vmatprep.subr.mxu0 0.0
        %6713 = vmatpush2.msra.mxu0 0.0
        %6714 = vmatprep.subr.mxu0 0.0
        %6715 = vmatpush2.msra.mxu0 0.0
        %6716 = vmatprep.subr.mxu0 0.0
        %6717 = vmatpush2.msra.mxu0 0.0
        %6718 = vmatprep.subr.mxu0 0.0
        %6719 = vmatpush2.msra.mxu0 0.0
        %6720 = vmatprep.subr.mxu0 0.0
        %6721 = vmatpush2.msra.mxu0 0.0
        %6722 = vmatprep.subr.mxu0 0.0
        %6723 = vmatpush2.msra.mxu0 0.0
        %6724 = vmatprep.subr.mxu0 0.0
        %6725 = vmatpush2.msra.mxu0 0.0
        %6726 = vmatprep.subr.mxu0 0.0
        %6727 = vmatpush2.msra.mxu0 0.0
        %6728 = vmatprep.subr.mxu0 0.0
        %6729 = vmatpush2.msra.mxu0 0.0
        %6730 = vmatprep.subr.mxu0 0.0
        %6731 = vmatpush2.msra.mxu0 0.0
        %6732 = vmatprep.subr.mxu0 0.0
        %6733 = vmatpush2.msra.mxu0 0.0
        %6734 = vmatprep.subr.mxu0 0.0
        %6735 = vmatpush2.msra.mxu0 0.0
        %6736 = vmatprep.subr.mxu0 0.0
        %6737 = vmatpush2.msra.mxu0 0.0
        %6738 = vmatprep.subr.mxu0 0.0
        %6739 = vmatpush2.msra.mxu0 0.0
        %6740 = vmatprep.subr.mxu0 0.0
        %6741 = vmatpush2.msra.mxu0 0.0
        %6742 = vmatprep.mubr.f32.mxu0 0.0
        %6743 = vmatmul.mubr.f32.gmra.mxu0 %v6676
        %v6744 = vpop.f32.mrf.mxu0
        %v6745 = vadd.f32 0.0, %v6744
        %v6746 = vpop.f32.mrf.mxu0
        %6747 = vdwg.mxu0
        %v6749 = vsel %vm4032, %v6745, 0
        %v6752 = vsel %vm4366, %v6096, 0
        %6754 = vmatprep.subr.mxu0 0.0
        %6755 = vmatpush1.msra.mxu0 0.0
        %6756 = vmatprep.subr.mxu0 0.0
        %6757 = vmatpush1.msra.mxu0 0.0
        %6758 = vmatprep.subr.mxu0 0.0
        %6759 = vmatpush1.msra.mxu0 0.0
        %6760 = vmatprep.subr.mxu0 0.0
        %6761 = vmatpush1.msra.mxu0 0.0
        %6762 = vmatprep.subr.mxu0 0.0
        %6763 = vmatpush1.msra.mxu0 0.0
        %6764 = vmatprep.subr.mxu0 0.0
        %6765 = vmatpush1.msra.mxu0 0.0
        %6766 = vmatprep.subr.mxu0 0.0
        %6767 = vmatpush1.msra.mxu0 0.0
        %6768 = vmatprep.subr.mxu0 0.0
        %6769 = vmatpush1.msra.mxu0 0.0
        %6770 = vmatprep.subr.mxu0 0.0
        %6771 = vmatpush1.msra.mxu0 0.0
        %6772 = vmatprep.subr.mxu0 0.0
        %6773 = vmatpush1.msra.mxu0 0.0
        %6774 = vmatprep.subr.mxu0 0.0
        %6775 = vmatpush1.msra.mxu0 0.0
        %6776 = vmatprep.subr.mxu0 0.0
        %6777 = vmatpush1.msra.mxu0 0.0
        %6778 = vmatprep.subr.mxu0 0.0
        %6779 = vmatpush1.msra.mxu0 0.0
        %6780 = vmatprep.subr.mxu0 0.0
        %6781 = vmatpush1.msra.mxu0 0.0
        %6782 = vmatprep.subr.mxu0 0.0
        %6783 = vmatpush1.msra.mxu0 0.0
        %6784 = vmatprep.subr.mxu0 0.0
        %6785 = vmatpush1.msra.mxu0 %v6752
        %6786 = vmatprep.subr.mxu0 0.0
        %6787 = vmatpush2.msra.mxu0 0.0
        %6788 = vmatprep.subr.mxu0 0.0
        %6789 = vmatpush2.msra.mxu0 0.0
        %6790 = vmatprep.subr.mxu0 0.0
        %6791 = vmatpush2.msra.mxu0 0.0
        %6792 = vmatprep.subr.mxu0 0.0
        %6793 = vmatpush2.msra.mxu0 0.0
        %6794 = vmatprep.subr.mxu0 0.0
        %6795 = vmatpush2.msra.mxu0 0.0
        %6796 = vmatprep.subr.mxu0 0.0
        %6797 = vmatpush2.msra.mxu0 0.0
        %6798 = vmatprep.subr.mxu0 0.0
        %6799 = vmatpush2.msra.mxu0 0.0
        %6800 = vmatprep.subr.mxu0 0.0
        %6801 = vmatpush2.msra.mxu0 0.0
        %6802 = vmatprep.subr.mxu0 0.0
        %6803 = vmatpush2.msra.mxu0 0.0
        %6804 = vmatprep.subr.mxu0 0.0
        %6805 = vmatpush2.msra.mxu0 0.0
        %6806 = vmatprep.subr.mxu0 0.0
        %6807 = vmatpush2.msra.mxu0 0.0
        %6808 = vmatprep.subr.mxu0 0.0
        %6809 = vmatpush2.msra.mxu0 0.0
        %6810 = vmatprep.subr.mxu0 0.0
        %6811 = vmatpush2.msra.mxu0 0.0
        %6812 = vmatprep.subr.mxu0 0.0
        %6813 = vmatpush2.msra.mxu0 0.0
        %6814 = vmatprep.subr.mxu0 0.0
        %6815 = vmatpush2.msra.mxu0 0.0
        %6816 = vmatprep.subr.mxu0 0.0
        %6817 = vmatpush2.msra.mxu0 0.0
        %6818 = vmatprep.mubr.f32.mxu0 0.0
        %6819 = vmatmul.mubr.f32.gmra.mxu0 %v6749
        %v6820 = vpop.f32.mrf.mxu0
        %v6821 = vadd.f32 0.0, %v6820
        %v6822 = vpop.f32.mrf.mxu0
        %6823 = vdwg.mxu0
        %v6824 = vadd.f32 %v6579, %v6821
        %6825 = vrot.lane.b32.xlu0 %v6092, 116
        %v6826 = vpop.permute.xlu0 %6825
        %6827 = vrot.lane.b32.xlu0 %v6092, 84
        %v6828 = vpop.permute.xlu0 %6827
        %v6829 = vsel %vm4032, %v6826, 0
        %v6831 = vsel %vm4032, %v6828, 0
        %6833 = vmatprep.subr.mxu0 0.0
        %6834 = vmatpush1.xpose.msra.mxu0 0.0
        %6835 = vmatprep.subr.mxu0 0.0
        %6836 = vmatpush1.xpose.msra.mxu0 0.0
        %6837 = vmatprep.subr.mxu0 0.0
        %6838 = vmatpush1.xpose.msra.mxu0 0.0
        %6839 = vmatprep.subr.mxu0 0.0
        %6840 = vmatpush1.xpose.msra.mxu0 0.0
        %6841 = vmatprep.subr.mxu0 0.0
        %6842 = vmatpush1.xpose.msra.mxu0 0.0
        %6843 = vmatprep.subr.mxu0 0.0
        %6844 = vmatpush1.xpose.msra.mxu0 0.0
        %6845 = vmatprep.subr.mxu0 0.0
        %6846 = vmatpush1.xpose.msra.mxu0 0.0
        %6847 = vmatprep.subr.mxu0 0.0
        %6848 = vmatpush1.xpose.msra.mxu0 0.0
        %6849 = vmatprep.subr.mxu0 0.0
        %6850 = vmatpush1.xpose.msra.mxu0 0.0
        %6851 = vmatprep.subr.mxu0 0.0
        %6852 = vmatpush1.xpose.msra.mxu0 0.0
        %6853 = vmatprep.subr.mxu0 0.0
        %6854 = vmatpush1.xpose.msra.mxu0 0.0
        %6855 = vmatprep.subr.mxu0 0.0
        %6856 = vmatpush1.xpose.msra.mxu0 0.0
        %6857 = vmatprep.subr.mxu0 0.0
        %6858 = vmatpush1.xpose.msra.mxu0 0.0
        %6859 = vmatprep.subr.mxu0 0.0
        %6860 = vmatpush1.xpose.msra.mxu0 0.0
        %6861 = vmatprep.subr.mxu0 0.0
        %6862 = vmatpush1.xpose.msra.mxu0 0.0
        %6863 = vmatprep.subr.mxu0 0.0
        %6864 = vmatpush1.xpose.msra.mxu0 %v6831
        %6865 = vmatprep.subr.mxu0 0.0
        %6866 = vmatpush2.xpose.msra.mxu0 0.0
        %6867 = vmatprep.subr.mxu0 0.0
        %6868 = vmatpush2.xpose.msra.mxu0 0.0
        %6869 = vmatprep.subr.mxu0 0.0
        %6870 = vmatpush2.xpose.msra.mxu0 0.0
        %6871 = vmatprep.subr.mxu0 0.0
        %6872 = vmatpush2.xpose.msra.mxu0 0.0
        %6873 = vmatprep.subr.mxu0 0.0
        %6874 = vmatpush2.xpose.msra.mxu0 0.0
        %6875 = vmatprep.subr.mxu0 0.0
        %6876 = vmatpush2.xpose.msra.mxu0 0.0
        %6877 = vmatprep.subr.mxu0 0.0
        %6878 = vmatpush2.xpose.msra.mxu0 0.0
        %6879 = vmatprep.subr.mxu0 0.0
        %6880 = vmatpush2.xpose.msra.mxu0 0.0
        %6881 = vmatprep.subr.mxu0 0.0
        %6882 = vmatpush2.xpose.msra.mxu0 0.0
        %6883 = vmatprep.subr.mxu0 0.0
        %6884 = vmatpush2.xpose.msra.mxu0 0.0
        %6885 = vmatprep.subr.mxu0 0.0
        %6886 = vmatpush2.xpose.msra.mxu0 0.0
        %6887 = vmatprep.subr.mxu0 0.0
        %6888 = vmatpush2.xpose.msra.mxu0 0.0
        %6889 = vmatprep.subr.mxu0 0.0
        %6890 = vmatpush2.xpose.msra.mxu0 0.0
        %6891 = vmatprep.subr.mxu0 0.0
        %6892 = vmatpush2.xpose.msra.mxu0 0.0
        %6893 = vmatprep.subr.mxu0 0.0
        %6894 = vmatpush2.xpose.msra.mxu0 0.0
        %6895 = vmatprep.subr.mxu0 0.0
        %6896 = vmatpush2.xpose.msra.mxu0 0.0
        %6897 = vmatprep.mubr.f32.mxu0 0.0
        %6898 = vmatmul.mubr.f32.gmra.mxu0 %v6829
        %v6899 = vpop.f32.mrf.mxu0
        %v6900 = vadd.f32 0.0, %v6899
        %v6901 = vpop.f32.mrf.mxu0
        %6902 = vdwg.mxu0
        %v6903 = vmul.f32 %v6900, 0.03608439
        %v6904 = vsel %vm3155, %v6903, -inf
        %6905 = vmax.xlane.f32.xlu0 %v6904
        %v6906 = vpop.xlane.xlu0 %6905
        %v6907 = vsub.f32 %v6903, %v6906
        %v6908 = vmul.f32 %v6907, 1.442695
        %v6909 = vpow.pop %v6908
        %v6910 = vsel %vm3155, %v6909, 0.0
        %6911 = vadd.xlane.f32.xlu0 %v6910
        %v6912 = vpop.xlane.xlu0 %6911
        %v6913 = vrcp.pop %v6912
        %v6914 = vmul.f32 %v6909, %v6913
        %6915 = vrot.lane.b32.xlu0 %v6092, 52
        %v6916 = vpop.permute.xlu0 %6915
        %v6919 = vsel %vm3155, %v6914, 0
        %6921 = vmatprep.subr.mxu0 0.0
        %6922 = vmatpush1.msra.mxu0 0.0
        %6923 = vmatprep.subr.mxu0 0.0
        %6924 = vmatpush1.msra.mxu0 0.0
        %6925 = vmatprep.subr.mxu0 0.0
        %6926 = vmatpush1.msra.mxu0 0.0
        %6927 = vmatprep.subr.mxu0 0.0
        %6928 = vmatpush1.msra.mxu0 0.0
        %6929 = vmatprep.subr.mxu0 0.0
        %6930 = vmatpush1.msra.mxu0 0.0
        %6931 = vmatprep.subr.mxu0 0.0
        %6932 = vmatpush1.msra.mxu0 0.0
        %6933 = vmatprep.subr.mxu0 0.0
        %6934 = vmatpush1.msra.mxu0 0.0
        %6935 = vmatprep.subr.mxu0 0.0
        %6936 = vmatpush1.msra.mxu0 0.0
        %6937 = vmatprep.subr.mxu0 0.0
        %6938 = vmatpush1.msra.mxu0 0.0
        %6939 = vmatprep.subr.mxu0 0.0
        %6940 = vmatpush1.msra.mxu0 0.0
        %6941 = vmatprep.subr.mxu0 0.0
        %6942 = vmatpush1.msra.mxu0 0.0
        %6943 = vmatprep.subr.mxu0 0.0
        %6944 = vmatpush1.msra.mxu0 0.0
        %6945 = vmatprep.subr.mxu0 0.0
        %6946 = vmatpush1.msra.mxu0 0.0
        %6947 = vmatprep.subr.mxu0 0.0
        %6948 = vmatpush1.msra.mxu0 0.0
        %6949 = vmatprep.subr.mxu0 0.0
        %6950 = vmatpush1.msra.mxu0 0.0
        %6951 = vmatprep.subr.mxu0 0.0
        %6952 = vmatpush1.msra.mxu0 %v6916
        %6953 = vmatprep.subr.mxu0 0.0
        %6954 = vmatpush2.msra.mxu0 0.0
        %6955 = vmatprep.subr.mxu0 0.0
        %6956 = vmatpush2.msra.mxu0 0.0
        %6957 = vmatprep.subr.mxu0 0.0
        %6958 = vmatpush2.msra.mxu0 0.0
        %6959 = vmatprep.subr.mxu0 0.0
        %6960 = vmatpush2.msra.mxu0 0.0
        %6961 = vmatprep.subr.mxu0 0.0
        %6962 = vmatpush2.msra.mxu0 0.0
        %6963 = vmatprep.subr.mxu0 0.0
        %6964 = vmatpush2.msra.mxu0 0.0
        %6965 = vmatprep.subr.mxu0 0.0
        %6966 = vmatpush2.msra.mxu0 0.0
        %6967 = vmatprep.subr.mxu0 0.0
        %6968 = vmatpush2.msra.mxu0 0.0
        %6969 = vmatprep.subr.mxu0 0.0
        %6970 = vmatpush2.msra.mxu0 0.0
        %6971 = vmatprep.subr.mxu0 0.0
        %6972 = vmatpush2.msra.mxu0 0.0
        %6973 = vmatprep.subr.mxu0 0.0
        %6974 = vmatpush2.msra.mxu0 0.0
        %6975 = vmatprep.subr.mxu0 0.0
        %6976 = vmatpush2.msra.mxu0 0.0
        %6977 = vmatprep.subr.mxu0 0.0
        %6978 = vmatpush2.msra.mxu0 0.0
        %6979 = vmatprep.subr.mxu0 0.0
        %6980 = vmatpush2.msra.mxu0 0.0
        %6981 = vmatprep.subr.mxu0 0.0
        %6982 = vmatpush2.msra.mxu0 0.0
        %6983 = vmatprep.subr.mxu0 0.0
        %6984 = vmatpush2.msra.mxu0 0.0
        %6985 = vmatprep.mubr.f32.mxu0 0.0
        %6986 = vmatmul.mubr.f32.gmra.mxu0 %v6919
        %v6987 = vpop.f32.mrf.mxu0
        %v6988 = vadd.f32 0.0, %v6987
        %v6989 = vpop.f32.mrf.mxu0
        %6990 = vdwg.mxu0
        %v6991 = vrot.slane %v6096, 4
        %v6993 = vsel %vm4032, %v6988, 0
        %v6995 = vsel %vm4366, %v6991, 0
        %6997 = vmatprep.subr.mxu0 0.0
        %6998 = vmatpush1.msra.mxu0 0.0
        %6999 = vmatprep.subr.mxu0 0.0
        %7000 = vmatpush1.msra.mxu0 0.0
        %7001 = vmatprep.subr.mxu0 0.0
        %7002 = vmatpush1.msra.mxu0 0.0
        %7003 = vmatprep.subr.mxu0 0.0
        %7004 = vmatpush1.msra.mxu0 0.0
        %7005 = vmatprep.subr.mxu0 0.0
        %7006 = vmatpush1.msra.mxu0 0.0
        %7007 = vmatprep.subr.mxu0 0.0
        %7008 = vmatpush1.msra.mxu0 0.0
        %7009 = vmatprep.subr.mxu0 0.0
        %7010 = vmatpush1.msra.mxu0 0.0
        %7011 = vmatprep.subr.mxu0 0.0
        %7012 = vmatpush1.msra.mxu0 0.0
        %7013 = vmatprep.subr.mxu0 0.0
        %7014 = vmatpush1.msra.mxu0 0.0
        %7015 = vmatprep.subr.mxu0 0.0
        %7016 = vmatpush1.msra.mxu0 0.0
        %7017 = vmatprep.subr.mxu0 0.0
        %7018 = vmatpush1.msra.mxu0 0.0
        %7019 = vmatprep.subr.mxu0 0.0
        %7020 = vmatpush1.msra.mxu0 0.0
        %7021 = vmatprep.subr.mxu0 0.0
        %7022 = vmatpush1.msra.mxu0 0.0
        %7023 = vmatprep.subr.mxu0 0.0
        %7024 = vmatpush1.msra.mxu0 0.0
        %7025 = vmatprep.subr.mxu0 0.0
        %7026 = vmatpush1.msra.mxu0 0.0
        %7027 = vmatprep.subr.mxu0 0.0
        %7028 = vmatpush1.msra.mxu0 %v6995
        %7029 = vmatprep.subr.mxu0 0.0
        %7030 = vmatpush2.msra.mxu0 0.0
        %7031 = vmatprep.subr.mxu0 0.0
        %7032 = vmatpush2.msra.mxu0 0.0
        %7033 = vmatprep.subr.mxu0 0.0
        %7034 = vmatpush2.msra.mxu0 0.0
        %7035 = vmatprep.subr.mxu0 0.0
        %7036 = vmatpush2.msra.mxu0 0.0
        %7037 = vmatprep.subr.mxu0 0.0
        %7038 = vmatpush2.msra.mxu0 0.0
        %7039 = vmatprep.subr.mxu0 0.0
        %7040 = vmatpush2.msra.mxu0 0.0
        %7041 = vmatprep.subr.mxu0 0.0
        %7042 = vmatpush2.msra.mxu0 0.0
        %7043 = vmatprep.subr.mxu0 0.0
        %7044 = vmatpush2.msra.mxu0 0.0
        %7045 = vmatprep.subr.mxu0 0.0
        %7046 = vmatpush2.msra.mxu0 0.0
        %7047 = vmatprep.subr.mxu0 0.0
        %7048 = vmatpush2.msra.mxu0 0.0
        %7049 = vmatprep.subr.mxu0 0.0
        %7050 = vmatpush2.msra.mxu0 0.0
        %7051 = vmatprep.subr.mxu0 0.0
        %7052 = vmatpush2.msra.mxu0 0.0
        %7053 = vmatprep.subr.mxu0 0.0
        %7054 = vmatpush2.msra.mxu0 0.0
        %7055 = vmatprep.subr.mxu0 0.0
        %7056 = vmatpush2.msra.mxu0 0.0
        %7057 = vmatprep.subr.mxu0 0.0
        %7058 = vmatpush2.msra.mxu0 0.0
        %7059 = vmatprep.subr.mxu0 0.0
        %7060 = vmatpush2.msra.mxu0 0.0
        %7061 = vmatprep.mubr.f32.mxu0 0.0
        %7062 = vmatmul.mubr.f32.gmra.mxu0 %v6993
        %v7063 = vpop.f32.mrf.mxu0
        %v7064 = vadd.f32 0.0, %v7063
        %v7065 = vpop.f32.mrf.mxu0
        %7066 = vdwg.mxu0
        %v7067 = vadd.f32 %v6824, %v7064
        %7068 = vrot.lane.b32.xlu0 %v6092, 112
        %v7069 = vpop.permute.xlu0 %7068
        %7070 = vrot.lane.b32.xlu0 %v6092, 80
        %v7071 = vpop.permute.xlu0 %7070
        %v7072 = vsel %vm4032, %v7069, 0
        %v7074 = vsel %vm4032, %v7071, 0
        %7076 = vmatprep.subr.mxu0 0.0
        %7077 = vmatpush1.xpose.msra.mxu0 0.0
        %7078 = vmatprep.subr.mxu0 0.0
        %7079 = vmatpush1.xpose.msra.mxu0 0.0
        %7080 = vmatprep.subr.mxu0 0.0
        %7081 = vmatpush1.xpose.msra.mxu0 0.0
        %7082 = vmatprep.subr.mxu0 0.0
        %7083 = vmatpush1.xpose.msra.mxu0 0.0
        %7084 = vmatprep.subr.mxu0 0.0
        %7085 = vmatpush1.xpose.msra.mxu0 0.0
        %7086 = vmatprep.subr.mxu0 0.0
        %7087 = vmatpush1.xpose.msra.mxu0 0.0
        %7088 = vmatprep.subr.mxu0 0.0
        %7089 = vmatpush1.xpose.msra.mxu0 0.0
        %7090 = vmatprep.subr.mxu0 0.0
        %7091 = vmatpush1.xpose.msra.mxu0 0.0
        %7092 = vmatprep.subr.mxu0 0.0
        %7093 = vmatpush1.xpose.msra.mxu0 0.0
        %7094 = vmatprep.subr.mxu0 0.0
        %7095 = vmatpush1.xpose.msra.mxu0 0.0
        %7096 = vmatprep.subr.mxu0 0.0
        %7097 = vmatpush1.xpose.msra.mxu0 0.0
        %7098 = vmatprep.subr.mxu0 0.0
        %7099 = vmatpush1.xpose.msra.mxu0 0.0
        %7100 = vmatprep.subr.mxu0 0.0
        %7101 = vmatpush1.xpose.msra.mxu0 0.0
        %7102 = vmatprep.subr.mxu0 0.0
        %7103 = vmatpush1.xpose.msra.mxu0 0.0
        %7104 = vmatprep.subr.mxu0 0.0
        %7105 = vmatpush1.xpose.msra.mxu0 0.0
        %7106 = vmatprep.subr.mxu0 0.0
        %7107 = vmatpush1.xpose.msra.mxu0 %v7074
        %7108 = vmatprep.subr.mxu0 0.0
        %7109 = vmatpush2.xpose.msra.mxu0 0.0
        %7110 = vmatprep.subr.mxu0 0.0
        %7111 = vmatpush2.xpose.msra.mxu0 0.0
        %7112 = vmatprep.subr.mxu0 0.0
        %7113 = vmatpush2.xpose.msra.mxu0 0.0
        %7114 = vmatprep.subr.mxu0 0.0
        %7115 = vmatpush2.xpose.msra.mxu0 0.0
        %7116 = vmatprep.subr.mxu0 0.0
        %7117 = vmatpush2.xpose.msra.mxu0 0.0
        %7118 = vmatprep.subr.mxu0 0.0
        %7119 = vmatpush2.xpose.msra.mxu0 0.0
        %7120 = vmatprep.subr.mxu0 0.0
        %7121 = vmatpush2.xpose.msra.mxu0 0.0
        %7122 = vmatprep.subr.mxu0 0.0
        %7123 = vmatpush2.xpose.msra.mxu0 0.0
        %7124 = vmatprep.subr.mxu0 0.0
        %7125 = vmatpush2.xpose.msra.mxu0 0.0
        %7126 = vmatprep.subr.mxu0 0.0
        %7127 = vmatpush2.xpose.msra.mxu0 0.0
        %7128 = vmatprep.subr.mxu0 0.0
        %7129 = vmatpush2.xpose.msra.mxu0 0.0
        %7130 = vmatprep.subr.mxu0 0.0
        %7131 = vmatpush2.xpose.msra.mxu0 0.0
        %7132 = vmatprep.subr.mxu0 0.0
        %7133 = vmatpush2.xpose.msra.mxu0 0.0
        %7134 = vmatprep.subr.mxu0 0.0
        %7135 = vmatpush2.xpose.msra.mxu0 0.0
        %7136 = vmatprep.subr.mxu0 0.0
        %7137 = vmatpush2.xpose.msra.mxu0 0.0
        %7138 = vmatprep.subr.mxu0 0.0
        %7139 = vmatpush2.xpose.msra.mxu0 0.0
        %7140 = vmatprep.mubr.f32.mxu0 0.0
        %7141 = vmatmul.mubr.f32.gmra.mxu0 %v7072
        %v7142 = vpop.f32.mrf.mxu0
        %v7143 = vadd.f32 0.0, %v7142
        %v7144 = vpop.f32.mrf.mxu0
        %7145 = vdwg.mxu0
        %v7146 = vmul.f32 %v7143, 0.03608439
        %v7147 = vsel %vm3155, %v7146, -inf
        %7148 = vmax.xlane.f32.xlu0 %v7147
        %v7149 = vpop.xlane.xlu0 %7148
        %v7150 = vsub.f32 %v7146, %v7149
        %v7151 = vmul.f32 %v7150, 1.442695
        %v7152 = vpow.pop %v7151
        %v7153 = vsel %vm3155, %v7152, 0.0
        %7154 = vadd.xlane.f32.xlu0 %v7153
        %v7155 = vpop.xlane.xlu0 %7154
        %v7156 = vrcp.pop %v7155
        %v7157 = vmul.f32 %v7152, %v7156
        %7158 = vrot.lane.b32.xlu0 %v6092, 48
        %v7159 = vpop.permute.xlu0 %7158
        %v7162 = vsel %vm3155, %v7157, 0
        %7164 = vmatprep.subr.mxu0 0.0
        %7165 = vmatpush1.msra.mxu0 0.0
        %7166 = vmatprep.subr.mxu0 0.0
        %7167 = vmatpush1.msra.mxu0 0.0
        %7168 = vmatprep.subr.mxu0 0.0
        %7169 = vmatpush1.msra.mxu0 0.0
        %7170 = vmatprep.subr.mxu0 0.0
        %7171 = vmatpush1.msra.mxu0 0.0
        %7172 = vmatprep.subr.mxu0 0.0
        %7173 = vmatpush1.msra.mxu0 0.0
        %7174 = vmatprep.subr.mxu0 0.0
        %7175 = vmatpush1.msra.mxu0 0.0
        %7176 = vmatprep.subr.mxu0 0.0
        %7177 = vmatpush1.msra.mxu0 0.0
        %7178 = vmatprep.subr.mxu0 0.0
        %7179 = vmatpush1.msra.mxu0 0.0
        %7180 = vmatprep.subr.mxu0 0.0
        %7181 = vmatpush1.msra.mxu0 0.0
        %7182 = vmatprep.subr.mxu0 0.0
        %7183 = vmatpush1.msra.mxu0 0.0
        %7184 = vmatprep.subr.mxu0 0.0
        %7185 = vmatpush1.msra.mxu0 0.0
        %7186 = vmatprep.subr.mxu0 0.0
        %7187 = vmatpush1.msra.mxu0 0.0
        %7188 = vmatprep.subr.mxu0 0.0
        %7189 = vmatpush1.msra.mxu0 0.0
        %7190 = vmatprep.subr.mxu0 0.0
        %7191 = vmatpush1.msra.mxu0 0.0
        %7192 = vmatprep.subr.mxu0 0.0
        %7193 = vmatpush1.msra.mxu0 0.0
        %7194 = vmatprep.subr.mxu0 0.0
        %7195 = vmatpush1.msra.mxu0 %v7159
        %7196 = vmatprep.subr.mxu0 0.0
        %7197 = vmatpush2.msra.mxu0 0.0
        %7198 = vmatprep.subr.mxu0 0.0
        %7199 = vmatpush2.msra.mxu0 0.0
        %7200 = vmatprep.subr.mxu0 0.0
        %7201 = vmatpush2.msra.mxu0 0.0
        %7202 = vmatprep.subr.mxu0 0.0
        %7203 = vmatpush2.msra.mxu0 0.0
        %7204 = vmatprep.subr.mxu0 0.0
        %7205 = vmatpush2.msra.mxu0 0.0
        %7206 = vmatprep.subr.mxu0 0.0
        %7207 = vmatpush2.msra.mxu0 0.0
        %7208 = vmatprep.subr.mxu0 0.0
        %7209 = vmatpush2.msra.mxu0 0.0
        %7210 = vmatprep.subr.mxu0 0.0
        %7211 = vmatpush2.msra.mxu0 0.0
        %7212 = vmatprep.subr.mxu0 0.0
        %7213 = vmatpush2.msra.mxu0 0.0
        %7214 = vmatprep.subr.mxu0 0.0
        %7215 = vmatpush2.msra.mxu0 0.0
        %7216 = vmatprep.subr.mxu0 0.0
        %7217 = vmatpush2.msra.mxu0 0.0
        %7218 = vmatprep.subr.mxu0 0.0
        %7219 = vmatpush2.msra.mxu0 0.0
        %7220 = vmatprep.subr.mxu0 0.0
        %7221 = vmatpush2.msra.mxu0 0.0
        %7222 = vmatprep.subr.mxu0 0.0
        %7223 = vmatpush2.msra.mxu0 0.0
        %7224 = vmatprep.subr.mxu0 0.0
        %7225 = vmatpush2.msra.mxu0 0.0
        %7226 = vmatprep.subr.mxu0 0.0
        %7227 = vmatpush2.msra.mxu0 0.0
        %7228 = vmatprep.mubr.f32.mxu0 0.0
        %7229 = vmatmul.mubr.f32.gmra.mxu0 %v7162
        %v7230 = vpop.f32.mrf.mxu0
        %v7231 = vadd.f32 0.0, %v7230
        %v7232 = vpop.f32.mrf.mxu0
        %7233 = vdwg.mxu0
        %v7235 = vsel %vm4032, %v7231, 0
        %v7238 = vsel %vm4366, %v6097, 0
        %7240 = vmatprep.subr.mxu0 0.0
        %7241 = vmatpush1.msra.mxu0 0.0
        %7242 = vmatprep.subr.mxu0 0.0
        %7243 = vmatpush1.msra.mxu0 0.0
        %7244 = vmatprep.subr.mxu0 0.0
        %7245 = vmatpush1.msra.mxu0 0.0
        %7246 = vmatprep.subr.mxu0 0.0
        %7247 = vmatpush1.msra.mxu0 0.0
        %7248 = vmatprep.subr.mxu0 0.0
        %7249 = vmatpush1.msra.mxu0 0.0
        %7250 = vmatprep.subr.mxu0 0.0
        %7251 = vmatpush1.msra.mxu0 0.0
        %7252 = vmatprep.subr.mxu0 0.0
        %7253 = vmatpush1.msra.mxu0 0.0
        %7254 = vmatprep.subr.mxu0 0.0
        %7255 = vmatpush1.msra.mxu0 0.0
        %7256 = vmatprep.subr.mxu0 0.0
        %7257 = vmatpush1.msra.mxu0 0.0
        %7258 = vmatprep.subr.mxu0 0.0
        %7259 = vmatpush1.msra.mxu0 0.0
        %7260 = vmatprep.subr.mxu0 0.0
        %7261 = vmatpush1.msra.mxu0 0.0
        %7262 = vmatprep.subr.mxu0 0.0
        %7263 = vmatpush1.msra.mxu0 0.0
        %7264 = vmatprep.subr.mxu0 0.0
        %7265 = vmatpush1.msra.mxu0 0.0
        %7266 = vmatprep.subr.mxu0 0.0
        %7267 = vmatpush1.msra.mxu0 0.0
        %7268 = vmatprep.subr.mxu0 0.0
        %7269 = vmatpush1.msra.mxu0 0.0
        %7270 = vmatprep.subr.mxu0 0.0
        %7271 = vmatpush1.msra.mxu0 %v7238
        %7272 = vmatprep.subr.mxu0 0.0
        %7273 = vmatpush2.msra.mxu0 0.0
        %7274 = vmatprep.subr.mxu0 0.0
        %7275 = vmatpush2.msra.mxu0 0.0
        %7276 = vmatprep.subr.mxu0 0.0
        %7277 = vmatpush2.msra.mxu0 0.0
        %7278 = vmatprep.subr.mxu0 0.0
        %7279 = vmatpush2.msra.mxu0 0.0
        %7280 = vmatprep.subr.mxu0 0.0
        %7281 = vmatpush2.msra.mxu0 0.0
        %7282 = vmatprep.subr.mxu0 0.0
        %7283 = vmatpush2.msra.mxu0 0.0
        %7284 = vmatprep.subr.mxu0 0.0
        %7285 = vmatpush2.msra.mxu0 0.0
        %7286 = vmatprep.subr.mxu0 0.0
        %7287 = vmatpush2.msra.mxu0 0.0
        %7288 = vmatprep.subr.mxu0 0.0
        %7289 = vmatpush2.msra.mxu0 0.0
        %7290 = vmatprep.subr.mxu0 0.0
        %7291 = vmatpush2.msra.mxu0 0.0
        %7292 = vmatprep.subr.mxu0 0.0
        %7293 = vmatpush2.msra.mxu0 0.0
        %7294 = vmatprep.subr.mxu0 0.0
        %7295 = vmatpush2.msra.mxu0 0.0
        %7296 = vmatprep.subr.mxu0 0.0
        %7297 = vmatpush2.msra.mxu0 0.0
        %7298 = vmatprep.subr.mxu0 0.0
        %7299 = vmatpush2.msra.mxu0 0.0
        %7300 = vmatprep.subr.mxu0 0.0
        %7301 = vmatpush2.msra.mxu0 0.0
        %7302 = vmatprep.subr.mxu0 0.0
        %7303 = vmatpush2.msra.mxu0 0.0
        %7304 = vmatprep.mubr.f32.mxu0 0.0
        %7305 = vmatmul.mubr.f32.gmra.mxu0 %v7235
        %v7306 = vpop.f32.mrf.mxu0
        %v7307 = vadd.f32 0.0, %v7306
        %v7308 = vpop.f32.mrf.mxu0
        %7309 = vdwg.mxu0
        %v7310 = vadd.f32 %v7067, %v7307
        %7311 = vrot.lane.b32.xlu0 %v6092, 108
        %v7312 = vpop.permute.xlu0 %7311
        %7313 = vrot.lane.b32.xlu0 %v6092, 76
        %v7314 = vpop.permute.xlu0 %7313
        %v7315 = vsel %vm4032, %v7312, 0
        %v7317 = vsel %vm4032, %v7314, 0
        %7319 = vmatprep.subr.mxu0 0.0
        %7320 = vmatpush1.xpose.msra.mxu0 0.0
        %7321 = vmatprep.subr.mxu0 0.0
        %7322 = vmatpush1.xpose.msra.mxu0 0.0
        %7323 = vmatprep.subr.mxu0 0.0
        %7324 = vmatpush1.xpose.msra.mxu0 0.0
        %7325 = vmatprep.subr.mxu0 0.0
        %7326 = vmatpush1.xpose.msra.mxu0 0.0
        %7327 = vmatprep.subr.mxu0 0.0
        %7328 = vmatpush1.xpose.msra.mxu0 0.0
        %7329 = vmatprep.subr.mxu0 0.0
        %7330 = vmatpush1.xpose.msra.mxu0 0.0
        %7331 = vmatprep.subr.mxu0 0.0
        %7332 = vmatpush1.xpose.msra.mxu0 0.0
        %7333 = vmatprep.subr.mxu0 0.0
        %7334 = vmatpush1.xpose.msra.mxu0 0.0
        %7335 = vmatprep.subr.mxu0 0.0
        %7336 = vmatpush1.xpose.msra.mxu0 0.0
        %7337 = vmatprep.subr.mxu0 0.0
        %7338 = vmatpush1.xpose.msra.mxu0 0.0
        %7339 = vmatprep.subr.mxu0 0.0
        %7340 = vmatpush1.xpose.msra.mxu0 0.0
        %7341 = vmatprep.subr.mxu0 0.0
        %7342 = vmatpush1.xpose.msra.mxu0 0.0
        %7343 = vmatprep.subr.mxu0 0.0
        %7344 = vmatpush1.xpose.msra.mxu0 0.0
        %7345 = vmatprep.subr.mxu0 0.0
        %7346 = vmatpush1.xpose.msra.mxu0 0.0
        %7347 = vmatprep.subr.mxu0 0.0
        %7348 = vmatpush1.xpose.msra.mxu0 0.0
        %7349 = vmatprep.subr.mxu0 0.0
        %7350 = vmatpush1.xpose.msra.mxu0 %v7317
        %7351 = vmatprep.subr.mxu0 0.0
        %7352 = vmatpush2.xpose.msra.mxu0 0.0
        %7353 = vmatprep.subr.mxu0 0.0
        %7354 = vmatpush2.xpose.msra.mxu0 0.0
        %7355 = vmatprep.subr.mxu0 0.0
        %7356 = vmatpush2.xpose.msra.mxu0 0.0
        %7357 = vmatprep.subr.mxu0 0.0
        %7358 = vmatpush2.xpose.msra.mxu0 0.0
        %7359 = vmatprep.subr.mxu0 0.0
        %7360 = vmatpush2.xpose.msra.mxu0 0.0
        %7361 = vmatprep.subr.mxu0 0.0
        %7362 = vmatpush2.xpose.msra.mxu0 0.0
        %7363 = vmatprep.subr.mxu0 0.0
        %7364 = vmatpush2.xpose.msra.mxu0 0.0
        %7365 = vmatprep.subr.mxu0 0.0
        %7366 = vmatpush2.xpose.msra.mxu0 0.0
        %7367 = vmatprep.subr.mxu0 0.0
        %7368 = vmatpush2.xpose.msra.mxu0 0.0
        %7369 = vmatprep.subr.mxu0 0.0
        %7370 = vmatpush2.xpose.msra.mxu0 0.0
        %7371 = vmatprep.subr.mxu0 0.0
        %7372 = vmatpush2.xpose.msra.mxu0 0.0
        %7373 = vmatprep.subr.mxu0 0.0
        %7374 = vmatpush2.xpose.msra.mxu0 0.0
        %7375 = vmatprep.subr.mxu0 0.0
        %7376 = vmatpush2.xpose.msra.mxu0 0.0
        %7377 = vmatprep.subr.mxu0 0.0
        %7378 = vmatpush2.xpose.msra.mxu0 0.0
        %7379 = vmatprep.subr.mxu0 0.0
        %7380 = vmatpush2.xpose.msra.mxu0 0.0
        %7381 = vmatprep.subr.mxu0 0.0
        %7382 = vmatpush2.xpose.msra.mxu0 0.0
        %7383 = vmatprep.mubr.f32.mxu0 0.0
        %7384 = vmatmul.mubr.f32.gmra.mxu0 %v7315
        %v7385 = vpop.f32.mrf.mxu0
        %v7386 = vadd.f32 0.0, %v7385
        %v7387 = vpop.f32.mrf.mxu0
        %7388 = vdwg.mxu0
        %v7389 = vmul.f32 %v7386, 0.03608439
        %v7390 = vsel %vm3155, %v7389, -inf
        %7391 = vmax.xlane.f32.xlu0 %v7390
        %v7392 = vpop.xlane.xlu0 %7391
        %v7393 = vsub.f32 %v7389, %v7392
        %v7394 = vmul.f32 %v7393, 1.442695
        %v7395 = vpow.pop %v7394
        %v7396 = vsel %vm3155, %v7395, 0.0
        %7397 = vadd.xlane.f32.xlu0 %v7396
        %v7398 = vpop.xlane.xlu0 %7397
        %v7399 = vrcp.pop %v7398
        %v7400 = vmul.f32 %v7395, %v7399
        %7401 = vrot.lane.b32.xlu0 %v6092, 44
        %v7402 = vpop.permute.xlu0 %7401
        %v7405 = vsel %vm3155, %v7400, 0
        %7407 = vmatprep.subr.mxu0 0.0
        %7408 = vmatpush1.msra.mxu0 0.0
        %7409 = vmatprep.subr.mxu0 0.0
        %7410 = vmatpush1.msra.mxu0 0.0
        %7411 = vmatprep.subr.mxu0 0.0
        %7412 = vmatpush1.msra.mxu0 0.0
        %7413 = vmatprep.subr.mxu0 0.0
        %7414 = vmatpush1.msra.mxu0 0.0
        %7415 = vmatprep.subr.mxu0 0.0
        %7416 = vmatpush1.msra.mxu0 0.0
        %7417 = vmatprep.subr.mxu0 0.0
        %7418 = vmatpush1.msra.mxu0 0.0
        %7419 = vmatprep.subr.mxu0 0.0
        %7420 = vmatpush1.msra.mxu0 0.0
        %7421 = vmatprep.subr.mxu0 0.0
        %7422 = vmatpush1.msra.mxu0 0.0
        %7423 = vmatprep.subr.mxu0 0.0
        %7424 = vmatpush1.msra.mxu0 0.0
        %7425 = vmatprep.subr.mxu0 0.0
        %7426 = vmatpush1.msra.mxu0 0.0
        %7427 = vmatprep.subr.mxu0 0.0
        %7428 = vmatpush1.msra.mxu0 0.0
        %7429 = vmatprep.subr.mxu0 0.0
        %7430 = vmatpush1.msra.mxu0 0.0
        %7431 = vmatprep.subr.mxu0 0.0
        %7432 = vmatpush1.msra.mxu0 0.0
        %7433 = vmatprep.subr.mxu0 0.0
        %7434 = vmatpush1.msra.mxu0 0.0
        %7435 = vmatprep.subr.mxu0 0.0
        %7436 = vmatpush1.msra.mxu0 0.0
        %7437 = vmatprep.subr.mxu0 0.0
        %7438 = vmatpush1.msra.mxu0 %v7402
        %7439 = vmatprep.subr.mxu0 0.0
        %7440 = vmatpush2.msra.mxu0 0.0
        %7441 = vmatprep.subr.mxu0 0.0
        %7442 = vmatpush2.msra.mxu0 0.0
        %7443 = vmatprep.subr.mxu0 0.0
        %7444 = vmatpush2.msra.mxu0 0.0
        %7445 = vmatprep.subr.mxu0 0.0
        %7446 = vmatpush2.msra.mxu0 0.0
        %7447 = vmatprep.subr.mxu0 0.0
        %7448 = vmatpush2.msra.mxu0 0.0
        %7449 = vmatprep.subr.mxu0 0.0
        %7450 = vmatpush2.msra.mxu0 0.0
        %7451 = vmatprep.subr.mxu0 0.0
        %7452 = vmatpush2.msra.mxu0 0.0
        %7453 = vmatprep.subr.mxu0 0.0
        %7454 = vmatpush2.msra.mxu0 0.0
        %7455 = vmatprep.subr.mxu0 0.0
        %7456 = vmatpush2.msra.mxu0 0.0
        %7457 = vmatprep.subr.mxu0 0.0
        %7458 = vmatpush2.msra.mxu0 0.0
        %7459 = vmatprep.subr.mxu0 0.0
        %7460 = vmatpush2.msra.mxu0 0.0
        %7461 = vmatprep.subr.mxu0 0.0
        %7462 = vmatpush2.msra.mxu0 0.0
        %7463 = vmatprep.subr.mxu0 0.0
        %7464 = vmatpush2.msra.mxu0 0.0
        %7465 = vmatprep.subr.mxu0 0.0
        %7466 = vmatpush2.msra.mxu0 0.0
        %7467 = vmatprep.subr.mxu0 0.0
        %7468 = vmatpush2.msra.mxu0 0.0
        %7469 = vmatprep.subr.mxu0 0.0
        %7470 = vmatpush2.msra.mxu0 0.0
        %7471 = vmatprep.mubr.f32.mxu0 0.0
        %7472 = vmatmul.mubr.f32.gmra.mxu0 %v7405
        %v7473 = vpop.f32.mrf.mxu0
        %v7474 = vadd.f32 0.0, %v7473
        %v7475 = vpop.f32.mrf.mxu0
        %7476 = vdwg.mxu0
        %v7477 = vrot.slane %v6097, 4
        %v7479 = vsel %vm4032, %v7474, 0
        %v7481 = vsel %vm4366, %v7477, 0
        %7483 = vmatprep.subr.mxu0 0.0
        %7484 = vmatpush1.msra.mxu0 0.0
        %7485 = vmatprep.subr.mxu0 0.0
        %7486 = vmatpush1.msra.mxu0 0.0
        %7487 = vmatprep.subr.mxu0 0.0
        %7488 = vmatpush1.msra.mxu0 0.0
        %7489 = vmatprep.subr.mxu0 0.0
        %7490 = vmatpush1.msra.mxu0 0.0
        %7491 = vmatprep.subr.mxu0 0.0
        %7492 = vmatpush1.msra.mxu0 0.0
        %7493 = vmatprep.subr.mxu0 0.0
        %7494 = vmatpush1.msra.mxu0 0.0
        %7495 = vmatprep.subr.mxu0 0.0
        %7496 = vmatpush1.msra.mxu0 0.0
        %7497 = vmatprep.subr.mxu0 0.0
        %7498 = vmatpush1.msra.mxu0 0.0
        %7499 = vmatprep.subr.mxu0 0.0
        %7500 = vmatpush1.msra.mxu0 0.0
        %7501 = vmatprep.subr.mxu0 0.0
        %7502 = vmatpush1.msra.mxu0 0.0
        %7503 = vmatprep.subr.mxu0 0.0
        %7504 = vmatpush1.msra.mxu0 0.0
        %7505 = vmatprep.subr.mxu0 0.0
        %7506 = vmatpush1.msra.mxu0 0.0
        %7507 = vmatprep.subr.mxu0 0.0
        %7508 = vmatpush1.msra.mxu0 0.0
        %7509 = vmatprep.subr.mxu0 0.0
        %7510 = vmatpush1.msra.mxu0 0.0
        %7511 = vmatprep.subr.mxu0 0.0
        %7512 = vmatpush1.msra.mxu0 0.0
        %7513 = vmatprep.subr.mxu0 0.0
        %7514 = vmatpush1.msra.mxu0 %v7481
        %7515 = vmatprep.subr.mxu0 0.0
        %7516 = vmatpush2.msra.mxu0 0.0
        %7517 = vmatprep.subr.mxu0 0.0
        %7518 = vmatpush2.msra.mxu0 0.0
        %7519 = vmatprep.subr.mxu0 0.0
        %7520 = vmatpush2.msra.mxu0 0.0
        %7521 = vmatprep.subr.mxu0 0.0
        %7522 = vmatpush2.msra.mxu0 0.0
        %7523 = vmatprep.subr.mxu0 0.0
        %7524 = vmatpush2.msra.mxu0 0.0
        %7525 = vmatprep.subr.mxu0 0.0
        %7526 = vmatpush2.msra.mxu0 0.0
        %7527 = vmatprep.subr.mxu0 0.0
        %7528 = vmatpush2.msra.mxu0 0.0
        %7529 = vmatprep.subr.mxu0 0.0
        %7530 = vmatpush2.msra.mxu0 0.0
        %7531 = vmatprep.subr.mxu0 0.0
        %7532 = vmatpush2.msra.mxu0 0.0
        %7533 = vmatprep.subr.mxu0 0.0
        %7534 = vmatpush2.msra.mxu0 0.0
        %7535 = vmatprep.subr.mxu0 0.0
        %7536 = vmatpush2.msra.mxu0 0.0
        %7537 = vmatprep.subr.mxu0 0.0
        %7538 = vmatpush2.msra.mxu0 0.0
        %7539 = vmatprep.subr.mxu0 0.0
        %7540 = vmatpush2.msra.mxu0 0.0
        %7541 = vmatprep.subr.mxu0 0.0
        %7542 = vmatpush2.msra.mxu0 0.0
        %7543 = vmatprep.subr.mxu0 0.0
        %7544 = vmatpush2.msra.mxu0 0.0
        %7545 = vmatprep.subr.mxu0 0.0
        %7546 = vmatpush2.msra.mxu0 0.0
        %7547 = vmatprep.mubr.f32.mxu0 0.0
        %7548 = vmatmul.mubr.f32.gmra.mxu0 %v7479
        %v7549 = vpop.f32.mrf.mxu0
        %v7550 = vadd.f32 0.0, %v7549
        %v7551 = vpop.f32.mrf.mxu0
        %7552 = vdwg.mxu0
        %v7553 = vadd.f32 %v7310, %v7550
        %7554 = vrot.lane.b32.xlu0 %v6092, 104
        %v7555 = vpop.permute.xlu0 %7554
        %7556 = vrot.lane.b32.xlu0 %v6092, 72
        %v7557 = vpop.permute.xlu0 %7556
        %v7558 = vsel %vm4032, %v7555, 0
        %v7560 = vsel %vm4032, %v7557, 0
        %7562 = vmatprep.subr.mxu0 0.0
        %7563 = vmatpush1.xpose.msra.mxu0 0.0
        %7564 = vmatprep.subr.mxu0 0.0
        %7565 = vmatpush1.xpose.msra.mxu0 0.0
        %7566 = vmatprep.subr.mxu0 0.0
        %7567 = vmatpush1.xpose.msra.mxu0 0.0
        %7568 = vmatprep.subr.mxu0 0.0
        %7569 = vmatpush1.xpose.msra.mxu0 0.0
        %7570 = vmatprep.subr.mxu0 0.0
        %7571 = vmatpush1.xpose.msra.mxu0 0.0
        %7572 = vmatprep.subr.mxu0 0.0
        %7573 = vmatpush1.xpose.msra.mxu0 0.0
        %7574 = vmatprep.subr.mxu0 0.0
        %7575 = vmatpush1.xpose.msra.mxu0 0.0
        %7576 = vmatprep.subr.mxu0 0.0
        %7577 = vmatpush1.xpose.msra.mxu0 0.0
        %7578 = vmatprep.subr.mxu0 0.0
        %7579 = vmatpush1.xpose.msra.mxu0 0.0
        %7580 = vmatprep.subr.mxu0 0.0
        %7581 = vmatpush1.xpose.msra.mxu0 0.0
        %7582 = vmatprep.subr.mxu0 0.0
        %7583 = vmatpush1.xpose.msra.mxu0 0.0
        %7584 = vmatprep.subr.mxu0 0.0
        %7585 = vmatpush1.xpose.msra.mxu0 0.0
        %7586 = vmatprep.subr.mxu0 0.0
        %7587 = vmatpush1.xpose.msra.mxu0 0.0
        %7588 = vmatprep.subr.mxu0 0.0
        %7589 = vmatpush1.xpose.msra.mxu0 0.0
        %7590 = vmatprep.subr.mxu0 0.0
        %7591 = vmatpush1.xpose.msra.mxu0 0.0
        %7592 = vmatprep.subr.mxu0 0.0
        %7593 = vmatpush1.xpose.msra.mxu0 %v7560
        %7594 = vmatprep.subr.mxu0 0.0
        %7595 = vmatpush2.xpose.msra.mxu0 0.0
        %7596 = vmatprep.subr.mxu0 0.0
        %7597 = vmatpush2.xpose.msra.mxu0 0.0
        %7598 = vmatprep.subr.mxu0 0.0
        %7599 = vmatpush2.xpose.msra.mxu0 0.0
        %7600 = vmatprep.subr.mxu0 0.0
        %7601 = vmatpush2.xpose.msra.mxu0 0.0
        %7602 = vmatprep.subr.mxu0 0.0
        %7603 = vmatpush2.xpose.msra.mxu0 0.0
        %7604 = vmatprep.subr.mxu0 0.0
        %7605 = vmatpush2.xpose.msra.mxu0 0.0
        %7606 = vmatprep.subr.mxu0 0.0
        %7607 = vmatpush2.xpose.msra.mxu0 0.0
        %7608 = vmatprep.subr.mxu0 0.0
        %7609 = vmatpush2.xpose.msra.mxu0 0.0
        %7610 = vmatprep.subr.mxu0 0.0
        %7611 = vmatpush2.xpose.msra.mxu0 0.0
        %7612 = vmatprep.subr.mxu0 0.0
        %7613 = vmatpush2.xpose.msra.mxu0 0.0
        %7614 = vmatprep.subr.mxu0 0.0
        %7615 = vmatpush2.xpose.msra.mxu0 0.0
        %7616 = vmatprep.subr.mxu0 0.0
        %7617 = vmatpush2.xpose.msra.mxu0 0.0
        %7618 = vmatprep.subr.mxu0 0.0
        %7619 = vmatpush2.xpose.msra.mxu0 0.0
        %7620 = vmatprep.subr.mxu0 0.0
        %7621 = vmatpush2.xpose.msra.mxu0 0.0
        %7622 = vmatprep.subr.mxu0 0.0
        %7623 = vmatpush2.xpose.msra.mxu0 0.0
        %7624 = vmatprep.subr.mxu0 0.0
        %7625 = vmatpush2.xpose.msra.mxu0 0.0
        %7626 = vmatprep.mubr.f32.mxu0 0.0
        %7627 = vmatmul.mubr.f32.gmra.mxu0 %v7558
        %v7628 = vpop.f32.mrf.mxu0
        %v7629 = vadd.f32 0.0, %v7628
        %v7630 = vpop.f32.mrf.mxu0
        %7631 = vdwg.mxu0
        %v7632 = vmul.f32 %v7629, 0.03608439
        %v7633 = vsel %vm3155, %v7632, -inf
        %7634 = vmax.xlane.f32.xlu0 %v7633
        %v7635 = vpop.xlane.xlu0 %7634
        %v7636 = vsub.f32 %v7632, %v7635
        %v7637 = vmul.f32 %v7636, 1.442695
        %v7638 = vpow.pop %v7637
        %v7639 = vsel %vm3155, %v7638, 0.0
        %7640 = vadd.xlane.f32.xlu0 %v7639
        %v7641 = vpop.xlane.xlu0 %7640
        %v7642 = vrcp.pop %v7641
        %v7643 = vmul.f32 %v7638, %v7642
        %7644 = vrot.lane.b32.xlu0 %v6092, 40
        %v7645 = vpop.permute.xlu0 %7644
        %v7648 = vsel %vm3155, %v7643, 0
        %7650 = vmatprep.subr.mxu0 0.0
        %7651 = vmatpush1.msra.mxu0 0.0
        %7652 = vmatprep.subr.mxu0 0.0
        %7653 = vmatpush1.msra.mxu0 0.0
        %7654 = vmatprep.subr.mxu0 0.0
        %7655 = vmatpush1.msra.mxu0 0.0
        %7656 = vmatprep.subr.mxu0 0.0
        %7657 = vmatpush1.msra.mxu0 0.0
        %7658 = vmatprep.subr.mxu0 0.0
        %7659 = vmatpush1.msra.mxu0 0.0
        %7660 = vmatprep.subr.mxu0 0.0
        %7661 = vmatpush1.msra.mxu0 0.0
        %7662 = vmatprep.subr.mxu0 0.0
        %7663 = vmatpush1.msra.mxu0 0.0
        %7664 = vmatprep.subr.mxu0 0.0
        %7665 = vmatpush1.msra.mxu0 0.0
        %7666 = vmatprep.subr.mxu0 0.0
        %7667 = vmatpush1.msra.mxu0 0.0
        %7668 = vmatprep.subr.mxu0 0.0
        %7669 = vmatpush1.msra.mxu0 0.0
        %7670 = vmatprep.subr.mxu0 0.0
        %7671 = vmatpush1.msra.mxu0 0.0
        %7672 = vmatprep.subr.mxu0 0.0
        %7673 = vmatpush1.msra.mxu0 0.0
        %7674 = vmatprep.subr.mxu0 0.0
        %7675 = vmatpush1.msra.mxu0 0.0
        %7676 = vmatprep.subr.mxu0 0.0
        %7677 = vmatpush1.msra.mxu0 0.0
        %7678 = vmatprep.subr.mxu0 0.0
        %7679 = vmatpush1.msra.mxu0 0.0
        %7680 = vmatprep.subr.mxu0 0.0
        %7681 = vmatpush1.msra.mxu0 %v7645
        %7682 = vmatprep.subr.mxu0 0.0
        %7683 = vmatpush2.msra.mxu0 0.0
        %7684 = vmatprep.subr.mxu0 0.0
        %7685 = vmatpush2.msra.mxu0 0.0
        %7686 = vmatprep.subr.mxu0 0.0
        %7687 = vmatpush2.msra.mxu0 0.0
        %7688 = vmatprep.subr.mxu0 0.0
        %7689 = vmatpush2.msra.mxu0 0.0
        %7690 = vmatprep.subr.mxu0 0.0
        %7691 = vmatpush2.msra.mxu0 0.0
        %7692 = vmatprep.subr.mxu0 0.0
        %7693 = vmatpush2.msra.mxu0 0.0
        %7694 = vmatprep.subr.mxu0 0.0
        %7695 = vmatpush2.msra.mxu0 0.0
        %7696 = vmatprep.subr.mxu0 0.0
        %7697 = vmatpush2.msra.mxu0 0.0
        %7698 = vmatprep.subr.mxu0 0.0
        %7699 = vmatpush2.msra.mxu0 0.0
        %7700 = vmatprep.subr.mxu0 0.0
        %7701 = vmatpush2.msra.mxu0 0.0
        %7702 = vmatprep.subr.mxu0 0.0
        %7703 = vmatpush2.msra.mxu0 0.0
        %7704 = vmatprep.subr.mxu0 0.0
        %7705 = vmatpush2.msra.mxu0 0.0
        %7706 = vmatprep.subr.mxu0 0.0
        %7707 = vmatpush2.msra.mxu0 0.0
        %7708 = vmatprep.subr.mxu0 0.0
        %7709 = vmatpush2.msra.mxu0 0.0
        %7710 = vmatprep.subr.mxu0 0.0
        %7711 = vmatpush2.msra.mxu0 0.0
        %7712 = vmatprep.subr.mxu0 0.0
        %7713 = vmatpush2.msra.mxu0 0.0
        %7714 = vmatprep.mubr.f32.mxu0 0.0
        %7715 = vmatmul.mubr.f32.gmra.mxu0 %v7648
        %v7716 = vpop.f32.mrf.mxu0
        %v7717 = vadd.f32 0.0, %v7716
        %v7718 = vpop.f32.mrf.mxu0
        %7719 = vdwg.mxu0
        %v7721 = vsel %vm4032, %v7717, 0
        %v7724 = vsel %vm4366, %v6098, 0
        %7726 = vmatprep.subr.mxu0 0.0
        %7727 = vmatpush1.msra.mxu0 0.0
        %7728 = vmatprep.subr.mxu0 0.0
        %7729 = vmatpush1.msra.mxu0 0.0
        %7730 = vmatprep.subr.mxu0 0.0
        %7731 = vmatpush1.msra.mxu0 0.0
        %7732 = vmatprep.subr.mxu0 0.0
        %7733 = vmatpush1.msra.mxu0 0.0
        %7734 = vmatprep.subr.mxu0 0.0
        %7735 = vmatpush1.msra.mxu0 0.0
        %7736 = vmatprep.subr.mxu0 0.0
        %7737 = vmatpush1.msra.mxu0 0.0
        %7738 = vmatprep.subr.mxu0 0.0
        %7739 = vmatpush1.msra.mxu0 0.0
        %7740 = vmatprep.subr.mxu0 0.0
        %7741 = vmatpush1.msra.mxu0 0.0
        %7742 = vmatprep.subr.mxu0 0.0
        %7743 = vmatpush1.msra.mxu0 0.0
        %7744 = vmatprep.subr.mxu0 0.0
        %7745 = vmatpush1.msra.mxu0 0.0
        %7746 = vmatprep.subr.mxu0 0.0
        %7747 = vmatpush1.msra.mxu0 0.0
        %7748 = vmatprep.subr.mxu0 0.0
        %7749 = vmatpush1.msra.mxu0 0.0
        %7750 = vmatprep.subr.mxu0 0.0
        %7751 = vmatpush1.msra.mxu0 0.0
        %7752 = vmatprep.subr.mxu0 0.0
        %7753 = vmatpush1.msra.mxu0 0.0
        %7754 = vmatprep.subr.mxu0 0.0
        %7755 = vmatpush1.msra.mxu0 0.0
        %7756 = vmatprep.subr.mxu0 0.0
        %7757 = vmatpush1.msra.mxu0 %v7724
        %7758 = vmatprep.subr.mxu0 0.0
        %7759 = vmatpush2.msra.mxu0 0.0
        %7760 = vmatprep.subr.mxu0 0.0
        %7761 = vmatpush2.msra.mxu0 0.0
        %7762 = vmatprep.subr.mxu0 0.0
        %7763 = vmatpush2.msra.mxu0 0.0
        %7764 = vmatprep.subr.mxu0 0.0
        %7765 = vmatpush2.msra.mxu0 0.0
        %7766 = vmatprep.subr.mxu0 0.0
        %7767 = vmatpush2.msra.mxu0 0.0
        %7768 = vmatprep.subr.mxu0 0.0
        %7769 = vmatpush2.msra.mxu0 0.0
        %7770 = vmatprep.subr.mxu0 0.0
        %7771 = vmatpush2.msra.mxu0 0.0
        %7772 = vmatprep.subr.mxu0 0.0
        %7773 = vmatpush2.msra.mxu0 0.0
        %7774 = vmatprep.subr.mxu0 0.0
        %7775 = vmatpush2.msra.mxu0 0.0
        %7776 = vmatprep.subr.mxu0 0.0
        %7777 = vmatpush2.msra.mxu0 0.0
        %7778 = vmatprep.subr.mxu0 0.0
        %7779 = vmatpush2.msra.mxu0 0.0
        %7780 = vmatprep.subr.mxu0 0.0
        %7781 = vmatpush2.msra.mxu0 0.0
        %7782 = vmatprep.subr.mxu0 0.0
        %7783 = vmatpush2.msra.mxu0 0.0
        %7784 = vmatprep.subr.mxu0 0.0
        %7785 = vmatpush2.msra.mxu0 0.0
        %7786 = vmatprep.subr.mxu0 0.0
        %7787 = vmatpush2.msra.mxu0 0.0
        %7788 = vmatprep.subr.mxu0 0.0
        %7789 = vmatpush2.msra.mxu0 0.0
        %7790 = vmatprep.mubr.f32.mxu0 0.0
        %7791 = vmatmul.mubr.f32.gmra.mxu0 %v7721
        %v7792 = vpop.f32.mrf.mxu0
        %v7793 = vadd.f32 0.0, %v7792
        %v7794 = vpop.f32.mrf.mxu0
        %7795 = vdwg.mxu0
        %v7796 = vadd.f32 %v7553, %v7793
        %7797 = vrot.lane.b32.xlu0 %v6092, 100
        %v7798 = vpop.permute.xlu0 %7797
        %7799 = vrot.lane.b32.xlu0 %v6092, 68
        %v7800 = vpop.permute.xlu0 %7799
        %v7801 = vsel %vm4032, %v7798, 0
        %v7803 = vsel %vm4032, %v7800, 0
        %7805 = vmatprep.subr.mxu0 0.0
        %7806 = vmatpush1.xpose.msra.mxu0 0.0
        %7807 = vmatprep.subr.mxu0 0.0
        %7808 = vmatpush1.xpose.msra.mxu0 0.0
        %7809 = vmatprep.subr.mxu0 0.0
        %7810 = vmatpush1.xpose.msra.mxu0 0.0
        %7811 = vmatprep.subr.mxu0 0.0
        %7812 = vmatpush1.xpose.msra.mxu0 0.0
        %7813 = vmatprep.subr.mxu0 0.0
        %7814 = vmatpush1.xpose.msra.mxu0 0.0
        %7815 = vmatprep.subr.mxu0 0.0
        %7816 = vmatpush1.xpose.msra.mxu0 0.0
        %7817 = vmatprep.subr.mxu0 0.0
        %7818 = vmatpush1.xpose.msra.mxu0 0.0
        %7819 = vmatprep.subr.mxu0 0.0
        %7820 = vmatpush1.xpose.msra.mxu0 0.0
        %7821 = vmatprep.subr.mxu0 0.0
        %7822 = vmatpush1.xpose.msra.mxu0 0.0
        %7823 = vmatprep.subr.mxu0 0.0
        %7824 = vmatpush1.xpose.msra.mxu0 0.0
        %7825 = vmatprep.subr.mxu0 0.0
        %7826 = vmatpush1.xpose.msra.mxu0 0.0
        %7827 = vmatprep.subr.mxu0 0.0
        %7828 = vmatpush1.xpose.msra.mxu0 0.0
        %7829 = vmatprep.subr.mxu0 0.0
        %7830 = vmatpush1.xpose.msra.mxu0 0.0
        %7831 = vmatprep.subr.mxu0 0.0
        %7832 = vmatpush1.xpose.msra.mxu0 0.0
        %7833 = vmatprep.subr.mxu0 0.0
        %7834 = vmatpush1.xpose.msra.mxu0 0.0
        %7835 = vmatprep.subr.mxu0 0.0
        %7836 = vmatpush1.xpose.msra.mxu0 %v7803
        %7837 = vmatprep.subr.mxu0 0.0
        %7838 = vmatpush2.xpose.msra.mxu0 0.0
        %7839 = vmatprep.subr.mxu0 0.0
        %7840 = vmatpush2.xpose.msra.mxu0 0.0
        %7841 = vmatprep.subr.mxu0 0.0
        %7842 = vmatpush2.xpose.msra.mxu0 0.0
        %7843 = vmatprep.subr.mxu0 0.0
        %7844 = vmatpush2.xpose.msra.mxu0 0.0
        %7845 = vmatprep.subr.mxu0 0.0
        %7846 = vmatpush2.xpose.msra.mxu0 0.0
        %7847 = vmatprep.subr.mxu0 0.0
        %7848 = vmatpush2.xpose.msra.mxu0 0.0
        %7849 = vmatprep.subr.mxu0 0.0
        %7850 = vmatpush2.xpose.msra.mxu0 0.0
        %7851 = vmatprep.subr.mxu0 0.0
        %7852 = vmatpush2.xpose.msra.mxu0 0.0
        %7853 = vmatprep.subr.mxu0 0.0
        %7854 = vmatpush2.xpose.msra.mxu0 0.0
        %7855 = vmatprep.subr.mxu0 0.0
        %7856 = vmatpush2.xpose.msra.mxu0 0.0
        %7857 = vmatprep.subr.mxu0 0.0
        %7858 = vmatpush2.xpose.msra.mxu0 0.0
        %7859 = vmatprep.subr.mxu0 0.0
        %7860 = vmatpush2.xpose.msra.mxu0 0.0
        %7861 = vmatprep.subr.mxu0 0.0
        %7862 = vmatpush2.xpose.msra.mxu0 0.0
        %7863 = vmatprep.subr.mxu0 0.0
        %7864 = vmatpush2.xpose.msra.mxu0 0.0
        %7865 = vmatprep.subr.mxu0 0.0
        %7866 = vmatpush2.xpose.msra.mxu0 0.0
        %7867 = vmatprep.subr.mxu0 0.0
        %7868 = vmatpush2.xpose.msra.mxu0 0.0
        %7869 = vmatprep.mubr.f32.mxu0 0.0
        %7870 = vmatmul.mubr.f32.gmra.mxu0 %v7801
        %v7871 = vpop.f32.mrf.mxu0
        %v7872 = vadd.f32 0.0, %v7871
        %v7873 = vpop.f32.mrf.mxu0
        %7874 = vdwg.mxu0
        %v7875 = vmul.f32 %v7872, 0.03608439
        %v7876 = vsel %vm3155, %v7875, -inf
        %7877 = vmax.xlane.f32.xlu0 %v7876
        %v7878 = vpop.xlane.xlu0 %7877
        %v7879 = vsub.f32 %v7875, %v7878
        %v7880 = vmul.f32 %v7879, 1.442695
        %v7881 = vpow.pop %v7880
        %v7882 = vsel %vm3155, %v7881, 0.0
        %7883 = vadd.xlane.f32.xlu0 %v7882
        %v7884 = vpop.xlane.xlu0 %7883
        %v7885 = vrcp.pop %v7884
        %v7886 = vmul.f32 %v7881, %v7885
        %7887 = vrot.lane.b32.xlu0 %v6092, 36
        %v7888 = vpop.permute.xlu0 %7887
        %v7891 = vsel %vm3155, %v7886, 0
        %7893 = vmatprep.subr.mxu0 0.0
        %7894 = vmatpush1.msra.mxu0 0.0
        %7895 = vmatprep.subr.mxu0 0.0
        %7896 = vmatpush1.msra.mxu0 0.0
        %7897 = vmatprep.subr.mxu0 0.0
        %7898 = vmatpush1.msra.mxu0 0.0
        %7899 = vmatprep.subr.mxu0 0.0
        %7900 = vmatpush1.msra.mxu0 0.0
        %7901 = vmatprep.subr.mxu0 0.0
        %7902 = vmatpush1.msra.mxu0 0.0
        %7903 = vmatprep.subr.mxu0 0.0
        %7904 = vmatpush1.msra.mxu0 0.0
        %7905 = vmatprep.subr.mxu0 0.0
        %7906 = vmatpush1.msra.mxu0 0.0
        %7907 = vmatprep.subr.mxu0 0.0
        %7908 = vmatpush1.msra.mxu0 0.0
        %7909 = vmatprep.subr.mxu0 0.0
        %7910 = vmatpush1.msra.mxu0 0.0
        %7911 = vmatprep.subr.mxu0 0.0
        %7912 = vmatpush1.msra.mxu0 0.0
        %7913 = vmatprep.subr.mxu0 0.0
        %7914 = vmatpush1.msra.mxu0 0.0
        %7915 = vmatprep.subr.mxu0 0.0
        %7916 = vmatpush1.msra.mxu0 0.0
        %7917 = vmatprep.subr.mxu0 0.0
        %7918 = vmatpush1.msra.mxu0 0.0
        %7919 = vmatprep.subr.mxu0 0.0
        %7920 = vmatpush1.msra.mxu0 0.0
        %7921 = vmatprep.subr.mxu0 0.0
        %7922 = vmatpush1.msra.mxu0 0.0
        %7923 = vmatprep.subr.mxu0 0.0
        %7924 = vmatpush1.msra.mxu0 %v7888
        %7925 = vmatprep.subr.mxu0 0.0
        %7926 = vmatpush2.msra.mxu0 0.0
        %7927 = vmatprep.subr.mxu0 0.0
        %7928 = vmatpush2.msra.mxu0 0.0
        %7929 = vmatprep.subr.mxu0 0.0
        %7930 = vmatpush2.msra.mxu0 0.0
        %7931 = vmatprep.subr.mxu0 0.0
        %7932 = vmatpush2.msra.mxu0 0.0
        %7933 = vmatprep.subr.mxu0 0.0
        %7934 = vmatpush2.msra.mxu0 0.0
        %7935 = vmatprep.subr.mxu0 0.0
        %7936 = vmatpush2.msra.mxu0 0.0
        %7937 = vmatprep.subr.mxu0 0.0
        %7938 = vmatpush2.msra.mxu0 0.0
        %7939 = vmatprep.subr.mxu0 0.0
        %7940 = vmatpush2.msra.mxu0 0.0
        %7941 = vmatprep.subr.mxu0 0.0
        %7942 = vmatpush2.msra.mxu0 0.0
        %7943 = vmatprep.subr.mxu0 0.0
        %7944 = vmatpush2.msra.mxu0 0.0
        %7945 = vmatprep.subr.mxu0 0.0
        %7946 = vmatpush2.msra.mxu0 0.0
        %7947 = vmatprep.subr.mxu0 0.0
        %7948 = vmatpush2.msra.mxu0 0.0
        %7949 = vmatprep.subr.mxu0 0.0
        %7950 = vmatpush2.msra.mxu0 0.0
        %7951 = vmatprep.subr.mxu0 0.0
        %7952 = vmatpush2.msra.mxu0 0.0
        %7953 = vmatprep.subr.mxu0 0.0
        %7954 = vmatpush2.msra.mxu0 0.0
        %7955 = vmatprep.subr.mxu0 0.0
        %7956 = vmatpush2.msra.mxu0 0.0
        %7957 = vmatprep.mubr.f32.mxu0 0.0
        %7958 = vmatmul.mubr.f32.gmra.mxu0 %v7891
        %v7959 = vpop.f32.mrf.mxu0
        %v7960 = vadd.f32 0.0, %v7959
        %v7961 = vpop.f32.mrf.mxu0
        %7962 = vdwg.mxu0
        %v7963 = vrot.slane %v6098, 4
        %v7965 = vsel %vm4032, %v7960, 0
        %v7967 = vsel %vm4366, %v7963, 0
        %7969 = vmatprep.subr.mxu0 0.0
        %7970 = vmatpush1.msra.mxu0 0.0
        %7971 = vmatprep.subr.mxu0 0.0
        %7972 = vmatpush1.msra.mxu0 0.0
        %7973 = vmatprep.subr.mxu0 0.0
        %7974 = vmatpush1.msra.mxu0 0.0
        %7975 = vmatprep.subr.mxu0 0.0
        %7976 = vmatpush1.msra.mxu0 0.0
        %7977 = vmatprep.subr.mxu0 0.0
        %7978 = vmatpush1.msra.mxu0 0.0
        %7979 = vmatprep.subr.mxu0 0.0
        %7980 = vmatpush1.msra.mxu0 0.0
        %7981 = vmatprep.subr.mxu0 0.0
        %7982 = vmatpush1.msra.mxu0 0.0
        %7983 = vmatprep.subr.mxu0 0.0
        %7984 = vmatpush1.msra.mxu0 0.0
        %7985 = vmatprep.subr.mxu0 0.0
        %7986 = vmatpush1.msra.mxu0 0.0
        %7987 = vmatprep.subr.mxu0 0.0
        %7988 = vmatpush1.msra.mxu0 0.0
        %7989 = vmatprep.subr.mxu0 0.0
        %7990 = vmatpush1.msra.mxu0 0.0
        %7991 = vmatprep.subr.mxu0 0.0
        %7992 = vmatpush1.msra.mxu0 0.0
        %7993 = vmatprep.subr.mxu0 0.0
        %7994 = vmatpush1.msra.mxu0 0.0
        %7995 = vmatprep.subr.mxu0 0.0
        %7996 = vmatpush1.msra.mxu0 0.0
        %7997 = vmatprep.subr.mxu0 0.0
        %7998 = vmatpush1.msra.mxu0 0.0
        %7999 = vmatprep.subr.mxu0 0.0
        %8000 = vmatpush1.msra.mxu0 %v7967
        %8001 = vmatprep.subr.mxu0 0.0
        %8002 = vmatpush2.msra.mxu0 0.0
        %8003 = vmatprep.subr.mxu0 0.0
        %8004 = vmatpush2.msra.mxu0 0.0
        %8005 = vmatprep.subr.mxu0 0.0
        %8006 = vmatpush2.msra.mxu0 0.0
        %8007 = vmatprep.subr.mxu0 0.0
        %8008 = vmatpush2.msra.mxu0 0.0
        %8009 = vmatprep.subr.mxu0 0.0
        %8010 = vmatpush2.msra.mxu0 0.0
        %8011 = vmatprep.subr.mxu0 0.0
        %8012 = vmatpush2.msra.mxu0 0.0
        %8013 = vmatprep.subr.mxu0 0.0
        %8014 = vmatpush2.msra.mxu0 0.0
        %8015 = vmatprep.subr.mxu0 0.0
        %8016 = vmatpush2.msra.mxu0 0.0
        %8017 = vmatprep.subr.mxu0 0.0
        %8018 = vmatpush2.msra.mxu0 0.0
        %8019 = vmatprep.subr.mxu0 0.0
        %8020 = vmatpush2.msra.mxu0 0.0
        %8021 = vmatprep.subr.mxu0 0.0
        %8022 = vmatpush2.msra.mxu0 0.0
        %8023 = vmatprep.subr.mxu0 0.0
        %8024 = vmatpush2.msra.mxu0 0.0
        %8025 = vmatprep.subr.mxu0 0.0
        %8026 = vmatpush2.msra.mxu0 0.0
        %8027 = vmatprep.subr.mxu0 0.0
        %8028 = vmatpush2.msra.mxu0 0.0
        %8029 = vmatprep.subr.mxu0 0.0
        %8030 = vmatpush2.msra.mxu0 0.0
        %8031 = vmatprep.subr.mxu0 0.0
        %8032 = vmatpush2.msra.mxu0 0.0
        %8033 = vmatprep.mubr.f32.mxu0 0.0
        %8034 = vmatmul.mubr.f32.gmra.mxu0 %v7965
        %v8035 = vpop.f32.mrf.mxu0
        %v8036 = vadd.f32 0.0, %v8035
        %v8037 = vpop.f32.mrf.mxu0
        %8038 = vdwg.mxu0
        %v8039 = vadd.f32 %v7796, %v8036
        %v8040 = vadd.f32 %v6010, %v8039
        %v8041 = vld [vmem:[%s22] sm:$0x1]
        %v8043 = vlaneseq
        %v8044 = vshrl.u32 %v8043, 7
        %v8045 = vsub.s32 0, %v8044
        %v8046 = vrot.slane %v8041, %v8045
        %v8048 = vadd.f32 %v8040, %v8046
        %v8049 = vsel %vm1015, %v8048, 0.0
        %8050 = vadd.xlane.f32.xlu0 %v8049
        %v8051 = vpop.xlane.xlu0 %8050
        %v8052 = vmul.f32 %v8051, %v5984
        %v8053 = vsub.f32 %v8048, %v8052
        %v8054 = vmul.f32 %v8053, %v8053
        %v8055 = vsel %vm1015, %v8054, 0.0
        %8056 = vadd.xlane.f32.xlu0 %v8055
        %v8057 = vpop.xlane.xlu0 %8056
        %v8058 = vmul.f32 %v8057, %v5984
        %v8059 = vadd.f32 %v8058, 1e-05
        %v8060 = vrsqrt.pop %v8059
        %v8061 = vmul.f32 %v8053, %v8060
        %v8062 = vld [vmem:[%s23] sm:$0x1]
        %v8064 = vlaneseq
        %v8065 = vshrl.u32 %v8064, 7
        %v8066 = vsub.s32 0, %v8065
        %v8067 = vrot.slane %v8062, %v8066
        %v8069 = vmul.f32 %v8061, %v8067
        %v8070 = vld [vmem:[%s24] sm:$0x1]
        %v8072 = vlaneseq
        %v8073 = vshrl.u32 %v8072, 7
        %v8074 = vsub.s32 0, %v8073
        %v8075 = vrot.slane %v8070, %v8074
        %v8077 = vadd.f32 %v8069, %v8075
        %v8078 = vld [vmem:[#allocation22] sm:$0xff]
        %v8079 = vld [vmem:[#allocation22 + $0x8] sm:$0xff]
        %v8080 = vld [vmem:[#allocation22 + $0x10] sm:$0xff]
        %v8081 = vld [vmem:[#allocation22 + $0x18] sm:$0xff]
        %v8082 = vld [vmem:[%s26] sm:$0x1]
        %v8084 = vlaneseq
        %v8085 = vshrl.u32 %v8084, 7
        %v8086 = vsub.s32 0, %v8085
        %v8087 = vrot.slane %v8082, %v8086
        %v8090 = vsel %vm1015, %v8077, 0
        %8092 = vmatprep.subr.mxu0 0.0
        %8093 = vmatpush1.msra.mxu0 0.0
        %8094 = vmatprep.subr.mxu0 0.0
        %8095 = vmatpush1.msra.mxu0 0.0
        %8096 = vmatprep.subr.mxu0 0.0
        %8097 = vmatpush1.msra.mxu0 0.0
        %8098 = vmatprep.subr.mxu0 0.0
        %8099 = vmatpush1.msra.mxu0 0.0
        %8100 = vmatprep.subr.mxu0 0.0
        %8101 = vmatpush1.msra.mxu0 0.0
        %8102 = vmatprep.subr.mxu0 0.0
        %8103 = vmatpush1.msra.mxu0 0.0
        %8104 = vmatprep.subr.mxu0 0.0
        %8105 = vmatpush1.msra.mxu0 0.0
        %8106 = vmatprep.subr.mxu0 0.0
        %8107 = vmatpush1.msra.mxu0 0.0
        %8108 = vmatprep.subr.mxu0 0.0
        %8109 = vmatpush1.msra.mxu0 0.0
        %8110 = vmatprep.subr.mxu0 0.0
        %8111 = vmatpush1.msra.mxu0 0.0
        %8112 = vmatprep.subr.mxu0 0.0
        %8113 = vmatpush1.msra.mxu0 0.0
        %8114 = vmatprep.subr.mxu0 0.0
        %8115 = vmatpush1.msra.mxu0 0.0
        %8116 = vmatprep.subr.mxu0 0.0
        %8117 = vmatpush1.msra.mxu0 %v8081
        %8118 = vmatprep.subr.mxu0 0.0
        %8119 = vmatpush1.msra.mxu0 %v8080
        %8120 = vmatprep.subr.mxu0 0.0
        %8121 = vmatpush1.msra.mxu0 %v8079
        %8122 = vmatprep.subr.mxu0 0.0
        %8123 = vmatpush1.msra.mxu0 %v8078
        %8124 = vmatprep.subr.mxu0 0.0
        %8125 = vmatpush2.msra.mxu0 0.0
        %8126 = vmatprep.subr.mxu0 0.0
        %8127 = vmatpush2.msra.mxu0 0.0
        %8128 = vmatprep.subr.mxu0 0.0
        %8129 = vmatpush2.msra.mxu0 0.0
        %8130 = vmatprep.subr.mxu0 0.0
        %8131 = vmatpush2.msra.mxu0 0.0
        %8132 = vmatprep.subr.mxu0 0.0
        %8133 = vmatpush2.msra.mxu0 0.0
        %8134 = vmatprep.subr.mxu0 0.0
        %8135 = vmatpush2.msra.mxu0 0.0
        %8136 = vmatprep.subr.mxu0 0.0
        %8137 = vmatpush2.msra.mxu0 0.0
        %8138 = vmatprep.subr.mxu0 0.0
        %8139 = vmatpush2.msra.mxu0 0.0
        %8140 = vmatprep.subr.mxu0 0.0
        %8141 = vmatpush2.msra.mxu0 0.0
        %8142 = vmatprep.subr.mxu0 0.0
        %8143 = vmatpush2.msra.mxu0 0.0
        %8144 = vmatprep.subr.mxu0 0.0
        %8145 = vmatpush2.msra.mxu0 0.0
        %8146 = vmatprep.subr.mxu0 0.0
        %8147 = vmatpush2.msra.mxu0 0.0
        %8148 = vmatprep.subr.mxu0 0.0
        %8149 = vmatpush2.msra.mxu0 0.0
        %8150 = vmatprep.subr.mxu0 0.0
        %8151 = vmatpush2.msra.mxu0 0.0
        %8152 = vmatprep.subr.mxu0 0.0
        %8153 = vmatpush2.msra.mxu0 0.0
        %8154 = vmatprep.subr.mxu0 0.0
        %8155 = vmatpush2.msra.mxu0 0.0
        %8156 = vmatprep.mubr.f32.mxu0 0.0
        %8157 = vmatmul.mubr.f32.gmra.mxu0 %v8090
        %v8158 = vpop.f32.mrf.mxu0
        %v8159 = vadd.f32 %v8087, %v8158
        %v8160 = vpop.f32.mrf.mxu0
        %8161 = vdwg.mxu0
        %v8162 = vmul.f32 %v3142, %v1088
        %8164 = vrot.lane.b32.xlu0 %v1088, 120
        %v8165 = vpop.permute.xlu0 %8164
        %v8167 = vmul.f32 %v4023, %v8165
        %v8168 = vadd.f32 %v8162, %v8167
        %8169 = vrot.lane.b32.xlu0 %v1088, 112
        %v8170 = vpop.permute.xlu0 %8169
        %v8172 = vmul.f32 %v8159, %v8170
        %v8173 = vadd.f32 %v8168, %v8172
        %8174 = vst.msk [vmem:[%s993] sm:$0xff] %vm3155, %v8173
        %s8175 = sand.u32 %s630, 1
        %s8176 = scalar_lea.sflag [#allocation6], %s8175
        %s8177 = sand.u32 %s630, 1
        %s8178 = smul.addr %s8177, 8
        %s8179 = scalar_lea.vmem [#allocation24], %s8178
        // Predicated region
        $region177: #{_lambda_.1} parent=127 // pred_check
          %p8180 = pneg %p640
        $region178: #{_lambda_.1} parent=127 // pred_check_branch
          %8182 = sbr.rel (%p8180) target = $region180
        $region179: #{_lambda_.1} parent=127 // pred_region
          %s8184 = ssub.s32 128, 128
          %8185 = vsyncadd %s8176, %s8184
          %s8186 = smul.addr %s50, 128
          %s8187 = scalar_lea.hbm %s27, %s8186
          %s8189 = sshll.u32 %s8179, 4
          %s8190 = int_to_ptr.vmem [resolvable:$true] %s8189
          %8192 = dma.vmem_to_hbm [thread:$0]  %s8190, 128, %s8187, %s8176
        $region180: #{_lambda_.1} parent=127 // pred_fallthru
          _
      $region128: #{_lambda_.1} parent=5 // pred_fallthru
        _
      %p8193 = scmp.le.s32.totalorder 2, %s45
      // Predicated region
      $region181: #{_lambda_.1} parent=5 // pred_check
        %p8194 = pneg %p8193
      $region182: #{_lambda_.1} parent=5 // pred_check_branch
        %8196 = sbr.rel (%p8194) target = $region184
      $region183: #{_lambda_.1} parent=5 // pred_region
        %s8197 = ssub.s32 %s45, 2
        // Predicated region
        $region185: #{_lambda_.1} parent=183 // pred_check
          %p8198 = pneg %p646
        $region186: #{_lambda_.1} parent=183 // pred_check_branch
          %8200 = sbr.rel (%p8198) target = $region188
        $region187: #{_lambda_.1} parent=183 // pred_region
          %s8201 = sand.u32 %s631, 1
          %s8202 = scalar_lea.sflag [#allocation6], %s8201
          %s8203 = sand.u32 %s631, 1
          %s8204 = smul.addr %s8203, 8
          %s8205 = scalar_lea.vmem [#allocation24], %s8204
          %8206 = dma.done %s8202, 128
        $region188: #{_lambda_.1} parent=183 // pred_fallthru
          _
      $region184: #{_lambda_.1} parent=5 // pred_fallthru
        _
    $region6: #{_lambda_.1} parent=1 // loop_footer
      %s49 = sadd.s32 1, %s45
    $region7: #{_lambda_.1} parent=1 // loop_footer_branch
      %44 = sbr.rel target = $region3
    $region8: #{_lambda_.1} parent=1 // loop_exit
      _
    %8207 = vsyncpa [#allocation5], 1
    %s8208 = scalar_lea.sflag [#allocation5], 1
    %8209 = vsyncpa %s8208, 1
    %8210 = vsyncpa [#allocation8], 1
    %8211 = vsyncpa [#allocation11], 1
    %8212 = vsyncpa [#allocation14], 1
    %8213 = vsyncpa [#allocation17], 1
    %8214 = vsyncpa [#allocation20], 1
    %8215 = vsyncpa [#allocation23], 1
    %8216 = vsyncpa [#allocation6], 1
    %s8217 = scalar_lea.sflag [#allocation6], 1
    %8218 = vsyncpa %s8217, 1

</llo_original>
